<compile_context>
chip_gen: v6e
topology: v6e:2x2x1
jax: 0.10.0
libtpu: 0.0.40
codegen_flags: <defaults>
</compile_context>

<pallas_src>
import functools
import math

import numpy as np
import jax
import jax.numpy as jnp
from jax import lax
from jax.experimental import pallas as pl
from jax.experimental.pallas import tpu as pltpu

# ----------------------------- configuration -----------------------------
NUM_LAYERS = 2          # small config (module default is 4)
NUM_HEADS  = 8
HIDDEN     = 64         # head_dim = 8
HEAD_DIM   = HIDDEN // NUM_HEADS
FF         = 128
VOCAB      = 16
VOCAB_PAD  = 128        # lane-dense logits store; sliced back to VOCAB outside
XNORM_PAD  = 128        # lane-dense x_norm store; sliced back to HIDDEN outside
MAX_LEN    = 64
LN_EPS     = 1e-6
NEG_INF    = -1e30


# ----------------------------- in-kernel helpers -----------------------------
def _layer_norm(v, g, b):
    """PyTorch nn.LayerNorm semantics (biased variance, eps inside sqrt)."""
    mu = jnp.mean(v, axis=-1, keepdims=True)
    var = jnp.mean((v - mu) ** 2, axis=-1, keepdims=True)
    return (v - mu) * lax.rsqrt(var + LN_EPS) * g + b


def _attention(q2, k2, v2, bias, w_o, b_o, bb, tq, tk):
    """Score / softmax / context core + fused output projection.

    q2 : (bb*tq, H) already projected, biased and scaled
    k2 : (bb*tk, H), v2 : (bb*tk, H) already projected + biased
    bias : additive mask broadcastable to (1, bb, tq, tk)
    w_o : (H, H) bf16, b_o : (1, H) f32
    """
    def split_heads(x2, tx):
        # (bb*tx, H) -> (NH*bb, tx, hd), merged batch ordered head-major.
        parts = [x2[:, h * HEAD_DIM:(h + 1) * HEAD_DIM].reshape(bb, tx, HEAD_DIM)
                 for h in range(NUM_HEADS)]
        return jnp.concatenate(parts, axis=0)

    q3 = split_heads(q2, tq)                                   # (NH*bb, tq, hd)
    k3 = split_heads(k2, tk)                                   # (NH*bb, tk, hd)
    v3 = split_heads(v2, tk)                                   # (NH*bb, tk, hd)

    scores = jnp.einsum("bqd,bkd->bqk", q3, k3,
                        preferred_element_type=jnp.float32)    # (NH*bb, tq, tk)
    scores = scores.reshape(NUM_HEADS, bb, tq, tk) + bias[None]

    m = jnp.max(scores, axis=-1, keepdims=True)
    p = jnp.exp(scores - m)
    attn = p * pl.reciprocal(jnp.sum(p, axis=-1, keepdims=True), approx=True)
    attn3 = attn.reshape(NUM_HEADS * bb, tq, tk)

    ctx = jnp.einsum("bqk,bkd->bqd", attn3, v3,
                     preferred_element_type=jnp.float32)       # (NH*bb, tq, hd)
    ctx = ctx.reshape(NUM_HEADS, bb * tq, HEAD_DIM)
    ctx2 = jnp.concatenate([ctx[h] for h in range(NUM_HEADS)], axis=-1)  # (bb*tq, H)

    # output projection: head-sum folded into the MXU contraction
    return jnp.dot(ctx2.astype(jnp.bfloat16), w_o,
                   preferred_element_type=jnp.float32) + b_o


# ----------------------------- fused kernel -----------------------------
def fused_decoder_kernel(emb_ref, pe_ref, mem_ref, tmask_ref, smask_ref,
                         ln_g_ref, ln_b_ref,
                         w_qkv_ref, b_qkv_ref, w_qx_ref, b_qx_ref,
                         w_kvx_ref, b_kvx_ref, w_o_ref, b_o_ref,
                         ff_w1_ref, ff_b1_ref, ff_w2_ref, ff_b2_ref,
                         out_g_ref, out_b_ref, w_out_ref,
                         logits_ref, xnorm_ref):
    bb, t, h = emb_ref.shape
    s = mem_ref.shape[1]
    rows = bb * t
    scale = 1.0 / math.sqrt(HEAD_DIM)
    bf16 = jnp.bfloat16

    # positional encoding add (emb_dropout = identity), flattened row slab
    x = (emb_ref[...] + pe_ref[...][None]).reshape(rows, h)        # (rows, H) f32
    mem2 = mem_ref[...].reshape(bb * s, h)                          # (bb*S, H)

    # additive masks built in-kernel (no (B,T,T) HBM traffic)
    row_i = lax.broadcasted_iota(jnp.int32, (t, t), 0)
    col_i = lax.broadcasted_iota(jnp.int32, (t, t), 1)
    causal = (col_i <= row_i)[None]                                 # (1, T, T)
    tkeep = tmask_ref[...] > 0.5                                    # (bb, 1, T)
    tbias = jnp.where(jnp.logical_and(causal, tkeep),
                      jnp.float32(0.0), jnp.float32(NEG_INF))       # (bb, T, T)
    sbias = jnp.where(smask_ref[...] > 0.5,
                      jnp.float32(0.0), jnp.float32(NEG_INF))       # (bb, 1, S)

    for l in range(NUM_LAYERS):          # static unroll; weights VMEM-resident
        # ---- masked target self-attention (pre-LN) + residual ----
        xn = _layer_norm(x, ln_g_ref[3 * l + 0], ln_b_ref[3 * l + 0])
        qkv = jnp.dot(xn.astype(bf16), w_qkv_ref[l],
                      preferred_element_type=jnp.float32) + b_qkv_ref[l]  # (rows, 3H)
        q2 = qkv[:, 0 * HIDDEN:1 * HIDDEN] * scale       # scale after bias (signjoey)
        k2 = qkv[:, 1 * HIDDEN:2 * HIDDEN]
        v2 = qkv[:, 2 * HIDDEN:3 * HIDDEN]
        h1 = _attention(q2, k2, v2, tbias,
                        w_o_ref[2 * l + 0], b_o_ref[2 * l + 0], bb, t, t) + x

        # ---- source-target attention (q = LN(h1), k = v = memory) ----
        h1n = _layer_norm(h1, ln_g_ref[3 * l + 1], ln_b_ref[3 * l + 1])
        qx = (jnp.dot(h1n.astype(bf16), w_qx_ref[l],
                      preferred_element_type=jnp.float32) + b_qx_ref[l]) * scale
        kvx = jnp.dot(mem2.astype(bf16), w_kvx_ref[l],
                      preferred_element_type=jnp.float32) + b_kvx_ref[l]  # (bb*S, 2H)
        kx = kvx[:, 0 * HIDDEN:1 * HIDDEN]
        vx = kvx[:, 1 * HIDDEN:2 * HIDDEN]
        h2 = _attention(qx, kx, vx, sbias,
                        w_o_ref[2 * l + 1], b_o_ref[2 * l + 1], bb, t, s)

        # ---- position-wise feed-forward (pre-LN, residual) ----
        ff_in = h2 + h1
        ffn = _layer_norm(ff_in, ln_g_ref[3 * l + 2], ln_b_ref[3 * l + 2])
        hid = jnp.maximum(
            jnp.dot(ffn.astype(bf16), ff_w1_ref[l],
                    preferred_element_type=jnp.float32) + ff_b1_ref[l], 0.0)
        x = (jnp.dot(hid.astype(bf16), ff_w2_ref[l],
                     preferred_element_type=jnp.float32) + ff_b2_ref[l]) + ff_in

    # ---- final LayerNorm + lane-dense (128-wide) output stores ----
    xn = _layer_norm(x, out_g_ref[...], out_b_ref[...])             # (rows, H) f32
    logits = jnp.dot(xn.astype(bf16), w_out_ref[...],
                     preferred_element_type=jnp.float32)            # (rows, VOCAB_PAD)
    logits_ref[...] = logits.reshape(bb, t, VOCAB_PAD).astype(logits_ref.dtype)

    xn_pad = jnp.concatenate(
        [xn, jnp.zeros((rows, XNORM_PAD - HIDDEN), jnp.float32)], axis=-1)
    xnorm_ref[...] = xn_pad.reshape(bb, t, XNORM_PAD).astype(xnorm_ref.dtype)


# ----------------------------- pallas_call wrapper -----------------------------
def _const_spec(shape):
    zeros = (0,) * len(shape)
    return pl.BlockSpec(shape, lambda g, zeros=zeros: zeros)


def _pick_block_batch(b, t):
    """Rows per grid step ~<=256 (fills MXU M), but keep >=2 steps when B>=2 (v7x)."""
    divs = [d for d in range(1, b + 1) if b % d == 0]
    cand = [d for d in divs if b // d >= 2] or divs
    cand = [d for d in cand if d * t <= 256] or [min(cand)]
    return max(cand)


def transformer_decoder_forward(packed, trg_embed, encoder_output, src_mask, trg_mask):
    """Matches TransformerDecoder.forward: returns (output, x, None, None)."""
    B, T, H = trg_embed.shape
    S = encoder_output.shape[1]
    Bb = _pick_block_batch(B, T)
    grid = (B // Bb,)

    tmask_f = trg_mask.astype(jnp.float32)   # (B, 1, T)
    smask_f = src_mask.astype(jnp.float32)   # (B, 1, S)

    weight_names = ("ln_g", "ln_b", "w_qkv_self", "b_qkv_self", "w_q_x", "b_q_x",
                    "w_kv_x", "b_kv_x", "w_o", "b_o",
                    "ff_w1", "ff_b1", "ff_w2", "ff_b2",
                    "out_ln_g", "out_ln_b", "w_out_p")
    weights = [packed[n] for n in weight_names]

    grid_spec = pltpu.PrefetchScalarGridSpec(
        num_scalar_prefetch=0, grid=grid,
        in_specs=[pl.BlockSpec((Bb, T, H), lambda g: (g, 0, 0)),
                  pl.BlockSpec((T, H), lambda g: (0, 0)),
                  pl.BlockSpec((Bb, S, H), lambda g: (g, 0, 0)),
                  pl.BlockSpec((Bb, 1, T), lambda g: (g, 0, 0)),
                  pl.BlockSpec((Bb, 1, S), lambda g: (g, 0, 0))]
                 + [_const_spec(w.shape) for w in weights],
        out_specs=(pl.BlockSpec((Bb, T, VOCAB_PAD), lambda g: (g, 0, 0)),
                   pl.BlockSpec((Bb, T, XNORM_PAD), lambda g: (g, 0, 0))))

    logits_p, xnorm_p = pl.pallas_call(
        fused_decoder_kernel,
        out_shape=(jax.ShapeDtypeStruct((B, T, VOCAB_PAD), jnp.float32),
                   jax.ShapeDtypeStruct((B, T, XNORM_PAD), jnp.float32)),
        grid_spec=grid_spec,
        compiler_params=pltpu.CompilerParams(
            dimension_semantics=("parallel",)),     # both v7x TensorCores get work
    )(trg_embed, packed["pe"][:T], encoder_output, tmask_f, smask_f, *weights)

    return logits_p[:, :, :VOCAB], xnorm_p[:, :, :HIDDEN], None, None


# ----------------------------- parameters -----------------------------
def sinusoidal_pe(max_len, size):
    position = np.arange(max_len, dtype=np.float32)[:, None]
    div_term = np.exp(np.arange(0, size, 2, dtype=np.float32) * -(math.log(10000.0) / size))
    pe = np.zeros((max_len, size), np.float32)
    pe[:, 0::2] = np.sin(position * div_term)
    pe[:, 1::2] = np.cos(position * div_term)
    return jnp.asarray(pe)


def init_params(key):
    """Logical parameters: W stored (in, out) so y = x @ W + b matches nn.Linear."""
    def nrm(k, shape, scale=0.02):
        return scale * jax.random.normal(k, shape, jnp.float32)

    keys = iter(jax.random.split(key, 8 * NUM_LAYERS + 2))
    layers = []
    for _ in range(NUM_LAYERS):
        layers.append({
            "ln_g": jnp.ones((3, 1, HIDDEN), jnp.float32),   # [x_ln, dec_ln, ff_ln]
            "ln_b": jnp.zeros((3, 1, HIDDEN), jnp.float32),
            "sa_w": nrm(next(keys), (4, HIDDEN, HIDDEN)),    # self-attn [Wq,Wk,Wv,Wo]
            "sa_b": nrm(next(keys), (4, 1, HIDDEN)),
            "ca_w": nrm(next(keys), (4, HIDDEN, HIDDEN)),    # cross-attn [Wq,Wk,Wv,Wo]
            "ca_b": nrm(next(keys), (4, 1, HIDDEN)),
            "ff_w1": nrm(next(keys), (HIDDEN, FF)),
            "ff_b1": nrm(next(keys), (1, FF)),
            "ff_w2": nrm(next(keys), (FF, HIDDEN)),
            "ff_b2": nrm(next(keys), (1, HIDDEN)),
        })
    return {
        "layers": layers,
        "pe": sinusoidal_pe(MAX_LEN, HIDDEN),
        "out_ln_g": jnp.ones((1, HIDDEN), jnp.float32),
        "out_ln_b": jnp.zeros((1, HIDDEN), jnp.float32),
        "w_out": nrm(next(keys), (HIDDEN, VOCAB)),           # Linear(hidden, vocab, bias=False)
    }


def pack_params(params):
    """Pack logical weights into the fused-matmul layout (QKV fused, bf16 matmul weights)."""
    bf = jnp.bfloat16
    ln_g, ln_b = [], []
    w_qkv, b_qkv, w_qx, b_qx, w_kvx, b_kvx, w_o, b_o = [], [], [], [], [], [], [], []
    ff_w1, ff_b1, ff_w2, ff_b2 = [], [], [], []
    for lp in params["layers"]:
        for j in range(3):
            ln_g.append(lp["ln_g"][j]); ln_b.append(lp["ln_b"][j])
        sa_w, sa_b, ca_w, ca_b = lp["sa_w"], lp["sa_b"], lp["ca_w"], lp["ca_b"]
        # self-attention: one (H, 3H) QKV matrix, columns [q | k | v], head-major inside
        w_qkv.append(jnp.concatenate([sa_w[0], sa_w[1], sa_w[2]], axis=1))
        b_qkv.append(jnp.concatenate([sa_b[0], sa_b[1], sa_b[2]], axis=1))
        # cross-attention: separate Q (from decoder) and fused KV (from encoder memory)
        w_qx.append(ca_w[0]);  b_qx.append(ca_b[0])
        w_kvx.append(jnp.concatenate([ca_w[1], ca_w[2]], axis=1))
        b_kvx.append(jnp.concatenate([ca_b[1], ca_b[2]], axis=1))
        # output projections: slot 2l = self-attn, 2l+1 = cross-attn
        w_o.append(sa_w[3]); w_o.append(ca_w[3])
        b_o.append(sa_b[3]); b_o.append(ca_b[3])
        ff_w1.append(lp["ff_w1"]); ff_b1.append(lp["ff_b1"])
        ff_w2.append(lp["ff_w2"]); ff_b2.append(lp["ff_b2"])

    w_out_p = jnp.zeros((HIDDEN, VOCAB_PAD), jnp.float32).at[:, :VOCAB].set(params["w_out"])
    return {
        "pe": params["pe"],
        "ln_g": jnp.stack(ln_g),                   # (3L, 1, H)   f32
        "ln_b": jnp.stack(ln_b),                   # (3L, 1, H)   f32
        "w_qkv_self": jnp.stack(w_qkv).astype(bf), # (L, H, 3H)   bf16
        "b_qkv_self": jnp.stack(b_qkv),            # (L, 1, 3H)   f32
        "w_q_x": jnp.stack(w_qx).astype(bf),       # (L, H, H)    bf16
        "b_q_x": jnp.stack(b_qx),                  # (L, 1, H)    f32
        "w_kv_x": jnp.stack(w_kvx).astype(bf),     # (L, H, 2H)   bf16
        "b_kv_x": jnp.stack(b_kvx),                # (L, 1, 2H)   f32
        "w_o": jnp.stack(w_o).astype(bf),          # (2L, H, H)   bf16
        "b_o": jnp.stack(b_o),                     # (2L, 1, H)   f32
        "ff_w1": jnp.stack(ff_w1).astype(bf),      # (L, H, FF)   bf16
        "ff_b1": jnp.stack(ff_b1),                 # (L, 1, FF)   f32
        "ff_w2": jnp.stack(ff_w2).astype(bf),      # (L, FF, H)   bf16
        "ff_b2": jnp.stack(ff_b2),                 # (L, 1, H)    f32
        "out_ln_g": params["out_ln_g"],            # (1, H)       f32
        "out_ln_b": params["out_ln_b"],            # (1, H)       f32
        "w_out_p": w_out_p.astype(bf),             # (H, VOCAB_PAD) bf16, lane-dense
    }


# ----------------------------- main -----------------------------
if __name__ == "__main__":
    key = jax.random.PRNGKey(0)
    kp, ke, kt = jax.random.split(key, 3)

    B, T, S = 2, 8, 8
    params = init_params(kp)
    packed = pack_params(params)

    trg_embed = jax.random.normal(kt, (B, T, HIDDEN), jnp.float32)
    encoder_output = jax.random.normal(ke, (B, S, HIDDEN), jnp.float32)
    trg_mask = jnp.ones((B, 1, T), dtype=bool).at[1, 0, T - 1].set(False)
    src_mask = jnp.ones((B, 1, S), dtype=bool).at[0, 0, S - 1].set(False)

    fwd = jax.jit(functools.partial(transformer_decoder_forward, packed))
    logits, x_out, _, _ = fwd(trg_embed, encoder_output, src_mask, trg_mask)
    jax.block_until_ready((logits, x_out))

    assert logits.shape == (B, T, VOCAB)
    assert x_out.shape == (B, T, HIDDEN)
    assert bool(jnp.all(jnp.isfinite(logits))) and bool(jnp.all(jnp.isfinite(x_out)))
    print("KERNEL_OK")
</pallas_src>

<mosaic_0001>
module attributes {stable_mosaic.version = 11 : i64} {
  func.func @fused_decoder_kernel(%arg0: i32, %arg1: memref<1x8x64xf32, #tpu.memory_space<vmem>>, %arg2: memref<8x64xf32, #tpu.memory_space<vmem>>, %arg3: memref<1x8x64xf32, #tpu.memory_space<vmem>>, %arg4: memref<1x1x8xf32, #tpu.memory_space<vmem>>, %arg5: memref<1x1x8xf32, #tpu.memory_space<vmem>>, %arg6: memref<6x1x64xf32, #tpu.memory_space<vmem>>, %arg7: memref<6x1x64xf32, #tpu.memory_space<vmem>>, %arg8: memref<2x64x192xbf16, #tpu.memory_space<vmem>>, %arg9: memref<2x1x192xf32, #tpu.memory_space<vmem>>, %arg10: memref<2x64x64xbf16, #tpu.memory_space<vmem>>, %arg11: memref<2x1x64xf32, #tpu.memory_space<vmem>>, %arg12: memref<2x64x128xbf16, #tpu.memory_space<vmem>>, %arg13: memref<2x1x128xf32, #tpu.memory_space<vmem>>, %arg14: memref<4x64x64xbf16, #tpu.memory_space<vmem>>, %arg15: memref<4x1x64xf32, #tpu.memory_space<vmem>>, %arg16: memref<2x64x128xbf16, #tpu.memory_space<vmem>>, %arg17: memref<2x1x128xf32, #tpu.memory_space<vmem>>, %arg18: memref<2x128x64xbf16, #tpu.memory_space<vmem>>, %arg19: memref<2x1x64xf32, #tpu.memory_space<vmem>>, %arg20: memref<1x64xf32, #tpu.memory_space<vmem>>, %arg21: memref<1x64xf32, #tpu.memory_space<vmem>>, %arg22: memref<64x128xbf16, #tpu.memory_space<vmem>>, %arg23: memref<1x8x128xf32, #tpu.memory_space<vmem>>, %arg24: memref<1x8x128xf32, #tpu.memory_space<vmem>>) attributes {dimension_semantics = [#tpu.dimension_semantics<parallel>], iteration_bounds = array<i64: 2>, scalar_prefetch = 0 : i64, scratch_operands = 0 : i64, tpu.core_type = #tpu.core_type<tc>, window_params = [{transform_indices = @transform_0, window_bounds = array<i64: 1, 8, 64>}, {pipeline_mode = #tpu.pipeline_mode<synchronous>, transform_indices = @transform_1, window_bounds = array<i64: 8, 64>}, {transform_indices = @transform_2, window_bounds = array<i64: 1, 8, 64>}, {transform_indices = @transform_3, window_bounds = array<i64: 1, 1, 8>}, {transform_indices = @transform_4, window_bounds = array<i64: 1, 1, 8>}, {pipeline_mode = #tpu.pipeline_mode<synchronous>, transform_indices = @transform_5, window_bounds = array<i64: 6, 1, 64>}, {pipeline_mode = #tpu.pipeline_mode<synchronous>, transform_indices = @transform_6, window_bounds = array<i64: 6, 1, 64>}, {pipeline_mode = #tpu.pipeline_mode<synchronous>, transform_indices = @transform_7, window_bounds = array<i64: 2, 64, 192>}, {pipeline_mode = #tpu.pipeline_mode<synchronous>, transform_indices = @transform_8, window_bounds = array<i64: 2, 1, 192>}, {pipeline_mode = #tpu.pipeline_mode<synchronous>, transform_indices = @transform_9, window_bounds = array<i64: 2, 64, 64>}, {pipeline_mode = #tpu.pipeline_mode<synchronous>, transform_indices = @transform_10, window_bounds = array<i64: 2, 1, 64>}, {pipeline_mode = #tpu.pipeline_mode<synchronous>, transform_indices = @transform_11, window_bounds = array<i64: 2, 64, 128>}, {pipeline_mode = #tpu.pipeline_mode<synchronous>, transform_indices = @transform_12, window_bounds = array<i64: 2, 1, 128>}, {pipeline_mode = #tpu.pipeline_mode<synchronous>, transform_indices = @transform_13, window_bounds = array<i64: 4, 64, 64>}, {pipeline_mode = #tpu.pipeline_mode<synchronous>, transform_indices = @transform_14, window_bounds = array<i64: 4, 1, 64>}, {pipeline_mode = #tpu.pipeline_mode<synchronous>, transform_indices = @transform_15, window_bounds = array<i64: 2, 64, 128>}, {pipeline_mode = #tpu.pipeline_mode<synchronous>, transform_indices = @transform_16, window_bounds = array<i64: 2, 1, 128>}, {pipeline_mode = #tpu.pipeline_mode<synchronous>, transform_indices = @transform_17, window_bounds = array<i64: 2, 128, 64>}, {pipeline_mode = #tpu.pipeline_mode<synchronous>, transform_indices = @transform_18, window_bounds = array<i64: 2, 1, 64>}, {pipeline_mode = #tpu.pipeline_mode<synchronous>, transform_indices = @transform_19, window_bounds = array<i64: 1, 64>}, {pipeline_mode = #tpu.pipeline_mode<synchronous>, transform_indices = @transform_20, window_bounds = array<i64: 1, 64>}, {pipeline_mode = #tpu.pipeline_mode<synchronous>, transform_indices = @transform_21, window_bounds = array<i64: 64, 128>}, {transform_indices = @transform_22, window_bounds = array<i64: 1, 8, 128>}, {transform_indices = @transform_23, window_bounds = array<i64: 1, 8, 128>}]} {
    %c0 = arith.constant 0 : index
    %c0_0 = arith.constant 0 : index
    %c0_1 = arith.constant 0 : index
    %0 = vector.load %arg1[%c0, %c0_0, %c0_1] : memref<1x8x64xf32, #tpu.memory_space<vmem>>, vector<1x8x64xf32>
    %c0_2 = arith.constant 0 : index
    %c0_3 = arith.constant 0 : index
    %1 = vector.load %arg2[%c0_2, %c0_3] : memref<8x64xf32, #tpu.memory_space<vmem>>, vector<8x64xf32>
    %2 = vector.shape_cast %1 : vector<8x64xf32> to vector<1x8x64xf32>
    %3 = arith.addf %0, %2 : vector<1x8x64xf32>
    %4 = vector.shape_cast %3 : vector<1x8x64xf32> to vector<8x64xf32>
    %c0_4 = arith.constant 0 : index
    %c0_5 = arith.constant 0 : index
    %c0_6 = arith.constant 0 : index
    %5 = vector.load %arg3[%c0_4, %c0_5, %c0_6] : memref<1x8x64xf32, #tpu.memory_space<vmem>>, vector<1x8x64xf32>
    %6 = vector.shape_cast %5 : vector<1x8x64xf32> to vector<8x64xf32>
    %7 = tpu.iota {dimensions = array<i32: 0>} : vector<8x8xi32>
    %8 = tpu.iota {dimensions = array<i32: 1>} : vector<8x8xi32>
    %9 = arith.cmpi sle, %8, %7 : vector<8x8xi32>
    %10 = vector.shape_cast %9 : vector<8x8xi1> to vector<1x8x8xi1>
    %c0_7 = arith.constant 0 : index
    %c0_8 = arith.constant 0 : index
    %c0_9 = arith.constant 0 : index
    %11 = vector.load %arg4[%c0_7, %c0_8, %c0_9] : memref<1x1x8xf32, #tpu.memory_space<vmem>>, vector<1x1x8xf32>
    %cst = arith.constant 5.000000e-01 : f32
    %12 = vector.broadcast %cst : f32 to vector<1x1x8xf32>
    %13 = arith.cmpf ogt, %11, %12 : vector<1x1x8xf32>
    %14 = vector.broadcast %13 : vector<1x1x8xi1> to vector<1x8x8xi1>
    %15 = arith.andi %10, %14 : vector<1x8x8xi1>
    %cst_10 = arith.constant 0.000000e+00 : f32
    %cst_11 = arith.constant -1.000000e+30 : f32
    %16 = vector.broadcast %cst_10 : f32 to vector<1x8x8xf32>
    %17 = vector.broadcast %cst_11 : f32 to vector<1x8x8xf32>
    %18 = arith.select %15, %16, %17 : vector<1x8x8xi1>, vector<1x8x8xf32>
    %c0_12 = arith.constant 0 : index
    %c0_13 = arith.constant 0 : index
    %c0_14 = arith.constant 0 : index
    %19 = vector.load %arg5[%c0_12, %c0_13, %c0_14] : memref<1x1x8xf32, #tpu.memory_space<vmem>>, vector<1x1x8xf32>
    %cst_15 = arith.constant 5.000000e-01 : f32
    %20 = vector.broadcast %cst_15 : f32 to vector<1x1x8xf32>
    %21 = arith.cmpf ogt, %19, %20 : vector<1x1x8xf32>
    %cst_16 = arith.constant 0.000000e+00 : f32
    %cst_17 = arith.constant -1.000000e+30 : f32
    %22 = vector.broadcast %cst_16 : f32 to vector<1x1x8xf32>
    %23 = vector.broadcast %cst_17 : f32 to vector<1x1x8xf32>
    %24 = arith.select %21, %22, %23 : vector<1x1x8xi1>, vector<1x1x8xf32>
    %c0_18 = arith.constant 0 : index
    %c0_19 = arith.constant 0 : index
    %c0_20 = arith.constant 0 : index
    %25 = vector.load %arg6[%c0_18, %c0_19, %c0_20] : memref<6x1x64xf32, #tpu.memory_space<vmem>>, vector<1x1x64xf32>
    %26 = vector.shape_cast %25 : vector<1x1x64xf32> to vector<1x64xf32>
    %c0_21 = arith.constant 0 : index
    %c0_22 = arith.constant 0 : index
    %c0_23 = arith.constant 0 : index
    %27 = vector.load %arg7[%c0_21, %c0_22, %c0_23] : memref<6x1x64xf32, #tpu.memory_space<vmem>>, vector<1x1x64xf32>
    %28 = vector.shape_cast %27 : vector<1x1x64xf32> to vector<1x64xf32>
    %cst_24 = arith.constant dense<0.000000e+00> : vector<8xf32>
    %29 = vector.multi_reduction <add>, %4, %cst_24 [1] : vector<8x64xf32> to vector<8xf32>
    %30 = vector.shape_cast %29 : vector<8xf32> to vector<8x1xf32>
    %cst_25 = arith.constant 6.400000e+01 : f32
    %31 = vector.broadcast %cst_25 : f32 to vector<8x1xf32>
    %32 = arith.divf %30, %31 : vector<8x1xf32>
    %33 = vector.broadcast %32 : vector<8x1xf32> to vector<8x64xf32>
    %34 = arith.subf %4, %33 : vector<8x64xf32>
    %35 = arith.mulf %34, %34 : vector<8x64xf32>
    %cst_26 = arith.constant dense<0.000000e+00> : vector<8xf32>
    %36 = vector.multi_reduction <add>, %35, %cst_26 [1] : vector<8x64xf32> to vector<8xf32>
    %37 = vector.shape_cast %36 : vector<8xf32> to vector<8x1xf32>
    %cst_27 = arith.constant 6.400000e+01 : f32
    %38 = vector.broadcast %cst_27 : f32 to vector<8x1xf32>
    %39 = arith.divf %37, %38 : vector<8x1xf32>
    %40 = vector.broadcast %32 : vector<8x1xf32> to vector<8x64xf32>
    %41 = arith.subf %4, %40 : vector<8x64xf32>
    %cst_28 = arith.constant 9.99999997E-7 : f32
    %42 = vector.broadcast %cst_28 : f32 to vector<8x1xf32>
    %43 = arith.addf %39, %42 : vector<8x1xf32>
    %44 = math.rsqrt %43 : vector<8x1xf32>
    %45 = vector.broadcast %44 : vector<8x1xf32> to vector<8x64xf32>
    %46 = arith.mulf %41, %45 : vector<8x64xf32>
    %47 = vector.broadcast %26 : vector<1x64xf32> to vector<8x64xf32>
    %48 = arith.mulf %46, %47 : vector<8x64xf32>
    %49 = vector.broadcast %28 : vector<1x64xf32> to vector<8x64xf32>
    %50 = arith.addf %48, %49 : vector<8x64xf32>
    %51 = arith.truncf %50 : vector<8x64xf32> to vector<8x64xbf16>
    %c0_29 = arith.constant 0 : index
    %c0_30 = arith.constant 0 : index
    %c0_31 = arith.constant 0 : index
    %52 = vector.load %arg8[%c0_29, %c0_30, %c0_31] : memref<2x64x192xbf16, #tpu.memory_space<vmem>>, vector<1x64x192xbf16>
    %53 = vector.shape_cast %52 : vector<1x64x192xbf16> to vector<64x192xbf16>
    %cst_32 = arith.constant dense<0.000000e+00> : vector<8x192xf32>
    %54 = tpu.matmul %51, %53, %cst_32 {dimension_numbers = #tpu.dot_dimension_numbers<[1], [0], [0], [1], [0, 0, 1, 1], [], []>} : vector<8x64xbf16>, vector<64x192xbf16>, vector<8x192xf32> -> vector<8x192xf32>
    %c0_33 = arith.constant 0 : index
    %c0_34 = arith.constant 0 : index
    %c0_35 = arith.constant 0 : index
    %55 = vector.load %arg9[%c0_33, %c0_34, %c0_35] : memref<2x1x192xf32, #tpu.memory_space<vmem>>, vector<1x1x192xf32>
    %56 = vector.shape_cast %55 : vector<1x1x192xf32> to vector<1x192xf32>
    %57 = vector.broadcast %56 : vector<1x192xf32> to vector<8x192xf32>
    %58 = arith.addf %54, %57 : vector<8x192xf32>
    %59 = vector.extract_strided_slice %58 {offsets = [0, 0], sizes = [8, 64], strides = [1, 1]} : vector<8x192xf32> to vector<8x64xf32>
    %cst_36 = arith.constant 0.353553385 : f32
    %60 = vector.broadcast %cst_36 : f32 to vector<8x64xf32>
    %61 = arith.mulf %59, %60 : vector<8x64xf32>
    %62 = vector.extract_strided_slice %58 {offsets = [0, 64], sizes = [8, 64], strides = [1, 1]} : vector<8x192xf32> to vector<8x64xf32>
    %63 = vector.extract_strided_slice %58 {offsets = [0, 128], sizes = [8, 64], strides = [1, 1]} : vector<8x192xf32> to vector<8x64xf32>
    %c0_37 = arith.constant 0 : index
    %c0_38 = arith.constant 0 : index
    %c0_39 = arith.constant 0 : index
    %64 = vector.load %arg14[%c0_37, %c0_38, %c0_39] : memref<4x64x64xbf16, #tpu.memory_space<vmem>>, vector<1x64x64xbf16>
    %65 = vector.shape_cast %64 : vector<1x64x64xbf16> to vector<64x64xbf16>
    %c0_40 = arith.constant 0 : index
    %c0_41 = arith.constant 0 : index
    %c0_42 = arith.constant 0 : index
    %66 = vector.load %arg15[%c0_40, %c0_41, %c0_42] : memref<4x1x64xf32, #tpu.memory_space<vmem>>, vector<1x1x64xf32>
    %67 = vector.shape_cast %66 : vector<1x1x64xf32> to vector<1x64xf32>
    %68 = vector.extract_strided_slice %61 {offsets = [0, 0], sizes = [8, 8], strides = [1, 1]} : vector<8x64xf32> to vector<8x8xf32>
    %69 = vector.shape_cast %68 : vector<8x8xf32> to vector<1x8x8xf32>
    %70 = vector.extract_strided_slice %61 {offsets = [0, 8], sizes = [8, 8], strides = [1, 1]} : vector<8x64xf32> to vector<8x8xf32>
    %71 = vector.shape_cast %70 : vector<8x8xf32> to vector<1x8x8xf32>
    %72 = vector.extract_strided_slice %61 {offsets = [0, 16], sizes = [8, 8], strides = [1, 1]} : vector<8x64xf32> to vector<8x8xf32>
    %73 = vector.shape_cast %72 : vector<8x8xf32> to vector<1x8x8xf32>
    %74 = vector.extract_strided_slice %61 {offsets = [0, 24], sizes = [8, 8], strides = [1, 1]} : vector<8x64xf32> to vector<8x8xf32>
    %75 = vector.shape_cast %74 : vector<8x8xf32> to vector<1x8x8xf32>
    %76 = vector.extract_strided_slice %61 {offsets = [0, 32], sizes = [8, 8], strides = [1, 1]} : vector<8x64xf32> to vector<8x8xf32>
    %77 = vector.shape_cast %76 : vector<8x8xf32> to vector<1x8x8xf32>
    %78 = vector.extract_strided_slice %61 {offsets = [0, 40], sizes = [8, 8], strides = [1, 1]} : vector<8x64xf32> to vector<8x8xf32>
    %79 = vector.shape_cast %78 : vector<8x8xf32> to vector<1x8x8xf32>
    %80 = vector.extract_strided_slice %61 {offsets = [0, 48], sizes = [8, 8], strides = [1, 1]} : vector<8x64xf32> to vector<8x8xf32>
    %81 = vector.shape_cast %80 : vector<8x8xf32> to vector<1x8x8xf32>
    %82 = vector.extract_strided_slice %61 {offsets = [0, 56], sizes = [8, 8], strides = [1, 1]} : vector<8x64xf32> to vector<8x8xf32>
    %83 = vector.shape_cast %82 : vector<8x8xf32> to vector<1x8x8xf32>
    %84 = tpu.concatenate %69, %71, %73, %75, %77, %79, %81, %83 in 0 : vector<1x8x8xf32>, vector<1x8x8xf32>, vector<1x8x8xf32>, vector<1x8x8xf32>, vector<1x8x8xf32>, vector<1x8x8xf32>, vector<1x8x8xf32>, vector<1x8x8xf32> -> vector<8x8x8xf32>
    %85 = vector.extract_strided_slice %62 {offsets = [0, 0], sizes = [8, 8], strides = [1, 1]} : vector<8x64xf32> to vector<8x8xf32>
    %86 = vector.shape_cast %85 : vector<8x8xf32> to vector<1x8x8xf32>
    %87 = vector.extract_strided_slice %62 {offsets = [0, 8], sizes = [8, 8], strides = [1, 1]} : vector<8x64xf32> to vector<8x8xf32>
    %88 = vector.shape_cast %87 : vector<8x8xf32> to vector<1x8x8xf32>
    %89 = vector.extract_strided_slice %62 {offsets = [0, 16], sizes = [8, 8], strides = [1, 1]} : vector<8x64xf32> to vector<8x8xf32>
    %90 = vector.shape_cast %89 : vector<8x8xf32> to vector<1x8x8xf32>
    %91 = vector.extract_strided_slice %62 {offsets = [0, 24], sizes = [8, 8], strides = [1, 1]} : vector<8x64xf32> to vector<8x8xf32>
    %92 = vector.shape_cast %91 : vector<8x8xf32> to vector<1x8x8xf32>
    %93 = vector.extract_strided_slice %62 {offsets = [0, 32], sizes = [8, 8], strides = [1, 1]} : vector<8x64xf32> to vector<8x8xf32>
    %94 = vector.shape_cast %93 : vector<8x8xf32> to vector<1x8x8xf32>
    %95 = vector.extract_strided_slice %62 {offsets = [0, 40], sizes = [8, 8], strides = [1, 1]} : vector<8x64xf32> to vector<8x8xf32>
    %96 = vector.shape_cast %95 : vector<8x8xf32> to vector<1x8x8xf32>
    %97 = vector.extract_strided_slice %62 {offsets = [0, 48], sizes = [8, 8], strides = [1, 1]} : vector<8x64xf32> to vector<8x8xf32>
    %98 = vector.shape_cast %97 : vector<8x8xf32> to vector<1x8x8xf32>
    %99 = vector.extract_strided_slice %62 {offsets = [0, 56], sizes = [8, 8], strides = [1, 1]} : vector<8x64xf32> to vector<8x8xf32>
    %100 = vector.shape_cast %99 : vector<8x8xf32> to vector<1x8x8xf32>
    %101 = tpu.concatenate %86, %88, %90, %92, %94, %96, %98, %100 in 0 : vector<1x8x8xf32>, vector<1x8x8xf32>, vector<1x8x8xf32>, vector<1x8x8xf32>, vector<1x8x8xf32>, vector<1x8x8xf32>, vector<1x8x8xf32>, vector<1x8x8xf32> -> vector<8x8x8xf32>
    %102 = vector.extract_strided_slice %63 {offsets = [0, 0], sizes = [8, 8], strides = [1, 1]} : vector<8x64xf32> to vector<8x8xf32>
    %103 = vector.shape_cast %102 : vector<8x8xf32> to vector<1x8x8xf32>
    %104 = vector.extract_strided_slice %63 {offsets = [0, 8], sizes = [8, 8], strides = [1, 1]} : vector<8x64xf32> to vector<8x8xf32>
    %105 = vector.shape_cast %104 : vector<8x8xf32> to vector<1x8x8xf32>
    %106 = vector.extract_strided_slice %63 {offsets = [0, 16], sizes = [8, 8], strides = [1, 1]} : vector<8x64xf32> to vector<8x8xf32>
    %107 = vector.shape_cast %106 : vector<8x8xf32> to vector<1x8x8xf32>
    %108 = vector.extract_strided_slice %63 {offsets = [0, 24], sizes = [8, 8], strides = [1, 1]} : vector<8x64xf32> to vector<8x8xf32>
    %109 = vector.shape_cast %108 : vector<8x8xf32> to vector<1x8x8xf32>
    %110 = vector.extract_strided_slice %63 {offsets = [0, 32], sizes = [8, 8], strides = [1, 1]} : vector<8x64xf32> to vector<8x8xf32>
    %111 = vector.shape_cast %110 : vector<8x8xf32> to vector<1x8x8xf32>
    %112 = vector.extract_strided_slice %63 {offsets = [0, 40], sizes = [8, 8], strides = [1, 1]} : vector<8x64xf32> to vector<8x8xf32>
    %113 = vector.shape_cast %112 : vector<8x8xf32> to vector<1x8x8xf32>
    %114 = vector.extract_strided_slice %63 {offsets = [0, 48], sizes = [8, 8], strides = [1, 1]} : vector<8x64xf32> to vector<8x8xf32>
    %115 = vector.shape_cast %114 : vector<8x8xf32> to vector<1x8x8xf32>
    %116 = vector.extract_strided_slice %63 {offsets = [0, 56], sizes = [8, 8], strides = [1, 1]} : vector<8x64xf32> to vector<8x8xf32>
    %117 = vector.shape_cast %116 : vector<8x8xf32> to vector<1x8x8xf32>
    %118 = tpu.concatenate %103, %105, %107, %109, %111, %113, %115, %117 in 0 : vector<1x8x8xf32>, vector<1x8x8xf32>, vector<1x8x8xf32>, vector<1x8x8xf32>, vector<1x8x8xf32>, vector<1x8x8xf32>, vector<1x8x8xf32>, vector<1x8x8xf32> -> vector<8x8x8xf32>
    "tpu.trace_start"() <{level = 10 : i32, message = "bqd,bkd->bqk"}> : () -> ()
    %cst_43 = arith.constant dense<0.000000e+00> : vector<8x8x8xf32>
    %119 = tpu.matmul %84, %101, %cst_43 {dimension_numbers = #tpu.dot_dimension_numbers<[2], [2], [1], [1], [0, 0, 0, 1, 1, 1], [0], [0]>} : vector<8x8x8xf32>, vector<8x8x8xf32>, vector<8x8x8xf32> -> vector<8x8x8xf32>
    "tpu.trace_stop"() : () -> ()
    %120 = vector.shape_cast %119 : vector<8x8x8xf32> to vector<8x1x8x8xf32>
    %121 = vector.shape_cast %18 : vector<1x8x8xf32> to vector<1x1x8x8xf32>
    %122 = vector.broadcast %121 : vector<1x1x8x8xf32> to vector<8x1x8x8xf32>
    %123 = arith.addf %120, %122 : vector<8x1x8x8xf32>
    %cst_44 = arith.constant dense<0xFF800000> : vector<8x1x8xf32>
    %124 = vector.multi_reduction <maximumf>, %123, %cst_44 [3] : vector<8x1x8x8xf32> to vector<8x1x8xf32>
    %125 = vector.shape_cast %124 : vector<8x1x8xf32> to vector<8x1x8x1xf32>
    %126 = vector.broadcast %125 : vector<8x1x8x1xf32> to vector<8x1x8x8xf32>
    %127 = arith.subf %123, %126 : vector<8x1x8x8xf32>
    %128 = math.exp %127 : vector<8x1x8x8xf32>
    %cst_45 = arith.constant dense<0.000000e+00> : vector<8x1x8xf32>
    %129 = vector.multi_reduction <add>, %128, %cst_45 [3] : vector<8x1x8x8xf32> to vector<8x1x8xf32>
    %130 = vector.shape_cast %129 : vector<8x1x8xf32> to vector<8x1x8x1xf32>
    %131 = tpu.reciprocal %130 {approx = true} : vector<8x1x8x1xf32> -> vector<8x1x8x1xf32>
    %132 = vector.broadcast %131 : vector<8x1x8x1xf32> to vector<8x1x8x8xf32>
    %133 = arith.mulf %128, %132 : vector<8x1x8x8xf32>
    %134 = vector.shape_cast %133 : vector<8x1x8x8xf32> to vector<8x8x8xf32>
    "tpu.trace_start"() <{level = 10 : i32, message = "bqk,bkd->bqd"}> : () -> ()
    %cst_46 = arith.constant dense<0.000000e+00> : vector<8x8x8xf32>
    %135 = tpu.matmul %134, %118, %cst_46 {dimension_numbers = #tpu.dot_dimension_numbers<[2], [1], [1], [2], [0, 0, 0, 1, 1, 2], [0], [0]>} : vector<8x8x8xf32>, vector<8x8x8xf32>, vector<8x8x8xf32> -> vector<8x8x8xf32>
    "tpu.trace_stop"() : () -> ()
    %136 = vector.extract_strided_slice %135 {offsets = [0, 0, 0], sizes = [1, 8, 8], strides = [1, 1, 1]} : vector<8x8x8xf32> to vector<1x8x8xf32>
    %137 = vector.shape_cast %136 : vector<1x8x8xf32> to vector<8x8xf32>
    %138 = vector.extract_strided_slice %135 {offsets = [1, 0, 0], sizes = [1, 8, 8], strides = [1, 1, 1]} : vector<8x8x8xf32> to vector<1x8x8xf32>
    %139 = vector.shape_cast %138 : vector<1x8x8xf32> to vector<8x8xf32>
    %140 = vector.extract_strided_slice %135 {offsets = [2, 0, 0], sizes = [1, 8, 8], strides = [1, 1, 1]} : vector<8x8x8xf32> to vector<1x8x8xf32>
    %141 = vector.shape_cast %140 : vector<1x8x8xf32> to vector<8x8xf32>
    %142 = vector.extract_strided_slice %135 {offsets = [3, 0, 0], sizes = [1, 8, 8], strides = [1, 1, 1]} : vector<8x8x8xf32> to vector<1x8x8xf32>
    %143 = vector.shape_cast %142 : vector<1x8x8xf32> to vector<8x8xf32>
    %144 = vector.extract_strided_slice %135 {offsets = [4, 0, 0], sizes = [1, 8, 8], strides = [1, 1, 1]} : vector<8x8x8xf32> to vector<1x8x8xf32>
    %145 = vector.shape_cast %144 : vector<1x8x8xf32> to vector<8x8xf32>
    %146 = vector.extract_strided_slice %135 {offsets = [5, 0, 0], sizes = [1, 8, 8], strides = [1, 1, 1]} : vector<8x8x8xf32> to vector<1x8x8xf32>
    %147 = vector.shape_cast %146 : vector<1x8x8xf32> to vector<8x8xf32>
    %148 = vector.extract_strided_slice %135 {offsets = [6, 0, 0], sizes = [1, 8, 8], strides = [1, 1, 1]} : vector<8x8x8xf32> to vector<1x8x8xf32>
    %149 = vector.shape_cast %148 : vector<1x8x8xf32> to vector<8x8xf32>
    %150 = vector.extract_strided_slice %135 {offsets = [7, 0, 0], sizes = [1, 8, 8], strides = [1, 1, 1]} : vector<8x8x8xf32> to vector<1x8x8xf32>
    %151 = vector.shape_cast %150 : vector<1x8x8xf32> to vector<8x8xf32>
    %152 = tpu.concatenate %137, %139, %141, %143, %145, %147, %149, %151 in 1 : vector<8x8xf32>, vector<8x8xf32>, vector<8x8xf32>, vector<8x8xf32>, vector<8x8xf32>, vector<8x8xf32>, vector<8x8xf32>, vector<8x8xf32> -> vector<8x64xf32>
    %153 = arith.truncf %152 : vector<8x64xf32> to vector<8x64xbf16>
    %cst_47 = arith.constant dense<0.000000e+00> : vector<8x64xf32>
    %154 = tpu.matmul %153, %65, %cst_47 {dimension_numbers = #tpu.dot_dimension_numbers<[1], [0], [0], [1], [0, 0, 1, 1], [], []>} : vector<8x64xbf16>, vector<64x64xbf16>, vector<8x64xf32> -> vector<8x64xf32>
    %155 = vector.broadcast %67 : vector<1x64xf32> to vector<8x64xf32>
    %156 = arith.addf %154, %155 : vector<8x64xf32>
    %157 = arith.addf %156, %4 : vector<8x64xf32>
    %c1 = arith.constant 1 : index
    %c0_48 = arith.constant 0 : index
    %c0_49 = arith.constant 0 : index
    %158 = vector.load %arg6[%c1, %c0_48, %c0_49] : memref<6x1x64xf32, #tpu.memory_space<vmem>>, vector<1x1x64xf32>
    %159 = vector.shape_cast %158 : vector<1x1x64xf32> to vector<1x64xf32>
    %c1_50 = arith.constant 1 : index
    %c0_51 = arith.constant 0 : index
    %c0_52 = arith.constant 0 : index
    %160 = vector.load %arg7[%c1_50, %c0_51, %c0_52] : memref<6x1x64xf32, #tpu.memory_space<vmem>>, vector<1x1x64xf32>
    %161 = vector.shape_cast %160 : vector<1x1x64xf32> to vector<1x64xf32>
    %cst_53 = arith.constant dense<0.000000e+00> : vector<8xf32>
    %162 = vector.multi_reduction <add>, %157, %cst_53 [1] : vector<8x64xf32> to vector<8xf32>
    %163 = vector.shape_cast %162 : vector<8xf32> to vector<8x1xf32>
    %cst_54 = arith.constant 6.400000e+01 : f32
    %164 = vector.broadcast %cst_54 : f32 to vector<8x1xf32>
    %165 = arith.divf %163, %164 : vector<8x1xf32>
    %166 = vector.broadcast %165 : vector<8x1xf32> to vector<8x64xf32>
    %167 = arith.subf %157, %166 : vector<8x64xf32>
    %168 = arith.mulf %167, %167 : vector<8x64xf32>
    %cst_55 = arith.constant dense<0.000000e+00> : vector<8xf32>
    %169 = vector.multi_reduction <add>, %168, %cst_55 [1] : vector<8x64xf32> to vector<8xf32>
    %170 = vector.shape_cast %169 : vector<8xf32> to vector<8x1xf32>
    %cst_56 = arith.constant 6.400000e+01 : f32
    %171 = vector.broadcast %cst_56 : f32 to vector<8x1xf32>
    %172 = arith.divf %170, %171 : vector<8x1xf32>
    %173 = vector.broadcast %165 : vector<8x1xf32> to vector<8x64xf32>
    %174 = arith.subf %157, %173 : vector<8x64xf32>
    %cst_57 = arith.constant 9.99999997E-7 : f32
    %175 = vector.broadcast %cst_57 : f32 to vector<8x1xf32>
    %176 = arith.addf %172, %175 : vector<8x1xf32>
    %177 = math.rsqrt %176 : vector<8x1xf32>
    %178 = vector.broadcast %177 : vector<8x1xf32> to vector<8x64xf32>
    %179 = arith.mulf %174, %178 : vector<8x64xf32>
    %180 = vector.broadcast %159 : vector<1x64xf32> to vector<8x64xf32>
    %181 = arith.mulf %179, %180 : vector<8x64xf32>
    %182 = vector.broadcast %161 : vector<1x64xf32> to vector<8x64xf32>
    %183 = arith.addf %181, %182 : vector<8x64xf32>
    %184 = arith.truncf %183 : vector<8x64xf32> to vector<8x64xbf16>
    %c0_58 = arith.constant 0 : index
    %c0_59 = arith.constant 0 : index
    %c0_60 = arith.constant 0 : index
    %185 = vector.load %arg10[%c0_58, %c0_59, %c0_60] : memref<2x64x64xbf16, #tpu.memory_space<vmem>>, vector<1x64x64xbf16>
    %186 = vector.shape_cast %185 : vector<1x64x64xbf16> to vector<64x64xbf16>
    %cst_61 = arith.constant dense<0.000000e+00> : vector<8x64xf32>
    %187 = tpu.matmul %184, %186, %cst_61 {dimension_numbers = #tpu.dot_dimension_numbers<[1], [0], [0], [1], [0, 0, 1, 1], [], []>} : vector<8x64xbf16>, vector<64x64xbf16>, vector<8x64xf32> -> vector<8x64xf32>
    %c0_62 = arith.constant 0 : index
    %c0_63 = arith.constant 0 : index
    %c0_64 = arith.constant 0 : index
    %188 = vector.load %arg11[%c0_62, %c0_63, %c0_64] : memref<2x1x64xf32, #tpu.memory_space<vmem>>, vector<1x1x64xf32>
    %189 = vector.shape_cast %188 : vector<1x1x64xf32> to vector<1x64xf32>
    %190 = vector.broadcast %189 : vector<1x64xf32> to vector<8x64xf32>
    %191 = arith.addf %187, %190 : vector<8x64xf32>
    %cst_65 = arith.constant 0.353553385 : f32
    %192 = vector.broadcast %cst_65 : f32 to vector<8x64xf32>
    %193 = arith.mulf %191, %192 : vector<8x64xf32>
    %194 = arith.truncf %6 : vector<8x64xf32> to vector<8x64xbf16>
    %c0_66 = arith.constant 0 : index
    %c0_67 = arith.constant 0 : index
    %c0_68 = arith.constant 0 : index
    %195 = vector.load %arg12[%c0_66, %c0_67, %c0_68] : memref<2x64x128xbf16, #tpu.memory_space<vmem>>, vector<1x64x128xbf16>
    %196 = vector.shape_cast %195 : vector<1x64x128xbf16> to vector<64x128xbf16>
    %cst_69 = arith.constant dense<0.000000e+00> : vector<8x128xf32>
    %197 = tpu.matmul %194, %196, %cst_69 {dimension_numbers = #tpu.dot_dimension_numbers<[1], [0], [0], [1], [0, 0, 1, 1], [], []>} : vector<8x64xbf16>, vector<64x128xbf16>, vector<8x128xf32> -> vector<8x128xf32>
    %c0_70 = arith.constant 0 : index
    %c0_71 = arith.constant 0 : index
    %c0_72 = arith.constant 0 : index
    %198 = vector.load %arg13[%c0_70, %c0_71, %c0_72] : memref<2x1x128xf32, #tpu.memory_space<vmem>>, vector<1x1x128xf32>
    %199 = vector.shape_cast %198 : vector<1x1x128xf32> to vector<1x128xf32>
    %200 = vector.broadcast %199 : vector<1x128xf32> to vector<8x128xf32>
    %201 = arith.addf %197, %200 : vector<8x128xf32>
    %202 = vector.extract_strided_slice %201 {offsets = [0, 0], sizes = [8, 64], strides = [1, 1]} : vector<8x128xf32> to vector<8x64xf32>
    %203 = vector.extract_strided_slice %201 {offsets = [0, 64], sizes = [8, 64], strides = [1, 1]} : vector<8x128xf32> to vector<8x64xf32>
    %c1_73 = arith.constant 1 : index
    %c0_74 = arith.constant 0 : index
    %c0_75 = arith.constant 0 : index
    %204 = vector.load %arg14[%c1_73, %c0_74, %c0_75] : memref<4x64x64xbf16, #tpu.memory_space<vmem>>, vector<1x64x64xbf16>
    %205 = vector.shape_cast %204 : vector<1x64x64xbf16> to vector<64x64xbf16>
    %c1_76 = arith.constant 1 : index
    %c0_77 = arith.constant 0 : index
    %c0_78 = arith.constant 0 : index
    %206 = vector.load %arg15[%c1_76, %c0_77, %c0_78] : memref<4x1x64xf32, #tpu.memory_space<vmem>>, vector<1x1x64xf32>
    %207 = vector.shape_cast %206 : vector<1x1x64xf32> to vector<1x64xf32>
    %208 = vector.extract_strided_slice %193 {offsets = [0, 0], sizes = [8, 8], strides = [1, 1]} : vector<8x64xf32> to vector<8x8xf32>
    %209 = vector.shape_cast %208 : vector<8x8xf32> to vector<1x8x8xf32>
    %210 = vector.extract_strided_slice %193 {offsets = [0, 8], sizes = [8, 8], strides = [1, 1]} : vector<8x64xf32> to vector<8x8xf32>
    %211 = vector.shape_cast %210 : vector<8x8xf32> to vector<1x8x8xf32>
    %212 = vector.extract_strided_slice %193 {offsets = [0, 16], sizes = [8, 8], strides = [1, 1]} : vector<8x64xf32> to vector<8x8xf32>
    %213 = vector.shape_cast %212 : vector<8x8xf32> to vector<1x8x8xf32>
    %214 = vector.extract_strided_slice %193 {offsets = [0, 24], sizes = [8, 8], strides = [1, 1]} : vector<8x64xf32> to vector<8x8xf32>
    %215 = vector.shape_cast %214 : vector<8x8xf32> to vector<1x8x8xf32>
    %216 = vector.extract_strided_slice %193 {offsets = [0, 32], sizes = [8, 8], strides = [1, 1]} : vector<8x64xf32> to vector<8x8xf32>
    %217 = vector.shape_cast %216 : vector<8x8xf32> to vector<1x8x8xf32>
    %218 = vector.extract_strided_slice %193 {offsets = [0, 40], sizes = [8, 8], strides = [1, 1]} : vector<8x64xf32> to vector<8x8xf32>
    %219 = vector.shape_cast %218 : vector<8x8xf32> to vector<1x8x8xf32>
    %220 = vector.extract_strided_slice %193 {offsets = [0, 48], sizes = [8, 8], strides = [1, 1]} : vector<8x64xf32> to vector<8x8xf32>
    %221 = vector.shape_cast %220 : vector<8x8xf32> to vector<1x8x8xf32>
    %222 = vector.extract_strided_slice %193 {offsets = [0, 56], sizes = [8, 8], strides = [1, 1]} : vector<8x64xf32> to vector<8x8xf32>
    %223 = vector.shape_cast %222 : vector<8x8xf32> to vector<1x8x8xf32>
    %224 = tpu.concatenate %209, %211, %213, %215, %217, %219, %221, %223 in 0 : vector<1x8x8xf32>, vector<1x8x8xf32>, vector<1x8x8xf32>, vector<1x8x8xf32>, vector<1x8x8xf32>, vector<1x8x8xf32>, vector<1x8x8xf32>, vector<1x8x8xf32> -> vector<8x8x8xf32>
    %225 = vector.extract_strided_slice %202 {offsets = [0, 0], sizes = [8, 8], strides = [1, 1]} : vector<8x64xf32> to vector<8x8xf32>
    %226 = vector.shape_cast %225 : vector<8x8xf32> to vector<1x8x8xf32>
    %227 = vector.extract_strided_slice %202 {offsets = [0, 8], sizes = [8, 8], strides = [1, 1]} : vector<8x64xf32> to vector<8x8xf32>
    %228 = vector.shape_cast %227 : vector<8x8xf32> to vector<1x8x8xf32>
    %229 = vector.extract_strided_slice %202 {offsets = [0, 16], sizes = [8, 8], strides = [1, 1]} : vector<8x64xf32> to vector<8x8xf32>
    %230 = vector.shape_cast %229 : vector<8x8xf32> to vector<1x8x8xf32>
    %231 = vector.extract_strided_slice %202 {offsets = [0, 24], sizes = [8, 8], strides = [1, 1]} : vector<8x64xf32> to vector<8x8xf32>
    %232 = vector.shape_cast %231 : vector<8x8xf32> to vector<1x8x8xf32>
    %233 = vector.extract_strided_slice %202 {offsets = [0, 32], sizes = [8, 8], strides = [1, 1]} : vector<8x64xf32> to vector<8x8xf32>
    %234 = vector.shape_cast %233 : vector<8x8xf32> to vector<1x8x8xf32>
    %235 = vector.extract_strided_slice %202 {offsets = [0, 40], sizes = [8, 8], strides = [1, 1]} : vector<8x64xf32> to vector<8x8xf32>
    %236 = vector.shape_cast %235 : vector<8x8xf32> to vector<1x8x8xf32>
    %237 = vector.extract_strided_slice %202 {offsets = [0, 48], sizes = [8, 8], strides = [1, 1]} : vector<8x64xf32> to vector<8x8xf32>
    %238 = vector.shape_cast %237 : vector<8x8xf32> to vector<1x8x8xf32>
    %239 = vector.extract_strided_slice %202 {offsets = [0, 56], sizes = [8, 8], strides = [1, 1]} : vector<8x64xf32> to vector<8x8xf32>
    %240 = vector.shape_cast %239 : vector<8x8xf32> to vector<1x8x8xf32>
    %241 = tpu.concatenate %226, %228, %230, %232, %234, %236, %238, %240 in 0 : vector<1x8x8xf32>, vector<1x8x8xf32>, vector<1x8x8xf32>, vector<1x8x8xf32>, vector<1x8x8xf32>, vector<1x8x8xf32>, vector<1x8x8xf32>, vector<1x8x8xf32> -> vector<8x8x8xf32>
    %242 = vector.extract_strided_slice %203 {offsets = [0, 0], sizes = [8, 8], strides = [1, 1]} : vector<8x64xf32> to vector<8x8xf32>
    %243 = vector.shape_cast %242 : vector<8x8xf32> to vector<1x8x8xf32>
    %244 = vector.extract_strided_slice %203 {offsets = [0, 8], sizes = [8, 8], strides = [1, 1]} : vector<8x64xf32> to vector<8x8xf32>
    %245 = vector.shape_cast %244 : vector<8x8xf32> to vector<1x8x8xf32>
    %246 = vector.extract_strided_slice %203 {offsets = [0, 16], sizes = [8, 8], strides = [1, 1]} : vector<8x64xf32> to vector<8x8xf32>
    %247 = vector.shape_cast %246 : vector<8x8xf32> to vector<1x8x8xf32>
    %248 = vector.extract_strided_slice %203 {offsets = [0, 24], sizes = [8, 8], strides = [1, 1]} : vector<8x64xf32> to vector<8x8xf32>
    %249 = vector.shape_cast %248 : vector<8x8xf32> to vector<1x8x8xf32>
    %250 = vector.extract_strided_slice %203 {offsets = [0, 32], sizes = [8, 8], strides = [1, 1]} : vector<8x64xf32> to vector<8x8xf32>
    %251 = vector.shape_cast %250 : vector<8x8xf32> to vector<1x8x8xf32>
    %252 = vector.extract_strided_slice %203 {offsets = [0, 40], sizes = [8, 8], strides = [1, 1]} : vector<8x64xf32> to vector<8x8xf32>
    %253 = vector.shape_cast %252 : vector<8x8xf32> to vector<1x8x8xf32>
    %254 = vector.extract_strided_slice %203 {offsets = [0, 48], sizes = [8, 8], strides = [1, 1]} : vector<8x64xf32> to vector<8x8xf32>
    %255 = vector.shape_cast %254 : vector<8x8xf32> to vector<1x8x8xf32>
    %256 = vector.extract_strided_slice %203 {offsets = [0, 56], sizes = [8, 8], strides = [1, 1]} : vector<8x64xf32> to vector<8x8xf32>
    %257 = vector.shape_cast %256 : vector<8x8xf32> to vector<1x8x8xf32>
    %258 = tpu.concatenate %243, %245, %247, %249, %251, %253, %255, %257 in 0 : vector<1x8x8xf32>, vector<1x8x8xf32>, vector<1x8x8xf32>, vector<1x8x8xf32>, vector<1x8x8xf32>, vector<1x8x8xf32>, vector<1x8x8xf32>, vector<1x8x8xf32> -> vector<8x8x8xf32>
    "tpu.trace_start"() <{level = 10 : i32, message = "bqd,bkd->bqk"}> : () -> ()
    %cst_79 = arith.constant dense<0.000000e+00> : vector<8x8x8xf32>
    %259 = tpu.matmul %224, %241, %cst_79 {dimension_numbers = #tpu.dot_dimension_numbers<[2], [2], [1], [1], [0, 0, 0, 1, 1, 1], [0], [0]>} : vector<8x8x8xf32>, vector<8x8x8xf32>, vector<8x8x8xf32> -> vector<8x8x8xf32>
    "tpu.trace_stop"() : () -> ()
    %260 = vector.shape_cast %259 : vector<8x8x8xf32> to vector<8x1x8x8xf32>
    %261 = vector.shape_cast %24 : vector<1x1x8xf32> to vector<1x1x1x8xf32>
    %262 = vector.broadcast %261 : vector<1x1x1x8xf32> to vector<8x1x8x8xf32>
    %263 = arith.addf %260, %262 : vector<8x1x8x8xf32>
    %cst_80 = arith.constant dense<0xFF800000> : vector<8x1x8xf32>
    %264 = vector.multi_reduction <maximumf>, %263, %cst_80 [3] : vector<8x1x8x8xf32> to vector<8x1x8xf32>
    %265 = vector.shape_cast %264 : vector<8x1x8xf32> to vector<8x1x8x1xf32>
    %266 = vector.broadcast %265 : vector<8x1x8x1xf32> to vector<8x1x8x8xf32>
    %267 = arith.subf %263, %266 : vector<8x1x8x8xf32>
    %268 = math.exp %267 : vector<8x1x8x8xf32>
    %cst_81 = arith.constant dense<0.000000e+00> : vector<8x1x8xf32>
    %269 = vector.multi_reduction <add>, %268, %cst_81 [3] : vector<8x1x8x8xf32> to vector<8x1x8xf32>
    %270 = vector.shape_cast %269 : vector<8x1x8xf32> to vector<8x1x8x1xf32>
    %271 = tpu.reciprocal %270 {approx = true} : vector<8x1x8x1xf32> -> vector<8x1x8x1xf32>
    %272 = vector.broadcast %271 : vector<8x1x8x1xf32> to vector<8x1x8x8xf32>
    %273 = arith.mulf %268, %272 : vector<8x1x8x8xf32>
    %274 = vector.shape_cast %273 : vector<8x1x8x8xf32> to vector<8x8x8xf32>
    "tpu.trace_start"() <{level = 10 : i32, message = "bqk,bkd->bqd"}> : () -> ()
    %cst_82 = arith.constant dense<0.000000e+00> : vector<8x8x8xf32>
    %275 = tpu.matmul %274, %258, %cst_82 {dimension_numbers = #tpu.dot_dimension_numbers<[2], [1], [1], [2], [0, 0, 0, 1, 1, 2], [0], [0]>} : vector<8x8x8xf32>, vector<8x8x8xf32>, vector<8x8x8xf32> -> vector<8x8x8xf32>
    "tpu.trace_stop"() : () -> ()
    %276 = vector.extract_strided_slice %275 {offsets = [0, 0, 0], sizes = [1, 8, 8], strides = [1, 1, 1]} : vector<8x8x8xf32> to vector<1x8x8xf32>
    %277 = vector.shape_cast %276 : vector<1x8x8xf32> to vector<8x8xf32>
    %278 = vector.extract_strided_slice %275 {offsets = [1, 0, 0], sizes = [1, 8, 8], strides = [1, 1, 1]} : vector<8x8x8xf32> to vector<1x8x8xf32>
    %279 = vector.shape_cast %278 : vector<1x8x8xf32> to vector<8x8xf32>
    %280 = vector.extract_strided_slice %275 {offsets = [2, 0, 0], sizes = [1, 8, 8], strides = [1, 1, 1]} : vector<8x8x8xf32> to vector<1x8x8xf32>
    %281 = vector.shape_cast %280 : vector<1x8x8xf32> to vector<8x8xf32>
    %282 = vector.extract_strided_slice %275 {offsets = [3, 0, 0], sizes = [1, 8, 8], strides = [1, 1, 1]} : vector<8x8x8xf32> to vector<1x8x8xf32>
    %283 = vector.shape_cast %282 : vector<1x8x8xf32> to vector<8x8xf32>
    %284 = vector.extract_strided_slice %275 {offsets = [4, 0, 0], sizes = [1, 8, 8], strides = [1, 1, 1]} : vector<8x8x8xf32> to vector<1x8x8xf32>
    %285 = vector.shape_cast %284 : vector<1x8x8xf32> to vector<8x8xf32>
    %286 = vector.extract_strided_slice %275 {offsets = [5, 0, 0], sizes = [1, 8, 8], strides = [1, 1, 1]} : vector<8x8x8xf32> to vector<1x8x8xf32>
    %287 = vector.shape_cast %286 : vector<1x8x8xf32> to vector<8x8xf32>
    %288 = vector.extract_strided_slice %275 {offsets = [6, 0, 0], sizes = [1, 8, 8], strides = [1, 1, 1]} : vector<8x8x8xf32> to vector<1x8x8xf32>
    %289 = vector.shape_cast %288 : vector<1x8x8xf32> to vector<8x8xf32>
    %290 = vector.extract_strided_slice %275 {offsets = [7, 0, 0], sizes = [1, 8, 8], strides = [1, 1, 1]} : vector<8x8x8xf32> to vector<1x8x8xf32>
    %291 = vector.shape_cast %290 : vector<1x8x8xf32> to vector<8x8xf32>
    %292 = tpu.concatenate %277, %279, %281, %283, %285, %287, %289, %291 in 1 : vector<8x8xf32>, vector<8x8xf32>, vector<8x8xf32>, vector<8x8xf32>, vector<8x8xf32>, vector<8x8xf32>, vector<8x8xf32>, vector<8x8xf32> -> vector<8x64xf32>
    %293 = arith.truncf %292 : vector<8x64xf32> to vector<8x64xbf16>
    %cst_83 = arith.constant dense<0.000000e+00> : vector<8x64xf32>
    %294 = tpu.matmul %293, %205, %cst_83 {dimension_numbers = #tpu.dot_dimension_numbers<[1], [0], [0], [1], [0, 0, 1, 1], [], []>} : vector<8x64xbf16>, vector<64x64xbf16>, vector<8x64xf32> -> vector<8x64xf32>
    %295 = vector.broadcast %207 : vector<1x64xf32> to vector<8x64xf32>
    %296 = arith.addf %294, %295 : vector<8x64xf32>
    %297 = arith.addf %296, %157 : vector<8x64xf32>
    %c2 = arith.constant 2 : index
    %c0_84 = arith.constant 0 : index
    %c0_85 = arith.constant 0 : index
    %298 = vector.load %arg6[%c2, %c0_84, %c0_85] : memref<6x1x64xf32, #tpu.memory_space<vmem>>, vector<1x1x64xf32>
    %299 = vector.shape_cast %298 : vector<1x1x64xf32> to vector<1x64xf32>
    %c2_86 = arith.constant 2 : index
    %c0_87 = arith.constant 0 : index
    %c0_88 = arith.constant 0 : index
    %300 = vector.load %arg7[%c2_86, %c0_87, %c0_88] : memref<6x1x64xf32, #tpu.memory_space<vmem>>, vector<1x1x64xf32>
    %301 = vector.shape_cast %300 : vector<1x1x64xf32> to vector<1x64xf32>
    %cst_89 = arith.constant dense<0.000000e+00> : vector<8xf32>
    %302 = vector.multi_reduction <add>, %297, %cst_89 [1] : vector<8x64xf32> to vector<8xf32>
    %303 = vector.shape_cast %302 : vector<8xf32> to vector<8x1xf32>
    %cst_90 = arith.constant 6.400000e+01 : f32
    %304 = vector.broadcast %cst_90 : f32 to vector<8x1xf32>
    %305 = arith.divf %303, %304 : vector<8x1xf32>
    %306 = vector.broadcast %305 : vector<8x1xf32> to vector<8x64xf32>
    %307 = arith.subf %297, %306 : vector<8x64xf32>
    %308 = arith.mulf %307, %307 : vector<8x64xf32>
    %cst_91 = arith.constant dense<0.000000e+00> : vector<8xf32>
    %309 = vector.multi_reduction <add>, %308, %cst_91 [1] : vector<8x64xf32> to vector<8xf32>
    %310 = vector.shape_cast %309 : vector<8xf32> to vector<8x1xf32>
    %cst_92 = arith.constant 6.400000e+01 : f32
    %311 = vector.broadcast %cst_92 : f32 to vector<8x1xf32>
    %312 = arith.divf %310, %311 : vector<8x1xf32>
    %313 = vector.broadcast %305 : vector<8x1xf32> to vector<8x64xf32>
    %314 = arith.subf %297, %313 : vector<8x64xf32>
    %cst_93 = arith.constant 9.99999997E-7 : f32
    %315 = vector.broadcast %cst_93 : f32 to vector<8x1xf32>
    %316 = arith.addf %312, %315 : vector<8x1xf32>
    %317 = math.rsqrt %316 : vector<8x1xf32>
    %318 = vector.broadcast %317 : vector<8x1xf32> to vector<8x64xf32>
    %319 = arith.mulf %314, %318 : vector<8x64xf32>
    %320 = vector.broadcast %299 : vector<1x64xf32> to vector<8x64xf32>
    %321 = arith.mulf %319, %320 : vector<8x64xf32>
    %322 = vector.broadcast %301 : vector<1x64xf32> to vector<8x64xf32>
    %323 = arith.addf %321, %322 : vector<8x64xf32>
    %324 = arith.truncf %323 : vector<8x64xf32> to vector<8x64xbf16>
    %c0_94 = arith.constant 0 : index
    %c0_95 = arith.constant 0 : index
    %c0_96 = arith.constant 0 : index
    %325 = vector.load %arg16[%c0_94, %c0_95, %c0_96] : memref<2x64x128xbf16, #tpu.memory_space<vmem>>, vector<1x64x128xbf16>
    %326 = vector.shape_cast %325 : vector<1x64x128xbf16> to vector<64x128xbf16>
    %cst_97 = arith.constant dense<0.000000e+00> : vector<8x128xf32>
    %327 = tpu.matmul %324, %326, %cst_97 {dimension_numbers = #tpu.dot_dimension_numbers<[1], [0], [0], [1], [0, 0, 1, 1], [], []>} : vector<8x64xbf16>, vector<64x128xbf16>, vector<8x128xf32> -> vector<8x128xf32>
    %c0_98 = arith.constant 0 : index
    %c0_99 = arith.constant 0 : index
    %c0_100 = arith.constant 0 : index
    %328 = vector.load %arg17[%c0_98, %c0_99, %c0_100] : memref<2x1x128xf32, #tpu.memory_space<vmem>>, vector<1x1x128xf32>
    %329 = vector.shape_cast %328 : vector<1x1x128xf32> to vector<1x128xf32>
    %330 = vector.broadcast %329 : vector<1x128xf32> to vector<8x128xf32>
    %331 = arith.addf %327, %330 : vector<8x128xf32>
    %cst_101 = arith.constant 0.000000e+00 : f32
    %332 = vector.broadcast %cst_101 : f32 to vector<8x128xf32>
    %333 = arith.maximumf %331, %332 : vector<8x128xf32>
    %334 = arith.truncf %333 : vector<8x128xf32> to vector<8x128xbf16>
    %c0_102 = arith.constant 0 : index
    %c0_103 = arith.constant 0 : index
    %c0_104 = arith.constant 0 : index
    %335 = vector.load %arg18[%c0_102, %c0_103, %c0_104] : memref<2x128x64xbf16, #tpu.memory_space<vmem>>, vector<1x128x64xbf16>
    %336 = vector.shape_cast %335 : vector<1x128x64xbf16> to vector<128x64xbf16>
    %cst_105 = arith.constant dense<0.000000e+00> : vector<8x64xf32>
    %337 = tpu.matmul %334, %336, %cst_105 {dimension_numbers = #tpu.dot_dimension_numbers<[1], [0], [0], [1], [0, 0, 1, 1], [], []>} : vector<8x128xbf16>, vector<128x64xbf16>, vector<8x64xf32> -> vector<8x64xf32>
    %c0_106 = arith.constant 0 : index
    %c0_107 = arith.constant 0 : index
    %c0_108 = arith.constant 0 : index
    %338 = vector.load %arg19[%c0_106, %c0_107, %c0_108] : memref<2x1x64xf32, #tpu.memory_space<vmem>>, vector<1x1x64xf32>
    %339 = vector.shape_cast %338 : vector<1x1x64xf32> to vector<1x64xf32>
    %340 = vector.broadcast %339 : vector<1x64xf32> to vector<8x64xf32>
    %341 = arith.addf %337, %340 : vector<8x64xf32>
    %342 = arith.addf %341, %297 : vector<8x64xf32>
    %c3 = arith.constant 3 : index
    %c0_109 = arith.constant 0 : index
    %c0_110 = arith.constant 0 : index
    %343 = vector.load %arg6[%c3, %c0_109, %c0_110] : memref<6x1x64xf32, #tpu.memory_space<vmem>>, vector<1x1x64xf32>
    %344 = vector.shape_cast %343 : vector<1x1x64xf32> to vector<1x64xf32>
    %c3_111 = arith.constant 3 : index
    %c0_112 = arith.constant 0 : index
    %c0_113 = arith.constant 0 : index
    %345 = vector.load %arg7[%c3_111, %c0_112, %c0_113] : memref<6x1x64xf32, #tpu.memory_space<vmem>>, vector<1x1x64xf32>
    %346 = vector.shape_cast %345 : vector<1x1x64xf32> to vector<1x64xf32>
    %cst_114 = arith.constant dense<0.000000e+00> : vector<8xf32>
    %347 = vector.multi_reduction <add>, %342, %cst_114 [1] : vector<8x64xf32> to vector<8xf32>
    %348 = vector.shape_cast %347 : vector<8xf32> to vector<8x1xf32>
    %cst_115 = arith.constant 6.400000e+01 : f32
    %349 = vector.broadcast %cst_115 : f32 to vector<8x1xf32>
    %350 = arith.divf %348, %349 : vector<8x1xf32>
    %351 = vector.broadcast %350 : vector<8x1xf32> to vector<8x64xf32>
    %352 = arith.subf %342, %351 : vector<8x64xf32>
    %353 = arith.mulf %352, %352 : vector<8x64xf32>
    %cst_116 = arith.constant dense<0.000000e+00> : vector<8xf32>
    %354 = vector.multi_reduction <add>, %353, %cst_116 [1] : vector<8x64xf32> to vector<8xf32>
    %355 = vector.shape_cast %354 : vector<8xf32> to vector<8x1xf32>
    %cst_117 = arith.constant 6.400000e+01 : f32
    %356 = vector.broadcast %cst_117 : f32 to vector<8x1xf32>
    %357 = arith.divf %355, %356 : vector<8x1xf32>
    %358 = vector.broadcast %350 : vector<8x1xf32> to vector<8x64xf32>
    %359 = arith.subf %342, %358 : vector<8x64xf32>
    %cst_118 = arith.constant 9.99999997E-7 : f32
    %360 = vector.broadcast %cst_118 : f32 to vector<8x1xf32>
    %361 = arith.addf %357, %360 : vector<8x1xf32>
    %362 = math.rsqrt %361 : vector<8x1xf32>
    %363 = vector.broadcast %362 : vector<8x1xf32> to vector<8x64xf32>
    %364 = arith.mulf %359, %363 : vector<8x64xf32>
    %365 = vector.broadcast %344 : vector<1x64xf32> to vector<8x64xf32>
    %366 = arith.mulf %364, %365 : vector<8x64xf32>
    %367 = vector.broadcast %346 : vector<1x64xf32> to vector<8x64xf32>
    %368 = arith.addf %366, %367 : vector<8x64xf32>
    %369 = arith.truncf %368 : vector<8x64xf32> to vector<8x64xbf16>
    %c1_119 = arith.constant 1 : index
    %c0_120 = arith.constant 0 : index
    %c0_121 = arith.constant 0 : index
    %370 = vector.load %arg8[%c1_119, %c0_120, %c0_121] : memref<2x64x192xbf16, #tpu.memory_space<vmem>>, vector<1x64x192xbf16>
    %371 = vector.shape_cast %370 : vector<1x64x192xbf16> to vector<64x192xbf16>
    %cst_122 = arith.constant dense<0.000000e+00> : vector<8x192xf32>
    %372 = tpu.matmul %369, %371, %cst_122 {dimension_numbers = #tpu.dot_dimension_numbers<[1], [0], [0], [1], [0, 0, 1, 1], [], []>} : vector<8x64xbf16>, vector<64x192xbf16>, vector<8x192xf32> -> vector<8x192xf32>
    %c1_123 = arith.constant 1 : index
    %c0_124 = arith.constant 0 : index
    %c0_125 = arith.constant 0 : index
    %373 = vector.load %arg9[%c1_123, %c0_124, %c0_125] : memref<2x1x192xf32, #tpu.memory_space<vmem>>, vector<1x1x192xf32>
    %374 = vector.shape_cast %373 : vector<1x1x192xf32> to vector<1x192xf32>
    %375 = vector.broadcast %374 : vector<1x192xf32> to vector<8x192xf32>
    %376 = arith.addf %372, %375 : vector<8x192xf32>
    %377 = vector.extract_strided_slice %376 {offsets = [0, 0], sizes = [8, 64], strides = [1, 1]} : vector<8x192xf32> to vector<8x64xf32>
    %cst_126 = arith.constant 0.353553385 : f32
    %378 = vector.broadcast %cst_126 : f32 to vector<8x64xf32>
    %379 = arith.mulf %377, %378 : vector<8x64xf32>
    %380 = vector.extract_strided_slice %376 {offsets = [0, 64], sizes = [8, 64], strides = [1, 1]} : vector<8x192xf32> to vector<8x64xf32>
    %381 = vector.extract_strided_slice %376 {offsets = [0, 128], sizes = [8, 64], strides = [1, 1]} : vector<8x192xf32> to vector<8x64xf32>
    %c2_127 = arith.constant 2 : index
    %c0_128 = arith.constant 0 : index
    %c0_129 = arith.constant 0 : index
    %382 = vector.load %arg14[%c2_127, %c0_128, %c0_129] : memref<4x64x64xbf16, #tpu.memory_space<vmem>>, vector<1x64x64xbf16>
    %383 = vector.shape_cast %382 : vector<1x64x64xbf16> to vector<64x64xbf16>
    %c2_130 = arith.constant 2 : index
    %c0_131 = arith.constant 0 : index
    %c0_132 = arith.constant 0 : index
    %384 = vector.load %arg15[%c2_130, %c0_131, %c0_132] : memref<4x1x64xf32, #tpu.memory_space<vmem>>, vector<1x1x64xf32>
    %385 = vector.shape_cast %384 : vector<1x1x64xf32> to vector<1x64xf32>
    %386 = vector.extract_strided_slice %379 {offsets = [0, 0], sizes = [8, 8], strides = [1, 1]} : vector<8x64xf32> to vector<8x8xf32>
    %387 = vector.shape_cast %386 : vector<8x8xf32> to vector<1x8x8xf32>
    %388 = vector.extract_strided_slice %379 {offsets = [0, 8], sizes = [8, 8], strides = [1, 1]} : vector<8x64xf32> to vector<8x8xf32>
    %389 = vector.shape_cast %388 : vector<8x8xf32> to vector<1x8x8xf32>
    %390 = vector.extract_strided_slice %379 {offsets = [0, 16], sizes = [8, 8], strides = [1, 1]} : vector<8x64xf32> to vector<8x8xf32>
    %391 = vector.shape_cast %390 : vector<8x8xf32> to vector<1x8x8xf32>
    %392 = vector.extract_strided_slice %379 {offsets = [0, 24], sizes = [8, 8], strides = [1, 1]} : vector<8x64xf32> to vector<8x8xf32>
    %393 = vector.shape_cast %392 : vector<8x8xf32> to vector<1x8x8xf32>
    %394 = vector.extract_strided_slice %379 {offsets = [0, 32], sizes = [8, 8], strides = [1, 1]} : vector<8x64xf32> to vector<8x8xf32>
    %395 = vector.shape_cast %394 : vector<8x8xf32> to vector<1x8x8xf32>
    %396 = vector.extract_strided_slice %379 {offsets = [0, 40], sizes = [8, 8], strides = [1, 1]} : vector<8x64xf32> to vector<8x8xf32>
    %397 = vector.shape_cast %396 : vector<8x8xf32> to vector<1x8x8xf32>
    %398 = vector.extract_strided_slice %379 {offsets = [0, 48], sizes = [8, 8], strides = [1, 1]} : vector<8x64xf32> to vector<8x8xf32>
    %399 = vector.shape_cast %398 : vector<8x8xf32> to vector<1x8x8xf32>
    %400 = vector.extract_strided_slice %379 {offsets = [0, 56], sizes = [8, 8], strides = [1, 1]} : vector<8x64xf32> to vector<8x8xf32>
    %401 = vector.shape_cast %400 : vector<8x8xf32> to vector<1x8x8xf32>
    %402 = tpu.concatenate %387, %389, %391, %393, %395, %397, %399, %401 in 0 : vector<1x8x8xf32>, vector<1x8x8xf32>, vector<1x8x8xf32>, vector<1x8x8xf32>, vector<1x8x8xf32>, vector<1x8x8xf32>, vector<1x8x8xf32>, vector<1x8x8xf32> -> vector<8x8x8xf32>
    %403 = vector.extract_strided_slice %380 {offsets = [0, 0], sizes = [8, 8], strides = [1, 1]} : vector<8x64xf32> to vector<8x8xf32>
    %404 = vector.shape_cast %403 : vector<8x8xf32> to vector<1x8x8xf32>
    %405 = vector.extract_strided_slice %380 {offsets = [0, 8], sizes = [8, 8], strides = [1, 1]} : vector<8x64xf32> to vector<8x8xf32>
    %406 = vector.shape_cast %405 : vector<8x8xf32> to vector<1x8x8xf32>
    %407 = vector.extract_strided_slice %380 {offsets = [0, 16], sizes = [8, 8], strides = [1, 1]} : vector<8x64xf32> to vector<8x8xf32>
    %408 = vector.shape_cast %407 : vector<8x8xf32> to vector<1x8x8xf32>
    %409 = vector.extract_strided_slice %380 {offsets = [0, 24], sizes = [8, 8], strides = [1, 1]} : vector<8x64xf32> to vector<8x8xf32>
    %410 = vector.shape_cast %409 : vector<8x8xf32> to vector<1x8x8xf32>
    %411 = vector.extract_strided_slice %380 {offsets = [0, 32], sizes = [8, 8], strides = [1, 1]} : vector<8x64xf32> to vector<8x8xf32>
    %412 = vector.shape_cast %411 : vector<8x8xf32> to vector<1x8x8xf32>
    %413 = vector.extract_strided_slice %380 {offsets = [0, 40], sizes = [8, 8], strides = [1, 1]} : vector<8x64xf32> to vector<8x8xf32>
    %414 = vector.shape_cast %413 : vector<8x8xf32> to vector<1x8x8xf32>
    %415 = vector.extract_strided_slice %380 {offsets = [0, 48], sizes = [8, 8], strides = [1, 1]} : vector<8x64xf32> to vector<8x8xf32>
    %416 = vector.shape_cast %415 : vector<8x8xf32> to vector<1x8x8xf32>
    %417 = vector.extract_strided_slice %380 {offsets = [0, 56], sizes = [8, 8], strides = [1, 1]} : vector<8x64xf32> to vector<8x8xf32>
    %418 = vector.shape_cast %417 : vector<8x8xf32> to vector<1x8x8xf32>
    %419 = tpu.concatenate %404, %406, %408, %410, %412, %414, %416, %418 in 0 : vector<1x8x8xf32>, vector<1x8x8xf32>, vector<1x8x8xf32>, vector<1x8x8xf32>, vector<1x8x8xf32>, vector<1x8x8xf32>, vector<1x8x8xf32>, vector<1x8x8xf32> -> vector<8x8x8xf32>
    %420 = vector.extract_strided_slice %381 {offsets = [0, 0], sizes = [8, 8], strides = [1, 1]} : vector<8x64xf32> to vector<8x8xf32>
    %421 = vector.shape_cast %420 : vector<8x8xf32> to vector<1x8x8xf32>
    %422 = vector.extract_strided_slice %381 {offsets = [0, 8], sizes = [8, 8], strides = [1, 1]} : vector<8x64xf32> to vector<8x8xf32>
    %423 = vector.shape_cast %422 : vector<8x8xf32> to vector<1x8x8xf32>
    %424 = vector.extract_strided_slice %381 {offsets = [0, 16], sizes = [8, 8], strides = [1, 1]} : vector<8x64xf32> to vector<8x8xf32>
    %425 = vector.shape_cast %424 : vector<8x8xf32> to vector<1x8x8xf32>
    %426 = vector.extract_strided_slice %381 {offsets = [0, 24], sizes = [8, 8], strides = [1, 1]} : vector<8x64xf32> to vector<8x8xf32>
    %427 = vector.shape_cast %426 : vector<8x8xf32> to vector<1x8x8xf32>
    %428 = vector.extract_strided_slice %381 {offsets = [0, 32], sizes = [8, 8], strides = [1, 1]} : vector<8x64xf32> to vector<8x8xf32>
    %429 = vector.shape_cast %428 : vector<8x8xf32> to vector<1x8x8xf32>
    %430 = vector.extract_strided_slice %381 {offsets = [0, 40], sizes = [8, 8], strides = [1, 1]} : vector<8x64xf32> to vector<8x8xf32>
    %431 = vector.shape_cast %430 : vector<8x8xf32> to vector<1x8x8xf32>
    %432 = vector.extract_strided_slice %381 {offsets = [0, 48], sizes = [8, 8], strides = [1, 1]} : vector<8x64xf32> to vector<8x8xf32>
    %433 = vector.shape_cast %432 : vector<8x8xf32> to vector<1x8x8xf32>
    %434 = vector.extract_strided_slice %381 {offsets = [0, 56], sizes = [8, 8], strides = [1, 1]} : vector<8x64xf32> to vector<8x8xf32>
    %435 = vector.shape_cast %434 : vector<8x8xf32> to vector<1x8x8xf32>
    %436 = tpu.concatenate %421, %423, %425, %427, %429, %431, %433, %435 in 0 : vector<1x8x8xf32>, vector<1x8x8xf32>, vector<1x8x8xf32>, vector<1x8x8xf32>, vector<1x8x8xf32>, vector<1x8x8xf32>, vector<1x8x8xf32>, vector<1x8x8xf32> -> vector<8x8x8xf32>
    "tpu.trace_start"() <{level = 10 : i32, message = "bqd,bkd->bqk"}> : () -> ()
    %cst_133 = arith.constant dense<0.000000e+00> : vector<8x8x8xf32>
    %437 = tpu.matmul %402, %419, %cst_133 {dimension_numbers = #tpu.dot_dimension_numbers<[2], [2], [1], [1], [0, 0, 0, 1, 1, 1], [0], [0]>} : vector<8x8x8xf32>, vector<8x8x8xf32>, vector<8x8x8xf32> -> vector<8x8x8xf32>
    "tpu.trace_stop"() : () -> ()
    %438 = vector.shape_cast %437 : vector<8x8x8xf32> to vector<8x1x8x8xf32>
    %439 = vector.shape_cast %18 : vector<1x8x8xf32> to vector<1x1x8x8xf32>
    %440 = vector.broadcast %439 : vector<1x1x8x8xf32> to vector<8x1x8x8xf32>
    %441 = arith.addf %438, %440 : vector<8x1x8x8xf32>
    %cst_134 = arith.constant dense<0xFF800000> : vector<8x1x8xf32>
    %442 = vector.multi_reduction <maximumf>, %441, %cst_134 [3] : vector<8x1x8x8xf32> to vector<8x1x8xf32>
    %443 = vector.shape_cast %442 : vector<8x1x8xf32> to vector<8x1x8x1xf32>
    %444 = vector.broadcast %443 : vector<8x1x8x1xf32> to vector<8x1x8x8xf32>
    %445 = arith.subf %441, %444 : vector<8x1x8x8xf32>
    %446 = math.exp %445 : vector<8x1x8x8xf32>
    %cst_135 = arith.constant dense<0.000000e+00> : vector<8x1x8xf32>
    %447 = vector.multi_reduction <add>, %446, %cst_135 [3] : vector<8x1x8x8xf32> to vector<8x1x8xf32>
    %448 = vector.shape_cast %447 : vector<8x1x8xf32> to vector<8x1x8x1xf32>
    %449 = tpu.reciprocal %448 {approx = true} : vector<8x1x8x1xf32> -> vector<8x1x8x1xf32>
    %450 = vector.broadcast %449 : vector<8x1x8x1xf32> to vector<8x1x8x8xf32>
    %451 = arith.mulf %446, %450 : vector<8x1x8x8xf32>
    %452 = vector.shape_cast %451 : vector<8x1x8x8xf32> to vector<8x8x8xf32>
    "tpu.trace_start"() <{level = 10 : i32, message = "bqk,bkd->bqd"}> : () -> ()
    %cst_136 = arith.constant dense<0.000000e+00> : vector<8x8x8xf32>
    %453 = tpu.matmul %452, %436, %cst_136 {dimension_numbers = #tpu.dot_dimension_numbers<[2], [1], [1], [2], [0, 0, 0, 1, 1, 2], [0], [0]>} : vector<8x8x8xf32>, vector<8x8x8xf32>, vector<8x8x8xf32> -> vector<8x8x8xf32>
    "tpu.trace_stop"() : () -> ()
    %454 = vector.extract_strided_slice %453 {offsets = [0, 0, 0], sizes = [1, 8, 8], strides = [1, 1, 1]} : vector<8x8x8xf32> to vector<1x8x8xf32>
    %455 = vector.shape_cast %454 : vector<1x8x8xf32> to vector<8x8xf32>
    %456 = vector.extract_strided_slice %453 {offsets = [1, 0, 0], sizes = [1, 8, 8], strides = [1, 1, 1]} : vector<8x8x8xf32> to vector<1x8x8xf32>
    %457 = vector.shape_cast %456 : vector<1x8x8xf32> to vector<8x8xf32>
    %458 = vector.extract_strided_slice %453 {offsets = [2, 0, 0], sizes = [1, 8, 8], strides = [1, 1, 1]} : vector<8x8x8xf32> to vector<1x8x8xf32>
    %459 = vector.shape_cast %458 : vector<1x8x8xf32> to vector<8x8xf32>
    %460 = vector.extract_strided_slice %453 {offsets = [3, 0, 0], sizes = [1, 8, 8], strides = [1, 1, 1]} : vector<8x8x8xf32> to vector<1x8x8xf32>
    %461 = vector.shape_cast %460 : vector<1x8x8xf32> to vector<8x8xf32>
    %462 = vector.extract_strided_slice %453 {offsets = [4, 0, 0], sizes = [1, 8, 8], strides = [1, 1, 1]} : vector<8x8x8xf32> to vector<1x8x8xf32>
    %463 = vector.shape_cast %462 : vector<1x8x8xf32> to vector<8x8xf32>
    %464 = vector.extract_strided_slice %453 {offsets = [5, 0, 0], sizes = [1, 8, 8], strides = [1, 1, 1]} : vector<8x8x8xf32> to vector<1x8x8xf32>
    %465 = vector.shape_cast %464 : vector<1x8x8xf32> to vector<8x8xf32>
    %466 = vector.extract_strided_slice %453 {offsets = [6, 0, 0], sizes = [1, 8, 8], strides = [1, 1, 1]} : vector<8x8x8xf32> to vector<1x8x8xf32>
    %467 = vector.shape_cast %466 : vector<1x8x8xf32> to vector<8x8xf32>
    %468 = vector.extract_strided_slice %453 {offsets = [7, 0, 0], sizes = [1, 8, 8], strides = [1, 1, 1]} : vector<8x8x8xf32> to vector<1x8x8xf32>
    %469 = vector.shape_cast %468 : vector<1x8x8xf32> to vector<8x8xf32>
    %470 = tpu.concatenate %455, %457, %459, %461, %463, %465, %467, %469 in 1 : vector<8x8xf32>, vector<8x8xf32>, vector<8x8xf32>, vector<8x8xf32>, vector<8x8xf32>, vector<8x8xf32>, vector<8x8xf32>, vector<8x8xf32> -> vector<8x64xf32>
    %471 = arith.truncf %470 : vector<8x64xf32> to vector<8x64xbf16>
    %cst_137 = arith.constant dense<0.000000e+00> : vector<8x64xf32>
    %472 = tpu.matmul %471, %383, %cst_137 {dimension_numbers = #tpu.dot_dimension_numbers<[1], [0], [0], [1], [0, 0, 1, 1], [], []>} : vector<8x64xbf16>, vector<64x64xbf16>, vector<8x64xf32> -> vector<8x64xf32>
    %473 = vector.broadcast %385 : vector<1x64xf32> to vector<8x64xf32>
    %474 = arith.addf %472, %473 : vector<8x64xf32>
    %475 = arith.addf %474, %342 : vector<8x64xf32>
    %c4 = arith.constant 4 : index
    %c0_138 = arith.constant 0 : index
    %c0_139 = arith.constant 0 : index
    %476 = vector.load %arg6[%c4, %c0_138, %c0_139] : memref<6x1x64xf32, #tpu.memory_space<vmem>>, vector<1x1x64xf32>
    %477 = vector.shape_cast %476 : vector<1x1x64xf32> to vector<1x64xf32>
    %c4_140 = arith.constant 4 : index
    %c0_141 = arith.constant 0 : index
    %c0_142 = arith.constant 0 : index
    %478 = vector.load %arg7[%c4_140, %c0_141, %c0_142] : memref<6x1x64xf32, #tpu.memory_space<vmem>>, vector<1x1x64xf32>
    %479 = vector.shape_cast %478 : vector<1x1x64xf32> to vector<1x64xf32>
    %cst_143 = arith.constant dense<0.000000e+00> : vector<8xf32>
    %480 = vector.multi_reduction <add>, %475, %cst_143 [1] : vector<8x64xf32> to vector<8xf32>
    %481 = vector.shape_cast %480 : vector<8xf32> to vector<8x1xf32>
    %cst_144 = arith.constant 6.400000e+01 : f32
    %482 = vector.broadcast %cst_144 : f32 to vector<8x1xf32>
    %483 = arith.divf %481, %482 : vector<8x1xf32>
    %484 = vector.broadcast %483 : vector<8x1xf32> to vector<8x64xf32>
    %485 = arith.subf %475, %484 : vector<8x64xf32>
    %486 = arith.mulf %485, %485 : vector<8x64xf32>
    %cst_145 = arith.constant dense<0.000000e+00> : vector<8xf32>
    %487 = vector.multi_reduction <add>, %486, %cst_145 [1] : vector<8x64xf32> to vector<8xf32>
    %488 = vector.shape_cast %487 : vector<8xf32> to vector<8x1xf32>
    %cst_146 = arith.constant 6.400000e+01 : f32
    %489 = vector.broadcast %cst_146 : f32 to vector<8x1xf32>
    %490 = arith.divf %488, %489 : vector<8x1xf32>
    %491 = vector.broadcast %483 : vector<8x1xf32> to vector<8x64xf32>
    %492 = arith.subf %475, %491 : vector<8x64xf32>
    %cst_147 = arith.constant 9.99999997E-7 : f32
    %493 = vector.broadcast %cst_147 : f32 to vector<8x1xf32>
    %494 = arith.addf %490, %493 : vector<8x1xf32>
    %495 = math.rsqrt %494 : vector<8x1xf32>
    %496 = vector.broadcast %495 : vector<8x1xf32> to vector<8x64xf32>
    %497 = arith.mulf %492, %496 : vector<8x64xf32>
    %498 = vector.broadcast %477 : vector<1x64xf32> to vector<8x64xf32>
    %499 = arith.mulf %497, %498 : vector<8x64xf32>
    %500 = vector.broadcast %479 : vector<1x64xf32> to vector<8x64xf32>
    %501 = arith.addf %499, %500 : vector<8x64xf32>
    %502 = arith.truncf %501 : vector<8x64xf32> to vector<8x64xbf16>
    %c1_148 = arith.constant 1 : index
    %c0_149 = arith.constant 0 : index
    %c0_150 = arith.constant 0 : index
    %503 = vector.load %arg10[%c1_148, %c0_149, %c0_150] : memref<2x64x64xbf16, #tpu.memory_space<vmem>>, vector<1x64x64xbf16>
    %504 = vector.shape_cast %503 : vector<1x64x64xbf16> to vector<64x64xbf16>
    %cst_151 = arith.constant dense<0.000000e+00> : vector<8x64xf32>
    %505 = tpu.matmul %502, %504, %cst_151 {dimension_numbers = #tpu.dot_dimension_numbers<[1], [0], [0], [1], [0, 0, 1, 1], [], []>} : vector<8x64xbf16>, vector<64x64xbf16>, vector<8x64xf32> -> vector<8x64xf32>
    %c1_152 = arith.constant 1 : index
    %c0_153 = arith.constant 0 : index
    %c0_154 = arith.constant 0 : index
    %506 = vector.load %arg11[%c1_152, %c0_153, %c0_154] : memref<2x1x64xf32, #tpu.memory_space<vmem>>, vector<1x1x64xf32>
    %507 = vector.shape_cast %506 : vector<1x1x64xf32> to vector<1x64xf32>
    %508 = vector.broadcast %507 : vector<1x64xf32> to vector<8x64xf32>
    %509 = arith.addf %505, %508 : vector<8x64xf32>
    %cst_155 = arith.constant 0.353553385 : f32
    %510 = vector.broadcast %cst_155 : f32 to vector<8x64xf32>
    %511 = arith.mulf %509, %510 : vector<8x64xf32>
    %512 = arith.truncf %6 : vector<8x64xf32> to vector<8x64xbf16>
    %c1_156 = arith.constant 1 : index
    %c0_157 = arith.constant 0 : index
    %c0_158 = arith.constant 0 : index
    %513 = vector.load %arg12[%c1_156, %c0_157, %c0_158] : memref<2x64x128xbf16, #tpu.memory_space<vmem>>, vector<1x64x128xbf16>
    %514 = vector.shape_cast %513 : vector<1x64x128xbf16> to vector<64x128xbf16>
    %cst_159 = arith.constant dense<0.000000e+00> : vector<8x128xf32>
    %515 = tpu.matmul %512, %514, %cst_159 {dimension_numbers = #tpu.dot_dimension_numbers<[1], [0], [0], [1], [0, 0, 1, 1], [], []>} : vector<8x64xbf16>, vector<64x128xbf16>, vector<8x128xf32> -> vector<8x128xf32>
    %c1_160 = arith.constant 1 : index
    %c0_161 = arith.constant 0 : index
    %c0_162 = arith.constant 0 : index
    %516 = vector.load %arg13[%c1_160, %c0_161, %c0_162] : memref<2x1x128xf32, #tpu.memory_space<vmem>>, vector<1x1x128xf32>
    %517 = vector.shape_cast %516 : vector<1x1x128xf32> to vector<1x128xf32>
    %518 = vector.broadcast %517 : vector<1x128xf32> to vector<8x128xf32>
    %519 = arith.addf %515, %518 : vector<8x128xf32>
    %520 = vector.extract_strided_slice %519 {offsets = [0, 0], sizes = [8, 64], strides = [1, 1]} : vector<8x128xf32> to vector<8x64xf32>
    %521 = vector.extract_strided_slice %519 {offsets = [0, 64], sizes = [8, 64], strides = [1, 1]} : vector<8x128xf32> to vector<8x64xf32>
    %c3_163 = arith.constant 3 : index
    %c0_164 = arith.constant 0 : index
    %c0_165 = arith.constant 0 : index
    %522 = vector.load %arg14[%c3_163, %c0_164, %c0_165] : memref<4x64x64xbf16, #tpu.memory_space<vmem>>, vector<1x64x64xbf16>
    %523 = vector.shape_cast %522 : vector<1x64x64xbf16> to vector<64x64xbf16>
    %c3_166 = arith.constant 3 : index
    %c0_167 = arith.constant 0 : index
    %c0_168 = arith.constant 0 : index
    %524 = vector.load %arg15[%c3_166, %c0_167, %c0_168] : memref<4x1x64xf32, #tpu.memory_space<vmem>>, vector<1x1x64xf32>
    %525 = vector.shape_cast %524 : vector<1x1x64xf32> to vector<1x64xf32>
    %526 = vector.extract_strided_slice %511 {offsets = [0, 0], sizes = [8, 8], strides = [1, 1]} : vector<8x64xf32> to vector<8x8xf32>
    %527 = vector.shape_cast %526 : vector<8x8xf32> to vector<1x8x8xf32>
    %528 = vector.extract_strided_slice %511 {offsets = [0, 8], sizes = [8, 8], strides = [1, 1]} : vector<8x64xf32> to vector<8x8xf32>
    %529 = vector.shape_cast %528 : vector<8x8xf32> to vector<1x8x8xf32>
    %530 = vector.extract_strided_slice %511 {offsets = [0, 16], sizes = [8, 8], strides = [1, 1]} : vector<8x64xf32> to vector<8x8xf32>
    %531 = vector.shape_cast %530 : vector<8x8xf32> to vector<1x8x8xf32>
    %532 = vector.extract_strided_slice %511 {offsets = [0, 24], sizes = [8, 8], strides = [1, 1]} : vector<8x64xf32> to vector<8x8xf32>
    %533 = vector.shape_cast %532 : vector<8x8xf32> to vector<1x8x8xf32>
    %534 = vector.extract_strided_slice %511 {offsets = [0, 32], sizes = [8, 8], strides = [1, 1]} : vector<8x64xf32> to vector<8x8xf32>
    %535 = vector.shape_cast %534 : vector<8x8xf32> to vector<1x8x8xf32>
    %536 = vector.extract_strided_slice %511 {offsets = [0, 40], sizes = [8, 8], strides = [1, 1]} : vector<8x64xf32> to vector<8x8xf32>
    %537 = vector.shape_cast %536 : vector<8x8xf32> to vector<1x8x8xf32>
    %538 = vector.extract_strided_slice %511 {offsets = [0, 48], sizes = [8, 8], strides = [1, 1]} : vector<8x64xf32> to vector<8x8xf32>
    %539 = vector.shape_cast %538 : vector<8x8xf32> to vector<1x8x8xf32>
    %540 = vector.extract_strided_slice %511 {offsets = [0, 56], sizes = [8, 8], strides = [1, 1]} : vector<8x64xf32> to vector<8x8xf32>
    %541 = vector.shape_cast %540 : vector<8x8xf32> to vector<1x8x8xf32>
    %542 = tpu.concatenate %527, %529, %531, %533, %535, %537, %539, %541 in 0 : vector<1x8x8xf32>, vector<1x8x8xf32>, vector<1x8x8xf32>, vector<1x8x8xf32>, vector<1x8x8xf32>, vector<1x8x8xf32>, vector<1x8x8xf32>, vector<1x8x8xf32> -> vector<8x8x8xf32>
    %543 = vector.extract_strided_slice %520 {offsets = [0, 0], sizes = [8, 8], strides = [1, 1]} : vector<8x64xf32> to vector<8x8xf32>
    %544 = vector.shape_cast %543 : vector<8x8xf32> to vector<1x8x8xf32>
    %545 = vector.extract_strided_slice %520 {offsets = [0, 8], sizes = [8, 8], strides = [1, 1]} : vector<8x64xf32> to vector<8x8xf32>
    %546 = vector.shape_cast %545 : vector<8x8xf32> to vector<1x8x8xf32>
    %547 = vector.extract_strided_slice %520 {offsets = [0, 16], sizes = [8, 8], strides = [1, 1]} : vector<8x64xf32> to vector<8x8xf32>
    %548 = vector.shape_cast %547 : vector<8x8xf32> to vector<1x8x8xf32>
    %549 = vector.extract_strided_slice %520 {offsets = [0, 24], sizes = [8, 8], strides = [1, 1]} : vector<8x64xf32> to vector<8x8xf32>
    %550 = vector.shape_cast %549 : vector<8x8xf32> to vector<1x8x8xf32>
    %551 = vector.extract_strided_slice %520 {offsets = [0, 32], sizes = [8, 8], strides = [1, 1]} : vector<8x64xf32> to vector<8x8xf32>
    %552 = vector.shape_cast %551 : vector<8x8xf32> to vector<1x8x8xf32>
    %553 = vector.extract_strided_slice %520 {offsets = [0, 40], sizes = [8, 8], strides = [1, 1]} : vector<8x64xf32> to vector<8x8xf32>
    %554 = vector.shape_cast %553 : vector<8x8xf32> to vector<1x8x8xf32>
    %555 = vector.extract_strided_slice %520 {offsets = [0, 48], sizes = [8, 8], strides = [1, 1]} : vector<8x64xf32> to vector<8x8xf32>
    %556 = vector.shape_cast %555 : vector<8x8xf32> to vector<1x8x8xf32>
    %557 = vector.extract_strided_slice %520 {offsets = [0, 56], sizes = [8, 8], strides = [1, 1]} : vector<8x64xf32> to vector<8x8xf32>
    %558 = vector.shape_cast %557 : vector<8x8xf32> to vector<1x8x8xf32>
    %559 = tpu.concatenate %544, %546, %548, %550, %552, %554, %556, %558 in 0 : vector<1x8x8xf32>, vector<1x8x8xf32>, vector<1x8x8xf32>, vector<1x8x8xf32>, vector<1x8x8xf32>, vector<1x8x8xf32>, vector<1x8x8xf32>, vector<1x8x8xf32> -> vector<8x8x8xf32>
    %560 = vector.extract_strided_slice %521 {offsets = [0, 0], sizes = [8, 8], strides = [1, 1]} : vector<8x64xf32> to vector<8x8xf32>
    %561 = vector.shape_cast %560 : vector<8x8xf32> to vector<1x8x8xf32>
    %562 = vector.extract_strided_slice %521 {offsets = [0, 8], sizes = [8, 8], strides = [1, 1]} : vector<8x64xf32> to vector<8x8xf32>
    %563 = vector.shape_cast %562 : vector<8x8xf32> to vector<1x8x8xf32>
    %564 = vector.extract_strided_slice %521 {offsets = [0, 16], sizes = [8, 8], strides = [1, 1]} : vector<8x64xf32> to vector<8x8xf32>
    %565 = vector.shape_cast %564 : vector<8x8xf32> to vector<1x8x8xf32>
    %566 = vector.extract_strided_slice %521 {offsets = [0, 24], sizes = [8, 8], strides = [1, 1]} : vector<8x64xf32> to vector<8x8xf32>
    %567 = vector.shape_cast %566 : vector<8x8xf32> to vector<1x8x8xf32>
    %568 = vector.extract_strided_slice %521 {offsets = [0, 32], sizes = [8, 8], strides = [1, 1]} : vector<8x64xf32> to vector<8x8xf32>
    %569 = vector.shape_cast %568 : vector<8x8xf32> to vector<1x8x8xf32>
    %570 = vector.extract_strided_slice %521 {offsets = [0, 40], sizes = [8, 8], strides = [1, 1]} : vector<8x64xf32> to vector<8x8xf32>
    %571 = vector.shape_cast %570 : vector<8x8xf32> to vector<1x8x8xf32>
    %572 = vector.extract_strided_slice %521 {offsets = [0, 48], sizes = [8, 8], strides = [1, 1]} : vector<8x64xf32> to vector<8x8xf32>
    %573 = vector.shape_cast %572 : vector<8x8xf32> to vector<1x8x8xf32>
    %574 = vector.extract_strided_slice %521 {offsets = [0, 56], sizes = [8, 8], strides = [1, 1]} : vector<8x64xf32> to vector<8x8xf32>
    %575 = vector.shape_cast %574 : vector<8x8xf32> to vector<1x8x8xf32>
    %576 = tpu.concatenate %561, %563, %565, %567, %569, %571, %573, %575 in 0 : vector<1x8x8xf32>, vector<1x8x8xf32>, vector<1x8x8xf32>, vector<1x8x8xf32>, vector<1x8x8xf32>, vector<1x8x8xf32>, vector<1x8x8xf32>, vector<1x8x8xf32> -> vector<8x8x8xf32>
    "tpu.trace_start"() <{level = 10 : i32, message = "bqd,bkd->bqk"}> : () -> ()
    %cst_169 = arith.constant dense<0.000000e+00> : vector<8x8x8xf32>
    %577 = tpu.matmul %542, %559, %cst_169 {dimension_numbers = #tpu.dot_dimension_numbers<[2], [2], [1], [1], [0, 0, 0, 1, 1, 1], [0], [0]>} : vector<8x8x8xf32>, vector<8x8x8xf32>, vector<8x8x8xf32> -> vector<8x8x8xf32>
    "tpu.trace_stop"() : () -> ()
    %578 = vector.shape_cast %577 : vector<8x8x8xf32> to vector<8x1x8x8xf32>
    %579 = vector.shape_cast %24 : vector<1x1x8xf32> to vector<1x1x1x8xf32>
    %580 = vector.broadcast %579 : vector<1x1x1x8xf32> to vector<8x1x8x8xf32>
    %581 = arith.addf %578, %580 : vector<8x1x8x8xf32>
    %cst_170 = arith.constant dense<0xFF800000> : vector<8x1x8xf32>
    %582 = vector.multi_reduction <maximumf>, %581, %cst_170 [3] : vector<8x1x8x8xf32> to vector<8x1x8xf32>
    %583 = vector.shape_cast %582 : vector<8x1x8xf32> to vector<8x1x8x1xf32>
    %584 = vector.broadcast %583 : vector<8x1x8x1xf32> to vector<8x1x8x8xf32>
    %585 = arith.subf %581, %584 : vector<8x1x8x8xf32>
    %586 = math.exp %585 : vector<8x1x8x8xf32>
    %cst_171 = arith.constant dense<0.000000e+00> : vector<8x1x8xf32>
    %587 = vector.multi_reduction <add>, %586, %cst_171 [3] : vector<8x1x8x8xf32> to vector<8x1x8xf32>
    %588 = vector.shape_cast %587 : vector<8x1x8xf32> to vector<8x1x8x1xf32>
    %589 = tpu.reciprocal %588 {approx = true} : vector<8x1x8x1xf32> -> vector<8x1x8x1xf32>
    %590 = vector.broadcast %589 : vector<8x1x8x1xf32> to vector<8x1x8x8xf32>
    %591 = arith.mulf %586, %590 : vector<8x1x8x8xf32>
    %592 = vector.shape_cast %591 : vector<8x1x8x8xf32> to vector<8x8x8xf32>
    "tpu.trace_start"() <{level = 10 : i32, message = "bqk,bkd->bqd"}> : () -> ()
    %cst_172 = arith.constant dense<0.000000e+00> : vector<8x8x8xf32>
    %593 = tpu.matmul %592, %576, %cst_172 {dimension_numbers = #tpu.dot_dimension_numbers<[2], [1], [1], [2], [0, 0, 0, 1, 1, 2], [0], [0]>} : vector<8x8x8xf32>, vector<8x8x8xf32>, vector<8x8x8xf32> -> vector<8x8x8xf32>
    "tpu.trace_stop"() : () -> ()
    %594 = vector.extract_strided_slice %593 {offsets = [0, 0, 0], sizes = [1, 8, 8], strides = [1, 1, 1]} : vector<8x8x8xf32> to vector<1x8x8xf32>
    %595 = vector.shape_cast %594 : vector<1x8x8xf32> to vector<8x8xf32>
    %596 = vector.extract_strided_slice %593 {offsets = [1, 0, 0], sizes = [1, 8, 8], strides = [1, 1, 1]} : vector<8x8x8xf32> to vector<1x8x8xf32>
    %597 = vector.shape_cast %596 : vector<1x8x8xf32> to vector<8x8xf32>
    %598 = vector.extract_strided_slice %593 {offsets = [2, 0, 0], sizes = [1, 8, 8], strides = [1, 1, 1]} : vector<8x8x8xf32> to vector<1x8x8xf32>
    %599 = vector.shape_cast %598 : vector<1x8x8xf32> to vector<8x8xf32>
    %600 = vector.extract_strided_slice %593 {offsets = [3, 0, 0], sizes = [1, 8, 8], strides = [1, 1, 1]} : vector<8x8x8xf32> to vector<1x8x8xf32>
    %601 = vector.shape_cast %600 : vector<1x8x8xf32> to vector<8x8xf32>
    %602 = vector.extract_strided_slice %593 {offsets = [4, 0, 0], sizes = [1, 8, 8], strides = [1, 1, 1]} : vector<8x8x8xf32> to vector<1x8x8xf32>
    %603 = vector.shape_cast %602 : vector<1x8x8xf32> to vector<8x8xf32>
    %604 = vector.extract_strided_slice %593 {offsets = [5, 0, 0], sizes = [1, 8, 8], strides = [1, 1, 1]} : vector<8x8x8xf32> to vector<1x8x8xf32>
    %605 = vector.shape_cast %604 : vector<1x8x8xf32> to vector<8x8xf32>
    %606 = vector.extract_strided_slice %593 {offsets = [6, 0, 0], sizes = [1, 8, 8], strides = [1, 1, 1]} : vector<8x8x8xf32> to vector<1x8x8xf32>
    %607 = vector.shape_cast %606 : vector<1x8x8xf32> to vector<8x8xf32>
    %608 = vector.extract_strided_slice %593 {offsets = [7, 0, 0], sizes = [1, 8, 8], strides = [1, 1, 1]} : vector<8x8x8xf32> to vector<1x8x8xf32>
    %609 = vector.shape_cast %608 : vector<1x8x8xf32> to vector<8x8xf32>
    %610 = tpu.concatenate %595, %597, %599, %601, %603, %605, %607, %609 in 1 : vector<8x8xf32>, vector<8x8xf32>, vector<8x8xf32>, vector<8x8xf32>, vector<8x8xf32>, vector<8x8xf32>, vector<8x8xf32>, vector<8x8xf32> -> vector<8x64xf32>
    %611 = arith.truncf %610 : vector<8x64xf32> to vector<8x64xbf16>
    %cst_173 = arith.constant dense<0.000000e+00> : vector<8x64xf32>
    %612 = tpu.matmul %611, %523, %cst_173 {dimension_numbers = #tpu.dot_dimension_numbers<[1], [0], [0], [1], [0, 0, 1, 1], [], []>} : vector<8x64xbf16>, vector<64x64xbf16>, vector<8x64xf32> -> vector<8x64xf32>
    %613 = vector.broadcast %525 : vector<1x64xf32> to vector<8x64xf32>
    %614 = arith.addf %612, %613 : vector<8x64xf32>
    %615 = arith.addf %614, %475 : vector<8x64xf32>
    %c5 = arith.constant 5 : index
    %c0_174 = arith.constant 0 : index
    %c0_175 = arith.constant 0 : index
    %616 = vector.load %arg6[%c5, %c0_174, %c0_175] : memref<6x1x64xf32, #tpu.memory_space<vmem>>, vector<1x1x64xf32>
    %617 = vector.shape_cast %616 : vector<1x1x64xf32> to vector<1x64xf32>
    %c5_176 = arith.constant 5 : index
    %c0_177 = arith.constant 0 : index
    %c0_178 = arith.constant 0 : index
    %618 = vector.load %arg7[%c5_176, %c0_177, %c0_178] : memref<6x1x64xf32, #tpu.memory_space<vmem>>, vector<1x1x64xf32>
    %619 = vector.shape_cast %618 : vector<1x1x64xf32> to vector<1x64xf32>
    %cst_179 = arith.constant dense<0.000000e+00> : vector<8xf32>
    %620 = vector.multi_reduction <add>, %615, %cst_179 [1] : vector<8x64xf32> to vector<8xf32>
    %621 = vector.shape_cast %620 : vector<8xf32> to vector<8x1xf32>
    %cst_180 = arith.constant 6.400000e+01 : f32
    %622 = vector.broadcast %cst_180 : f32 to vector<8x1xf32>
    %623 = arith.divf %621, %622 : vector<8x1xf32>
    %624 = vector.broadcast %623 : vector<8x1xf32> to vector<8x64xf32>
    %625 = arith.subf %615, %624 : vector<8x64xf32>
    %626 = arith.mulf %625, %625 : vector<8x64xf32>
    %cst_181 = arith.constant dense<0.000000e+00> : vector<8xf32>
    %627 = vector.multi_reduction <add>, %626, %cst_181 [1] : vector<8x64xf32> to vector<8xf32>
    %628 = vector.shape_cast %627 : vector<8xf32> to vector<8x1xf32>
    %cst_182 = arith.constant 6.400000e+01 : f32
    %629 = vector.broadcast %cst_182 : f32 to vector<8x1xf32>
    %630 = arith.divf %628, %629 : vector<8x1xf32>
    %631 = vector.broadcast %623 : vector<8x1xf32> to vector<8x64xf32>
    %632 = arith.subf %615, %631 : vector<8x64xf32>
    %cst_183 = arith.constant 9.99999997E-7 : f32
    %633 = vector.broadcast %cst_183 : f32 to vector<8x1xf32>
    %634 = arith.addf %630, %633 : vector<8x1xf32>
    %635 = math.rsqrt %634 : vector<8x1xf32>
    %636 = vector.broadcast %635 : vector<8x1xf32> to vector<8x64xf32>
    %637 = arith.mulf %632, %636 : vector<8x64xf32>
    %638 = vector.broadcast %617 : vector<1x64xf32> to vector<8x64xf32>
    %639 = arith.mulf %637, %638 : vector<8x64xf32>
    %640 = vector.broadcast %619 : vector<1x64xf32> to vector<8x64xf32>
    %641 = arith.addf %639, %640 : vector<8x64xf32>
    %642 = arith.truncf %641 : vector<8x64xf32> to vector<8x64xbf16>
    %c1_184 = arith.constant 1 : index
    %c0_185 = arith.constant 0 : index
    %c0_186 = arith.constant 0 : index
    %643 = vector.load %arg16[%c1_184, %c0_185, %c0_186] : memref<2x64x128xbf16, #tpu.memory_space<vmem>>, vector<1x64x128xbf16>
    %644 = vector.shape_cast %643 : vector<1x64x128xbf16> to vector<64x128xbf16>
    %cst_187 = arith.constant dense<0.000000e+00> : vector<8x128xf32>
    %645 = tpu.matmul %642, %644, %cst_187 {dimension_numbers = #tpu.dot_dimension_numbers<[1], [0], [0], [1], [0, 0, 1, 1], [], []>} : vector<8x64xbf16>, vector<64x128xbf16>, vector<8x128xf32> -> vector<8x128xf32>
    %c1_188 = arith.constant 1 : index
    %c0_189 = arith.constant 0 : index
    %c0_190 = arith.constant 0 : index
    %646 = vector.load %arg17[%c1_188, %c0_189, %c0_190] : memref<2x1x128xf32, #tpu.memory_space<vmem>>, vector<1x1x128xf32>
    %647 = vector.shape_cast %646 : vector<1x1x128xf32> to vector<1x128xf32>
    %648 = vector.broadcast %647 : vector<1x128xf32> to vector<8x128xf32>
    %649 = arith.addf %645, %648 : vector<8x128xf32>
    %cst_191 = arith.constant 0.000000e+00 : f32
    %650 = vector.broadcast %cst_191 : f32 to vector<8x128xf32>
    %651 = arith.maximumf %649, %650 : vector<8x128xf32>
    %652 = arith.truncf %651 : vector<8x128xf32> to vector<8x128xbf16>
    %c1_192 = arith.constant 1 : index
    %c0_193 = arith.constant 0 : index
    %c0_194 = arith.constant 0 : index
    %653 = vector.load %arg18[%c1_192, %c0_193, %c0_194] : memref<2x128x64xbf16, #tpu.memory_space<vmem>>, vector<1x128x64xbf16>
    %654 = vector.shape_cast %653 : vector<1x128x64xbf16> to vector<128x64xbf16>
    %cst_195 = arith.constant dense<0.000000e+00> : vector<8x64xf32>
    %655 = tpu.matmul %652, %654, %cst_195 {dimension_numbers = #tpu.dot_dimension_numbers<[1], [0], [0], [1], [0, 0, 1, 1], [], []>} : vector<8x128xbf16>, vector<128x64xbf16>, vector<8x64xf32> -> vector<8x64xf32>
    %c1_196 = arith.constant 1 : index
    %c0_197 = arith.constant 0 : index
    %c0_198 = arith.constant 0 : index
    %656 = vector.load %arg19[%c1_196, %c0_197, %c0_198] : memref<2x1x64xf32, #tpu.memory_space<vmem>>, vector<1x1x64xf32>
    %657 = vector.shape_cast %656 : vector<1x1x64xf32> to vector<1x64xf32>
    %658 = vector.broadcast %657 : vector<1x64xf32> to vector<8x64xf32>
    %659 = arith.addf %655, %658 : vector<8x64xf32>
    %660 = arith.addf %659, %615 : vector<8x64xf32>
    %c0_199 = arith.constant 0 : index
    %c0_200 = arith.constant 0 : index
    %661 = vector.load %arg20[%c0_199, %c0_200] : memref<1x64xf32, #tpu.memory_space<vmem>>, vector<1x64xf32>
    %c0_201 = arith.constant 0 : index
    %c0_202 = arith.constant 0 : index
    %662 = vector.load %arg21[%c0_201, %c0_202] : memref<1x64xf32, #tpu.memory_space<vmem>>, vector<1x64xf32>
    %cst_203 = arith.constant dense<0.000000e+00> : vector<8xf32>
    %663 = vector.multi_reduction <add>, %660, %cst_203 [1] : vector<8x64xf32> to vector<8xf32>
    %664 = vector.shape_cast %663 : vector<8xf32> to vector<8x1xf32>
    %cst_204 = arith.constant 6.400000e+01 : f32
    %665 = vector.broadcast %cst_204 : f32 to vector<8x1xf32>
    %666 = arith.divf %664, %665 : vector<8x1xf32>
    %667 = vector.broadcast %666 : vector<8x1xf32> to vector<8x64xf32>
    %668 = arith.subf %660, %667 : vector<8x64xf32>
    %669 = arith.mulf %668, %668 : vector<8x64xf32>
    %cst_205 = arith.constant dense<0.000000e+00> : vector<8xf32>
    %670 = vector.multi_reduction <add>, %669, %cst_205 [1] : vector<8x64xf32> to vector<8xf32>
    %671 = vector.shape_cast %670 : vector<8xf32> to vector<8x1xf32>
    %cst_206 = arith.constant 6.400000e+01 : f32
    %672 = vector.broadcast %cst_206 : f32 to vector<8x1xf32>
    %673 = arith.divf %671, %672 : vector<8x1xf32>
    %674 = vector.broadcast %666 : vector<8x1xf32> to vector<8x64xf32>
    %675 = arith.subf %660, %674 : vector<8x64xf32>
    %cst_207 = arith.constant 9.99999997E-7 : f32
    %676 = vector.broadcast %cst_207 : f32 to vector<8x1xf32>
    %677 = arith.addf %673, %676 : vector<8x1xf32>
    %678 = math.rsqrt %677 : vector<8x1xf32>
    %679 = vector.broadcast %678 : vector<8x1xf32> to vector<8x64xf32>
    %680 = arith.mulf %675, %679 : vector<8x64xf32>
    %681 = vector.broadcast %661 : vector<1x64xf32> to vector<8x64xf32>
    %682 = arith.mulf %680, %681 : vector<8x64xf32>
    %683 = vector.broadcast %662 : vector<1x64xf32> to vector<8x64xf32>
    %684 = arith.addf %682, %683 : vector<8x64xf32>
    %685 = arith.truncf %684 : vector<8x64xf32> to vector<8x64xbf16>
    %c0_208 = arith.constant 0 : index
    %c0_209 = arith.constant 0 : index
    %686 = vector.load %arg22[%c0_208, %c0_209] : memref<64x128xbf16, #tpu.memory_space<vmem>>, vector<64x128xbf16>
    %cst_210 = arith.constant dense<0.000000e+00> : vector<8x128xf32>
    %687 = tpu.matmul %685, %686, %cst_210 {dimension_numbers = #tpu.dot_dimension_numbers<[1], [0], [0], [1], [0, 0, 1, 1], [], []>} : vector<8x64xbf16>, vector<64x128xbf16>, vector<8x128xf32> -> vector<8x128xf32>
    %688 = vector.shape_cast %687 : vector<8x128xf32> to vector<1x8x128xf32>
    %c0_211 = arith.constant 0 : index
    %c0_212 = arith.constant 0 : index
    %c0_213 = arith.constant 0 : index
    %689 = vector.load %arg23[%c0_211, %c0_212, %c0_213] : memref<1x8x128xf32, #tpu.memory_space<vmem>>, vector<1x8x128xf32>
    tpu.vector_store %arg23[%c0_211, %c0_212, %c0_213], %688 {strides = array<i32>} : memref<1x8x128xf32, #tpu.memory_space<vmem>>, vector<1x8x128xf32>,
    %cst_214 = arith.constant 0.000000e+00 : f32
    %690 = vector.broadcast %cst_214 : f32 to vector<8x64xf32>
    %691 = tpu.concatenate %684, %690 in 1 : vector<8x64xf32>, vector<8x64xf32> -> vector<8x128xf32>
    %692 = vector.shape_cast %691 : vector<8x128xf32> to vector<1x8x128xf32>
    %c0_215 = arith.constant 0 : index
    %c0_216 = arith.constant 0 : index
    %c0_217 = arith.constant 0 : index
    %693 = vector.load %arg24[%c0_215, %c0_216, %c0_217] : memref<1x8x128xf32, #tpu.memory_space<vmem>>, vector<1x8x128xf32>
    tpu.vector_store %arg24[%c0_215, %c0_216, %c0_217], %692 {strides = array<i32>} : memref<1x8x128xf32, #tpu.memory_space<vmem>>, vector<1x8x128xf32>,
    return
  }
  func.func @transform_0(%arg0: i32) -> (i32, i32, i32) {
    %c0_i32 = arith.constant 0 : i32
    %c0_i32_0 = arith.constant 0 : i32
    %c0_i32_1 = arith.constant 0 : i32
    return %arg0, %c0_i32, %c0_i32_0 : i32, i32, i32
  }
  func.func @transform_1(%arg0: i32) -> (i32, i32) {
    %c0_i32 = arith.constant 0 : i32
    %c0_i32_0 = arith.constant 0 : i32
    %c0_i32_1 = arith.constant 0 : i32
    return %c0_i32, %c0_i32_0 : i32, i32
  }
  func.func @transform_2(%arg0: i32) -> (i32, i32, i32) {
    %c0_i32 = arith.constant 0 : i32
    %c0_i32_0 = arith.constant 0 : i32
    %c0_i32_1 = arith.constant 0 : i32
    return %arg0, %c0_i32, %c0_i32_0 : i32, i32, i32
  }
  func.func @transform_3(%arg0: i32) -> (i32, i32, i32) {
    %c0_i32 = arith.constant 0 : i32
    %c0_i32_0 = arith.constant 0 : i32
    %c0_i32_1 = arith.constant 0 : i32
    return %arg0, %c0_i32, %c0_i32_0 : i32, i32, i32
  }
  func.func @transform_4(%arg0: i32) -> (i32, i32, i32) {
    %c0_i32 = arith.constant 0 : i32
    %c0_i32_0 = arith.constant 0 : i32
    %c0_i32_1 = arith.constant 0 : i32
    return %arg0, %c0_i32, %c0_i32_0 : i32, i32, i32
  }
  func.func @transform_5(%arg0: i32) -> (i32, i32, i32) {
    %c0_i32 = arith.constant 0 : i32
    %c0_i32_0 = arith.constant 0 : i32
    %c0_i32_1 = arith.constant 0 : i32
    %c0_i32_2 = arith.constant 0 : i32
    return %c0_i32, %c0_i32_0, %c0_i32_1 : i32, i32, i32
  }
  func.func @transform_6(%arg0: i32) -> (i32, i32, i32) {
    %c0_i32 = arith.constant 0 : i32
    %c0_i32_0 = arith.constant 0 : i32
    %c0_i32_1 = arith.constant 0 : i32
    %c0_i32_2 = arith.constant 0 : i32
    return %c0_i32, %c0_i32_0, %c0_i32_1 : i32, i32, i32
  }
  func.func @transform_7(%arg0: i32) -> (i32, i32, i32) {
    %c0_i32 = arith.constant 0 : i32
    %c0_i32_0 = arith.constant 0 : i32
    %c0_i32_1 = arith.constant 0 : i32
    %c0_i32_2 = arith.constant 0 : i32
    return %c0_i32, %c0_i32_0, %c0_i32_1 : i32, i32, i32
  }
  func.func @transform_8(%arg0: i32) -> (i32, i32, i32) {
    %c0_i32 = arith.constant 0 : i32
    %c0_i32_0 = arith.constant 0 : i32
    %c0_i32_1 = arith.constant 0 : i32
    %c0_i32_2 = arith.constant 0 : i32
    return %c0_i32, %c0_i32_0, %c0_i32_1 : i32, i32, i32
  }
  func.func @transform_9(%arg0: i32) -> (i32, i32, i32) {
    %c0_i32 = arith.constant 0 : i32
    %c0_i32_0 = arith.constant 0 : i32
    %c0_i32_1 = arith.constant 0 : i32
    %c0_i32_2 = arith.constant 0 : i32
    return %c0_i32, %c0_i32_0, %c0_i32_1 : i32, i32, i32
  }
  func.func @transform_10(%arg0: i32) -> (i32, i32, i32) {
    %c0_i32 = arith.constant 0 : i32
    %c0_i32_0 = arith.constant 0 : i32
    %c0_i32_1 = arith.constant 0 : i32
    %c0_i32_2 = arith.constant 0 : i32
    return %c0_i32, %c0_i32_0, %c0_i32_1 : i32, i32, i32
  }
  func.func @transform_11(%arg0: i32) -> (i32, i32, i32) {
    %c0_i32 = arith.constant 0 : i32
    %c0_i32_0 = arith.constant 0 : i32
    %c0_i32_1 = arith.constant 0 : i32
    %c0_i32_2 = arith.constant 0 : i32
    return %c0_i32, %c0_i32_0, %c0_i32_1 : i32, i32, i32
  }
  func.func @transform_12(%arg0: i32) -> (i32, i32, i32) {
    %c0_i32 = arith.constant 0 : i32
    %c0_i32_0 = arith.constant 0 : i32
    %c0_i32_1 = arith.constant 0 : i32
    %c0_i32_2 = arith.constant 0 : i32
    return %c0_i32, %c0_i32_0, %c0_i32_1 : i32, i32, i32
  }
  func.func @transform_13(%arg0: i32) -> (i32, i32, i32) {
    %c0_i32 = arith.constant 0 : i32
    %c0_i32_0 = arith.constant 0 : i32
    %c0_i32_1 = arith.constant 0 : i32
    %c0_i32_2 = arith.constant 0 : i32
    return %c0_i32, %c0_i32_0, %c0_i32_1 : i32, i32, i32
  }
  func.func @transform_14(%arg0: i32) -> (i32, i32, i32) {
    %c0_i32 = arith.constant 0 : i32
    %c0_i32_0 = arith.constant 0 : i32
    %c0_i32_1 = arith.constant 0 : i32
    %c0_i32_2 = arith.constant 0 : i32
    return %c0_i32, %c0_i32_0, %c0_i32_1 : i32, i32, i32
  }
  func.func @transform_15(%arg0: i32) -> (i32, i32, i32) {
    %c0_i32 = arith.constant 0 : i32
    %c0_i32_0 = arith.constant 0 : i32
    %c0_i32_1 = arith.constant 0 : i32
    %c0_i32_2 = arith.constant 0 : i32
    return %c0_i32, %c0_i32_0, %c0_i32_1 : i32, i32, i32
  }
  func.func @transform_16(%arg0: i32) -> (i32, i32, i32) {
    %c0_i32 = arith.constant 0 : i32
    %c0_i32_0 = arith.constant 0 : i32
    %c0_i32_1 = arith.constant 0 : i32
    %c0_i32_2 = arith.constant 0 : i32
    return %c0_i32, %c0_i32_0, %c0_i32_1 : i32, i32, i32
  }
  func.func @transform_17(%arg0: i32) -> (i32, i32, i32) {
    %c0_i32 = arith.constant 0 : i32
    %c0_i32_0 = arith.constant 0 : i32
    %c0_i32_1 = arith.constant 0 : i32
    %c0_i32_2 = arith.constant 0 : i32
    return %c0_i32, %c0_i32_0, %c0_i32_1 : i32, i32, i32
  }
  func.func @transform_18(%arg0: i32) -> (i32, i32, i32) {
    %c0_i32 = arith.constant 0 : i32
    %c0_i32_0 = arith.constant 0 : i32
    %c0_i32_1 = arith.constant 0 : i32
    %c0_i32_2 = arith.constant 0 : i32
    return %c0_i32, %c0_i32_0, %c0_i32_1 : i32, i32, i32
  }
  func.func @transform_19(%arg0: i32) -> (i32, i32) {
    %c0_i32 = arith.constant 0 : i32
    %c0_i32_0 = arith.constant 0 : i32
    %c0_i32_1 = arith.constant 0 : i32
    return %c0_i32, %c0_i32_0 : i32, i32
  }
  func.func @transform_20(%arg0: i32) -> (i32, i32) {
    %c0_i32 = arith.constant 0 : i32
    %c0_i32_0 = arith.constant 0 : i32
    %c0_i32_1 = arith.constant 0 : i32
    return %c0_i32, %c0_i32_0 : i32, i32
  }
  func.func @transform_21(%arg0: i32) -> (i32, i32) {
    %c0_i32 = arith.constant 0 : i32
    %c0_i32_0 = arith.constant 0 : i32
    %c0_i32_1 = arith.constant 0 : i32
    return %c0_i32, %c0_i32_0 : i32, i32
  }
  func.func @transform_22(%arg0: i32) -> (i32, i32, i32) {
    %c0_i32 = arith.constant 0 : i32
    %c0_i32_0 = arith.constant 0 : i32
    %c0_i32_1 = arith.constant 0 : i32
    return %arg0, %c0_i32, %c0_i32_0 : i32, i32, i32
  }
  func.func @transform_23(%arg0: i32) -> (i32, i32, i32) {
    %c0_i32 = arith.constant 0 : i32
    %c0_i32_0 = arith.constant 0 : i32
    %c0_i32_1 = arith.constant 0 : i32
    return %arg0, %c0_i32, %c0_i32_0 : i32, i32, i32
  }
}

</mosaic_0001>

<llo_original>
// kernel: transformer_decoder_forward.1
$region0: #{transformer_decoder_forward.1}
  #allocation0 [shape = 'u32[]', space=smem, size = 0x4, offset = 0x4, fixed_abs, tag = 'smem constant byte address 0x4 - core index']
  #allocation1 [shape = 'u32[144,128]{1,0:T(1,128)}', space=vmem, size = 0x12000, scoped, tag = 'internal scratch']
  %s0 = inlined_call_operand.vmem [shape: f32[2,8,64], index: 0, kind: input, shape index: {}]
  %s1 = inlined_call_operand.vmem [shape: f32[8,64], index: 1, kind: input, shape index: {}]
  %s2 = inlined_call_operand.hbm [shape: f32[2,8,64], index: 2, kind: input, shape index: {}]
  %s3 = inlined_call_operand.vmem [shape: f32[2,1,8], index: 3, kind: input, shape index: {}]
  %s4 = inlined_call_operand.vmem [shape: f32[2,1,8], index: 4, kind: input, shape index: {}]
  %s5 = inlined_call_operand.vmem [shape: f32[6,1,64], index: 5, kind: input, shape index: {}]
  %s6 = inlined_call_operand.vmem [shape: f32[6,1,64], index: 6, kind: input, shape index: {}]
  %s7 = inlined_call_operand.hbm [shape: bf16[2,64,192], index: 7, kind: input, shape index: {}]
  %s8 = inlined_call_operand.hbm [shape: f32[2,1,192], index: 8, kind: input, shape index: {}]
  %s9 = inlined_call_operand.hbm [shape: bf16[2,64,64], index: 9, kind: input, shape index: {}]
  %s10 = inlined_call_operand.hbm [shape: f32[2,1,64], index: 10, kind: input, shape index: {}]
  %s11 = inlined_call_operand.hbm [shape: bf16[2,64,128], index: 11, kind: input, shape index: {}]
  %s12 = inlined_call_operand.hbm [shape: f32[2,1,128], index: 12, kind: input, shape index: {}]
  %s13 = inlined_call_operand.hbm [shape: bf16[4,64,64], index: 13, kind: input, shape index: {}]
  %s14 = inlined_call_operand.vmem [shape: f32[4,1,64], index: 14, kind: input, shape index: {}]
  %s15 = inlined_call_operand.hbm [shape: bf16[2,64,128], index: 15, kind: input, shape index: {}]
  %s16 = inlined_call_operand.hbm [shape: f32[2,1,128], index: 16, kind: input, shape index: {}]
  %s17 = inlined_call_operand.hbm [shape: bf16[2,128,64], index: 17, kind: input, shape index: {}]
  %s18 = inlined_call_operand.vmem [shape: f32[2,1,64], index: 18, kind: input, shape index: {}]
  %s19 = inlined_call_operand.vmem [shape: f32[1,64], index: 19, kind: input, shape index: {}]
  %s20 = inlined_call_operand.vmem [shape: f32[1,64], index: 20, kind: input, shape index: {}]
  %s21 = inlined_call_operand.vmem [shape: bf16[64,128], index: 21, kind: input, shape index: {}]
  %s22 = inlined_call_operand.hbm [shape: f32[2,8,128], index: 22, kind: output, shape index: {0}]
  %s23 = inlined_call_operand.hbm [shape: f32[2,8,128], index: 23, kind: output, shape index: {1}]
  %24 = xla_tuple %s22, %s23
  %s25 = sld [smem:[#allocation0]]
  $region173: #{transformer_decoder_forward.1} parent=0
    _
  %s27 = ssub.s32 1, %s25
  %s28 = scalar_select 0, %s27, %s25
  $region1: #{transformer_decoder_forward.1} parent=0
    #allocation2 [shape = 'u8[8192]{0}', space=vmem, size = 0x2000, scoped, tag = 'input window, operand 2']
    #allocation3 [shape = 's32[2]{0}', space=sflag, size = 0x8, scoped, tag = 'scoped memory for transformer_decoder_forward.1']
    #allocation4 [shape = 's32[2]{0}', space=sflag, size = 0x8, scoped, tag = 'scoped memory for transformer_decoder_forward.1']
    #allocation5 [shape = 'u8[65536]{0}', space=vmem, size = 0x10000, scoped, tag = 'input window, operand 7, single buffered']
    #allocation6 [shape = 's32[1]{0}', space=sflag, size = 0x4, scoped, tag = 'scoped memory for transformer_decoder_forward.1']
    #allocation7 [shape = 'u8[2048]{0}', space=vmem, size = 0x800, scoped, tag = 'input window, operand 8, single buffered']
    #allocation8 [shape = 'u8[32768]{0}', space=vmem, size = 0x8000, scoped, tag = 'input window, operand 9, single buffered']
    #allocation9 [shape = 's32[1]{0}', space=sflag, size = 0x4, scoped, tag = 'scoped memory for transformer_decoder_forward.1']
    #allocation10 [shape = 'u8[1024]{0}', space=vmem, size = 0x400, scoped, tag = 'input window, operand 10, single buffered']
    #allocation11 [shape = 'u8[32768]{0}', space=vmem, size = 0x8000, scoped, tag = 'input window, operand 11, single buffered']
    #allocation12 [shape = 's32[1]{0}', space=sflag, size = 0x4, scoped, tag = 'scoped memory for transformer_decoder_forward.1']
    #allocation13 [shape = 'u8[1024]{0}', space=vmem, size = 0x400, scoped, tag = 'input window, operand 12, single buffered']
    #allocation14 [shape = 'u8[65536]{0}', space=vmem, size = 0x10000, scoped, tag = 'input window, operand 13, single buffered']
    #allocation15 [shape = 's32[1]{0}', space=sflag, size = 0x4, scoped, tag = 'scoped memory for transformer_decoder_forward.1']
    #allocation16 [shape = 'u8[32768]{0}', space=vmem, size = 0x8000, scoped, tag = 'input window, operand 15, single buffered']
    #allocation17 [shape = 'u8[1024]{0}', space=vmem, size = 0x400, scoped, tag = 'input window, operand 16, single buffered']
    #allocation18 [shape = 's32[1]{0}', space=sflag, size = 0x4, scoped, tag = 'scoped memory for transformer_decoder_forward.1']
    #allocation19 [shape = 'u8[65536]{0}', space=vmem, size = 0x10000, scoped, tag = 'input window, operand 17, single buffered']
    #allocation20 [shape = 'u8[8192]{0}', space=vmem, size = 0x2000, scoped, tag = 'output window, operand 0']
    #allocation21 [shape = 'u8[8192]{0}', space=vmem, size = 0x2000, scoped, tag = 'output window, operand 1']
    #allocation22 [shape = 's32[2]{0}', space=sflag, size = 0x8, scoped, tag = 'scoped memory for transformer_decoder_forward.1']
    %29 = vsyncpa [#allocation3], 0
    %s30 = scalar_lea.sflag [#allocation3], 1
    %31 = vsyncpa %s30, 0
    %32 = vsyncpa [#allocation6], 0
    %33 = vsyncpa [#allocation9], 0
    %34 = vsyncpa [#allocation12], 0
    %35 = vsyncpa [#allocation15], 0
    %36 = vsyncpa [#allocation18], 0
    %37 = vsyncpa [#allocation4], 0
    %s38 = scalar_lea.sflag [#allocation4], 1
    %39 = vsyncpa %s38, 0
    %40 = vsyncpa [#allocation22], 0
    %s41 = scalar_lea.sflag [#allocation22], 1
    %42 = vsyncpa %s41, 0
    loop: start=0, step=1, limit=4
    $region2: #{transformer_decoder_forward.1} parent=1 // loop_pre_header
      _
    $region3: #{transformer_decoder_forward.1} parent=1 // loop_header
      %s44 = sphi 0, %s48
      %p45 = scmp.ge.s32.totalorder %s44, 4
      %s54 = sphi 0, %s56
      %s57 = sphi 0, %s54
      %s58 = sphi 0, %s57
      %s74 = sphi 0, %s58
      %s78 = sphi 0, %s78
      %s80 = sphi 0, %s78
      %s81 = sphi 0, %s80
      %s95 = sphi 0, %s81
      %s101 = sphi 0, %s103
      %s104 = sphi 0, %s101
      %s105 = sphi 0, %s104
      %s121 = sphi 0, %s105
      %s127 = sphi 0, %s129
      %s130 = sphi 0, %s127
      %s131 = sphi 0, %s130
      %s147 = sphi 0, %s131
      %s153 = sphi 0, %s155
      %s156 = sphi 0, %s153
      %s157 = sphi 0, %s156
      %s173 = sphi 0, %s157
      %s177 = sphi 0, %s177
      %s179 = sphi 0, %s177
      %s180 = sphi 0, %s179
      %s194 = sphi 0, %s180
      %s198 = sphi 0, %s198
      %s200 = sphi 0, %s198
      %s201 = sphi 0, %s200
      %s215 = sphi 0, %s201
      %s219 = sphi 0, %s219
      %s221 = sphi 0, %s219
      %s222 = sphi 0, %s221
      %s236 = sphi 0, %s222
      %s240 = sphi 0, %s240
      %s242 = sphi 0, %s240
      %s243 = sphi 0, %s242
      %s257 = sphi 0, %s243
      %s261 = sphi 0, %s261
      %s263 = sphi 0, %s261
      %s264 = sphi 0, %s263
      %s278 = sphi 0, %s264
      %s282 = sphi 0, %s282
      %s284 = sphi 0, %s282
      %s285 = sphi 0, %s284
      %s299 = sphi 0, %s285
      %s303 = sphi 0, %s303
      %s305 = sphi 0, %s303
      %s306 = sphi 0, %s305
      %s320 = sphi 0, %s306
      %s324 = sphi 0, %s324
      %s326 = sphi 0, %s324
      %s327 = sphi 0, %s326
      %s341 = sphi 0, %s327
      %s345 = sphi 0, %s345
      %s347 = sphi 0, %s345
      %s348 = sphi 0, %s347
      %s362 = sphi 0, %s348
      %s366 = sphi 0, %s366
      %s368 = sphi 0, %s366
      %s369 = sphi 0, %s368
      %s383 = sphi 0, %s369
      %s387 = sphi 0, %s387
      %s389 = sphi 0, %s387
      %s390 = sphi 0, %s389
      %s404 = sphi 0, %s390
      %s408 = sphi 0, %s408
      %s410 = sphi 0, %s408
      %s411 = sphi 0, %s410
      %s425 = sphi 0, %s411
      %s429 = sphi 0, %s429
      %s431 = sphi 0, %s429
      %s432 = sphi 0, %s431
      %s446 = sphi 0, %s432
      %s450 = sphi 0, %s450
      %s452 = sphi 0, %s450
      %s453 = sphi 0, %s452
      %s467 = sphi 0, %s453
      %s471 = sphi 0, %s471
      %s473 = sphi 0, %s471
      %s474 = sphi 0, %s473
      %s488 = sphi 0, %s474
      %s492 = sphi 0, %s492
      %s494 = sphi 0, %s492
      %s495 = sphi 0, %s494
      %s509 = sphi 0, %s495
      %s513 = sphi 0, %s513
      %s515 = sphi 0, %s513
      %s516 = sphi 0, %s515
      %s530 = sphi 0, %s516
      %s536 = sphi 0, %s538
      %s539 = sphi 0, %s536
      %s540 = sphi 0, %s539
      %s556 = sphi 0, %s540
      %s562 = sphi 0, %s564
      %s565 = sphi 0, %s562
      %s566 = sphi 0, %s565
      %s582 = sphi 0, %s566
    $region4: #{transformer_decoder_forward.1} parent=1 // loop_header_branch
      %47 = sbr.rel (%p45) target = $region8
    $region5: #{transformer_decoder_forward.1} parent=1 // loop_body
      %s49 = ssub.s32 %s44, 1
      %s50 = ssub.s32 %s44, 2
      %s51 = sadd.s32 %s44, 1
      %s52 = ssub.s32 %s44, %s51
      %p53 = scmp.eq.s32.totalorder %s52, 0
      %s55 = sadd.s32 %s54, 1
      %s56 = scalar_select %p53, %s54, %s55
      %p59 = pneg %p53
      %p60 = scmp.eq.s32.totalorder %s44, 1
      %p61 = por %p59, %p60
      %p62 = scmp.ne.s32.totalorder %s54, %s57
      %p63 = scmp.eq.s32.totalorder %s44, 0
      %p64 = por %p62, %p63
      %p65 = scmp.ne.s32.totalorder %s54, %s57
      %p66 = scmp.eq.s32.totalorder %s49, 1
      %p67 = por %p65, %p66
      %p68 = scmp.ne.s32.totalorder %s57, %s58
      %p69 = scmp.eq.s32.totalorder %s49, 0
      %p70 = por %p68, %p69
      %p71 = scmp.ne.s32.totalorder %s57, %s58
      %p72 = scmp.eq.s32.totalorder %s50, 1
      %p73 = por %p71, %p72
      %p75 = scmp.ne.s32.totalorder %s58, %s74
      %p76 = scmp.eq.s32.totalorder %s50, 0
      %p77 = por %p75, %p76
      %s79 = sadd.s32 %s78, 1
      %p82 = scmp.eq.s32.totalorder %s44, 1
      %p83 = scmp.ne.s32.totalorder %s78, %s80
      %p84 = scmp.eq.s32.totalorder %s44, 0
      %p85 = por %p83, %p84
      %p86 = scmp.ne.s32.totalorder %s78, %s80
      %p87 = scmp.eq.s32.totalorder %s49, 1
      %p88 = por %p86, %p87
      %p89 = scmp.ne.s32.totalorder %s80, %s81
      %p90 = scmp.eq.s32.totalorder %s49, 0
      %p91 = por %p89, %p90
      %p92 = scmp.ne.s32.totalorder %s80, %s81
      %p93 = scmp.eq.s32.totalorder %s50, 1
      %p94 = por %p92, %p93
      %p96 = scmp.ne.s32.totalorder %s81, %s95
      %p97 = scmp.eq.s32.totalorder %s50, 0
      %p98 = por %p96, %p97
      %s99 = ssub.s32 %s44, %s51
      %p100 = scmp.eq.s32.totalorder %s99, 0
      %s102 = sadd.s32 %s101, 1
      %s103 = scalar_select %p100, %s101, %s102
      %p106 = pneg %p100
      %p107 = scmp.eq.s32.totalorder %s44, 1
      %p108 = por %p106, %p107
      %p109 = scmp.ne.s32.totalorder %s101, %s104
      %p110 = scmp.eq.s32.totalorder %s44, 0
      %p111 = por %p109, %p110
      %p112 = scmp.ne.s32.totalorder %s101, %s104
      %p113 = scmp.eq.s32.totalorder %s49, 1
      %p114 = por %p112, %p113
      %p115 = scmp.ne.s32.totalorder %s104, %s105
      %p116 = scmp.eq.s32.totalorder %s49, 0
      %p117 = por %p115, %p116
      %p118 = scmp.ne.s32.totalorder %s104, %s105
      %p119 = scmp.eq.s32.totalorder %s50, 1
      %p120 = por %p118, %p119
      %p122 = scmp.ne.s32.totalorder %s105, %s121
      %p123 = scmp.eq.s32.totalorder %s50, 0
      %p124 = por %p122, %p123
      %s125 = ssub.s32 %s44, %s51
      %p126 = scmp.eq.s32.totalorder %s125, 0
      %s128 = sadd.s32 %s127, 1
      %s129 = scalar_select %p126, %s127, %s128
      %p132 = pneg %p126
      %p133 = scmp.eq.s32.totalorder %s44, 1
      %p134 = por %p132, %p133
      %p135 = scmp.ne.s32.totalorder %s127, %s130
      %p136 = scmp.eq.s32.totalorder %s44, 0
      %p137 = por %p135, %p136
      %p138 = scmp.ne.s32.totalorder %s127, %s130
      %p139 = scmp.eq.s32.totalorder %s49, 1
      %p140 = por %p138, %p139
      %p141 = scmp.ne.s32.totalorder %s130, %s131
      %p142 = scmp.eq.s32.totalorder %s49, 0
      %p143 = por %p141, %p142
      %p144 = scmp.ne.s32.totalorder %s130, %s131
      %p145 = scmp.eq.s32.totalorder %s50, 1
      %p146 = por %p144, %p145
      %p148 = scmp.ne.s32.totalorder %s131, %s147
      %p149 = scmp.eq.s32.totalorder %s50, 0
      %p150 = por %p148, %p149
      %s151 = ssub.s32 %s44, %s51
      %p152 = scmp.eq.s32.totalorder %s151, 0
      %s154 = sadd.s32 %s153, 1
      %s155 = scalar_select %p152, %s153, %s154
      %p158 = pneg %p152
      %p159 = scmp.eq.s32.totalorder %s44, 1
      %p160 = por %p158, %p159
      %p161 = scmp.ne.s32.totalorder %s153, %s156
      %p162 = scmp.eq.s32.totalorder %s44, 0
      %p163 = por %p161, %p162
      %p164 = scmp.ne.s32.totalorder %s153, %s156
      %p165 = scmp.eq.s32.totalorder %s49, 1
      %p166 = por %p164, %p165
      %p167 = scmp.ne.s32.totalorder %s156, %s157
      %p168 = scmp.eq.s32.totalorder %s49, 0
      %p169 = por %p167, %p168
      %p170 = scmp.ne.s32.totalorder %s156, %s157
      %p171 = scmp.eq.s32.totalorder %s50, 1
      %p172 = por %p170, %p171
      %p174 = scmp.ne.s32.totalorder %s157, %s173
      %p175 = scmp.eq.s32.totalorder %s50, 0
      %p176 = por %p174, %p175
      %s178 = sadd.s32 %s177, 1
      %p181 = scmp.eq.s32.totalorder %s44, 1
      %p182 = scmp.ne.s32.totalorder %s177, %s179
      %p183 = scmp.eq.s32.totalorder %s44, 0
      %p184 = por %p182, %p183
      %p185 = scmp.ne.s32.totalorder %s177, %s179
      %p186 = scmp.eq.s32.totalorder %s49, 1
      %p187 = por %p185, %p186
      %p188 = scmp.ne.s32.totalorder %s179, %s180
      %p189 = scmp.eq.s32.totalorder %s49, 0
      %p190 = por %p188, %p189
      %p191 = scmp.ne.s32.totalorder %s179, %s180
      %p192 = scmp.eq.s32.totalorder %s50, 1
      %p193 = por %p191, %p192
      %p195 = scmp.ne.s32.totalorder %s180, %s194
      %p196 = scmp.eq.s32.totalorder %s50, 0
      %p197 = por %p195, %p196
      %s199 = sadd.s32 %s198, 1
      %p202 = scmp.eq.s32.totalorder %s44, 1
      %p203 = scmp.ne.s32.totalorder %s198, %s200
      %p204 = scmp.eq.s32.totalorder %s44, 0
      %p205 = por %p203, %p204
      %p206 = scmp.ne.s32.totalorder %s198, %s200
      %p207 = scmp.eq.s32.totalorder %s49, 1
      %p208 = por %p206, %p207
      %p209 = scmp.ne.s32.totalorder %s200, %s201
      %p210 = scmp.eq.s32.totalorder %s49, 0
      %p211 = por %p209, %p210
      %p212 = scmp.ne.s32.totalorder %s200, %s201
      %p213 = scmp.eq.s32.totalorder %s50, 1
      %p214 = por %p212, %p213
      %p216 = scmp.ne.s32.totalorder %s201, %s215
      %p217 = scmp.eq.s32.totalorder %s50, 0
      %p218 = por %p216, %p217
      %s220 = sadd.s32 %s219, 1
      %p223 = scmp.eq.s32.totalorder %s44, 1
      %p224 = scmp.ne.s32.totalorder %s219, %s221
      %p225 = scmp.eq.s32.totalorder %s44, 0
      %p226 = por %p224, %p225
      %p227 = scmp.ne.s32.totalorder %s219, %s221
      %p228 = scmp.eq.s32.totalorder %s49, 1
      %p229 = por %p227, %p228
      %p230 = scmp.ne.s32.totalorder %s221, %s222
      %p231 = scmp.eq.s32.totalorder %s49, 0
      %p232 = por %p230, %p231
      %p233 = scmp.ne.s32.totalorder %s221, %s222
      %p234 = scmp.eq.s32.totalorder %s50, 1
      %p235 = por %p233, %p234
      %p237 = scmp.ne.s32.totalorder %s222, %s236
      %p238 = scmp.eq.s32.totalorder %s50, 0
      %p239 = por %p237, %p238
      %s241 = sadd.s32 %s240, 1
      %p244 = scmp.eq.s32.totalorder %s44, 1
      %p245 = scmp.ne.s32.totalorder %s240, %s242
      %p246 = scmp.eq.s32.totalorder %s44, 0
      %p247 = por %p245, %p246
      %p248 = scmp.ne.s32.totalorder %s240, %s242
      %p249 = scmp.eq.s32.totalorder %s49, 1
      %p250 = por %p248, %p249
      %p251 = scmp.ne.s32.totalorder %s242, %s243
      %p252 = scmp.eq.s32.totalorder %s49, 0
      %p253 = por %p251, %p252
      %p254 = scmp.ne.s32.totalorder %s242, %s243
      %p255 = scmp.eq.s32.totalorder %s50, 1
      %p256 = por %p254, %p255
      %p258 = scmp.ne.s32.totalorder %s243, %s257
      %p259 = scmp.eq.s32.totalorder %s50, 0
      %p260 = por %p258, %p259
      %s262 = sadd.s32 %s261, 1
      %p265 = scmp.eq.s32.totalorder %s44, 1
      %p266 = scmp.ne.s32.totalorder %s261, %s263
      %p267 = scmp.eq.s32.totalorder %s44, 0
      %p268 = por %p266, %p267
      %p269 = scmp.ne.s32.totalorder %s261, %s263
      %p270 = scmp.eq.s32.totalorder %s49, 1
      %p271 = por %p269, %p270
      %p272 = scmp.ne.s32.totalorder %s263, %s264
      %p273 = scmp.eq.s32.totalorder %s49, 0
      %p274 = por %p272, %p273
      %p275 = scmp.ne.s32.totalorder %s263, %s264
      %p276 = scmp.eq.s32.totalorder %s50, 1
      %p277 = por %p275, %p276
      %p279 = scmp.ne.s32.totalorder %s264, %s278
      %p280 = scmp.eq.s32.totalorder %s50, 0
      %p281 = por %p279, %p280
      %s283 = sadd.s32 %s282, 1
      %p286 = scmp.eq.s32.totalorder %s44, 1
      %p287 = scmp.ne.s32.totalorder %s282, %s284
      %p288 = scmp.eq.s32.totalorder %s44, 0
      %p289 = por %p287, %p288
      %p290 = scmp.ne.s32.totalorder %s282, %s284
      %p291 = scmp.eq.s32.totalorder %s49, 1
      %p292 = por %p290, %p291
      %p293 = scmp.ne.s32.totalorder %s284, %s285
      %p294 = scmp.eq.s32.totalorder %s49, 0
      %p295 = por %p293, %p294
      %p296 = scmp.ne.s32.totalorder %s284, %s285
      %p297 = scmp.eq.s32.totalorder %s50, 1
      %p298 = por %p296, %p297
      %p300 = scmp.ne.s32.totalorder %s285, %s299
      %p301 = scmp.eq.s32.totalorder %s50, 0
      %p302 = por %p300, %p301
      %s304 = sadd.s32 %s303, 1
      %p307 = scmp.eq.s32.totalorder %s44, 1
      %p308 = scmp.ne.s32.totalorder %s303, %s305
      %p309 = scmp.eq.s32.totalorder %s44, 0
      %p310 = por %p308, %p309
      %p311 = scmp.ne.s32.totalorder %s303, %s305
      %p312 = scmp.eq.s32.totalorder %s49, 1
      %p313 = por %p311, %p312
      %p314 = scmp.ne.s32.totalorder %s305, %s306
      %p315 = scmp.eq.s32.totalorder %s49, 0
      %p316 = por %p314, %p315
      %p317 = scmp.ne.s32.totalorder %s305, %s306
      %p318 = scmp.eq.s32.totalorder %s50, 1
      %p319 = por %p317, %p318
      %p321 = scmp.ne.s32.totalorder %s306, %s320
      %p322 = scmp.eq.s32.totalorder %s50, 0
      %p323 = por %p321, %p322
      %s325 = sadd.s32 %s324, 1
      %p328 = scmp.eq.s32.totalorder %s44, 1
      %p329 = scmp.ne.s32.totalorder %s324, %s326
      %p330 = scmp.eq.s32.totalorder %s44, 0
      %p331 = por %p329, %p330
      %p332 = scmp.ne.s32.totalorder %s324, %s326
      %p333 = scmp.eq.s32.totalorder %s49, 1
      %p334 = por %p332, %p333
      %p335 = scmp.ne.s32.totalorder %s326, %s327
      %p336 = scmp.eq.s32.totalorder %s49, 0
      %p337 = por %p335, %p336
      %p338 = scmp.ne.s32.totalorder %s326, %s327
      %p339 = scmp.eq.s32.totalorder %s50, 1
      %p340 = por %p338, %p339
      %p342 = scmp.ne.s32.totalorder %s327, %s341
      %p343 = scmp.eq.s32.totalorder %s50, 0
      %p344 = por %p342, %p343
      %s346 = sadd.s32 %s345, 1
      %p349 = scmp.eq.s32.totalorder %s44, 1
      %p350 = scmp.ne.s32.totalorder %s345, %s347
      %p351 = scmp.eq.s32.totalorder %s44, 0
      %p352 = por %p350, %p351
      %p353 = scmp.ne.s32.totalorder %s345, %s347
      %p354 = scmp.eq.s32.totalorder %s49, 1
      %p355 = por %p353, %p354
      %p356 = scmp.ne.s32.totalorder %s347, %s348
      %p357 = scmp.eq.s32.totalorder %s49, 0
      %p358 = por %p356, %p357
      %p359 = scmp.ne.s32.totalorder %s347, %s348
      %p360 = scmp.eq.s32.totalorder %s50, 1
      %p361 = por %p359, %p360
      %p363 = scmp.ne.s32.totalorder %s348, %s362
      %p364 = scmp.eq.s32.totalorder %s50, 0
      %p365 = por %p363, %p364
      %s367 = sadd.s32 %s366, 1
      %p370 = scmp.eq.s32.totalorder %s44, 1
      %p371 = scmp.ne.s32.totalorder %s366, %s368
      %p372 = scmp.eq.s32.totalorder %s44, 0
      %p373 = por %p371, %p372
      %p374 = scmp.ne.s32.totalorder %s366, %s368
      %p375 = scmp.eq.s32.totalorder %s49, 1
      %p376 = por %p374, %p375
      %p377 = scmp.ne.s32.totalorder %s368, %s369
      %p378 = scmp.eq.s32.totalorder %s49, 0
      %p379 = por %p377, %p378
      %p380 = scmp.ne.s32.totalorder %s368, %s369
      %p381 = scmp.eq.s32.totalorder %s50, 1
      %p382 = por %p380, %p381
      %p384 = scmp.ne.s32.totalorder %s369, %s383
      %p385 = scmp.eq.s32.totalorder %s50, 0
      %p386 = por %p384, %p385
      %s388 = sadd.s32 %s387, 1
      %p391 = scmp.eq.s32.totalorder %s44, 1
      %p392 = scmp.ne.s32.totalorder %s387, %s389
      %p393 = scmp.eq.s32.totalorder %s44, 0
      %p394 = por %p392, %p393
      %p395 = scmp.ne.s32.totalorder %s387, %s389
      %p396 = scmp.eq.s32.totalorder %s49, 1
      %p397 = por %p395, %p396
      %p398 = scmp.ne.s32.totalorder %s389, %s390
      %p399 = scmp.eq.s32.totalorder %s49, 0
      %p400 = por %p398, %p399
      %p401 = scmp.ne.s32.totalorder %s389, %s390
      %p402 = scmp.eq.s32.totalorder %s50, 1
      %p403 = por %p401, %p402
      %p405 = scmp.ne.s32.totalorder %s390, %s404
      %p406 = scmp.eq.s32.totalorder %s50, 0
      %p407 = por %p405, %p406
      %s409 = sadd.s32 %s408, 1
      %p412 = scmp.eq.s32.totalorder %s44, 1
      %p413 = scmp.ne.s32.totalorder %s408, %s410
      %p414 = scmp.eq.s32.totalorder %s44, 0
      %p415 = por %p413, %p414
      %p416 = scmp.ne.s32.totalorder %s408, %s410
      %p417 = scmp.eq.s32.totalorder %s49, 1
      %p418 = por %p416, %p417
      %p419 = scmp.ne.s32.totalorder %s410, %s411
      %p420 = scmp.eq.s32.totalorder %s49, 0
      %p421 = por %p419, %p420
      %p422 = scmp.ne.s32.totalorder %s410, %s411
      %p423 = scmp.eq.s32.totalorder %s50, 1
      %p424 = por %p422, %p423
      %p426 = scmp.ne.s32.totalorder %s411, %s425
      %p427 = scmp.eq.s32.totalorder %s50, 0
      %p428 = por %p426, %p427
      %s430 = sadd.s32 %s429, 1
      %p433 = scmp.eq.s32.totalorder %s44, 1
      %p434 = scmp.ne.s32.totalorder %s429, %s431
      %p435 = scmp.eq.s32.totalorder %s44, 0
      %p436 = por %p434, %p435
      %p437 = scmp.ne.s32.totalorder %s429, %s431
      %p438 = scmp.eq.s32.totalorder %s49, 1
      %p439 = por %p437, %p438
      %p440 = scmp.ne.s32.totalorder %s431, %s432
      %p441 = scmp.eq.s32.totalorder %s49, 0
      %p442 = por %p440, %p441
      %p443 = scmp.ne.s32.totalorder %s431, %s432
      %p444 = scmp.eq.s32.totalorder %s50, 1
      %p445 = por %p443, %p444
      %p447 = scmp.ne.s32.totalorder %s432, %s446
      %p448 = scmp.eq.s32.totalorder %s50, 0
      %p449 = por %p447, %p448
      %s451 = sadd.s32 %s450, 1
      %p454 = scmp.eq.s32.totalorder %s44, 1
      %p455 = scmp.ne.s32.totalorder %s450, %s452
      %p456 = scmp.eq.s32.totalorder %s44, 0
      %p457 = por %p455, %p456
      %p458 = scmp.ne.s32.totalorder %s450, %s452
      %p459 = scmp.eq.s32.totalorder %s49, 1
      %p460 = por %p458, %p459
      %p461 = scmp.ne.s32.totalorder %s452, %s453
      %p462 = scmp.eq.s32.totalorder %s49, 0
      %p463 = por %p461, %p462
      %p464 = scmp.ne.s32.totalorder %s452, %s453
      %p465 = scmp.eq.s32.totalorder %s50, 1
      %p466 = por %p464, %p465
      %p468 = scmp.ne.s32.totalorder %s453, %s467
      %p469 = scmp.eq.s32.totalorder %s50, 0
      %p470 = por %p468, %p469
      %s472 = sadd.s32 %s471, 1
      %p475 = scmp.eq.s32.totalorder %s44, 1
      %p476 = scmp.ne.s32.totalorder %s471, %s473
      %p477 = scmp.eq.s32.totalorder %s44, 0
      %p478 = por %p476, %p477
      %p479 = scmp.ne.s32.totalorder %s471, %s473
      %p480 = scmp.eq.s32.totalorder %s49, 1
      %p481 = por %p479, %p480
      %p482 = scmp.ne.s32.totalorder %s473, %s474
      %p483 = scmp.eq.s32.totalorder %s49, 0
      %p484 = por %p482, %p483
      %p485 = scmp.ne.s32.totalorder %s473, %s474
      %p486 = scmp.eq.s32.totalorder %s50, 1
      %p487 = por %p485, %p486
      %p489 = scmp.ne.s32.totalorder %s474, %s488
      %p490 = scmp.eq.s32.totalorder %s50, 0
      %p491 = por %p489, %p490
      %s493 = sadd.s32 %s492, 1
      %p496 = scmp.eq.s32.totalorder %s44, 1
      %p497 = scmp.ne.s32.totalorder %s492, %s494
      %p498 = scmp.eq.s32.totalorder %s44, 0
      %p499 = por %p497, %p498
      %p500 = scmp.ne.s32.totalorder %s492, %s494
      %p501 = scmp.eq.s32.totalorder %s49, 1
      %p502 = por %p500, %p501
      %p503 = scmp.ne.s32.totalorder %s494, %s495
      %p504 = scmp.eq.s32.totalorder %s49, 0
      %p505 = por %p503, %p504
      %p506 = scmp.ne.s32.totalorder %s494, %s495
      %p507 = scmp.eq.s32.totalorder %s50, 1
      %p508 = por %p506, %p507
      %p510 = scmp.ne.s32.totalorder %s495, %s509
      %p511 = scmp.eq.s32.totalorder %s50, 0
      %p512 = por %p510, %p511
      %s514 = sadd.s32 %s513, 1
      %p517 = scmp.eq.s32.totalorder %s44, 1
      %p518 = scmp.ne.s32.totalorder %s513, %s515
      %p519 = scmp.eq.s32.totalorder %s44, 0
      %p520 = por %p518, %p519
      %p521 = scmp.ne.s32.totalorder %s513, %s515
      %p522 = scmp.eq.s32.totalorder %s49, 1
      %p523 = por %p521, %p522
      %p524 = scmp.ne.s32.totalorder %s515, %s516
      %p525 = scmp.eq.s32.totalorder %s49, 0
      %p526 = por %p524, %p525
      %p527 = scmp.ne.s32.totalorder %s515, %s516
      %p528 = scmp.eq.s32.totalorder %s50, 1
      %p529 = por %p527, %p528
      %p531 = scmp.ne.s32.totalorder %s516, %s530
      %p532 = scmp.eq.s32.totalorder %s50, 0
      %p533 = por %p531, %p532
      %s534 = ssub.s32 %s44, %s51
      %p535 = scmp.eq.s32.totalorder %s534, 0
      %s537 = sadd.s32 %s536, 1
      %s538 = scalar_select %p535, %s536, %s537
      %p541 = pneg %p535
      %p542 = scmp.eq.s32.totalorder %s44, 1
      %p543 = por %p541, %p542
      %p544 = scmp.ne.s32.totalorder %s536, %s539
      %p545 = scmp.eq.s32.totalorder %s44, 0
      %p546 = por %p544, %p545
      %p547 = scmp.ne.s32.totalorder %s536, %s539
      %p548 = scmp.eq.s32.totalorder %s49, 1
      %p549 = por %p547, %p548
      %p550 = scmp.ne.s32.totalorder %s539, %s540
      %p551 = scmp.eq.s32.totalorder %s49, 0
      %p552 = por %p550, %p551
      %p553 = scmp.ne.s32.totalorder %s539, %s540
      %p554 = scmp.eq.s32.totalorder %s50, 1
      %p555 = por %p553, %p554
      %p557 = scmp.ne.s32.totalorder %s540, %s556
      %p558 = scmp.eq.s32.totalorder %s50, 0
      %p559 = por %p557, %p558
      %s560 = ssub.s32 %s44, %s51
      %p561 = scmp.eq.s32.totalorder %s560, 0
      %s563 = sadd.s32 %s562, 1
      %s564 = scalar_select %p561, %s562, %s563
      %p567 = pneg %p561
      %p568 = scmp.eq.s32.totalorder %s44, 1
      %p569 = por %p567, %p568
      %p570 = scmp.ne.s32.totalorder %s562, %s565
      %p571 = scmp.eq.s32.totalorder %s44, 0
      %p572 = por %p570, %p571
      %p573 = scmp.ne.s32.totalorder %s562, %s565
      %p574 = scmp.eq.s32.totalorder %s49, 1
      %p575 = por %p573, %p574
      %p576 = scmp.ne.s32.totalorder %s565, %s566
      %p577 = scmp.eq.s32.totalorder %s49, 0
      %p578 = por %p576, %p577
      %p579 = scmp.ne.s32.totalorder %s565, %s566
      %p580 = scmp.eq.s32.totalorder %s50, 1
      %p581 = por %p579, %p580
      %p583 = scmp.ne.s32.totalorder %s566, %s582
      %p584 = scmp.eq.s32.totalorder %s50, 0
      %p585 = por %p583, %p584
      %p586 = scmp.le.s32.totalorder 1, %s44
      %p587 = scmp.lt.s32.totalorder %s44, 3
      %p588 = pnand %p586, %p587
      %p589 = pneg %p588
      // Predicated region
      $region9: #{transformer_decoder_forward.1} parent=5 // pred_check
        _
      $region10: #{transformer_decoder_forward.1} parent=5 // pred_check_branch
        %591 = sbr.rel (%p588) target = $region12
      $region11: #{transformer_decoder_forward.1} parent=5 // pred_region
        %s592 = ssub.s32 %s44, 1
        // Predicated region
        $region13: #{transformer_decoder_forward.1} parent=11 // pred_check
          %p593 = pneg %p91
        $region14: #{transformer_decoder_forward.1} parent=11 // pred_check_branch
          %595 = sbr.rel (%p593) target = $region16
        $region15: #{transformer_decoder_forward.1} parent=11 // pred_region
          _
        $region16: #{transformer_decoder_forward.1} parent=11 // pred_fallthru
          _
        // Predicated region
        $region17: #{transformer_decoder_forward.1} parent=11 // pred_check
          %p596 = pneg %p190
        $region18: #{transformer_decoder_forward.1} parent=11 // pred_check_branch
          %598 = sbr.rel (%p596) target = $region20
        $region19: #{transformer_decoder_forward.1} parent=11 // pred_region
          _
        $region20: #{transformer_decoder_forward.1} parent=11 // pred_fallthru
          _
        // Predicated region
        $region21: #{transformer_decoder_forward.1} parent=11 // pred_check
          %p599 = pneg %p211
        $region22: #{transformer_decoder_forward.1} parent=11 // pred_check_branch
          %601 = sbr.rel (%p599) target = $region24
        $region23: #{transformer_decoder_forward.1} parent=11 // pred_region
          _
        $region24: #{transformer_decoder_forward.1} parent=11 // pred_fallthru
          _
        // Predicated region
        $region25: #{transformer_decoder_forward.1} parent=11 // pred_check
          %p602 = pneg %p232
        $region26: #{transformer_decoder_forward.1} parent=11 // pred_check_branch
          %604 = sbr.rel (%p602) target = $region28
        $region27: #{transformer_decoder_forward.1} parent=11 // pred_region
          %s606 = ssub.s32 2048, 2048
          %607 = vsyncadd [#allocation6], %s606
          %s608 = sshll.u32 [#allocation5], 4
          %s609 = int_to_ptr.vmem [resolvable:$true] %s608
          %614 = dma.hbm_to_vmem [thread:$0]  %s7, 2048, %s609, [#allocation6], 128, 128, 8
        $region28: #{transformer_decoder_forward.1} parent=11 // pred_fallthru
          _
        // Predicated region
        $region29: #{transformer_decoder_forward.1} parent=11 // pred_check
          %p615 = pneg %p253
        $region30: #{transformer_decoder_forward.1} parent=11 // pred_check_branch
          %617 = sbr.rel (%p615) target = $region32
        $region31: #{transformer_decoder_forward.1} parent=11 // pred_region
          %s619 = ssub.s32 64, 64
          %620 = vsyncadd [#allocation6], %s619
          %s621 = sshll.u32 [#allocation7], 4
          %s622 = int_to_ptr.vmem [resolvable:$true] %s621
          %627 = dma.hbm_to_vmem [thread:$0]  %s8, 64, %s622, [#allocation6], 32, 32, 2
        $region32: #{transformer_decoder_forward.1} parent=11 // pred_fallthru
          _
        // Predicated region
        $region33: #{transformer_decoder_forward.1} parent=11 // pred_check
          %p628 = pneg %p274
        $region34: #{transformer_decoder_forward.1} parent=11 // pred_check_branch
          %630 = sbr.rel (%p628) target = $region36
        $region35: #{transformer_decoder_forward.1} parent=11 // pred_region
          %s632 = ssub.s32 1024, 1024
          %633 = vsyncadd [#allocation9], %s632
          %s634 = sshll.u32 [#allocation8], 4
          %s635 = int_to_ptr.vmem [resolvable:$true] %s634
          %640 = dma.hbm_to_vmem [thread:$0]  %s9, 1024, %s635, [#allocation9], 64, 64, 4
        $region36: #{transformer_decoder_forward.1} parent=11 // pred_fallthru
          _
        // Predicated region
        $region37: #{transformer_decoder_forward.1} parent=11 // pred_check
          %p641 = pneg %p295
        $region38: #{transformer_decoder_forward.1} parent=11 // pred_check_branch
          %643 = sbr.rel (%p641) target = $region40
        $region39: #{transformer_decoder_forward.1} parent=11 // pred_region
          %s645 = ssub.s32 32, 32
          %646 = vsyncadd [#allocation9], %s645
          %s647 = sshll.u32 [#allocation10], 4
          %s648 = int_to_ptr.vmem [resolvable:$true] %s647
          %653 = dma.hbm_to_vmem [thread:$0]  %s10, 32, %s648, [#allocation9], 16, 16, 1
        $region40: #{transformer_decoder_forward.1} parent=11 // pred_fallthru
          _
        // Predicated region
        $region41: #{transformer_decoder_forward.1} parent=11 // pred_check
          %p654 = pneg %p316
        $region42: #{transformer_decoder_forward.1} parent=11 // pred_check_branch
          %656 = sbr.rel (%p654) target = $region44
        $region43: #{transformer_decoder_forward.1} parent=11 // pred_region
          %s658 = ssub.s32 1024, 1024
          %659 = vsyncadd [#allocation12], %s658
          %s660 = sshll.u32 [#allocation11], 4
          %s661 = int_to_ptr.vmem [resolvable:$true] %s660
          %666 = dma.hbm_to_vmem [thread:$0]  %s11, 1024, %s661, [#allocation12], 64, 64, 4
        $region44: #{transformer_decoder_forward.1} parent=11 // pred_fallthru
          _
        // Predicated region
        $region45: #{transformer_decoder_forward.1} parent=11 // pred_check
          %p667 = pneg %p337
        $region46: #{transformer_decoder_forward.1} parent=11 // pred_check_branch
          %669 = sbr.rel (%p667) target = $region48
        $region47: #{transformer_decoder_forward.1} parent=11 // pred_region
          %s671 = ssub.s32 32, 32
          %672 = vsyncadd [#allocation12], %s671
          %s673 = sshll.u32 [#allocation13], 4
          %s674 = int_to_ptr.vmem [resolvable:$true] %s673
          %679 = dma.hbm_to_vmem [thread:$0]  %s12, 32, %s674, [#allocation12], 16, 16, 1
        $region48: #{transformer_decoder_forward.1} parent=11 // pred_fallthru
          _
        // Predicated region
        $region49: #{transformer_decoder_forward.1} parent=11 // pred_check
          %p680 = pneg %p358
        $region50: #{transformer_decoder_forward.1} parent=11 // pred_check_branch
          %682 = sbr.rel (%p680) target = $region52
        $region51: #{transformer_decoder_forward.1} parent=11 // pred_region
          %s684 = ssub.s32 2048, 2048
          %685 = vsyncadd [#allocation15], %s684
          %s686 = sshll.u32 [#allocation14], 4
          %s687 = int_to_ptr.vmem [resolvable:$true] %s686
          %692 = dma.hbm_to_vmem [thread:$0]  %s13, 2048, %s687, [#allocation15], 64, 64, 4
        $region52: #{transformer_decoder_forward.1} parent=11 // pred_fallthru
          _
        // Predicated region
        $region53: #{transformer_decoder_forward.1} parent=11 // pred_check
          %p693 = pneg %p379
        $region54: #{transformer_decoder_forward.1} parent=11 // pred_check_branch
          %695 = sbr.rel (%p693) target = $region56
        $region55: #{transformer_decoder_forward.1} parent=11 // pred_region
          _
        $region56: #{transformer_decoder_forward.1} parent=11 // pred_fallthru
          _
        // Predicated region
        $region57: #{transformer_decoder_forward.1} parent=11 // pred_check
          %p696 = pneg %p400
        $region58: #{transformer_decoder_forward.1} parent=11 // pred_check_branch
          %698 = sbr.rel (%p696) target = $region60
        $region59: #{transformer_decoder_forward.1} parent=11 // pred_region
          %s700 = ssub.s32 1024, 1024
          %701 = vsyncadd [#allocation15], %s700
          %s702 = sshll.u32 [#allocation16], 4
          %s703 = int_to_ptr.vmem [resolvable:$true] %s702
          %708 = dma.hbm_to_vmem [thread:$0]  %s15, 1024, %s703, [#allocation15], 64, 64, 4
        $region60: #{transformer_decoder_forward.1} parent=11 // pred_fallthru
          _
        // Predicated region
        $region61: #{transformer_decoder_forward.1} parent=11 // pred_check
          %p709 = pneg %p421
        $region62: #{transformer_decoder_forward.1} parent=11 // pred_check_branch
          %711 = sbr.rel (%p709) target = $region64
        $region63: #{transformer_decoder_forward.1} parent=11 // pred_region
          %s713 = ssub.s32 32, 32
          %714 = vsyncadd [#allocation18], %s713
          %s715 = sshll.u32 [#allocation17], 4
          %s716 = int_to_ptr.vmem [resolvable:$true] %s715
          %721 = dma.hbm_to_vmem [thread:$0]  %s16, 32, %s716, [#allocation18], 16, 16, 1
        $region64: #{transformer_decoder_forward.1} parent=11 // pred_fallthru
          _
        // Predicated region
        $region65: #{transformer_decoder_forward.1} parent=11 // pred_check
          %p722 = pneg %p442
        $region66: #{transformer_decoder_forward.1} parent=11 // pred_check_branch
          %724 = sbr.rel (%p722) target = $region68
        $region67: #{transformer_decoder_forward.1} parent=11 // pred_region
          %s726 = ssub.s32 2048, 2048
          %727 = vsyncadd [#allocation18], %s726
          %s728 = sshll.u32 [#allocation19], 4
          %s729 = int_to_ptr.vmem [resolvable:$true] %s728
          %734 = dma.hbm_to_vmem [thread:$0]  %s17, 2048, %s729, [#allocation18], 64, 64, 4
        $region68: #{transformer_decoder_forward.1} parent=11 // pred_fallthru
          _
        // Predicated region
        $region69: #{transformer_decoder_forward.1} parent=11 // pred_check
          %p735 = pneg %p463
        $region70: #{transformer_decoder_forward.1} parent=11 // pred_check_branch
          %737 = sbr.rel (%p735) target = $region72
        $region71: #{transformer_decoder_forward.1} parent=11 // pred_region
          _
        $region72: #{transformer_decoder_forward.1} parent=11 // pred_fallthru
          _
        // Predicated region
        $region73: #{transformer_decoder_forward.1} parent=11 // pred_check
          %p738 = pneg %p484
        $region74: #{transformer_decoder_forward.1} parent=11 // pred_check_branch
          %740 = sbr.rel (%p738) target = $region76
        $region75: #{transformer_decoder_forward.1} parent=11 // pred_region
          _
        $region76: #{transformer_decoder_forward.1} parent=11 // pred_fallthru
          _
        // Predicated region
        $region77: #{transformer_decoder_forward.1} parent=11 // pred_check
          %p741 = pneg %p505
        $region78: #{transformer_decoder_forward.1} parent=11 // pred_check_branch
          %743 = sbr.rel (%p741) target = $region80
        $region79: #{transformer_decoder_forward.1} parent=11 // pred_region
          _
        $region80: #{transformer_decoder_forward.1} parent=11 // pred_fallthru
          _
        // Predicated region
        $region81: #{transformer_decoder_forward.1} parent=11 // pred_check
          %p744 = pneg %p526
        $region82: #{transformer_decoder_forward.1} parent=11 // pred_check_branch
          %746 = sbr.rel (%p744) target = $region84
        $region83: #{transformer_decoder_forward.1} parent=11 // pred_region
          _
        $region84: #{transformer_decoder_forward.1} parent=11 // pred_fallthru
          _
      $region12: #{transformer_decoder_forward.1} parent=5 // pred_fallthru
        _
      %p747 = scmp.lt.s32.totalorder %s44, 2
      // Predicated region
      $region85: #{transformer_decoder_forward.1} parent=5 // pred_check
        %p748 = pneg %p747
      $region86: #{transformer_decoder_forward.1} parent=5 // pred_check_branch
        %750 = sbr.rel (%p748) target = $region88
      $region87: #{transformer_decoder_forward.1} parent=5 // pred_region
        // Predicated region
        $region89: #{transformer_decoder_forward.1} parent=87 // pred_check
          %p751 = pneg %p64
        $region90: #{transformer_decoder_forward.1} parent=87 // pred_check_branch
          %753 = sbr.rel (%p751) target = $region92
        $region91: #{transformer_decoder_forward.1} parent=87 // pred_region
          %p754 = scmp.lt.s32.totalorder %s44, 1
          %s755 = scalar_select %p754, %s44, 1
          %s756 = smul.addr %s755, 8
          %s757 = scalar_lea.vmem %s0, %s756
        $region92: #{transformer_decoder_forward.1} parent=87 // pred_fallthru
          _
        // Predicated region
        $region93: #{transformer_decoder_forward.1} parent=87 // pred_check
          %p758 = pneg %p111
        $region94: #{transformer_decoder_forward.1} parent=87 // pred_check_branch
          %760 = sbr.rel (%p758) target = $region96
        $region95: #{transformer_decoder_forward.1} parent=87 // pred_region
          %s761 = sand.u32 %s101, 1
          %s762 = scalar_lea.sflag [#allocation3], %s761
          %s763 = sand.u32 %s101, 1
          %s764 = smul.addr %s763, 8
          %s765 = scalar_lea.vmem [#allocation2], %s764
          %s767 = ssub.s32 128, 128
          %768 = vsyncadd %s762, %s767
          %s769 = smul.addr %s44, 128
          %s770 = scalar_lea.hbm %s2, %s769
          %s772 = sshll.u32 %s765, 4
          %s773 = int_to_ptr.vmem [resolvable:$true] %s772
          %775 = dma.hbm_to_vmem [thread:$0]  %s770, 128, %s773, %s762
        $region96: #{transformer_decoder_forward.1} parent=87 // pred_fallthru
          _
        // Predicated region
        $region97: #{transformer_decoder_forward.1} parent=87 // pred_check
          %p776 = pneg %p137
        $region98: #{transformer_decoder_forward.1} parent=87 // pred_check_branch
          %778 = sbr.rel (%p776) target = $region100
        $region99: #{transformer_decoder_forward.1} parent=87 // pred_region
          %p779 = scmp.lt.s32.totalorder %s44, 1
          %s780 = scalar_select %p779, %s44, 1
          %s781 = scalar_lea.vmem %s3, %s780
        $region100: #{transformer_decoder_forward.1} parent=87 // pred_fallthru
          _
        // Predicated region
        $region101: #{transformer_decoder_forward.1} parent=87 // pred_check
          %p782 = pneg %p163
        $region102: #{transformer_decoder_forward.1} parent=87 // pred_check_branch
          %784 = sbr.rel (%p782) target = $region104
        $region103: #{transformer_decoder_forward.1} parent=87 // pred_region
          %p785 = scmp.lt.s32.totalorder %s44, 1
          %s786 = scalar_select %p785, %s44, 1
          %s787 = scalar_lea.vmem %s4, %s786
        $region104: #{transformer_decoder_forward.1} parent=87 // pred_fallthru
          _
      $region88: #{transformer_decoder_forward.1} parent=5 // pred_fallthru
        _
      %p788 = scmp.le.s32.totalorder 1, %s44
      %p789 = scmp.lt.s32.totalorder %s44, 3
      %p790 = pnand %p788, %p789
      %p791 = pneg %p790
      // Predicated region
      $region105: #{transformer_decoder_forward.1} parent=5 // pred_check
        _
      $region106: #{transformer_decoder_forward.1} parent=5 // pred_check_branch
        %793 = sbr.rel (%p790) target = $region108
      $region107: #{transformer_decoder_forward.1} parent=5 // pred_region
        %s794 = ssub.s32 %s44, 1
        %s795 = sand.u32 %s104, 1
        %s796 = scalar_lea.sflag [#allocation3], %s795
        %s797 = sand.u32 %s104, 1
        %s798 = smul.addr %s797, 8
        %s799 = scalar_lea.vmem [#allocation2], %s798
        // Predicated region
        $region109: #{transformer_decoder_forward.1} parent=107 // pred_check
          %p800 = pneg %p117
        $region110: #{transformer_decoder_forward.1} parent=107 // pred_check_branch
          %802 = sbr.rel (%p800) target = $region112
        $region111: #{transformer_decoder_forward.1} parent=107 // pred_region
          %803 = dma.done %s796, 128
        $region112: #{transformer_decoder_forward.1} parent=107 // pred_fallthru
          _
        // Predicated region
        $region113: #{transformer_decoder_forward.1} parent=107 // pred_check
          %p804 = pneg %p232
        $region114: #{transformer_decoder_forward.1} parent=107 // pred_check_branch
          %806 = sbr.rel (%p804) target = $region116
        $region115: #{transformer_decoder_forward.1} parent=107 // pred_region
          %807 = dma.done [#allocation6], 2048
        $region116: #{transformer_decoder_forward.1} parent=107 // pred_fallthru
          _
        // Predicated region
        $region117: #{transformer_decoder_forward.1} parent=107 // pred_check
          %p808 = pneg %p253
        $region118: #{transformer_decoder_forward.1} parent=107 // pred_check_branch
          %810 = sbr.rel (%p808) target = $region120
        $region119: #{transformer_decoder_forward.1} parent=107 // pred_region
          %811 = dma.done [#allocation6], 64
        $region120: #{transformer_decoder_forward.1} parent=107 // pred_fallthru
          _
        // Predicated region
        $region121: #{transformer_decoder_forward.1} parent=107 // pred_check
          %p812 = pneg %p274
        $region122: #{transformer_decoder_forward.1} parent=107 // pred_check_branch
          %814 = sbr.rel (%p812) target = $region124
        $region123: #{transformer_decoder_forward.1} parent=107 // pred_region
          %815 = dma.done [#allocation9], 1024
        $region124: #{transformer_decoder_forward.1} parent=107 // pred_fallthru
          _
        // Predicated region
        $region125: #{transformer_decoder_forward.1} parent=107 // pred_check
          %p816 = pneg %p295
        $region126: #{transformer_decoder_forward.1} parent=107 // pred_check_branch
          %818 = sbr.rel (%p816) target = $region128
        $region127: #{transformer_decoder_forward.1} parent=107 // pred_region
          %819 = dma.done [#allocation9], 32
        $region128: #{transformer_decoder_forward.1} parent=107 // pred_fallthru
          _
        // Predicated region
        $region129: #{transformer_decoder_forward.1} parent=107 // pred_check
          %p820 = pneg %p316
        $region130: #{transformer_decoder_forward.1} parent=107 // pred_check_branch
          %822 = sbr.rel (%p820) target = $region132
        $region131: #{transformer_decoder_forward.1} parent=107 // pred_region
          %823 = dma.done [#allocation12], 1024
        $region132: #{transformer_decoder_forward.1} parent=107 // pred_fallthru
          _
        // Predicated region
        $region133: #{transformer_decoder_forward.1} parent=107 // pred_check
          %p824 = pneg %p337
        $region134: #{transformer_decoder_forward.1} parent=107 // pred_check_branch
          %826 = sbr.rel (%p824) target = $region136
        $region135: #{transformer_decoder_forward.1} parent=107 // pred_region
          %827 = dma.done [#allocation12], 32
        $region136: #{transformer_decoder_forward.1} parent=107 // pred_fallthru
          _
        // Predicated region
        $region137: #{transformer_decoder_forward.1} parent=107 // pred_check
          %p828 = pneg %p358
        $region138: #{transformer_decoder_forward.1} parent=107 // pred_check_branch
          %830 = sbr.rel (%p828) target = $region140
        $region139: #{transformer_decoder_forward.1} parent=107 // pred_region
          %831 = dma.done [#allocation15], 2048
        $region140: #{transformer_decoder_forward.1} parent=107 // pred_fallthru
          _
        // Predicated region
        $region141: #{transformer_decoder_forward.1} parent=107 // pred_check
          %p832 = pneg %p400
        $region142: #{transformer_decoder_forward.1} parent=107 // pred_check_branch
          %834 = sbr.rel (%p832) target = $region144
        $region143: #{transformer_decoder_forward.1} parent=107 // pred_region
          %835 = dma.done [#allocation15], 1024
        $region144: #{transformer_decoder_forward.1} parent=107 // pred_fallthru
          _
        // Predicated region
        $region145: #{transformer_decoder_forward.1} parent=107 // pred_check
          %p836 = pneg %p421
        $region146: #{transformer_decoder_forward.1} parent=107 // pred_check_branch
          %838 = sbr.rel (%p836) target = $region148
        $region147: #{transformer_decoder_forward.1} parent=107 // pred_region
          %839 = dma.done [#allocation18], 32
        $region148: #{transformer_decoder_forward.1} parent=107 // pred_fallthru
          _
        // Predicated region
        $region149: #{transformer_decoder_forward.1} parent=107 // pred_check
          %p840 = pneg %p442
        $region150: #{transformer_decoder_forward.1} parent=107 // pred_check_branch
          %842 = sbr.rel (%p840) target = $region152
        $region151: #{transformer_decoder_forward.1} parent=107 // pred_region
          %843 = dma.done [#allocation18], 2048
        $region152: #{transformer_decoder_forward.1} parent=107 // pred_fallthru
          _
        %p844 = scmp.lt.s32.totalorder %s49, 1
        %s845 = scalar_select %p844, %s49, 1
        %s846 = smul.addr %s845, 8
        %s847 = scalar_lea.vmem %s0, %s846
        %p848 = pneg %p70
        %p849 = pneg %p67
        %p850 = pneg %p91
        %p851 = pneg %p88
        %s852 = sand.u32 %s104, 1
        %s853 = scalar_lea.sflag [#allocation3], %s852
        %s854 = sand.u32 %s104, 1
        %s855 = smul.addr %s854, 8
        %s856 = scalar_lea.vmem [#allocation2], %s855
        %p857 = pneg %p117
        %p858 = pneg %p114
        %p859 = scmp.lt.s32.totalorder %s49, 1
        %s860 = scalar_select %p859, %s49, 1
        %s861 = scalar_lea.vmem %s3, %s860
        %p862 = pneg %p143
        %p863 = pneg %p140
        %p864 = scmp.lt.s32.totalorder %s49, 1
        %s865 = scalar_select %p864, %s49, 1
        %s866 = scalar_lea.vmem %s4, %s865
        %p867 = pneg %p169
        %p868 = pneg %p166
        %p869 = pneg %p190
        %p870 = pneg %p187
        %p871 = pneg %p211
        %p872 = pneg %p208
        %p873 = pneg %p232
        %p874 = pneg %p229
        %p875 = pneg %p253
        %p876 = pneg %p250
        %p877 = pneg %p274
        %p878 = pneg %p271
        %p879 = pneg %p295
        %p880 = pneg %p292
        %p881 = pneg %p316
        %p882 = pneg %p313
        %p883 = pneg %p337
        %p884 = pneg %p334
        %p885 = pneg %p358
        %p886 = pneg %p355
        %p887 = pneg %p379
        %p888 = pneg %p376
        %p889 = pneg %p400
        %p890 = pneg %p397
        %p891 = pneg %p421
        %p892 = pneg %p418
        %p893 = pneg %p442
        %p894 = pneg %p439
        %p895 = pneg %p463
        %p896 = pneg %p460
        %p897 = pneg %p484
        %p898 = pneg %p481
        %p899 = pneg %p505
        %p900 = pneg %p502
        %p901 = pneg %p526
        %p902 = pneg %p523
        %p903 = pneg %p552
        %p904 = pneg %p549
        %s905 = sand.u32 %s539, 1
        %s906 = scalar_lea.sflag [#allocation4], %s905
        %s907 = sand.u32 %s539, 1
        %s908 = smul.addr %s907, 8
        %s909 = scalar_lea.vmem [#allocation20], %s908
        %p910 = pneg %p578
        %p911 = pneg %p575
        %s912 = sand.u32 %s565, 1
        %s913 = scalar_lea.sflag [#allocation22], %s912
        %s914 = sand.u32 %s565, 1
        %s915 = smul.addr %s914, 8
        %s916 = scalar_lea.vmem [#allocation21], %s915
        %p917 = scmp.lt.s32.totalorder %s49, 1
        %s918 = scalar_select %p917, %s49, 1
        %s919 = smul.addr %s918, 8
        %s920 = scalar_lea.vmem %s0, %s919
        %p921 = scmp.lt.s32.totalorder %s49, 1
        %s922 = scalar_select %p921, %s49, 1
        %s923 = scalar_lea.vmem %s3, %s922
        %p924 = scmp.lt.s32.totalorder %s49, 1
        %s925 = scalar_select %p924, %s49, 1
        %s926 = scalar_lea.vmem %s4, %s925
        %v928 = vld [vmem:[%s920] sm:$0xff]
        %v929 = vld [vmem:[%s1] sm:$0xff]
        %v930 = vadd.f32 %v928, %v929
        %v931 = vld [vmem:[%s799] sm:$0xff]
        %v932 = vlaneseq
        %v933 = vshrl.u32 %v932, 7
        %v934 = vlaneseq
        %v935 = vand.u32 %v934, 127
        %vm936 = vcmp.le.s32.totalorder %v935, %v933
        %v937 = vld [vmem:[%s923] sm:$0x1]
        %vm938 = vcmp.gt.f32.partialorder %v937, 0.5
        %v939 = vsel %vm938, 1, 0
        %v940 = vlaneseq
        %v941 = vshrl.u32 %v940, 7
        %v942 = vsub.s32 0, %v941
        %v943 = vrot.slane %v939, %v942
        %vm944 = vcmp.eq.s32.totalorder %v943, 1
        %vm945 = vmand %vm936, %vm944
        %v946 = vsel %vm945, 0.0, -1e+30
        %v947 = vld [vmem:[%s926] sm:$0x1]
        %vm948 = vcmp.gt.f32.partialorder %v947, 0.5
        %v949 = vsel %vm948, 0.0, -1e+30
        %v950 = vld [vmem:[%s5] sm:$0x1]
        %v951 = vld [vmem:[%s6] sm:$0x1]
        %vm952 = vcmask 523264
        %v953 = vsel %vm952, %v930, 0.0
        %954 = vadd.xlane.f32.xlu0 %v953
        %v955 = vpop.xlane.xlu0 %954
        %v956 = vrcp.pop 64.0
        %v957 = vmul.f32 %v955, %v956
        %v958 = vsub.f32 %v930, %v957
        %v959 = vmul.f32 %v958, %v958
        %v960 = vsel %vm952, %v959, 0.0
        %961 = vadd.xlane.f32.xlu0 %v960
        %v962 = vpop.xlane.xlu0 %961
        %v963 = vmul.f32 %v962, %v956
        %v964 = vadd.f32 %v963, 1e-06
        %v965 = vrsqrt.pop %v964
        %v966 = vmul.f32 %v958, %v965
        %v968 = vlaneseq
        %v969 = vshrl.u32 %v968, 7
        %v970 = vsub.s32 0, %v969
        %v971 = vrot.slane %v950, %v970
        %v973 = vmul.f32 %v966, %v971
        %v975 = vlaneseq
        %v976 = vshrl.u32 %v975, 7
        %v977 = vsub.s32 0, %v976
        %v978 = vrot.slane %v951, %v977
        %v980 = vadd.f32 %v973, %v978
        %v981 = vpack.c.bf16 %v980, %v980
        %v982 = vld [vmem:[#allocation5] sm:$0xff]
        %v983 = vld [vmem:[#allocation5 + $0x8] sm:$0xff]
        %v984 = vld [vmem:[#allocation5 + $0x10] sm:$0xff]
        %v985 = vld [vmem:[#allocation5 + $0x18] sm:$0xff]
        %v986 = vld [vmem:[#allocation5 + $0x20] sm:$0xff]
        %v987 = vld [vmem:[#allocation5 + $0x28] sm:$0xff]
        %v988 = vld [vmem:[#allocation5 + $0x30] sm:$0xff]
        %v989 = vld [vmem:[#allocation5 + $0x38] sm:$0xff]
        %v990 = vld [vmem:[#allocation7] sm:$0x3]
        %v992 = vlaneseq
        %v993 = vshrl.u32 %v992, 7
        %v994 = vsub.s32 0, %v993
        %v995 = vrot.slane %v990, %v994
        %v996 = vlaneseq
        %v997 = vshrl.u32 %v996, 7
        %v998 = vsub.s32 1, %v997
        %v999 = vrot.slane %v990, %v998
        %v1010 = vunpack.c.l.b16 %v982
        %v1011 = vunpack.c.h.b16 %v982
        %v1012 = vunpack.c.l.b16 %v983
        %v1013 = vunpack.c.h.b16 %v983
        %v1014 = vunpack.c.l.b16 %v984
        %v1015 = vunpack.c.h.b16 %v984
        %v1016 = vunpack.c.l.b16 %v985
        %v1017 = vunpack.c.h.b16 %v985
        %v1018 = vunpack.c.l.b16 %v986
        %v1019 = vunpack.c.h.b16 %v986
        %v1020 = vunpack.c.l.b16 %v987
        %v1021 = vunpack.c.h.b16 %v987
        %v1022 = vunpack.c.l.b16 %v988
        %v1023 = vunpack.c.h.b16 %v988
        %v1024 = vunpack.c.l.b16 %v989
        %v1025 = vunpack.c.h.b16 %v989
        %v1026 = vpack.c.b16 %v1012, %v1010
        %v1027 = vpack.c.b16 %v1013, %v1011
        %v1028 = vpack.c.b16 %v1016, %v1014
        %v1029 = vpack.c.b16 %v1017, %v1015
        %v1030 = vpack.c.b16 %v1020, %v1018
        %v1031 = vpack.c.b16 %v1021, %v1019
        %v1032 = vpack.c.b16 %v1024, %v1022
        %v1033 = vpack.c.b16 %v1025, %v1023
        %v1043 = vsel %vm952, %v981, 0
        %1045 = vmatprep.subr.bf16.mxu0 0
        %1046 = vmatpush1.bf16.msra.mxu0 0
        %1047 = vmatprep.subr.bf16.mxu0 0
        %1048 = vmatpush1.bf16.msra.mxu0 0
        %1049 = vmatprep.subr.bf16.mxu0 0
        %1050 = vmatpush1.bf16.msra.mxu0 0
        %1051 = vmatprep.subr.bf16.mxu0 0
        %1052 = vmatpush1.bf16.msra.mxu0 0
        %1053 = vmatprep.subr.bf16.mxu0 %v1033
        %1054 = vmatpush1.bf16.msra.mxu0 %v1032
        %1055 = vmatprep.subr.bf16.mxu0 %v1031
        %1056 = vmatpush1.bf16.msra.mxu0 %v1030
        %1057 = vmatprep.subr.bf16.mxu0 %v1029
        %1058 = vmatpush1.bf16.msra.mxu0 %v1028
        %1059 = vmatprep.subr.bf16.mxu0 %v1027
        %1060 = vmatpush1.bf16.msra.mxu0 %v1026
        %1061 = vmatprep.subr.bf16.mxu0 0
        %1062 = vmatpush2.bf16.msra.mxu0 0
        %1063 = vmatprep.subr.bf16.mxu0 0
        %1064 = vmatpush2.bf16.msra.mxu0 0
        %1065 = vmatprep.subr.bf16.mxu0 0
        %1066 = vmatpush2.bf16.msra.mxu0 0
        %1067 = vmatprep.subr.bf16.mxu0 0
        %1068 = vmatpush2.bf16.msra.mxu0 0
        %1069 = vmatprep.subr.bf16.mxu0 0
        %1070 = vmatpush2.bf16.msra.mxu0 0
        %1071 = vmatprep.subr.bf16.mxu0 0
        %1072 = vmatpush2.bf16.msra.mxu0 0
        %1073 = vmatprep.subr.bf16.mxu0 0
        %1074 = vmatpush2.bf16.msra.mxu0 0
        %1075 = vmatprep.subr.bf16.mxu0 0
        %1076 = vmatpush2.bf16.msra.mxu0 0
        %1077 = vmatprep.mubr.bf16.mxu0 0
        %1078 = vmatmul.mubr.bf16.gmra.mxu0 %v1043
        %v1079 = vpop.f32.mrf.mxu0
        %v1080 = vadd.f32 %v995, %v1079
        %v1081 = vpop.f32.mrf.mxu0
        %v1082 = vadd.f32 %v999, %v1081
        %v1083 = vpop.f32.mrf.mxu0
        %v1084 = vpop.f32.mrf.mxu0
        %1085 = vdwg.mxu0
        %v1086 = vmul.f32 %v1080, 0.35355338
        %v1087 = vld [vmem:[#allocation14] sm:$0xf]
        %v1088 = vld [vmem:[#allocation14 + $0x4] sm:$0xf]
        %v1089 = vld [vmem:[#allocation14 + $0x8] sm:$0xf]
        %v1090 = vld [vmem:[#allocation14 + $0xc] sm:$0xf]
        %v1091 = vld [vmem:[#allocation14 + $0x10] sm:$0xf]
        %v1092 = vld [vmem:[#allocation14 + $0x14] sm:$0xf]
        %v1093 = vld [vmem:[#allocation14 + $0x18] sm:$0xf]
        %v1094 = vld [vmem:[#allocation14 + $0x1c] sm:$0xf]
        %v1095 = vld [vmem:[%s14] sm:$0x1]
        %1097 = vrot.lane.b32.xlu0 %v1086, 120
        %v1098 = vpop.permute.xlu0 %1097
        %1099 = vrot.lane.b32.xlu0 %v1086, 112
        %v1100 = vpop.permute.xlu0 %1099
        %1101 = vrot.lane.b32.xlu0 %v1086, 104
        %v1102 = vpop.permute.xlu0 %1101
        %1103 = vrot.lane.b32.xlu0 %v1086, 96
        %v1104 = vpop.permute.xlu0 %1103
        %1105 = vrot.lane.b32.xlu0 %v1086, 88
        %v1106 = vpop.permute.xlu0 %1105
        %1107 = vrot.lane.b32.xlu0 %v1086, 80
        %v1108 = vpop.permute.xlu0 %1107
        %1109 = vrot.lane.b32.xlu0 %v1086, 72
        %v1110 = vpop.permute.xlu0 %1109
        %1112 = vrot.lane.b32.xlu0 %v1080, 120
        %v1113 = vpop.permute.xlu0 %1112
        %1114 = vrot.lane.b32.xlu0 %v1080, 112
        %v1115 = vpop.permute.xlu0 %1114
        %1116 = vrot.lane.b32.xlu0 %v1080, 104
        %v1117 = vpop.permute.xlu0 %1116
        %1118 = vrot.lane.b32.xlu0 %v1080, 96
        %v1119 = vpop.permute.xlu0 %1118
        %1120 = vrot.lane.b32.xlu0 %v1080, 88
        %v1121 = vpop.permute.xlu0 %1120
        %1122 = vrot.lane.b32.xlu0 %v1080, 80
        %v1123 = vpop.permute.xlu0 %1122
        %1124 = vrot.lane.b32.xlu0 %v1080, 72
        %v1125 = vpop.permute.xlu0 %1124
        %1127 = vrot.lane.b32.xlu0 %v1082, 120
        %v1128 = vpop.permute.xlu0 %1127
        %1130 = vrot.lane.b32.xlu0 %v1082, 112
        %v1131 = vpop.permute.xlu0 %1130
        %1133 = vrot.lane.b32.xlu0 %v1082, 104
        %v1134 = vpop.permute.xlu0 %1133
        %1136 = vrot.lane.b32.xlu0 %v1082, 96
        %v1137 = vpop.permute.xlu0 %1136
        %1139 = vrot.lane.b32.xlu0 %v1082, 88
        %v1140 = vpop.permute.xlu0 %1139
        %1142 = vrot.lane.b32.xlu0 %v1082, 80
        %v1143 = vpop.permute.xlu0 %1142
        %1145 = vrot.lane.b32.xlu0 %v1082, 72
        %v1146 = vpop.permute.xlu0 %1145
        %1148 = vrot.lane.b32.xlu0 %v1080, 64
        %v1149 = vpop.permute.xlu0 %1148
        %vm1150 = vcmask 64512
        %v1151 = vsel %vm1150, %v1086, 0
        %v1153 = vsel %vm1150, %v1149, 0
        %1155 = vmatprep.subr.mxu0 0.0
        %1156 = vmatpush1.xpose.msra.mxu0 0.0
        %1157 = vmatprep.subr.mxu0 0.0
        %1158 = vmatpush1.xpose.msra.mxu0 0.0
        %1159 = vmatprep.subr.mxu0 0.0
        %1160 = vmatpush1.xpose.msra.mxu0 0.0
        %1161 = vmatprep.subr.mxu0 0.0
        %1162 = vmatpush1.xpose.msra.mxu0 0.0
        %1163 = vmatprep.subr.mxu0 0.0
        %1164 = vmatpush1.xpose.msra.mxu0 0.0
        %1165 = vmatprep.subr.mxu0 0.0
        %1166 = vmatpush1.xpose.msra.mxu0 0.0
        %1167 = vmatprep.subr.mxu0 0.0
        %1168 = vmatpush1.xpose.msra.mxu0 0.0
        %1169 = vmatprep.subr.mxu0 0.0
        %1170 = vmatpush1.xpose.msra.mxu0 0.0
        %1171 = vmatprep.subr.mxu0 0.0
        %1172 = vmatpush1.xpose.msra.mxu0 0.0
        %1173 = vmatprep.subr.mxu0 0.0
        %1174 = vmatpush1.xpose.msra.mxu0 0.0
        %1175 = vmatprep.subr.mxu0 0.0
        %1176 = vmatpush1.xpose.msra.mxu0 0.0
        %1177 = vmatprep.subr.mxu0 0.0
        %1178 = vmatpush1.xpose.msra.mxu0 0.0
        %1179 = vmatprep.subr.mxu0 0.0
        %1180 = vmatpush1.xpose.msra.mxu0 0.0
        %1181 = vmatprep.subr.mxu0 0.0
        %1182 = vmatpush1.xpose.msra.mxu0 0.0
        %1183 = vmatprep.subr.mxu0 0.0
        %1184 = vmatpush1.xpose.msra.mxu0 0.0
        %1185 = vmatprep.subr.mxu0 0.0
        %1186 = vmatpush1.xpose.msra.mxu0 %v1153
        %1187 = vmatprep.subr.mxu0 0.0
        %1188 = vmatpush2.xpose.msra.mxu0 0.0
        %1189 = vmatprep.subr.mxu0 0.0
        %1190 = vmatpush2.xpose.msra.mxu0 0.0
        %1191 = vmatprep.subr.mxu0 0.0
        %1192 = vmatpush2.xpose.msra.mxu0 0.0
        %1193 = vmatprep.subr.mxu0 0.0
        %1194 = vmatpush2.xpose.msra.mxu0 0.0
        %1195 = vmatprep.subr.mxu0 0.0
        %1196 = vmatpush2.xpose.msra.mxu0 0.0
        %1197 = vmatprep.subr.mxu0 0.0
        %1198 = vmatpush2.xpose.msra.mxu0 0.0
        %1199 = vmatprep.subr.mxu0 0.0
        %1200 = vmatpush2.xpose.msra.mxu0 0.0
        %1201 = vmatprep.subr.mxu0 0.0
        %1202 = vmatpush2.xpose.msra.mxu0 0.0
        %1203 = vmatprep.subr.mxu0 0.0
        %1204 = vmatpush2.xpose.msra.mxu0 0.0
        %1205 = vmatprep.subr.mxu0 0.0
        %1206 = vmatpush2.xpose.msra.mxu0 0.0
        %1207 = vmatprep.subr.mxu0 0.0
        %1208 = vmatpush2.xpose.msra.mxu0 0.0
        %1209 = vmatprep.subr.mxu0 0.0
        %1210 = vmatpush2.xpose.msra.mxu0 0.0
        %1211 = vmatprep.subr.mxu0 0.0
        %1212 = vmatpush2.xpose.msra.mxu0 0.0
        %1213 = vmatprep.subr.mxu0 0.0
        %1214 = vmatpush2.xpose.msra.mxu0 0.0
        %1215 = vmatprep.subr.mxu0 0.0
        %1216 = vmatpush2.xpose.msra.mxu0 0.0
        %1217 = vmatprep.subr.mxu0 0.0
        %1218 = vmatpush2.xpose.msra.mxu0 0.0
        %1219 = vmatprep.mubr.f32.mxu0 0.0
        %1220 = vmatmul.mubr.f32.gmra.mxu0 %v1151
        %v1221 = vpop.f32.mrf.mxu0
        %v1222 = vadd.f32 0.0, %v1221
        %v1223 = vpop.f32.mrf.mxu0
        %1224 = vdwg.mxu0
        %1225 = vrot.lane.b32.xlu0 %v1113, 64
        %v1226 = vpop.permute.xlu0 %1225
        %v1227 = vsel %vm1150, %v1098, 0
        %v1229 = vsel %vm1150, %v1226, 0
        %1231 = vmatprep.subr.mxu0 0.0
        %1232 = vmatpush1.xpose.msra.mxu0 0.0
        %1233 = vmatprep.subr.mxu0 0.0
        %1234 = vmatpush1.xpose.msra.mxu0 0.0
        %1235 = vmatprep.subr.mxu0 0.0
        %1236 = vmatpush1.xpose.msra.mxu0 0.0
        %1237 = vmatprep.subr.mxu0 0.0
        %1238 = vmatpush1.xpose.msra.mxu0 0.0
        %1239 = vmatprep.subr.mxu0 0.0
        %1240 = vmatpush1.xpose.msra.mxu0 0.0
        %1241 = vmatprep.subr.mxu0 0.0
        %1242 = vmatpush1.xpose.msra.mxu0 0.0
        %1243 = vmatprep.subr.mxu0 0.0
        %1244 = vmatpush1.xpose.msra.mxu0 0.0
        %1245 = vmatprep.subr.mxu0 0.0
        %1246 = vmatpush1.xpose.msra.mxu0 0.0
        %1247 = vmatprep.subr.mxu0 0.0
        %1248 = vmatpush1.xpose.msra.mxu0 0.0
        %1249 = vmatprep.subr.mxu0 0.0
        %1250 = vmatpush1.xpose.msra.mxu0 0.0
        %1251 = vmatprep.subr.mxu0 0.0
        %1252 = vmatpush1.xpose.msra.mxu0 0.0
        %1253 = vmatprep.subr.mxu0 0.0
        %1254 = vmatpush1.xpose.msra.mxu0 0.0
        %1255 = vmatprep.subr.mxu0 0.0
        %1256 = vmatpush1.xpose.msra.mxu0 0.0
        %1257 = vmatprep.subr.mxu0 0.0
        %1258 = vmatpush1.xpose.msra.mxu0 0.0
        %1259 = vmatprep.subr.mxu0 0.0
        %1260 = vmatpush1.xpose.msra.mxu0 0.0
        %1261 = vmatprep.subr.mxu0 0.0
        %1262 = vmatpush1.xpose.msra.mxu0 %v1229
        %1263 = vmatprep.subr.mxu0 0.0
        %1264 = vmatpush2.xpose.msra.mxu0 0.0
        %1265 = vmatprep.subr.mxu0 0.0
        %1266 = vmatpush2.xpose.msra.mxu0 0.0
        %1267 = vmatprep.subr.mxu0 0.0
        %1268 = vmatpush2.xpose.msra.mxu0 0.0
        %1269 = vmatprep.subr.mxu0 0.0
        %1270 = vmatpush2.xpose.msra.mxu0 0.0
        %1271 = vmatprep.subr.mxu0 0.0
        %1272 = vmatpush2.xpose.msra.mxu0 0.0
        %1273 = vmatprep.subr.mxu0 0.0
        %1274 = vmatpush2.xpose.msra.mxu0 0.0
        %1275 = vmatprep.subr.mxu0 0.0
        %1276 = vmatpush2.xpose.msra.mxu0 0.0
        %1277 = vmatprep.subr.mxu0 0.0
        %1278 = vmatpush2.xpose.msra.mxu0 0.0
        %1279 = vmatprep.subr.mxu0 0.0
        %1280 = vmatpush2.xpose.msra.mxu0 0.0
        %1281 = vmatprep.subr.mxu0 0.0
        %1282 = vmatpush2.xpose.msra.mxu0 0.0
        %1283 = vmatprep.subr.mxu0 0.0
        %1284 = vmatpush2.xpose.msra.mxu0 0.0
        %1285 = vmatprep.subr.mxu0 0.0
        %1286 = vmatpush2.xpose.msra.mxu0 0.0
        %1287 = vmatprep.subr.mxu0 0.0
        %1288 = vmatpush2.xpose.msra.mxu0 0.0
        %1289 = vmatprep.subr.mxu0 0.0
        %1290 = vmatpush2.xpose.msra.mxu0 0.0
        %1291 = vmatprep.subr.mxu0 0.0
        %1292 = vmatpush2.xpose.msra.mxu0 0.0
        %1293 = vmatprep.subr.mxu0 0.0
        %1294 = vmatpush2.xpose.msra.mxu0 0.0
        %1295 = vmatprep.mubr.f32.mxu0 0.0
        %1296 = vmatmul.mubr.f32.gmra.mxu0 %v1227
        %v1297 = vpop.f32.mrf.mxu0
        %v1298 = vadd.f32 0.0, %v1297
        %v1299 = vpop.f32.mrf.mxu0
        %1300 = vdwg.mxu0
        %1301 = vrot.lane.b32.xlu0 %v1115, 64
        %v1302 = vpop.permute.xlu0 %1301
        %v1303 = vsel %vm1150, %v1100, 0
        %v1305 = vsel %vm1150, %v1302, 0
        %1307 = vmatprep.subr.mxu0 0.0
        %1308 = vmatpush1.xpose.msra.mxu0 0.0
        %1309 = vmatprep.subr.mxu0 0.0
        %1310 = vmatpush1.xpose.msra.mxu0 0.0
        %1311 = vmatprep.subr.mxu0 0.0
        %1312 = vmatpush1.xpose.msra.mxu0 0.0
        %1313 = vmatprep.subr.mxu0 0.0
        %1314 = vmatpush1.xpose.msra.mxu0 0.0
        %1315 = vmatprep.subr.mxu0 0.0
        %1316 = vmatpush1.xpose.msra.mxu0 0.0
        %1317 = vmatprep.subr.mxu0 0.0
        %1318 = vmatpush1.xpose.msra.mxu0 0.0
        %1319 = vmatprep.subr.mxu0 0.0
        %1320 = vmatpush1.xpose.msra.mxu0 0.0
        %1321 = vmatprep.subr.mxu0 0.0
        %1322 = vmatpush1.xpose.msra.mxu0 0.0
        %1323 = vmatprep.subr.mxu0 0.0
        %1324 = vmatpush1.xpose.msra.mxu0 0.0
        %1325 = vmatprep.subr.mxu0 0.0
        %1326 = vmatpush1.xpose.msra.mxu0 0.0
        %1327 = vmatprep.subr.mxu0 0.0
        %1328 = vmatpush1.xpose.msra.mxu0 0.0
        %1329 = vmatprep.subr.mxu0 0.0
        %1330 = vmatpush1.xpose.msra.mxu0 0.0
        %1331 = vmatprep.subr.mxu0 0.0
        %1332 = vmatpush1.xpose.msra.mxu0 0.0
        %1333 = vmatprep.subr.mxu0 0.0
        %1334 = vmatpush1.xpose.msra.mxu0 0.0
        %1335 = vmatprep.subr.mxu0 0.0
        %1336 = vmatpush1.xpose.msra.mxu0 0.0
        %1337 = vmatprep.subr.mxu0 0.0
        %1338 = vmatpush1.xpose.msra.mxu0 %v1305
        %1339 = vmatprep.subr.mxu0 0.0
        %1340 = vmatpush2.xpose.msra.mxu0 0.0
        %1341 = vmatprep.subr.mxu0 0.0
        %1342 = vmatpush2.xpose.msra.mxu0 0.0
        %1343 = vmatprep.subr.mxu0 0.0
        %1344 = vmatpush2.xpose.msra.mxu0 0.0
        %1345 = vmatprep.subr.mxu0 0.0
        %1346 = vmatpush2.xpose.msra.mxu0 0.0
        %1347 = vmatprep.subr.mxu0 0.0
        %1348 = vmatpush2.xpose.msra.mxu0 0.0
        %1349 = vmatprep.subr.mxu0 0.0
        %1350 = vmatpush2.xpose.msra.mxu0 0.0
        %1351 = vmatprep.subr.mxu0 0.0
        %1352 = vmatpush2.xpose.msra.mxu0 0.0
        %1353 = vmatprep.subr.mxu0 0.0
        %1354 = vmatpush2.xpose.msra.mxu0 0.0
        %1355 = vmatprep.subr.mxu0 0.0
        %1356 = vmatpush2.xpose.msra.mxu0 0.0
        %1357 = vmatprep.subr.mxu0 0.0
        %1358 = vmatpush2.xpose.msra.mxu0 0.0
        %1359 = vmatprep.subr.mxu0 0.0
        %1360 = vmatpush2.xpose.msra.mxu0 0.0
        %1361 = vmatprep.subr.mxu0 0.0
        %1362 = vmatpush2.xpose.msra.mxu0 0.0
        %1363 = vmatprep.subr.mxu0 0.0
        %1364 = vmatpush2.xpose.msra.mxu0 0.0
        %1365 = vmatprep.subr.mxu0 0.0
        %1366 = vmatpush2.xpose.msra.mxu0 0.0
        %1367 = vmatprep.subr.mxu0 0.0
        %1368 = vmatpush2.xpose.msra.mxu0 0.0
        %1369 = vmatprep.subr.mxu0 0.0
        %1370 = vmatpush2.xpose.msra.mxu0 0.0
        %1371 = vmatprep.mubr.f32.mxu0 0.0
        %1372 = vmatmul.mubr.f32.gmra.mxu0 %v1303
        %v1373 = vpop.f32.mrf.mxu0
        %v1374 = vadd.f32 0.0, %v1373
        %v1375 = vpop.f32.mrf.mxu0
        %1376 = vdwg.mxu0
        %1377 = vrot.lane.b32.xlu0 %v1117, 64
        %v1378 = vpop.permute.xlu0 %1377
        %v1379 = vsel %vm1150, %v1102, 0
        %v1381 = vsel %vm1150, %v1378, 0
        %1383 = vmatprep.subr.mxu0 0.0
        %1384 = vmatpush1.xpose.msra.mxu0 0.0
        %1385 = vmatprep.subr.mxu0 0.0
        %1386 = vmatpush1.xpose.msra.mxu0 0.0
        %1387 = vmatprep.subr.mxu0 0.0
        %1388 = vmatpush1.xpose.msra.mxu0 0.0
        %1389 = vmatprep.subr.mxu0 0.0
        %1390 = vmatpush1.xpose.msra.mxu0 0.0
        %1391 = vmatprep.subr.mxu0 0.0
        %1392 = vmatpush1.xpose.msra.mxu0 0.0
        %1393 = vmatprep.subr.mxu0 0.0
        %1394 = vmatpush1.xpose.msra.mxu0 0.0
        %1395 = vmatprep.subr.mxu0 0.0
        %1396 = vmatpush1.xpose.msra.mxu0 0.0
        %1397 = vmatprep.subr.mxu0 0.0
        %1398 = vmatpush1.xpose.msra.mxu0 0.0
        %1399 = vmatprep.subr.mxu0 0.0
        %1400 = vmatpush1.xpose.msra.mxu0 0.0
        %1401 = vmatprep.subr.mxu0 0.0
        %1402 = vmatpush1.xpose.msra.mxu0 0.0
        %1403 = vmatprep.subr.mxu0 0.0
        %1404 = vmatpush1.xpose.msra.mxu0 0.0
        %1405 = vmatprep.subr.mxu0 0.0
        %1406 = vmatpush1.xpose.msra.mxu0 0.0
        %1407 = vmatprep.subr.mxu0 0.0
        %1408 = vmatpush1.xpose.msra.mxu0 0.0
        %1409 = vmatprep.subr.mxu0 0.0
        %1410 = vmatpush1.xpose.msra.mxu0 0.0
        %1411 = vmatprep.subr.mxu0 0.0
        %1412 = vmatpush1.xpose.msra.mxu0 0.0
        %1413 = vmatprep.subr.mxu0 0.0
        %1414 = vmatpush1.xpose.msra.mxu0 %v1381
        %1415 = vmatprep.subr.mxu0 0.0
        %1416 = vmatpush2.xpose.msra.mxu0 0.0
        %1417 = vmatprep.subr.mxu0 0.0
        %1418 = vmatpush2.xpose.msra.mxu0 0.0
        %1419 = vmatprep.subr.mxu0 0.0
        %1420 = vmatpush2.xpose.msra.mxu0 0.0
        %1421 = vmatprep.subr.mxu0 0.0
        %1422 = vmatpush2.xpose.msra.mxu0 0.0
        %1423 = vmatprep.subr.mxu0 0.0
        %1424 = vmatpush2.xpose.msra.mxu0 0.0
        %1425 = vmatprep.subr.mxu0 0.0
        %1426 = vmatpush2.xpose.msra.mxu0 0.0
        %1427 = vmatprep.subr.mxu0 0.0
        %1428 = vmatpush2.xpose.msra.mxu0 0.0
        %1429 = vmatprep.subr.mxu0 0.0
        %1430 = vmatpush2.xpose.msra.mxu0 0.0
        %1431 = vmatprep.subr.mxu0 0.0
        %1432 = vmatpush2.xpose.msra.mxu0 0.0
        %1433 = vmatprep.subr.mxu0 0.0
        %1434 = vmatpush2.xpose.msra.mxu0 0.0
        %1435 = vmatprep.subr.mxu0 0.0
        %1436 = vmatpush2.xpose.msra.mxu0 0.0
        %1437 = vmatprep.subr.mxu0 0.0
        %1438 = vmatpush2.xpose.msra.mxu0 0.0
        %1439 = vmatprep.subr.mxu0 0.0
        %1440 = vmatpush2.xpose.msra.mxu0 0.0
        %1441 = vmatprep.subr.mxu0 0.0
        %1442 = vmatpush2.xpose.msra.mxu0 0.0
        %1443 = vmatprep.subr.mxu0 0.0
        %1444 = vmatpush2.xpose.msra.mxu0 0.0
        %1445 = vmatprep.subr.mxu0 0.0
        %1446 = vmatpush2.xpose.msra.mxu0 0.0
        %1447 = vmatprep.mubr.f32.mxu0 0.0
        %1448 = vmatmul.mubr.f32.gmra.mxu0 %v1379
        %v1449 = vpop.f32.mrf.mxu0
        %v1450 = vadd.f32 0.0, %v1449
        %v1451 = vpop.f32.mrf.mxu0
        %1452 = vdwg.mxu0
        %1453 = vrot.lane.b32.xlu0 %v1119, 64
        %v1454 = vpop.permute.xlu0 %1453
        %v1455 = vsel %vm1150, %v1104, 0
        %v1457 = vsel %vm1150, %v1454, 0
        %1459 = vmatprep.subr.mxu0 0.0
        %1460 = vmatpush1.xpose.msra.mxu0 0.0
        %1461 = vmatprep.subr.mxu0 0.0
        %1462 = vmatpush1.xpose.msra.mxu0 0.0
        %1463 = vmatprep.subr.mxu0 0.0
        %1464 = vmatpush1.xpose.msra.mxu0 0.0
        %1465 = vmatprep.subr.mxu0 0.0
        %1466 = vmatpush1.xpose.msra.mxu0 0.0
        %1467 = vmatprep.subr.mxu0 0.0
        %1468 = vmatpush1.xpose.msra.mxu0 0.0
        %1469 = vmatprep.subr.mxu0 0.0
        %1470 = vmatpush1.xpose.msra.mxu0 0.0
        %1471 = vmatprep.subr.mxu0 0.0
        %1472 = vmatpush1.xpose.msra.mxu0 0.0
        %1473 = vmatprep.subr.mxu0 0.0
        %1474 = vmatpush1.xpose.msra.mxu0 0.0
        %1475 = vmatprep.subr.mxu0 0.0
        %1476 = vmatpush1.xpose.msra.mxu0 0.0
        %1477 = vmatprep.subr.mxu0 0.0
        %1478 = vmatpush1.xpose.msra.mxu0 0.0
        %1479 = vmatprep.subr.mxu0 0.0
        %1480 = vmatpush1.xpose.msra.mxu0 0.0
        %1481 = vmatprep.subr.mxu0 0.0
        %1482 = vmatpush1.xpose.msra.mxu0 0.0
        %1483 = vmatprep.subr.mxu0 0.0
        %1484 = vmatpush1.xpose.msra.mxu0 0.0
        %1485 = vmatprep.subr.mxu0 0.0
        %1486 = vmatpush1.xpose.msra.mxu0 0.0
        %1487 = vmatprep.subr.mxu0 0.0
        %1488 = vmatpush1.xpose.msra.mxu0 0.0
        %1489 = vmatprep.subr.mxu0 0.0
        %1490 = vmatpush1.xpose.msra.mxu0 %v1457
        %1491 = vmatprep.subr.mxu0 0.0
        %1492 = vmatpush2.xpose.msra.mxu0 0.0
        %1493 = vmatprep.subr.mxu0 0.0
        %1494 = vmatpush2.xpose.msra.mxu0 0.0
        %1495 = vmatprep.subr.mxu0 0.0
        %1496 = vmatpush2.xpose.msra.mxu0 0.0
        %1497 = vmatprep.subr.mxu0 0.0
        %1498 = vmatpush2.xpose.msra.mxu0 0.0
        %1499 = vmatprep.subr.mxu0 0.0
        %1500 = vmatpush2.xpose.msra.mxu0 0.0
        %1501 = vmatprep.subr.mxu0 0.0
        %1502 = vmatpush2.xpose.msra.mxu0 0.0
        %1503 = vmatprep.subr.mxu0 0.0
        %1504 = vmatpush2.xpose.msra.mxu0 0.0
        %1505 = vmatprep.subr.mxu0 0.0
        %1506 = vmatpush2.xpose.msra.mxu0 0.0
        %1507 = vmatprep.subr.mxu0 0.0
        %1508 = vmatpush2.xpose.msra.mxu0 0.0
        %1509 = vmatprep.subr.mxu0 0.0
        %1510 = vmatpush2.xpose.msra.mxu0 0.0
        %1511 = vmatprep.subr.mxu0 0.0
        %1512 = vmatpush2.xpose.msra.mxu0 0.0
        %1513 = vmatprep.subr.mxu0 0.0
        %1514 = vmatpush2.xpose.msra.mxu0 0.0
        %1515 = vmatprep.subr.mxu0 0.0
        %1516 = vmatpush2.xpose.msra.mxu0 0.0
        %1517 = vmatprep.subr.mxu0 0.0
        %1518 = vmatpush2.xpose.msra.mxu0 0.0
        %1519 = vmatprep.subr.mxu0 0.0
        %1520 = vmatpush2.xpose.msra.mxu0 0.0
        %1521 = vmatprep.subr.mxu0 0.0
        %1522 = vmatpush2.xpose.msra.mxu0 0.0
        %1523 = vmatprep.mubr.f32.mxu0 0.0
        %1524 = vmatmul.mubr.f32.gmra.mxu0 %v1455
        %v1525 = vpop.f32.mrf.mxu0
        %v1526 = vadd.f32 0.0, %v1525
        %v1527 = vpop.f32.mrf.mxu0
        %1528 = vdwg.mxu0
        %1529 = vrot.lane.b32.xlu0 %v1121, 64
        %v1530 = vpop.permute.xlu0 %1529
        %v1531 = vsel %vm1150, %v1106, 0
        %v1533 = vsel %vm1150, %v1530, 0
        %1535 = vmatprep.subr.mxu0 0.0
        %1536 = vmatpush1.xpose.msra.mxu0 0.0
        %1537 = vmatprep.subr.mxu0 0.0
        %1538 = vmatpush1.xpose.msra.mxu0 0.0
        %1539 = vmatprep.subr.mxu0 0.0
        %1540 = vmatpush1.xpose.msra.mxu0 0.0
        %1541 = vmatprep.subr.mxu0 0.0
        %1542 = vmatpush1.xpose.msra.mxu0 0.0
        %1543 = vmatprep.subr.mxu0 0.0
        %1544 = vmatpush1.xpose.msra.mxu0 0.0
        %1545 = vmatprep.subr.mxu0 0.0
        %1546 = vmatpush1.xpose.msra.mxu0 0.0
        %1547 = vmatprep.subr.mxu0 0.0
        %1548 = vmatpush1.xpose.msra.mxu0 0.0
        %1549 = vmatprep.subr.mxu0 0.0
        %1550 = vmatpush1.xpose.msra.mxu0 0.0
        %1551 = vmatprep.subr.mxu0 0.0
        %1552 = vmatpush1.xpose.msra.mxu0 0.0
        %1553 = vmatprep.subr.mxu0 0.0
        %1554 = vmatpush1.xpose.msra.mxu0 0.0
        %1555 = vmatprep.subr.mxu0 0.0
        %1556 = vmatpush1.xpose.msra.mxu0 0.0
        %1557 = vmatprep.subr.mxu0 0.0
        %1558 = vmatpush1.xpose.msra.mxu0 0.0
        %1559 = vmatprep.subr.mxu0 0.0
        %1560 = vmatpush1.xpose.msra.mxu0 0.0
        %1561 = vmatprep.subr.mxu0 0.0
        %1562 = vmatpush1.xpose.msra.mxu0 0.0
        %1563 = vmatprep.subr.mxu0 0.0
        %1564 = vmatpush1.xpose.msra.mxu0 0.0
        %1565 = vmatprep.subr.mxu0 0.0
        %1566 = vmatpush1.xpose.msra.mxu0 %v1533
        %1567 = vmatprep.subr.mxu0 0.0
        %1568 = vmatpush2.xpose.msra.mxu0 0.0
        %1569 = vmatprep.subr.mxu0 0.0
        %1570 = vmatpush2.xpose.msra.mxu0 0.0
        %1571 = vmatprep.subr.mxu0 0.0
        %1572 = vmatpush2.xpose.msra.mxu0 0.0
        %1573 = vmatprep.subr.mxu0 0.0
        %1574 = vmatpush2.xpose.msra.mxu0 0.0
        %1575 = vmatprep.subr.mxu0 0.0
        %1576 = vmatpush2.xpose.msra.mxu0 0.0
        %1577 = vmatprep.subr.mxu0 0.0
        %1578 = vmatpush2.xpose.msra.mxu0 0.0
        %1579 = vmatprep.subr.mxu0 0.0
        %1580 = vmatpush2.xpose.msra.mxu0 0.0
        %1581 = vmatprep.subr.mxu0 0.0
        %1582 = vmatpush2.xpose.msra.mxu0 0.0
        %1583 = vmatprep.subr.mxu0 0.0
        %1584 = vmatpush2.xpose.msra.mxu0 0.0
        %1585 = vmatprep.subr.mxu0 0.0
        %1586 = vmatpush2.xpose.msra.mxu0 0.0
        %1587 = vmatprep.subr.mxu0 0.0
        %1588 = vmatpush2.xpose.msra.mxu0 0.0
        %1589 = vmatprep.subr.mxu0 0.0
        %1590 = vmatpush2.xpose.msra.mxu0 0.0
        %1591 = vmatprep.subr.mxu0 0.0
        %1592 = vmatpush2.xpose.msra.mxu0 0.0
        %1593 = vmatprep.subr.mxu0 0.0
        %1594 = vmatpush2.xpose.msra.mxu0 0.0
        %1595 = vmatprep.subr.mxu0 0.0
        %1596 = vmatpush2.xpose.msra.mxu0 0.0
        %1597 = vmatprep.subr.mxu0 0.0
        %1598 = vmatpush2.xpose.msra.mxu0 0.0
        %1599 = vmatprep.mubr.f32.mxu0 0.0
        %1600 = vmatmul.mubr.f32.gmra.mxu0 %v1531
        %v1601 = vpop.f32.mrf.mxu0
        %v1602 = vadd.f32 0.0, %v1601
        %v1603 = vpop.f32.mrf.mxu0
        %1604 = vdwg.mxu0
        %1605 = vrot.lane.b32.xlu0 %v1123, 64
        %v1606 = vpop.permute.xlu0 %1605
        %v1607 = vsel %vm1150, %v1108, 0
        %v1609 = vsel %vm1150, %v1606, 0
        %1611 = vmatprep.subr.mxu0 0.0
        %1612 = vmatpush1.xpose.msra.mxu0 0.0
        %1613 = vmatprep.subr.mxu0 0.0
        %1614 = vmatpush1.xpose.msra.mxu0 0.0
        %1615 = vmatprep.subr.mxu0 0.0
        %1616 = vmatpush1.xpose.msra.mxu0 0.0
        %1617 = vmatprep.subr.mxu0 0.0
        %1618 = vmatpush1.xpose.msra.mxu0 0.0
        %1619 = vmatprep.subr.mxu0 0.0
        %1620 = vmatpush1.xpose.msra.mxu0 0.0
        %1621 = vmatprep.subr.mxu0 0.0
        %1622 = vmatpush1.xpose.msra.mxu0 0.0
        %1623 = vmatprep.subr.mxu0 0.0
        %1624 = vmatpush1.xpose.msra.mxu0 0.0
        %1625 = vmatprep.subr.mxu0 0.0
        %1626 = vmatpush1.xpose.msra.mxu0 0.0
        %1627 = vmatprep.subr.mxu0 0.0
        %1628 = vmatpush1.xpose.msra.mxu0 0.0
        %1629 = vmatprep.subr.mxu0 0.0
        %1630 = vmatpush1.xpose.msra.mxu0 0.0
        %1631 = vmatprep.subr.mxu0 0.0
        %1632 = vmatpush1.xpose.msra.mxu0 0.0
        %1633 = vmatprep.subr.mxu0 0.0
        %1634 = vmatpush1.xpose.msra.mxu0 0.0
        %1635 = vmatprep.subr.mxu0 0.0
        %1636 = vmatpush1.xpose.msra.mxu0 0.0
        %1637 = vmatprep.subr.mxu0 0.0
        %1638 = vmatpush1.xpose.msra.mxu0 0.0
        %1639 = vmatprep.subr.mxu0 0.0
        %1640 = vmatpush1.xpose.msra.mxu0 0.0
        %1641 = vmatprep.subr.mxu0 0.0
        %1642 = vmatpush1.xpose.msra.mxu0 %v1609
        %1643 = vmatprep.subr.mxu0 0.0
        %1644 = vmatpush2.xpose.msra.mxu0 0.0
        %1645 = vmatprep.subr.mxu0 0.0
        %1646 = vmatpush2.xpose.msra.mxu0 0.0
        %1647 = vmatprep.subr.mxu0 0.0
        %1648 = vmatpush2.xpose.msra.mxu0 0.0
        %1649 = vmatprep.subr.mxu0 0.0
        %1650 = vmatpush2.xpose.msra.mxu0 0.0
        %1651 = vmatprep.subr.mxu0 0.0
        %1652 = vmatpush2.xpose.msra.mxu0 0.0
        %1653 = vmatprep.subr.mxu0 0.0
        %1654 = vmatpush2.xpose.msra.mxu0 0.0
        %1655 = vmatprep.subr.mxu0 0.0
        %1656 = vmatpush2.xpose.msra.mxu0 0.0
        %1657 = vmatprep.subr.mxu0 0.0
        %1658 = vmatpush2.xpose.msra.mxu0 0.0
        %1659 = vmatprep.subr.mxu0 0.0
        %1660 = vmatpush2.xpose.msra.mxu0 0.0
        %1661 = vmatprep.subr.mxu0 0.0
        %1662 = vmatpush2.xpose.msra.mxu0 0.0
        %1663 = vmatprep.subr.mxu0 0.0
        %1664 = vmatpush2.xpose.msra.mxu0 0.0
        %1665 = vmatprep.subr.mxu0 0.0
        %1666 = vmatpush2.xpose.msra.mxu0 0.0
        %1667 = vmatprep.subr.mxu0 0.0
        %1668 = vmatpush2.xpose.msra.mxu0 0.0
        %1669 = vmatprep.subr.mxu0 0.0
        %1670 = vmatpush2.xpose.msra.mxu0 0.0
        %1671 = vmatprep.subr.mxu0 0.0
        %1672 = vmatpush2.xpose.msra.mxu0 0.0
        %1673 = vmatprep.subr.mxu0 0.0
        %1674 = vmatpush2.xpose.msra.mxu0 0.0
        %1675 = vmatprep.mubr.f32.mxu0 0.0
        %1676 = vmatmul.mubr.f32.gmra.mxu0 %v1607
        %v1677 = vpop.f32.mrf.mxu0
        %v1678 = vadd.f32 0.0, %v1677
        %v1679 = vpop.f32.mrf.mxu0
        %1680 = vdwg.mxu0
        %1681 = vrot.lane.b32.xlu0 %v1125, 64
        %v1682 = vpop.permute.xlu0 %1681
        %v1683 = vsel %vm1150, %v1110, 0
        %v1685 = vsel %vm1150, %v1682, 0
        %1687 = vmatprep.subr.mxu0 0.0
        %1688 = vmatpush1.xpose.msra.mxu0 0.0
        %1689 = vmatprep.subr.mxu0 0.0
        %1690 = vmatpush1.xpose.msra.mxu0 0.0
        %1691 = vmatprep.subr.mxu0 0.0
        %1692 = vmatpush1.xpose.msra.mxu0 0.0
        %1693 = vmatprep.subr.mxu0 0.0
        %1694 = vmatpush1.xpose.msra.mxu0 0.0
        %1695 = vmatprep.subr.mxu0 0.0
        %1696 = vmatpush1.xpose.msra.mxu0 0.0
        %1697 = vmatprep.subr.mxu0 0.0
        %1698 = vmatpush1.xpose.msra.mxu0 0.0
        %1699 = vmatprep.subr.mxu0 0.0
        %1700 = vmatpush1.xpose.msra.mxu0 0.0
        %1701 = vmatprep.subr.mxu0 0.0
        %1702 = vmatpush1.xpose.msra.mxu0 0.0
        %1703 = vmatprep.subr.mxu0 0.0
        %1704 = vmatpush1.xpose.msra.mxu0 0.0
        %1705 = vmatprep.subr.mxu0 0.0
        %1706 = vmatpush1.xpose.msra.mxu0 0.0
        %1707 = vmatprep.subr.mxu0 0.0
        %1708 = vmatpush1.xpose.msra.mxu0 0.0
        %1709 = vmatprep.subr.mxu0 0.0
        %1710 = vmatpush1.xpose.msra.mxu0 0.0
        %1711 = vmatprep.subr.mxu0 0.0
        %1712 = vmatpush1.xpose.msra.mxu0 0.0
        %1713 = vmatprep.subr.mxu0 0.0
        %1714 = vmatpush1.xpose.msra.mxu0 0.0
        %1715 = vmatprep.subr.mxu0 0.0
        %1716 = vmatpush1.xpose.msra.mxu0 0.0
        %1717 = vmatprep.subr.mxu0 0.0
        %1718 = vmatpush1.xpose.msra.mxu0 %v1685
        %1719 = vmatprep.subr.mxu0 0.0
        %1720 = vmatpush2.xpose.msra.mxu0 0.0
        %1721 = vmatprep.subr.mxu0 0.0
        %1722 = vmatpush2.xpose.msra.mxu0 0.0
        %1723 = vmatprep.subr.mxu0 0.0
        %1724 = vmatpush2.xpose.msra.mxu0 0.0
        %1725 = vmatprep.subr.mxu0 0.0
        %1726 = vmatpush2.xpose.msra.mxu0 0.0
        %1727 = vmatprep.subr.mxu0 0.0
        %1728 = vmatpush2.xpose.msra.mxu0 0.0
        %1729 = vmatprep.subr.mxu0 0.0
        %1730 = vmatpush2.xpose.msra.mxu0 0.0
        %1731 = vmatprep.subr.mxu0 0.0
        %1732 = vmatpush2.xpose.msra.mxu0 0.0
        %1733 = vmatprep.subr.mxu0 0.0
        %1734 = vmatpush2.xpose.msra.mxu0 0.0
        %1735 = vmatprep.subr.mxu0 0.0
        %1736 = vmatpush2.xpose.msra.mxu0 0.0
        %1737 = vmatprep.subr.mxu0 0.0
        %1738 = vmatpush2.xpose.msra.mxu0 0.0
        %1739 = vmatprep.subr.mxu0 0.0
        %1740 = vmatpush2.xpose.msra.mxu0 0.0
        %1741 = vmatprep.subr.mxu0 0.0
        %1742 = vmatpush2.xpose.msra.mxu0 0.0
        %1743 = vmatprep.subr.mxu0 0.0
        %1744 = vmatpush2.xpose.msra.mxu0 0.0
        %1745 = vmatprep.subr.mxu0 0.0
        %1746 = vmatpush2.xpose.msra.mxu0 0.0
        %1747 = vmatprep.subr.mxu0 0.0
        %1748 = vmatpush2.xpose.msra.mxu0 0.0
        %1749 = vmatprep.subr.mxu0 0.0
        %1750 = vmatpush2.xpose.msra.mxu0 0.0
        %1751 = vmatprep.mubr.f32.mxu0 0.0
        %1752 = vmatmul.mubr.f32.gmra.mxu0 %v1683
        %v1753 = vpop.f32.mrf.mxu0
        %v1754 = vadd.f32 0.0, %v1753
        %v1755 = vpop.f32.mrf.mxu0
        %1756 = vdwg.mxu0
        %v1757 = vadd.f32 %v1222, %v946
        %v1758 = vadd.f32 %v1298, %v946
        %v1759 = vadd.f32 %v1374, %v946
        %v1760 = vadd.f32 %v1450, %v946
        %v1761 = vadd.f32 %v1526, %v946
        %v1762 = vadd.f32 %v1602, %v946
        %v1763 = vadd.f32 %v1678, %v946
        %v1764 = vadd.f32 %v1754, %v946
        %v1765 = vsel %vm1150, %v1757, -inf
        %1766 = vmax.xlane.f32.xlu0 %v1765
        %v1767 = vpop.xlane.xlu0 %1766
        %v1768 = vsel %vm1150, %v1758, -inf
        %1769 = vmax.xlane.f32.xlu0 %v1768
        %v1770 = vpop.xlane.xlu0 %1769
        %v1771 = vsel %vm1150, %v1759, -inf
        %1772 = vmax.xlane.f32.xlu0 %v1771
        %v1773 = vpop.xlane.xlu0 %1772
        %v1774 = vsel %vm1150, %v1760, -inf
        %1775 = vmax.xlane.f32.xlu0 %v1774
        %v1776 = vpop.xlane.xlu0 %1775
        %v1777 = vsel %vm1150, %v1761, -inf
        %1778 = vmax.xlane.f32.xlu0 %v1777
        %v1779 = vpop.xlane.xlu0 %1778
        %v1780 = vsel %vm1150, %v1762, -inf
        %1781 = vmax.xlane.f32.xlu0 %v1780
        %v1782 = vpop.xlane.xlu0 %1781
        %v1783 = vsel %vm1150, %v1763, -inf
        %1784 = vmax.xlane.f32.xlu0 %v1783
        %v1785 = vpop.xlane.xlu0 %1784
        %v1786 = vsel %vm1150, %v1764, -inf
        %1787 = vmax.xlane.f32.xlu0 %v1786
        %v1788 = vpop.xlane.xlu0 %1787
        %v1789 = vsub.f32 %v1757, %v1767
        %v1790 = vsub.f32 %v1758, %v1770
        %v1791 = vsub.f32 %v1759, %v1773
        %v1792 = vsub.f32 %v1760, %v1776
        %v1793 = vsub.f32 %v1761, %v1779
        %v1794 = vsub.f32 %v1762, %v1782
        %v1795 = vsub.f32 %v1763, %v1785
        %v1796 = vsub.f32 %v1764, %v1788
        %v1797 = vmul.f32 %v1789, 1.442695
        %v1798 = vpow.pop %v1797
        %v1799 = vmul.f32 %v1790, 1.442695
        %v1800 = vpow.pop %v1799
        %v1801 = vmul.f32 %v1791, 1.442695
        %v1802 = vpow.pop %v1801
        %v1803 = vmul.f32 %v1792, 1.442695
        %v1804 = vpow.pop %v1803
        %v1805 = vmul.f32 %v1793, 1.442695
        %v1806 = vpow.pop %v1805
        %v1807 = vmul.f32 %v1794, 1.442695
        %v1808 = vpow.pop %v1807
        %v1809 = vmul.f32 %v1795, 1.442695
        %v1810 = vpow.pop %v1809
        %v1811 = vmul.f32 %v1796, 1.442695
        %v1812 = vpow.pop %v1811
        %v1813 = vsel %vm1150, %v1798, 0.0
        %1814 = vadd.xlane.f32.xlu0 %v1813
        %v1815 = vpop.xlane.xlu0 %1814
        %v1816 = vsel %vm1150, %v1800, 0.0
        %1817 = vadd.xlane.f32.xlu0 %v1816
        %v1818 = vpop.xlane.xlu0 %1817
        %v1819 = vsel %vm1150, %v1802, 0.0
        %1820 = vadd.xlane.f32.xlu0 %v1819
        %v1821 = vpop.xlane.xlu0 %1820
        %v1822 = vsel %vm1150, %v1804, 0.0
        %1823 = vadd.xlane.f32.xlu0 %v1822
        %v1824 = vpop.xlane.xlu0 %1823
        %v1825 = vsel %vm1150, %v1806, 0.0
        %1826 = vadd.xlane.f32.xlu0 %v1825
        %v1827 = vpop.xlane.xlu0 %1826
        %v1828 = vsel %vm1150, %v1808, 0.0
        %1829 = vadd.xlane.f32.xlu0 %v1828
        %v1830 = vpop.xlane.xlu0 %1829
        %v1831 = vsel %vm1150, %v1810, 0.0
        %1832 = vadd.xlane.f32.xlu0 %v1831
        %v1833 = vpop.xlane.xlu0 %1832
        %v1834 = vsel %vm1150, %v1812, 0.0
        %1835 = vadd.xlane.f32.xlu0 %v1834
        %v1836 = vpop.xlane.xlu0 %1835
        %v1837 = vrcp.pop %v1815
        %v1838 = vrcp.pop %v1818
        %v1839 = vrcp.pop %v1821
        %v1840 = vrcp.pop %v1824
        %v1841 = vrcp.pop %v1827
        %v1842 = vrcp.pop %v1830
        %v1843 = vrcp.pop %v1833
        %v1844 = vrcp.pop %v1836
        %v1845 = vmul.f32 %v1798, %v1837
        %v1846 = vmul.f32 %v1800, %v1838
        %v1847 = vmul.f32 %v1802, %v1839
        %v1848 = vmul.f32 %v1804, %v1840
        %v1849 = vmul.f32 %v1806, %v1841
        %v1850 = vmul.f32 %v1808, %v1842
        %v1851 = vmul.f32 %v1810, %v1843
        %v1852 = vmul.f32 %v1812, %v1844
        %v1854 = vsel %vm1150, %v1845, 0
        %1856 = vmatprep.subr.mxu0 0.0
        %1857 = vmatpush1.msra.mxu0 0.0
        %1858 = vmatprep.subr.mxu0 0.0
        %1859 = vmatpush1.msra.mxu0 0.0
        %1860 = vmatprep.subr.mxu0 0.0
        %1861 = vmatpush1.msra.mxu0 0.0
        %1862 = vmatprep.subr.mxu0 0.0
        %1863 = vmatpush1.msra.mxu0 0.0
        %1864 = vmatprep.subr.mxu0 0.0
        %1865 = vmatpush1.msra.mxu0 0.0
        %1866 = vmatprep.subr.mxu0 0.0
        %1867 = vmatpush1.msra.mxu0 0.0
        %1868 = vmatprep.subr.mxu0 0.0
        %1869 = vmatpush1.msra.mxu0 0.0
        %1870 = vmatprep.subr.mxu0 0.0
        %1871 = vmatpush1.msra.mxu0 0.0
        %1872 = vmatprep.subr.mxu0 0.0
        %1873 = vmatpush1.msra.mxu0 0.0
        %1874 = vmatprep.subr.mxu0 0.0
        %1875 = vmatpush1.msra.mxu0 0.0
        %1876 = vmatprep.subr.mxu0 0.0
        %1877 = vmatpush1.msra.mxu0 0.0
        %1878 = vmatprep.subr.mxu0 0.0
        %1879 = vmatpush1.msra.mxu0 0.0
        %1880 = vmatprep.subr.mxu0 0.0
        %1881 = vmatpush1.msra.mxu0 0.0
        %1882 = vmatprep.subr.mxu0 0.0
        %1883 = vmatpush1.msra.mxu0 0.0
        %1884 = vmatprep.subr.mxu0 0.0
        %1885 = vmatpush1.msra.mxu0 0.0
        %1886 = vmatprep.subr.mxu0 0.0
        %1887 = vmatpush1.msra.mxu0 %v1082
        %1888 = vmatprep.subr.mxu0 0.0
        %1889 = vmatpush2.msra.mxu0 0.0
        %1890 = vmatprep.subr.mxu0 0.0
        %1891 = vmatpush2.msra.mxu0 0.0
        %1892 = vmatprep.subr.mxu0 0.0
        %1893 = vmatpush2.msra.mxu0 0.0
        %1894 = vmatprep.subr.mxu0 0.0
        %1895 = vmatpush2.msra.mxu0 0.0
        %1896 = vmatprep.subr.mxu0 0.0
        %1897 = vmatpush2.msra.mxu0 0.0
        %1898 = vmatprep.subr.mxu0 0.0
        %1899 = vmatpush2.msra.mxu0 0.0
        %1900 = vmatprep.subr.mxu0 0.0
        %1901 = vmatpush2.msra.mxu0 0.0
        %1902 = vmatprep.subr.mxu0 0.0
        %1903 = vmatpush2.msra.mxu0 0.0
        %1904 = vmatprep.subr.mxu0 0.0
        %1905 = vmatpush2.msra.mxu0 0.0
        %1906 = vmatprep.subr.mxu0 0.0
        %1907 = vmatpush2.msra.mxu0 0.0
        %1908 = vmatprep.subr.mxu0 0.0
        %1909 = vmatpush2.msra.mxu0 0.0
        %1910 = vmatprep.subr.mxu0 0.0
        %1911 = vmatpush2.msra.mxu0 0.0
        %1912 = vmatprep.subr.mxu0 0.0
        %1913 = vmatpush2.msra.mxu0 0.0
        %1914 = vmatprep.subr.mxu0 0.0
        %1915 = vmatpush2.msra.mxu0 0.0
        %1916 = vmatprep.subr.mxu0 0.0
        %1917 = vmatpush2.msra.mxu0 0.0
        %1918 = vmatprep.subr.mxu0 0.0
        %1919 = vmatpush2.msra.mxu0 0.0
        %1920 = vmatprep.mubr.f32.mxu0 0.0
        %1921 = vmatmul.mubr.f32.gmra.mxu0 %v1854
        %v1922 = vpop.f32.mrf.mxu0
        %v1923 = vadd.f32 0.0, %v1922
        %v1924 = vpop.f32.mrf.mxu0
        %1925 = vdwg.mxu0
        %v1927 = vsel %vm1150, %v1846, 0
        %1929 = vmatprep.subr.mxu0 0.0
        %1930 = vmatpush1.msra.mxu0 0.0
        %1931 = vmatprep.subr.mxu0 0.0
        %1932 = vmatpush1.msra.mxu0 0.0
        %1933 = vmatprep.subr.mxu0 0.0
        %1934 = vmatpush1.msra.mxu0 0.0
        %1935 = vmatprep.subr.mxu0 0.0
        %1936 = vmatpush1.msra.mxu0 0.0
        %1937 = vmatprep.subr.mxu0 0.0
        %1938 = vmatpush1.msra.mxu0 0.0
        %1939 = vmatprep.subr.mxu0 0.0
        %1940 = vmatpush1.msra.mxu0 0.0
        %1941 = vmatprep.subr.mxu0 0.0
        %1942 = vmatpush1.msra.mxu0 0.0
        %1943 = vmatprep.subr.mxu0 0.0
        %1944 = vmatpush1.msra.mxu0 0.0
        %1945 = vmatprep.subr.mxu0 0.0
        %1946 = vmatpush1.msra.mxu0 0.0
        %1947 = vmatprep.subr.mxu0 0.0
        %1948 = vmatpush1.msra.mxu0 0.0
        %1949 = vmatprep.subr.mxu0 0.0
        %1950 = vmatpush1.msra.mxu0 0.0
        %1951 = vmatprep.subr.mxu0 0.0
        %1952 = vmatpush1.msra.mxu0 0.0
        %1953 = vmatprep.subr.mxu0 0.0
        %1954 = vmatpush1.msra.mxu0 0.0
        %1955 = vmatprep.subr.mxu0 0.0
        %1956 = vmatpush1.msra.mxu0 0.0
        %1957 = vmatprep.subr.mxu0 0.0
        %1958 = vmatpush1.msra.mxu0 0.0
        %1959 = vmatprep.subr.mxu0 0.0
        %1960 = vmatpush1.msra.mxu0 %v1128
        %1961 = vmatprep.subr.mxu0 0.0
        %1962 = vmatpush2.msra.mxu0 0.0
        %1963 = vmatprep.subr.mxu0 0.0
        %1964 = vmatpush2.msra.mxu0 0.0
        %1965 = vmatprep.subr.mxu0 0.0
        %1966 = vmatpush2.msra.mxu0 0.0
        %1967 = vmatprep.subr.mxu0 0.0
        %1968 = vmatpush2.msra.mxu0 0.0
        %1969 = vmatprep.subr.mxu0 0.0
        %1970 = vmatpush2.msra.mxu0 0.0
        %1971 = vmatprep.subr.mxu0 0.0
        %1972 = vmatpush2.msra.mxu0 0.0
        %1973 = vmatprep.subr.mxu0 0.0
        %1974 = vmatpush2.msra.mxu0 0.0
        %1975 = vmatprep.subr.mxu0 0.0
        %1976 = vmatpush2.msra.mxu0 0.0
        %1977 = vmatprep.subr.mxu0 0.0
        %1978 = vmatpush2.msra.mxu0 0.0
        %1979 = vmatprep.subr.mxu0 0.0
        %1980 = vmatpush2.msra.mxu0 0.0
        %1981 = vmatprep.subr.mxu0 0.0
        %1982 = vmatpush2.msra.mxu0 0.0
        %1983 = vmatprep.subr.mxu0 0.0
        %1984 = vmatpush2.msra.mxu0 0.0
        %1985 = vmatprep.subr.mxu0 0.0
        %1986 = vmatpush2.msra.mxu0 0.0
        %1987 = vmatprep.subr.mxu0 0.0
        %1988 = vmatpush2.msra.mxu0 0.0
        %1989 = vmatprep.subr.mxu0 0.0
        %1990 = vmatpush2.msra.mxu0 0.0
        %1991 = vmatprep.subr.mxu0 0.0
        %1992 = vmatpush2.msra.mxu0 0.0
        %1993 = vmatprep.mubr.f32.mxu0 0.0
        %1994 = vmatmul.mubr.f32.gmra.mxu0 %v1927
        %v1995 = vpop.f32.mrf.mxu0
        %v1996 = vadd.f32 0.0, %v1995
        %v1997 = vpop.f32.mrf.mxu0
        %1998 = vdwg.mxu0
        %v2000 = vsel %vm1150, %v1847, 0
        %2002 = vmatprep.subr.mxu0 0.0
        %2003 = vmatpush1.msra.mxu0 0.0
        %2004 = vmatprep.subr.mxu0 0.0
        %2005 = vmatpush1.msra.mxu0 0.0
        %2006 = vmatprep.subr.mxu0 0.0
        %2007 = vmatpush1.msra.mxu0 0.0
        %2008 = vmatprep.subr.mxu0 0.0
        %2009 = vmatpush1.msra.mxu0 0.0
        %2010 = vmatprep.subr.mxu0 0.0
        %2011 = vmatpush1.msra.mxu0 0.0
        %2012 = vmatprep.subr.mxu0 0.0
        %2013 = vmatpush1.msra.mxu0 0.0
        %2014 = vmatprep.subr.mxu0 0.0
        %2015 = vmatpush1.msra.mxu0 0.0
        %2016 = vmatprep.subr.mxu0 0.0
        %2017 = vmatpush1.msra.mxu0 0.0
        %2018 = vmatprep.subr.mxu0 0.0
        %2019 = vmatpush1.msra.mxu0 0.0
        %2020 = vmatprep.subr.mxu0 0.0
        %2021 = vmatpush1.msra.mxu0 0.0
        %2022 = vmatprep.subr.mxu0 0.0
        %2023 = vmatpush1.msra.mxu0 0.0
        %2024 = vmatprep.subr.mxu0 0.0
        %2025 = vmatpush1.msra.mxu0 0.0
        %2026 = vmatprep.subr.mxu0 0.0
        %2027 = vmatpush1.msra.mxu0 0.0
        %2028 = vmatprep.subr.mxu0 0.0
        %2029 = vmatpush1.msra.mxu0 0.0
        %2030 = vmatprep.subr.mxu0 0.0
        %2031 = vmatpush1.msra.mxu0 0.0
        %2032 = vmatprep.subr.mxu0 0.0
        %2033 = vmatpush1.msra.mxu0 %v1131
        %2034 = vmatprep.subr.mxu0 0.0
        %2035 = vmatpush2.msra.mxu0 0.0
        %2036 = vmatprep.subr.mxu0 0.0
        %2037 = vmatpush2.msra.mxu0 0.0
        %2038 = vmatprep.subr.mxu0 0.0
        %2039 = vmatpush2.msra.mxu0 0.0
        %2040 = vmatprep.subr.mxu0 0.0
        %2041 = vmatpush2.msra.mxu0 0.0
        %2042 = vmatprep.subr.mxu0 0.0
        %2043 = vmatpush2.msra.mxu0 0.0
        %2044 = vmatprep.subr.mxu0 0.0
        %2045 = vmatpush2.msra.mxu0 0.0
        %2046 = vmatprep.subr.mxu0 0.0
        %2047 = vmatpush2.msra.mxu0 0.0
        %2048 = vmatprep.subr.mxu0 0.0
        %2049 = vmatpush2.msra.mxu0 0.0
        %2050 = vmatprep.subr.mxu0 0.0
        %2051 = vmatpush2.msra.mxu0 0.0
        %2052 = vmatprep.subr.mxu0 0.0
        %2053 = vmatpush2.msra.mxu0 0.0
        %2054 = vmatprep.subr.mxu0 0.0
        %2055 = vmatpush2.msra.mxu0 0.0
        %2056 = vmatprep.subr.mxu0 0.0
        %2057 = vmatpush2.msra.mxu0 0.0
        %2058 = vmatprep.subr.mxu0 0.0
        %2059 = vmatpush2.msra.mxu0 0.0
        %2060 = vmatprep.subr.mxu0 0.0
        %2061 = vmatpush2.msra.mxu0 0.0
        %2062 = vmatprep.subr.mxu0 0.0
        %2063 = vmatpush2.msra.mxu0 0.0
        %2064 = vmatprep.subr.mxu0 0.0
        %2065 = vmatpush2.msra.mxu0 0.0
        %2066 = vmatprep.mubr.f32.mxu0 0.0
        %2067 = vmatmul.mubr.f32.gmra.mxu0 %v2000
        %v2068 = vpop.f32.mrf.mxu0
        %v2069 = vadd.f32 0.0, %v2068
        %v2070 = vpop.f32.mrf.mxu0
        %2071 = vdwg.mxu0
        %v2073 = vsel %vm1150, %v1848, 0
        %2075 = vmatprep.subr.mxu0 0.0
        %2076 = vmatpush1.msra.mxu0 0.0
        %2077 = vmatprep.subr.mxu0 0.0
        %2078 = vmatpush1.msra.mxu0 0.0
        %2079 = vmatprep.subr.mxu0 0.0
        %2080 = vmatpush1.msra.mxu0 0.0
        %2081 = vmatprep.subr.mxu0 0.0
        %2082 = vmatpush1.msra.mxu0 0.0
        %2083 = vmatprep.subr.mxu0 0.0
        %2084 = vmatpush1.msra.mxu0 0.0
        %2085 = vmatprep.subr.mxu0 0.0
        %2086 = vmatpush1.msra.mxu0 0.0
        %2087 = vmatprep.subr.mxu0 0.0
        %2088 = vmatpush1.msra.mxu0 0.0
        %2089 = vmatprep.subr.mxu0 0.0
        %2090 = vmatpush1.msra.mxu0 0.0
        %2091 = vmatprep.subr.mxu0 0.0
        %2092 = vmatpush1.msra.mxu0 0.0
        %2093 = vmatprep.subr.mxu0 0.0
        %2094 = vmatpush1.msra.mxu0 0.0
        %2095 = vmatprep.subr.mxu0 0.0
        %2096 = vmatpush1.msra.mxu0 0.0
        %2097 = vmatprep.subr.mxu0 0.0
        %2098 = vmatpush1.msra.mxu0 0.0
        %2099 = vmatprep.subr.mxu0 0.0
        %2100 = vmatpush1.msra.mxu0 0.0
        %2101 = vmatprep.subr.mxu0 0.0
        %2102 = vmatpush1.msra.mxu0 0.0
        %2103 = vmatprep.subr.mxu0 0.0
        %2104 = vmatpush1.msra.mxu0 0.0
        %2105 = vmatprep.subr.mxu0 0.0
        %2106 = vmatpush1.msra.mxu0 %v1134
        %2107 = vmatprep.subr.mxu0 0.0
        %2108 = vmatpush2.msra.mxu0 0.0
        %2109 = vmatprep.subr.mxu0 0.0
        %2110 = vmatpush2.msra.mxu0 0.0
        %2111 = vmatprep.subr.mxu0 0.0
        %2112 = vmatpush2.msra.mxu0 0.0
        %2113 = vmatprep.subr.mxu0 0.0
        %2114 = vmatpush2.msra.mxu0 0.0
        %2115 = vmatprep.subr.mxu0 0.0
        %2116 = vmatpush2.msra.mxu0 0.0
        %2117 = vmatprep.subr.mxu0 0.0
        %2118 = vmatpush2.msra.mxu0 0.0
        %2119 = vmatprep.subr.mxu0 0.0
        %2120 = vmatpush2.msra.mxu0 0.0
        %2121 = vmatprep.subr.mxu0 0.0
        %2122 = vmatpush2.msra.mxu0 0.0
        %2123 = vmatprep.subr.mxu0 0.0
        %2124 = vmatpush2.msra.mxu0 0.0
        %2125 = vmatprep.subr.mxu0 0.0
        %2126 = vmatpush2.msra.mxu0 0.0
        %2127 = vmatprep.subr.mxu0 0.0
        %2128 = vmatpush2.msra.mxu0 0.0
        %2129 = vmatprep.subr.mxu0 0.0
        %2130 = vmatpush2.msra.mxu0 0.0
        %2131 = vmatprep.subr.mxu0 0.0
        %2132 = vmatpush2.msra.mxu0 0.0
        %2133 = vmatprep.subr.mxu0 0.0
        %2134 = vmatpush2.msra.mxu0 0.0
        %2135 = vmatprep.subr.mxu0 0.0
        %2136 = vmatpush2.msra.mxu0 0.0
        %2137 = vmatprep.subr.mxu0 0.0
        %2138 = vmatpush2.msra.mxu0 0.0
        %2139 = vmatprep.mubr.f32.mxu0 0.0
        %2140 = vmatmul.mubr.f32.gmra.mxu0 %v2073
        %v2141 = vpop.f32.mrf.mxu0
        %v2142 = vadd.f32 0.0, %v2141
        %v2143 = vpop.f32.mrf.mxu0
        %2144 = vdwg.mxu0
        %v2146 = vsel %vm1150, %v1849, 0
        %2148 = vmatprep.subr.mxu0 0.0
        %2149 = vmatpush1.msra.mxu0 0.0
        %2150 = vmatprep.subr.mxu0 0.0
        %2151 = vmatpush1.msra.mxu0 0.0
        %2152 = vmatprep.subr.mxu0 0.0
        %2153 = vmatpush1.msra.mxu0 0.0
        %2154 = vmatprep.subr.mxu0 0.0
        %2155 = vmatpush1.msra.mxu0 0.0
        %2156 = vmatprep.subr.mxu0 0.0
        %2157 = vmatpush1.msra.mxu0 0.0
        %2158 = vmatprep.subr.mxu0 0.0
        %2159 = vmatpush1.msra.mxu0 0.0
        %2160 = vmatprep.subr.mxu0 0.0
        %2161 = vmatpush1.msra.mxu0 0.0
        %2162 = vmatprep.subr.mxu0 0.0
        %2163 = vmatpush1.msra.mxu0 0.0
        %2164 = vmatprep.subr.mxu0 0.0
        %2165 = vmatpush1.msra.mxu0 0.0
        %2166 = vmatprep.subr.mxu0 0.0
        %2167 = vmatpush1.msra.mxu0 0.0
        %2168 = vmatprep.subr.mxu0 0.0
        %2169 = vmatpush1.msra.mxu0 0.0
        %2170 = vmatprep.subr.mxu0 0.0
        %2171 = vmatpush1.msra.mxu0 0.0
        %2172 = vmatprep.subr.mxu0 0.0
        %2173 = vmatpush1.msra.mxu0 0.0
        %2174 = vmatprep.subr.mxu0 0.0
        %2175 = vmatpush1.msra.mxu0 0.0
        %2176 = vmatprep.subr.mxu0 0.0
        %2177 = vmatpush1.msra.mxu0 0.0
        %2178 = vmatprep.subr.mxu0 0.0
        %2179 = vmatpush1.msra.mxu0 %v1137
        %2180 = vmatprep.subr.mxu0 0.0
        %2181 = vmatpush2.msra.mxu0 0.0
        %2182 = vmatprep.subr.mxu0 0.0
        %2183 = vmatpush2.msra.mxu0 0.0
        %2184 = vmatprep.subr.mxu0 0.0
        %2185 = vmatpush2.msra.mxu0 0.0
        %2186 = vmatprep.subr.mxu0 0.0
        %2187 = vmatpush2.msra.mxu0 0.0
        %2188 = vmatprep.subr.mxu0 0.0
        %2189 = vmatpush2.msra.mxu0 0.0
        %2190 = vmatprep.subr.mxu0 0.0
        %2191 = vmatpush2.msra.mxu0 0.0
        %2192 = vmatprep.subr.mxu0 0.0
        %2193 = vmatpush2.msra.mxu0 0.0
        %2194 = vmatprep.subr.mxu0 0.0
        %2195 = vmatpush2.msra.mxu0 0.0
        %2196 = vmatprep.subr.mxu0 0.0
        %2197 = vmatpush2.msra.mxu0 0.0
        %2198 = vmatprep.subr.mxu0 0.0
        %2199 = vmatpush2.msra.mxu0 0.0
        %2200 = vmatprep.subr.mxu0 0.0
        %2201 = vmatpush2.msra.mxu0 0.0
        %2202 = vmatprep.subr.mxu0 0.0
        %2203 = vmatpush2.msra.mxu0 0.0
        %2204 = vmatprep.subr.mxu0 0.0
        %2205 = vmatpush2.msra.mxu0 0.0
        %2206 = vmatprep.subr.mxu0 0.0
        %2207 = vmatpush2.msra.mxu0 0.0
        %2208 = vmatprep.subr.mxu0 0.0
        %2209 = vmatpush2.msra.mxu0 0.0
        %2210 = vmatprep.subr.mxu0 0.0
        %2211 = vmatpush2.msra.mxu0 0.0
        %2212 = vmatprep.mubr.f32.mxu0 0.0
        %2213 = vmatmul.mubr.f32.gmra.mxu0 %v2146
        %v2214 = vpop.f32.mrf.mxu0
        %v2215 = vadd.f32 0.0, %v2214
        %v2216 = vpop.f32.mrf.mxu0
        %2217 = vdwg.mxu0
        %v2219 = vsel %vm1150, %v1850, 0
        %2221 = vmatprep.subr.mxu0 0.0
        %2222 = vmatpush1.msra.mxu0 0.0
        %2223 = vmatprep.subr.mxu0 0.0
        %2224 = vmatpush1.msra.mxu0 0.0
        %2225 = vmatprep.subr.mxu0 0.0
        %2226 = vmatpush1.msra.mxu0 0.0
        %2227 = vmatprep.subr.mxu0 0.0
        %2228 = vmatpush1.msra.mxu0 0.0
        %2229 = vmatprep.subr.mxu0 0.0
        %2230 = vmatpush1.msra.mxu0 0.0
        %2231 = vmatprep.subr.mxu0 0.0
        %2232 = vmatpush1.msra.mxu0 0.0
        %2233 = vmatprep.subr.mxu0 0.0
        %2234 = vmatpush1.msra.mxu0 0.0
        %2235 = vmatprep.subr.mxu0 0.0
        %2236 = vmatpush1.msra.mxu0 0.0
        %2237 = vmatprep.subr.mxu0 0.0
        %2238 = vmatpush1.msra.mxu0 0.0
        %2239 = vmatprep.subr.mxu0 0.0
        %2240 = vmatpush1.msra.mxu0 0.0
        %2241 = vmatprep.subr.mxu0 0.0
        %2242 = vmatpush1.msra.mxu0 0.0
        %2243 = vmatprep.subr.mxu0 0.0
        %2244 = vmatpush1.msra.mxu0 0.0
        %2245 = vmatprep.subr.mxu0 0.0
        %2246 = vmatpush1.msra.mxu0 0.0
        %2247 = vmatprep.subr.mxu0 0.0
        %2248 = vmatpush1.msra.mxu0 0.0
        %2249 = vmatprep.subr.mxu0 0.0
        %2250 = vmatpush1.msra.mxu0 0.0
        %2251 = vmatprep.subr.mxu0 0.0
        %2252 = vmatpush1.msra.mxu0 %v1140
        %2253 = vmatprep.subr.mxu0 0.0
        %2254 = vmatpush2.msra.mxu0 0.0
        %2255 = vmatprep.subr.mxu0 0.0
        %2256 = vmatpush2.msra.mxu0 0.0
        %2257 = vmatprep.subr.mxu0 0.0
        %2258 = vmatpush2.msra.mxu0 0.0
        %2259 = vmatprep.subr.mxu0 0.0
        %2260 = vmatpush2.msra.mxu0 0.0
        %2261 = vmatprep.subr.mxu0 0.0
        %2262 = vmatpush2.msra.mxu0 0.0
        %2263 = vmatprep.subr.mxu0 0.0
        %2264 = vmatpush2.msra.mxu0 0.0
        %2265 = vmatprep.subr.mxu0 0.0
        %2266 = vmatpush2.msra.mxu0 0.0
        %2267 = vmatprep.subr.mxu0 0.0
        %2268 = vmatpush2.msra.mxu0 0.0
        %2269 = vmatprep.subr.mxu0 0.0
        %2270 = vmatpush2.msra.mxu0 0.0
        %2271 = vmatprep.subr.mxu0 0.0
        %2272 = vmatpush2.msra.mxu0 0.0
        %2273 = vmatprep.subr.mxu0 0.0
        %2274 = vmatpush2.msra.mxu0 0.0
        %2275 = vmatprep.subr.mxu0 0.0
        %2276 = vmatpush2.msra.mxu0 0.0
        %2277 = vmatprep.subr.mxu0 0.0
        %2278 = vmatpush2.msra.mxu0 0.0
        %2279 = vmatprep.subr.mxu0 0.0
        %2280 = vmatpush2.msra.mxu0 0.0
        %2281 = vmatprep.subr.mxu0 0.0
        %2282 = vmatpush2.msra.mxu0 0.0
        %2283 = vmatprep.subr.mxu0 0.0
        %2284 = vmatpush2.msra.mxu0 0.0
        %2285 = vmatprep.mubr.f32.mxu0 0.0
        %2286 = vmatmul.mubr.f32.gmra.mxu0 %v2219
        %v2287 = vpop.f32.mrf.mxu0
        %v2288 = vadd.f32 0.0, %v2287
        %v2289 = vpop.f32.mrf.mxu0
        %2290 = vdwg.mxu0
        %v2292 = vsel %vm1150, %v1851, 0
        %2294 = vmatprep.subr.mxu0 0.0
        %2295 = vmatpush1.msra.mxu0 0.0
        %2296 = vmatprep.subr.mxu0 0.0
        %2297 = vmatpush1.msra.mxu0 0.0
        %2298 = vmatprep.subr.mxu0 0.0
        %2299 = vmatpush1.msra.mxu0 0.0
        %2300 = vmatprep.subr.mxu0 0.0
        %2301 = vmatpush1.msra.mxu0 0.0
        %2302 = vmatprep.subr.mxu0 0.0
        %2303 = vmatpush1.msra.mxu0 0.0
        %2304 = vmatprep.subr.mxu0 0.0
        %2305 = vmatpush1.msra.mxu0 0.0
        %2306 = vmatprep.subr.mxu0 0.0
        %2307 = vmatpush1.msra.mxu0 0.0
        %2308 = vmatprep.subr.mxu0 0.0
        %2309 = vmatpush1.msra.mxu0 0.0
        %2310 = vmatprep.subr.mxu0 0.0
        %2311 = vmatpush1.msra.mxu0 0.0
        %2312 = vmatprep.subr.mxu0 0.0
        %2313 = vmatpush1.msra.mxu0 0.0
        %2314 = vmatprep.subr.mxu0 0.0
        %2315 = vmatpush1.msra.mxu0 0.0
        %2316 = vmatprep.subr.mxu0 0.0
        %2317 = vmatpush1.msra.mxu0 0.0
        %2318 = vmatprep.subr.mxu0 0.0
        %2319 = vmatpush1.msra.mxu0 0.0
        %2320 = vmatprep.subr.mxu0 0.0
        %2321 = vmatpush1.msra.mxu0 0.0
        %2322 = vmatprep.subr.mxu0 0.0
        %2323 = vmatpush1.msra.mxu0 0.0
        %2324 = vmatprep.subr.mxu0 0.0
        %2325 = vmatpush1.msra.mxu0 %v1143
        %2326 = vmatprep.subr.mxu0 0.0
        %2327 = vmatpush2.msra.mxu0 0.0
        %2328 = vmatprep.subr.mxu0 0.0
        %2329 = vmatpush2.msra.mxu0 0.0
        %2330 = vmatprep.subr.mxu0 0.0
        %2331 = vmatpush2.msra.mxu0 0.0
        %2332 = vmatprep.subr.mxu0 0.0
        %2333 = vmatpush2.msra.mxu0 0.0
        %2334 = vmatprep.subr.mxu0 0.0
        %2335 = vmatpush2.msra.mxu0 0.0
        %2336 = vmatprep.subr.mxu0 0.0
        %2337 = vmatpush2.msra.mxu0 0.0
        %2338 = vmatprep.subr.mxu0 0.0
        %2339 = vmatpush2.msra.mxu0 0.0
        %2340 = vmatprep.subr.mxu0 0.0
        %2341 = vmatpush2.msra.mxu0 0.0
        %2342 = vmatprep.subr.mxu0 0.0
        %2343 = vmatpush2.msra.mxu0 0.0
        %2344 = vmatprep.subr.mxu0 0.0
        %2345 = vmatpush2.msra.mxu0 0.0
        %2346 = vmatprep.subr.mxu0 0.0
        %2347 = vmatpush2.msra.mxu0 0.0
        %2348 = vmatprep.subr.mxu0 0.0
        %2349 = vmatpush2.msra.mxu0 0.0
        %2350 = vmatprep.subr.mxu0 0.0
        %2351 = vmatpush2.msra.mxu0 0.0
        %2352 = vmatprep.subr.mxu0 0.0
        %2353 = vmatpush2.msra.mxu0 0.0
        %2354 = vmatprep.subr.mxu0 0.0
        %2355 = vmatpush2.msra.mxu0 0.0
        %2356 = vmatprep.subr.mxu0 0.0
        %2357 = vmatpush2.msra.mxu0 0.0
        %2358 = vmatprep.mubr.f32.mxu0 0.0
        %2359 = vmatmul.mubr.f32.gmra.mxu0 %v2292
        %v2360 = vpop.f32.mrf.mxu0
        %v2361 = vadd.f32 0.0, %v2360
        %v2362 = vpop.f32.mrf.mxu0
        %2363 = vdwg.mxu0
        %v2365 = vsel %vm1150, %v1852, 0
        %2367 = vmatprep.subr.mxu0 0.0
        %2368 = vmatpush1.msra.mxu0 0.0
        %2369 = vmatprep.subr.mxu0 0.0
        %2370 = vmatpush1.msra.mxu0 0.0
        %2371 = vmatprep.subr.mxu0 0.0
        %2372 = vmatpush1.msra.mxu0 0.0
        %2373 = vmatprep.subr.mxu0 0.0
        %2374 = vmatpush1.msra.mxu0 0.0
        %2375 = vmatprep.subr.mxu0 0.0
        %2376 = vmatpush1.msra.mxu0 0.0
        %2377 = vmatprep.subr.mxu0 0.0
        %2378 = vmatpush1.msra.mxu0 0.0
        %2379 = vmatprep.subr.mxu0 0.0
        %2380 = vmatpush1.msra.mxu0 0.0
        %2381 = vmatprep.subr.mxu0 0.0
        %2382 = vmatpush1.msra.mxu0 0.0
        %2383 = vmatprep.subr.mxu0 0.0
        %2384 = vmatpush1.msra.mxu0 0.0
        %2385 = vmatprep.subr.mxu0 0.0
        %2386 = vmatpush1.msra.mxu0 0.0
        %2387 = vmatprep.subr.mxu0 0.0
        %2388 = vmatpush1.msra.mxu0 0.0
        %2389 = vmatprep.subr.mxu0 0.0
        %2390 = vmatpush1.msra.mxu0 0.0
        %2391 = vmatprep.subr.mxu0 0.0
        %2392 = vmatpush1.msra.mxu0 0.0
        %2393 = vmatprep.subr.mxu0 0.0
        %2394 = vmatpush1.msra.mxu0 0.0
        %2395 = vmatprep.subr.mxu0 0.0
        %2396 = vmatpush1.msra.mxu0 0.0
        %2397 = vmatprep.subr.mxu0 0.0
        %2398 = vmatpush1.msra.mxu0 %v1146
        %2399 = vmatprep.subr.mxu0 0.0
        %2400 = vmatpush2.msra.mxu0 0.0
        %2401 = vmatprep.subr.mxu0 0.0
        %2402 = vmatpush2.msra.mxu0 0.0
        %2403 = vmatprep.subr.mxu0 0.0
        %2404 = vmatpush2.msra.mxu0 0.0
        %2405 = vmatprep.subr.mxu0 0.0
        %2406 = vmatpush2.msra.mxu0 0.0
        %2407 = vmatprep.subr.mxu0 0.0
        %2408 = vmatpush2.msra.mxu0 0.0
        %2409 = vmatprep.subr.mxu0 0.0
        %2410 = vmatpush2.msra.mxu0 0.0
        %2411 = vmatprep.subr.mxu0 0.0
        %2412 = vmatpush2.msra.mxu0 0.0
        %2413 = vmatprep.subr.mxu0 0.0
        %2414 = vmatpush2.msra.mxu0 0.0
        %2415 = vmatprep.subr.mxu0 0.0
        %2416 = vmatpush2.msra.mxu0 0.0
        %2417 = vmatprep.subr.mxu0 0.0
        %2418 = vmatpush2.msra.mxu0 0.0
        %2419 = vmatprep.subr.mxu0 0.0
        %2420 = vmatpush2.msra.mxu0 0.0
        %2421 = vmatprep.subr.mxu0 0.0
        %2422 = vmatpush2.msra.mxu0 0.0
        %2423 = vmatprep.subr.mxu0 0.0
        %2424 = vmatpush2.msra.mxu0 0.0
        %2425 = vmatprep.subr.mxu0 0.0
        %2426 = vmatpush2.msra.mxu0 0.0
        %2427 = vmatprep.subr.mxu0 0.0
        %2428 = vmatpush2.msra.mxu0 0.0
        %2429 = vmatprep.subr.mxu0 0.0
        %2430 = vmatpush2.msra.mxu0 0.0
        %2431 = vmatprep.mubr.f32.mxu0 0.0
        %2432 = vmatmul.mubr.f32.gmra.mxu0 %v2365
        %v2433 = vpop.f32.mrf.mxu0
        %v2434 = vadd.f32 0.0, %v2433
        %v2435 = vpop.f32.mrf.mxu0
        %2436 = vdwg.mxu0
        %2438 = vrot.lane.b32.xlu0 %v1996, 8
        %v2439 = vpop.permute.xlu0 %2438
        %2442 = vrot.lane.b32.xlu0 %v2069, 16
        %v2443 = vpop.permute.xlu0 %2442
        %2446 = vrot.lane.b32.xlu0 %v2142, 24
        %v2447 = vpop.permute.xlu0 %2446
        %2450 = vrot.lane.b32.xlu0 %v2215, 32
        %v2451 = vpop.permute.xlu0 %2450
        %2454 = vrot.lane.b32.xlu0 %v2288, 40
        %v2455 = vpop.permute.xlu0 %2454
        %2458 = vrot.lane.b32.xlu0 %v2361, 48
        %v2459 = vpop.permute.xlu0 %2458
        %2462 = vrot.lane.b32.xlu0 %v2434, 56
        %v2463 = vpop.permute.xlu0 %2462
        %v2465 = vsel %vm1150, %v1923, %v2439
        %vm2466 = vcmask 130048
        %v2467 = vsel %vm2466, %v2465, %v2443
        %vm2468 = vcmask 195584
        %v2469 = vsel %vm2468, %v2467, %v2447
        %vm2470 = vcmask 261120
        %v2471 = vsel %vm2470, %v2469, %v2451
        %vm2472 = vcmask 326656
        %v2473 = vsel %vm2472, %v2471, %v2455
        %vm2474 = vcmask 392192
        %v2475 = vsel %vm2474, %v2473, %v2459
        %vm2476 = vcmask 457728
        %v2477 = vsel %vm2476, %v2475, %v2463
        %v2478 = vpack.c.bf16 %v2477, %v2477
        %v2480 = vlaneseq
        %v2481 = vshrl.u32 %v2480, 7
        %v2482 = vsub.s32 0, %v2481
        %v2483 = vrot.slane %v1095, %v2482
        %v2493 = vunpack.c.l.b16 %v1087
        %v2494 = vunpack.c.l.b16 %v1088
        %v2495 = vunpack.c.l.b16 %v1089
        %v2496 = vunpack.c.l.b16 %v1090
        %v2497 = vunpack.c.l.b16 %v1091
        %v2498 = vunpack.c.l.b16 %v1092
        %v2499 = vunpack.c.l.b16 %v1093
        %v2500 = vunpack.c.l.b16 %v1094
        %v2501 = vpack.c.b16 %v2494, %v2493
        %v2502 = vpack.c.b16 %v2496, %v2495
        %v2503 = vpack.c.b16 %v2498, %v2497
        %v2504 = vpack.c.b16 %v2500, %v2499
        %v2510 = vsel %vm952, %v2478, 0
        %2512 = vmatprep.subr.bf16.mxu0 0
        %2513 = vmatpush1.bf16.msra.mxu0 0
        %2514 = vmatprep.subr.bf16.mxu0 0
        %2515 = vmatpush1.bf16.msra.mxu0 0
        %2516 = vmatprep.subr.bf16.mxu0 0
        %2517 = vmatpush1.bf16.msra.mxu0 0
        %2518 = vmatprep.subr.bf16.mxu0 0
        %2519 = vmatpush1.bf16.msra.mxu0 0
        %2520 = vmatprep.subr.bf16.mxu0 0
        %2521 = vmatpush1.bf16.msra.mxu0 %v2504
        %2522 = vmatprep.subr.bf16.mxu0 0
        %2523 = vmatpush1.bf16.msra.mxu0 %v2503
        %2524 = vmatprep.subr.bf16.mxu0 0
        %2525 = vmatpush1.bf16.msra.mxu0 %v2502
        %2526 = vmatprep.subr.bf16.mxu0 0
        %2527 = vmatpush1.bf16.msra.mxu0 %v2501
        %2528 = vmatprep.subr.bf16.mxu0 0
        %2529 = vmatpush2.bf16.msra.mxu0 0
        %2530 = vmatprep.subr.bf16.mxu0 0
        %2531 = vmatpush2.bf16.msra.mxu0 0
        %2532 = vmatprep.subr.bf16.mxu0 0
        %2533 = vmatpush2.bf16.msra.mxu0 0
        %2534 = vmatprep.subr.bf16.mxu0 0
        %2535 = vmatpush2.bf16.msra.mxu0 0
        %2536 = vmatprep.subr.bf16.mxu0 0
        %2537 = vmatpush2.bf16.msra.mxu0 0
        %2538 = vmatprep.subr.bf16.mxu0 0
        %2539 = vmatpush2.bf16.msra.mxu0 0
        %2540 = vmatprep.subr.bf16.mxu0 0
        %2541 = vmatpush2.bf16.msra.mxu0 0
        %2542 = vmatprep.subr.bf16.mxu0 0
        %2543 = vmatpush2.bf16.msra.mxu0 0
        %2544 = vmatprep.mubr.bf16.mxu0 0
        %2545 = vmatmul.mubr.bf16.gmra.mxu0 %v2510
        %v2546 = vpop.f32.mrf.mxu0
        %v2547 = vadd.f32 %v2483, %v2546
        %v2548 = vpop.f32.mrf.mxu0
        %v2549 = vpop.f32.mrf.mxu0
        %v2550 = vpop.f32.mrf.mxu0
        %2551 = vdwg.mxu0
        %v2552 = vadd.f32 %v2547, %v930
        %s2553 = scalar_lea.vmem %s5, 1
        %v2554 = vld [vmem:[%s2553] sm:$0x1]
        %s2555 = scalar_lea.vmem %s6, 1
        %v2556 = vld [vmem:[%s2555] sm:$0x1]
        %v2557 = vsel %vm952, %v2552, 0.0
        %2558 = vadd.xlane.f32.xlu0 %v2557
        %v2559 = vpop.xlane.xlu0 %2558
        %v2560 = vmul.f32 %v2559, %v956
        %v2561 = vsub.f32 %v2552, %v2560
        %v2562 = vmul.f32 %v2561, %v2561
        %v2563 = vsel %vm952, %v2562, 0.0
        %2564 = vadd.xlane.f32.xlu0 %v2563
        %v2565 = vpop.xlane.xlu0 %2564
        %v2566 = vmul.f32 %v2565, %v956
        %v2567 = vadd.f32 %v2566, 1e-06
        %v2568 = vrsqrt.pop %v2567
        %v2569 = vmul.f32 %v2561, %v2568
        %v2571 = vlaneseq
        %v2572 = vshrl.u32 %v2571, 7
        %v2573 = vsub.s32 0, %v2572
        %v2574 = vrot.slane %v2554, %v2573
        %v2576 = vmul.f32 %v2569, %v2574
        %v2578 = vlaneseq
        %v2579 = vshrl.u32 %v2578, 7
        %v2580 = vsub.s32 0, %v2579
        %v2581 = vrot.slane %v2556, %v2580
        %v2583 = vadd.f32 %v2576, %v2581
        %v2584 = vpack.c.bf16 %v2583, %v2583
        %v2585 = vld [vmem:[#allocation8] sm:$0xf]
        %v2586 = vld [vmem:[#allocation8 + $0x4] sm:$0xf]
        %v2587 = vld [vmem:[#allocation8 + $0x8] sm:$0xf]
        %v2588 = vld [vmem:[#allocation8 + $0xc] sm:$0xf]
        %v2589 = vld [vmem:[#allocation8 + $0x10] sm:$0xf]
        %v2590 = vld [vmem:[#allocation8 + $0x14] sm:$0xf]
        %v2591 = vld [vmem:[#allocation8 + $0x18] sm:$0xf]
        %v2592 = vld [vmem:[#allocation8 + $0x1c] sm:$0xf]
        %v2593 = vld [vmem:[#allocation10] sm:$0x1]
        %v2595 = vlaneseq
        %v2596 = vshrl.u32 %v2595, 7
        %v2597 = vsub.s32 0, %v2596
        %v2598 = vrot.slane %v2593, %v2597
        %v2608 = vunpack.c.l.b16 %v2585
        %v2609 = vunpack.c.l.b16 %v2586
        %v2610 = vunpack.c.l.b16 %v2587
        %v2611 = vunpack.c.l.b16 %v2588
        %v2612 = vunpack.c.l.b16 %v2589
        %v2613 = vunpack.c.l.b16 %v2590
        %v2614 = vunpack.c.l.b16 %v2591
        %v2615 = vunpack.c.l.b16 %v2592
        %v2616 = vpack.c.b16 %v2609, %v2608
        %v2617 = vpack.c.b16 %v2611, %v2610
        %v2618 = vpack.c.b16 %v2613, %v2612
        %v2619 = vpack.c.b16 %v2615, %v2614
        %v2625 = vsel %vm952, %v2584, 0
        %2627 = vmatprep.subr.bf16.mxu0 0
        %2628 = vmatpush1.bf16.msra.mxu0 0
        %2629 = vmatprep.subr.bf16.mxu0 0
        %2630 = vmatpush1.bf16.msra.mxu0 0
        %2631 = vmatprep.subr.bf16.mxu0 0
        %2632 = vmatpush1.bf16.msra.mxu0 0
        %2633 = vmatprep.subr.bf16.mxu0 0
        %2634 = vmatpush1.bf16.msra.mxu0 0
        %2635 = vmatprep.subr.bf16.mxu0 0
        %2636 = vmatpush1.bf16.msra.mxu0 %v2619
        %2637 = vmatprep.subr.bf16.mxu0 0
        %2638 = vmatpush1.bf16.msra.mxu0 %v2618
        %2639 = vmatprep.subr.bf16.mxu0 0
        %2640 = vmatpush1.bf16.msra.mxu0 %v2617
        %2641 = vmatprep.subr.bf16.mxu0 0
        %2642 = vmatpush1.bf16.msra.mxu0 %v2616
        %2643 = vmatprep.subr.bf16.mxu0 0
        %2644 = vmatpush2.bf16.msra.mxu0 0
        %2645 = vmatprep.subr.bf16.mxu0 0
        %2646 = vmatpush2.bf16.msra.mxu0 0
        %2647 = vmatprep.subr.bf16.mxu0 0
        %2648 = vmatpush2.bf16.msra.mxu0 0
        %2649 = vmatprep.subr.bf16.mxu0 0
        %2650 = vmatpush2.bf16.msra.mxu0 0
        %2651 = vmatprep.subr.bf16.mxu0 0
        %2652 = vmatpush2.bf16.msra.mxu0 0
        %2653 = vmatprep.subr.bf16.mxu0 0
        %2654 = vmatpush2.bf16.msra.mxu0 0
        %2655 = vmatprep.subr.bf16.mxu0 0
        %2656 = vmatpush2.bf16.msra.mxu0 0
        %2657 = vmatprep.subr.bf16.mxu0 0
        %2658 = vmatpush2.bf16.msra.mxu0 0
        %2659 = vmatprep.mubr.bf16.mxu0 0
        %2660 = vmatmul.mubr.bf16.gmra.mxu0 %v2625
        %v2661 = vpop.f32.mrf.mxu0
        %v2662 = vadd.f32 %v2598, %v2661
        %v2663 = vpop.f32.mrf.mxu0
        %v2664 = vpop.f32.mrf.mxu0
        %v2665 = vpop.f32.mrf.mxu0
        %2666 = vdwg.mxu0
        %v2667 = vmul.f32 %v2662, 0.35355338
        %v2668 = vpack.c.bf16 %v931, %v931
        %v2669 = vld [vmem:[#allocation11] sm:$0xf]
        %v2670 = vld [vmem:[#allocation11 + $0x4] sm:$0xf]
        %v2671 = vld [vmem:[#allocation11 + $0x8] sm:$0xf]
        %v2672 = vld [vmem:[#allocation11 + $0xc] sm:$0xf]
        %v2673 = vld [vmem:[#allocation11 + $0x10] sm:$0xf]
        %v2674 = vld [vmem:[#allocation11 + $0x14] sm:$0xf]
        %v2675 = vld [vmem:[#allocation11 + $0x18] sm:$0xf]
        %v2676 = vld [vmem:[#allocation11 + $0x1c] sm:$0xf]
        %v2677 = vld [vmem:[#allocation13] sm:$0x1]
        %v2679 = vlaneseq
        %v2680 = vshrl.u32 %v2679, 7
        %v2681 = vsub.s32 0, %v2680
        %v2682 = vrot.slane %v2677, %v2681
        %v2692 = vunpack.c.l.b16 %v2669
        %v2693 = vunpack.c.l.b16 %v2670
        %v2694 = vunpack.c.l.b16 %v2671
        %v2695 = vunpack.c.l.b16 %v2672
        %v2696 = vunpack.c.l.b16 %v2673
        %v2697 = vunpack.c.l.b16 %v2674
        %v2698 = vunpack.c.l.b16 %v2675
        %v2699 = vunpack.c.l.b16 %v2676
        %v2700 = vpack.c.b16 %v2693, %v2692
        %v2701 = vpack.c.b16 %v2695, %v2694
        %v2702 = vpack.c.b16 %v2697, %v2696
        %v2703 = vpack.c.b16 %v2699, %v2698
        %v2709 = vsel %vm952, %v2668, 0
        %2711 = vmatprep.subr.bf16.mxu0 0
        %2712 = vmatpush1.bf16.msra.mxu0 0
        %2713 = vmatprep.subr.bf16.mxu0 0
        %2714 = vmatpush1.bf16.msra.mxu0 0
        %2715 = vmatprep.subr.bf16.mxu0 0
        %2716 = vmatpush1.bf16.msra.mxu0 0
        %2717 = vmatprep.subr.bf16.mxu0 0
        %2718 = vmatpush1.bf16.msra.mxu0 0
        %2719 = vmatprep.subr.bf16.mxu0 0
        %2720 = vmatpush1.bf16.msra.mxu0 %v2703
        %2721 = vmatprep.subr.bf16.mxu0 0
        %2722 = vmatpush1.bf16.msra.mxu0 %v2702
        %2723 = vmatprep.subr.bf16.mxu0 0
        %2724 = vmatpush1.bf16.msra.mxu0 %v2701
        %2725 = vmatprep.subr.bf16.mxu0 0
        %2726 = vmatpush1.bf16.msra.mxu0 %v2700
        %2727 = vmatprep.subr.bf16.mxu0 0
        %2728 = vmatpush2.bf16.msra.mxu0 0
        %2729 = vmatprep.subr.bf16.mxu0 0
        %2730 = vmatpush2.bf16.msra.mxu0 0
        %2731 = vmatprep.subr.bf16.mxu0 0
        %2732 = vmatpush2.bf16.msra.mxu0 0
        %2733 = vmatprep.subr.bf16.mxu0 0
        %2734 = vmatpush2.bf16.msra.mxu0 0
        %2735 = vmatprep.subr.bf16.mxu0 0
        %2736 = vmatpush2.bf16.msra.mxu0 0
        %2737 = vmatprep.subr.bf16.mxu0 0
        %2738 = vmatpush2.bf16.msra.mxu0 0
        %2739 = vmatprep.subr.bf16.mxu0 0
        %2740 = vmatpush2.bf16.msra.mxu0 0
        %2741 = vmatprep.subr.bf16.mxu0 0
        %2742 = vmatpush2.bf16.msra.mxu0 0
        %2743 = vmatprep.mubr.bf16.mxu0 0
        %2744 = vmatmul.mubr.bf16.gmra.mxu0 %v2709
        %v2745 = vpop.f32.mrf.mxu0
        %v2746 = vadd.f32 %v2682, %v2745
        %v2747 = vpop.f32.mrf.mxu0
        %v2748 = vpop.f32.mrf.mxu0
        %v2749 = vpop.f32.mrf.mxu0
        %2750 = vdwg.mxu0
        %s2751 = scalar_lea.vmem [#allocation14], 32
        %v2752 = vld [vmem:[%s2751] sm:$0xf]
        %v2753 = vld [vmem:[%s2751 + $0x4] sm:$0xf]
        %v2754 = vld [vmem:[%s2751 + $0x8] sm:$0xf]
        %v2755 = vld [vmem:[%s2751 + $0xc] sm:$0xf]
        %v2756 = vld [vmem:[%s2751 + $0x10] sm:$0xf]
        %v2757 = vld [vmem:[%s2751 + $0x14] sm:$0xf]
        %v2758 = vld [vmem:[%s2751 + $0x18] sm:$0xf]
        %v2759 = vld [vmem:[%s2751 + $0x1c] sm:$0xf]
        %s2760 = scalar_lea.vmem %s14, 1
        %v2761 = vld [vmem:[%s2760] sm:$0x1]
        %2763 = vrot.lane.b32.xlu0 %v2667, 120
        %v2764 = vpop.permute.xlu0 %2763
        %2765 = vrot.lane.b32.xlu0 %v2667, 112
        %v2766 = vpop.permute.xlu0 %2765
        %2767 = vrot.lane.b32.xlu0 %v2667, 104
        %v2768 = vpop.permute.xlu0 %2767
        %2769 = vrot.lane.b32.xlu0 %v2667, 96
        %v2770 = vpop.permute.xlu0 %2769
        %2771 = vrot.lane.b32.xlu0 %v2667, 88
        %v2772 = vpop.permute.xlu0 %2771
        %2773 = vrot.lane.b32.xlu0 %v2667, 80
        %v2774 = vpop.permute.xlu0 %2773
        %2775 = vrot.lane.b32.xlu0 %v2667, 72
        %v2776 = vpop.permute.xlu0 %2775
        %2778 = vrot.lane.b32.xlu0 %v2746, 120
        %v2779 = vpop.permute.xlu0 %2778
        %2780 = vrot.lane.b32.xlu0 %v2746, 112
        %v2781 = vpop.permute.xlu0 %2780
        %2782 = vrot.lane.b32.xlu0 %v2746, 104
        %v2783 = vpop.permute.xlu0 %2782
        %2784 = vrot.lane.b32.xlu0 %v2746, 96
        %v2785 = vpop.permute.xlu0 %2784
        %2786 = vrot.lane.b32.xlu0 %v2746, 88
        %v2787 = vpop.permute.xlu0 %2786
        %2788 = vrot.lane.b32.xlu0 %v2746, 80
        %v2789 = vpop.permute.xlu0 %2788
        %2790 = vrot.lane.b32.xlu0 %v2746, 72
        %v2791 = vpop.permute.xlu0 %2790
        %v2792 = vsel %vm1150, %v2667, 0
        %v2794 = vsel %vm1150, %v2746, 0
        %2796 = vmatprep.subr.mxu0 0.0
        %2797 = vmatpush1.xpose.msra.mxu0 0.0
        %2798 = vmatprep.subr.mxu0 0.0
        %2799 = vmatpush1.xpose.msra.mxu0 0.0
        %2800 = vmatprep.subr.mxu0 0.0
        %2801 = vmatpush1.xpose.msra.mxu0 0.0
        %2802 = vmatprep.subr.mxu0 0.0
        %2803 = vmatpush1.xpose.msra.mxu0 0.0
        %2804 = vmatprep.subr.mxu0 0.0
        %2805 = vmatpush1.xpose.msra.mxu0 0.0
        %2806 = vmatprep.subr.mxu0 0.0
        %2807 = vmatpush1.xpose.msra.mxu0 0.0
        %2808 = vmatprep.subr.mxu0 0.0
        %2809 = vmatpush1.xpose.msra.mxu0 0.0
        %2810 = vmatprep.subr.mxu0 0.0
        %2811 = vmatpush1.xpose.msra.mxu0 0.0
        %2812 = vmatprep.subr.mxu0 0.0
        %2813 = vmatpush1.xpose.msra.mxu0 0.0
        %2814 = vmatprep.subr.mxu0 0.0
        %2815 = vmatpush1.xpose.msra.mxu0 0.0
        %2816 = vmatprep.subr.mxu0 0.0
        %2817 = vmatpush1.xpose.msra.mxu0 0.0
        %2818 = vmatprep.subr.mxu0 0.0
        %2819 = vmatpush1.xpose.msra.mxu0 0.0
        %2820 = vmatprep.subr.mxu0 0.0
        %2821 = vmatpush1.xpose.msra.mxu0 0.0
        %2822 = vmatprep.subr.mxu0 0.0
        %2823 = vmatpush1.xpose.msra.mxu0 0.0
        %2824 = vmatprep.subr.mxu0 0.0
        %2825 = vmatpush1.xpose.msra.mxu0 0.0
        %2826 = vmatprep.subr.mxu0 0.0
        %2827 = vmatpush1.xpose.msra.mxu0 %v2794
        %2828 = vmatprep.subr.mxu0 0.0
        %2829 = vmatpush2.xpose.msra.mxu0 0.0
        %2830 = vmatprep.subr.mxu0 0.0
        %2831 = vmatpush2.xpose.msra.mxu0 0.0
        %2832 = vmatprep.subr.mxu0 0.0
        %2833 = vmatpush2.xpose.msra.mxu0 0.0
        %2834 = vmatprep.subr.mxu0 0.0
        %2835 = vmatpush2.xpose.msra.mxu0 0.0
        %2836 = vmatprep.subr.mxu0 0.0
        %2837 = vmatpush2.xpose.msra.mxu0 0.0
        %2838 = vmatprep.subr.mxu0 0.0
        %2839 = vmatpush2.xpose.msra.mxu0 0.0
        %2840 = vmatprep.subr.mxu0 0.0
        %2841 = vmatpush2.xpose.msra.mxu0 0.0
        %2842 = vmatprep.subr.mxu0 0.0
        %2843 = vmatpush2.xpose.msra.mxu0 0.0
        %2844 = vmatprep.subr.mxu0 0.0
        %2845 = vmatpush2.xpose.msra.mxu0 0.0
        %2846 = vmatprep.subr.mxu0 0.0
        %2847 = vmatpush2.xpose.msra.mxu0 0.0
        %2848 = vmatprep.subr.mxu0 0.0
        %2849 = vmatpush2.xpose.msra.mxu0 0.0
        %2850 = vmatprep.subr.mxu0 0.0
        %2851 = vmatpush2.xpose.msra.mxu0 0.0
        %2852 = vmatprep.subr.mxu0 0.0
        %2853 = vmatpush2.xpose.msra.mxu0 0.0
        %2854 = vmatprep.subr.mxu0 0.0
        %2855 = vmatpush2.xpose.msra.mxu0 0.0
        %2856 = vmatprep.subr.mxu0 0.0
        %2857 = vmatpush2.xpose.msra.mxu0 0.0
        %2858 = vmatprep.subr.mxu0 0.0
        %2859 = vmatpush2.xpose.msra.mxu0 0.0
        %2860 = vmatprep.mubr.f32.mxu0 0.0
        %2861 = vmatmul.mubr.f32.gmra.mxu0 %v2792
        %v2862 = vpop.f32.mrf.mxu0
        %v2863 = vadd.f32 0.0, %v2862
        %v2864 = vpop.f32.mrf.mxu0
        %2865 = vdwg.mxu0
        %v2866 = vsel %vm1150, %v2764, 0
        %v2868 = vsel %vm1150, %v2779, 0
        %2870 = vmatprep.subr.mxu0 0.0
        %2871 = vmatpush1.xpose.msra.mxu0 0.0
        %2872 = vmatprep.subr.mxu0 0.0
        %2873 = vmatpush1.xpose.msra.mxu0 0.0
        %2874 = vmatprep.subr.mxu0 0.0
        %2875 = vmatpush1.xpose.msra.mxu0 0.0
        %2876 = vmatprep.subr.mxu0 0.0
        %2877 = vmatpush1.xpose.msra.mxu0 0.0
        %2878 = vmatprep.subr.mxu0 0.0
        %2879 = vmatpush1.xpose.msra.mxu0 0.0
        %2880 = vmatprep.subr.mxu0 0.0
        %2881 = vmatpush1.xpose.msra.mxu0 0.0
        %2882 = vmatprep.subr.mxu0 0.0
        %2883 = vmatpush1.xpose.msra.mxu0 0.0
        %2884 = vmatprep.subr.mxu0 0.0
        %2885 = vmatpush1.xpose.msra.mxu0 0.0
        %2886 = vmatprep.subr.mxu0 0.0
        %2887 = vmatpush1.xpose.msra.mxu0 0.0
        %2888 = vmatprep.subr.mxu0 0.0
        %2889 = vmatpush1.xpose.msra.mxu0 0.0
        %2890 = vmatprep.subr.mxu0 0.0
        %2891 = vmatpush1.xpose.msra.mxu0 0.0
        %2892 = vmatprep.subr.mxu0 0.0
        %2893 = vmatpush1.xpose.msra.mxu0 0.0
        %2894 = vmatprep.subr.mxu0 0.0
        %2895 = vmatpush1.xpose.msra.mxu0 0.0
        %2896 = vmatprep.subr.mxu0 0.0
        %2897 = vmatpush1.xpose.msra.mxu0 0.0
        %2898 = vmatprep.subr.mxu0 0.0
        %2899 = vmatpush1.xpose.msra.mxu0 0.0
        %2900 = vmatprep.subr.mxu0 0.0
        %2901 = vmatpush1.xpose.msra.mxu0 %v2868
        %2902 = vmatprep.subr.mxu0 0.0
        %2903 = vmatpush2.xpose.msra.mxu0 0.0
        %2904 = vmatprep.subr.mxu0 0.0
        %2905 = vmatpush2.xpose.msra.mxu0 0.0
        %2906 = vmatprep.subr.mxu0 0.0
        %2907 = vmatpush2.xpose.msra.mxu0 0.0
        %2908 = vmatprep.subr.mxu0 0.0
        %2909 = vmatpush2.xpose.msra.mxu0 0.0
        %2910 = vmatprep.subr.mxu0 0.0
        %2911 = vmatpush2.xpose.msra.mxu0 0.0
        %2912 = vmatprep.subr.mxu0 0.0
        %2913 = vmatpush2.xpose.msra.mxu0 0.0
        %2914 = vmatprep.subr.mxu0 0.0
        %2915 = vmatpush2.xpose.msra.mxu0 0.0
        %2916 = vmatprep.subr.mxu0 0.0
        %2917 = vmatpush2.xpose.msra.mxu0 0.0
        %2918 = vmatprep.subr.mxu0 0.0
        %2919 = vmatpush2.xpose.msra.mxu0 0.0
        %2920 = vmatprep.subr.mxu0 0.0
        %2921 = vmatpush2.xpose.msra.mxu0 0.0
        %2922 = vmatprep.subr.mxu0 0.0
        %2923 = vmatpush2.xpose.msra.mxu0 0.0
        %2924 = vmatprep.subr.mxu0 0.0
        %2925 = vmatpush2.xpose.msra.mxu0 0.0
        %2926 = vmatprep.subr.mxu0 0.0
        %2927 = vmatpush2.xpose.msra.mxu0 0.0
        %2928 = vmatprep.subr.mxu0 0.0
        %2929 = vmatpush2.xpose.msra.mxu0 0.0
        %2930 = vmatprep.subr.mxu0 0.0
        %2931 = vmatpush2.xpose.msra.mxu0 0.0
        %2932 = vmatprep.subr.mxu0 0.0
        %2933 = vmatpush2.xpose.msra.mxu0 0.0
        %2934 = vmatprep.mubr.f32.mxu0 0.0
        %2935 = vmatmul.mubr.f32.gmra.mxu0 %v2866
        %v2936 = vpop.f32.mrf.mxu0
        %v2937 = vadd.f32 0.0, %v2936
        %v2938 = vpop.f32.mrf.mxu0
        %2939 = vdwg.mxu0
        %v2940 = vsel %vm1150, %v2766, 0
        %v2942 = vsel %vm1150, %v2781, 0
        %2944 = vmatprep.subr.mxu0 0.0
        %2945 = vmatpush1.xpose.msra.mxu0 0.0
        %2946 = vmatprep.subr.mxu0 0.0
        %2947 = vmatpush1.xpose.msra.mxu0 0.0
        %2948 = vmatprep.subr.mxu0 0.0
        %2949 = vmatpush1.xpose.msra.mxu0 0.0
        %2950 = vmatprep.subr.mxu0 0.0
        %2951 = vmatpush1.xpose.msra.mxu0 0.0
        %2952 = vmatprep.subr.mxu0 0.0
        %2953 = vmatpush1.xpose.msra.mxu0 0.0
        %2954 = vmatprep.subr.mxu0 0.0
        %2955 = vmatpush1.xpose.msra.mxu0 0.0
        %2956 = vmatprep.subr.mxu0 0.0
        %2957 = vmatpush1.xpose.msra.mxu0 0.0
        %2958 = vmatprep.subr.mxu0 0.0
        %2959 = vmatpush1.xpose.msra.mxu0 0.0
        %2960 = vmatprep.subr.mxu0 0.0
        %2961 = vmatpush1.xpose.msra.mxu0 0.0
        %2962 = vmatprep.subr.mxu0 0.0
        %2963 = vmatpush1.xpose.msra.mxu0 0.0
        %2964 = vmatprep.subr.mxu0 0.0
        %2965 = vmatpush1.xpose.msra.mxu0 0.0
        %2966 = vmatprep.subr.mxu0 0.0
        %2967 = vmatpush1.xpose.msra.mxu0 0.0
        %2968 = vmatprep.subr.mxu0 0.0
        %2969 = vmatpush1.xpose.msra.mxu0 0.0
        %2970 = vmatprep.subr.mxu0 0.0
        %2971 = vmatpush1.xpose.msra.mxu0 0.0
        %2972 = vmatprep.subr.mxu0 0.0
        %2973 = vmatpush1.xpose.msra.mxu0 0.0
        %2974 = vmatprep.subr.mxu0 0.0
        %2975 = vmatpush1.xpose.msra.mxu0 %v2942
        %2976 = vmatprep.subr.mxu0 0.0
        %2977 = vmatpush2.xpose.msra.mxu0 0.0
        %2978 = vmatprep.subr.mxu0 0.0
        %2979 = vmatpush2.xpose.msra.mxu0 0.0
        %2980 = vmatprep.subr.mxu0 0.0
        %2981 = vmatpush2.xpose.msra.mxu0 0.0
        %2982 = vmatprep.subr.mxu0 0.0
        %2983 = vmatpush2.xpose.msra.mxu0 0.0
        %2984 = vmatprep.subr.mxu0 0.0
        %2985 = vmatpush2.xpose.msra.mxu0 0.0
        %2986 = vmatprep.subr.mxu0 0.0
        %2987 = vmatpush2.xpose.msra.mxu0 0.0
        %2988 = vmatprep.subr.mxu0 0.0
        %2989 = vmatpush2.xpose.msra.mxu0 0.0
        %2990 = vmatprep.subr.mxu0 0.0
        %2991 = vmatpush2.xpose.msra.mxu0 0.0
        %2992 = vmatprep.subr.mxu0 0.0
        %2993 = vmatpush2.xpose.msra.mxu0 0.0
        %2994 = vmatprep.subr.mxu0 0.0
        %2995 = vmatpush2.xpose.msra.mxu0 0.0
        %2996 = vmatprep.subr.mxu0 0.0
        %2997 = vmatpush2.xpose.msra.mxu0 0.0
        %2998 = vmatprep.subr.mxu0 0.0
        %2999 = vmatpush2.xpose.msra.mxu0 0.0
        %3000 = vmatprep.subr.mxu0 0.0
        %3001 = vmatpush2.xpose.msra.mxu0 0.0
        %3002 = vmatprep.subr.mxu0 0.0
        %3003 = vmatpush2.xpose.msra.mxu0 0.0
        %3004 = vmatprep.subr.mxu0 0.0
        %3005 = vmatpush2.xpose.msra.mxu0 0.0
        %3006 = vmatprep.subr.mxu0 0.0
        %3007 = vmatpush2.xpose.msra.mxu0 0.0
        %3008 = vmatprep.mubr.f32.mxu0 0.0
        %3009 = vmatmul.mubr.f32.gmra.mxu0 %v2940
        %v3010 = vpop.f32.mrf.mxu0
        %v3011 = vadd.f32 0.0, %v3010
        %v3012 = vpop.f32.mrf.mxu0
        %3013 = vdwg.mxu0
        %v3014 = vsel %vm1150, %v2768, 0
        %v3016 = vsel %vm1150, %v2783, 0
        %3018 = vmatprep.subr.mxu0 0.0
        %3019 = vmatpush1.xpose.msra.mxu0 0.0
        %3020 = vmatprep.subr.mxu0 0.0
        %3021 = vmatpush1.xpose.msra.mxu0 0.0
        %3022 = vmatprep.subr.mxu0 0.0
        %3023 = vmatpush1.xpose.msra.mxu0 0.0
        %3024 = vmatprep.subr.mxu0 0.0
        %3025 = vmatpush1.xpose.msra.mxu0 0.0
        %3026 = vmatprep.subr.mxu0 0.0
        %3027 = vmatpush1.xpose.msra.mxu0 0.0
        %3028 = vmatprep.subr.mxu0 0.0
        %3029 = vmatpush1.xpose.msra.mxu0 0.0
        %3030 = vmatprep.subr.mxu0 0.0
        %3031 = vmatpush1.xpose.msra.mxu0 0.0
        %3032 = vmatprep.subr.mxu0 0.0
        %3033 = vmatpush1.xpose.msra.mxu0 0.0
        %3034 = vmatprep.subr.mxu0 0.0
        %3035 = vmatpush1.xpose.msra.mxu0 0.0
        %3036 = vmatprep.subr.mxu0 0.0
        %3037 = vmatpush1.xpose.msra.mxu0 0.0
        %3038 = vmatprep.subr.mxu0 0.0
        %3039 = vmatpush1.xpose.msra.mxu0 0.0
        %3040 = vmatprep.subr.mxu0 0.0
        %3041 = vmatpush1.xpose.msra.mxu0 0.0
        %3042 = vmatprep.subr.mxu0 0.0
        %3043 = vmatpush1.xpose.msra.mxu0 0.0
        %3044 = vmatprep.subr.mxu0 0.0
        %3045 = vmatpush1.xpose.msra.mxu0 0.0
        %3046 = vmatprep.subr.mxu0 0.0
        %3047 = vmatpush1.xpose.msra.mxu0 0.0
        %3048 = vmatprep.subr.mxu0 0.0
        %3049 = vmatpush1.xpose.msra.mxu0 %v3016
        %3050 = vmatprep.subr.mxu0 0.0
        %3051 = vmatpush2.xpose.msra.mxu0 0.0
        %3052 = vmatprep.subr.mxu0 0.0
        %3053 = vmatpush2.xpose.msra.mxu0 0.0
        %3054 = vmatprep.subr.mxu0 0.0
        %3055 = vmatpush2.xpose.msra.mxu0 0.0
        %3056 = vmatprep.subr.mxu0 0.0
        %3057 = vmatpush2.xpose.msra.mxu0 0.0
        %3058 = vmatprep.subr.mxu0 0.0
        %3059 = vmatpush2.xpose.msra.mxu0 0.0
        %3060 = vmatprep.subr.mxu0 0.0
        %3061 = vmatpush2.xpose.msra.mxu0 0.0
        %3062 = vmatprep.subr.mxu0 0.0
        %3063 = vmatpush2.xpose.msra.mxu0 0.0
        %3064 = vmatprep.subr.mxu0 0.0
        %3065 = vmatpush2.xpose.msra.mxu0 0.0
        %3066 = vmatprep.subr.mxu0 0.0
        %3067 = vmatpush2.xpose.msra.mxu0 0.0
        %3068 = vmatprep.subr.mxu0 0.0
        %3069 = vmatpush2.xpose.msra.mxu0 0.0
        %3070 = vmatprep.subr.mxu0 0.0
        %3071 = vmatpush2.xpose.msra.mxu0 0.0
        %3072 = vmatprep.subr.mxu0 0.0
        %3073 = vmatpush2.xpose.msra.mxu0 0.0
        %3074 = vmatprep.subr.mxu0 0.0
        %3075 = vmatpush2.xpose.msra.mxu0 0.0
        %3076 = vmatprep.subr.mxu0 0.0
        %3077 = vmatpush2.xpose.msra.mxu0 0.0
        %3078 = vmatprep.subr.mxu0 0.0
        %3079 = vmatpush2.xpose.msra.mxu0 0.0
        %3080 = vmatprep.subr.mxu0 0.0
        %3081 = vmatpush2.xpose.msra.mxu0 0.0
        %3082 = vmatprep.mubr.f32.mxu0 0.0
        %3083 = vmatmul.mubr.f32.gmra.mxu0 %v3014
        %v3084 = vpop.f32.mrf.mxu0
        %v3085 = vadd.f32 0.0, %v3084
        %v3086 = vpop.f32.mrf.mxu0
        %3087 = vdwg.mxu0
        %v3088 = vsel %vm1150, %v2770, 0
        %v3090 = vsel %vm1150, %v2785, 0
        %3092 = vmatprep.subr.mxu0 0.0
        %3093 = vmatpush1.xpose.msra.mxu0 0.0
        %3094 = vmatprep.subr.mxu0 0.0
        %3095 = vmatpush1.xpose.msra.mxu0 0.0
        %3096 = vmatprep.subr.mxu0 0.0
        %3097 = vmatpush1.xpose.msra.mxu0 0.0
        %3098 = vmatprep.subr.mxu0 0.0
        %3099 = vmatpush1.xpose.msra.mxu0 0.0
        %3100 = vmatprep.subr.mxu0 0.0
        %3101 = vmatpush1.xpose.msra.mxu0 0.0
        %3102 = vmatprep.subr.mxu0 0.0
        %3103 = vmatpush1.xpose.msra.mxu0 0.0
        %3104 = vmatprep.subr.mxu0 0.0
        %3105 = vmatpush1.xpose.msra.mxu0 0.0
        %3106 = vmatprep.subr.mxu0 0.0
        %3107 = vmatpush1.xpose.msra.mxu0 0.0
        %3108 = vmatprep.subr.mxu0 0.0
        %3109 = vmatpush1.xpose.msra.mxu0 0.0
        %3110 = vmatprep.subr.mxu0 0.0
        %3111 = vmatpush1.xpose.msra.mxu0 0.0
        %3112 = vmatprep.subr.mxu0 0.0
        %3113 = vmatpush1.xpose.msra.mxu0 0.0
        %3114 = vmatprep.subr.mxu0 0.0
        %3115 = vmatpush1.xpose.msra.mxu0 0.0
        %3116 = vmatprep.subr.mxu0 0.0
        %3117 = vmatpush1.xpose.msra.mxu0 0.0
        %3118 = vmatprep.subr.mxu0 0.0
        %3119 = vmatpush1.xpose.msra.mxu0 0.0
        %3120 = vmatprep.subr.mxu0 0.0
        %3121 = vmatpush1.xpose.msra.mxu0 0.0
        %3122 = vmatprep.subr.mxu0 0.0
        %3123 = vmatpush1.xpose.msra.mxu0 %v3090
        %3124 = vmatprep.subr.mxu0 0.0
        %3125 = vmatpush2.xpose.msra.mxu0 0.0
        %3126 = vmatprep.subr.mxu0 0.0
        %3127 = vmatpush2.xpose.msra.mxu0 0.0
        %3128 = vmatprep.subr.mxu0 0.0
        %3129 = vmatpush2.xpose.msra.mxu0 0.0
        %3130 = vmatprep.subr.mxu0 0.0
        %3131 = vmatpush2.xpose.msra.mxu0 0.0
        %3132 = vmatprep.subr.mxu0 0.0
        %3133 = vmatpush2.xpose.msra.mxu0 0.0
        %3134 = vmatprep.subr.mxu0 0.0
        %3135 = vmatpush2.xpose.msra.mxu0 0.0
        %3136 = vmatprep.subr.mxu0 0.0
        %3137 = vmatpush2.xpose.msra.mxu0 0.0
        %3138 = vmatprep.subr.mxu0 0.0
        %3139 = vmatpush2.xpose.msra.mxu0 0.0
        %3140 = vmatprep.subr.mxu0 0.0
        %3141 = vmatpush2.xpose.msra.mxu0 0.0
        %3142 = vmatprep.subr.mxu0 0.0
        %3143 = vmatpush2.xpose.msra.mxu0 0.0
        %3144 = vmatprep.subr.mxu0 0.0
        %3145 = vmatpush2.xpose.msra.mxu0 0.0
        %3146 = vmatprep.subr.mxu0 0.0
        %3147 = vmatpush2.xpose.msra.mxu0 0.0
        %3148 = vmatprep.subr.mxu0 0.0
        %3149 = vmatpush2.xpose.msra.mxu0 0.0
        %3150 = vmatprep.subr.mxu0 0.0
        %3151 = vmatpush2.xpose.msra.mxu0 0.0
        %3152 = vmatprep.subr.mxu0 0.0
        %3153 = vmatpush2.xpose.msra.mxu0 0.0
        %3154 = vmatprep.subr.mxu0 0.0
        %3155 = vmatpush2.xpose.msra.mxu0 0.0
        %3156 = vmatprep.mubr.f32.mxu0 0.0
        %3157 = vmatmul.mubr.f32.gmra.mxu0 %v3088
        %v3158 = vpop.f32.mrf.mxu0
        %v3159 = vadd.f32 0.0, %v3158
        %v3160 = vpop.f32.mrf.mxu0
        %3161 = vdwg.mxu0
        %v3162 = vsel %vm1150, %v2772, 0
        %v3164 = vsel %vm1150, %v2787, 0
        %3166 = vmatprep.subr.mxu0 0.0
        %3167 = vmatpush1.xpose.msra.mxu0 0.0
        %3168 = vmatprep.subr.mxu0 0.0
        %3169 = vmatpush1.xpose.msra.mxu0 0.0
        %3170 = vmatprep.subr.mxu0 0.0
        %3171 = vmatpush1.xpose.msra.mxu0 0.0
        %3172 = vmatprep.subr.mxu0 0.0
        %3173 = vmatpush1.xpose.msra.mxu0 0.0
        %3174 = vmatprep.subr.mxu0 0.0
        %3175 = vmatpush1.xpose.msra.mxu0 0.0
        %3176 = vmatprep.subr.mxu0 0.0
        %3177 = vmatpush1.xpose.msra.mxu0 0.0
        %3178 = vmatprep.subr.mxu0 0.0
        %3179 = vmatpush1.xpose.msra.mxu0 0.0
        %3180 = vmatprep.subr.mxu0 0.0
        %3181 = vmatpush1.xpose.msra.mxu0 0.0
        %3182 = vmatprep.subr.mxu0 0.0
        %3183 = vmatpush1.xpose.msra.mxu0 0.0
        %3184 = vmatprep.subr.mxu0 0.0
        %3185 = vmatpush1.xpose.msra.mxu0 0.0
        %3186 = vmatprep.subr.mxu0 0.0
        %3187 = vmatpush1.xpose.msra.mxu0 0.0
        %3188 = vmatprep.subr.mxu0 0.0
        %3189 = vmatpush1.xpose.msra.mxu0 0.0
        %3190 = vmatprep.subr.mxu0 0.0
        %3191 = vmatpush1.xpose.msra.mxu0 0.0
        %3192 = vmatprep.subr.mxu0 0.0
        %3193 = vmatpush1.xpose.msra.mxu0 0.0
        %3194 = vmatprep.subr.mxu0 0.0
        %3195 = vmatpush1.xpose.msra.mxu0 0.0
        %3196 = vmatprep.subr.mxu0 0.0
        %3197 = vmatpush1.xpose.msra.mxu0 %v3164
        %3198 = vmatprep.subr.mxu0 0.0
        %3199 = vmatpush2.xpose.msra.mxu0 0.0
        %3200 = vmatprep.subr.mxu0 0.0
        %3201 = vmatpush2.xpose.msra.mxu0 0.0
        %3202 = vmatprep.subr.mxu0 0.0
        %3203 = vmatpush2.xpose.msra.mxu0 0.0
        %3204 = vmatprep.subr.mxu0 0.0
        %3205 = vmatpush2.xpose.msra.mxu0 0.0
        %3206 = vmatprep.subr.mxu0 0.0
        %3207 = vmatpush2.xpose.msra.mxu0 0.0
        %3208 = vmatprep.subr.mxu0 0.0
        %3209 = vmatpush2.xpose.msra.mxu0 0.0
        %3210 = vmatprep.subr.mxu0 0.0
        %3211 = vmatpush2.xpose.msra.mxu0 0.0
        %3212 = vmatprep.subr.mxu0 0.0
        %3213 = vmatpush2.xpose.msra.mxu0 0.0
        %3214 = vmatprep.subr.mxu0 0.0
        %3215 = vmatpush2.xpose.msra.mxu0 0.0
        %3216 = vmatprep.subr.mxu0 0.0
        %3217 = vmatpush2.xpose.msra.mxu0 0.0
        %3218 = vmatprep.subr.mxu0 0.0
        %3219 = vmatpush2.xpose.msra.mxu0 0.0
        %3220 = vmatprep.subr.mxu0 0.0
        %3221 = vmatpush2.xpose.msra.mxu0 0.0
        %3222 = vmatprep.subr.mxu0 0.0
        %3223 = vmatpush2.xpose.msra.mxu0 0.0
        %3224 = vmatprep.subr.mxu0 0.0
        %3225 = vmatpush2.xpose.msra.mxu0 0.0
        %3226 = vmatprep.subr.mxu0 0.0
        %3227 = vmatpush2.xpose.msra.mxu0 0.0
        %3228 = vmatprep.subr.mxu0 0.0
        %3229 = vmatpush2.xpose.msra.mxu0 0.0
        %3230 = vmatprep.mubr.f32.mxu0 0.0
        %3231 = vmatmul.mubr.f32.gmra.mxu0 %v3162
        %v3232 = vpop.f32.mrf.mxu0
        %v3233 = vadd.f32 0.0, %v3232
        %v3234 = vpop.f32.mrf.mxu0
        %3235 = vdwg.mxu0
        %v3236 = vsel %vm1150, %v2774, 0
        %v3238 = vsel %vm1150, %v2789, 0
        %3240 = vmatprep.subr.mxu0 0.0
        %3241 = vmatpush1.xpose.msra.mxu0 0.0
        %3242 = vmatprep.subr.mxu0 0.0
        %3243 = vmatpush1.xpose.msra.mxu0 0.0
        %3244 = vmatprep.subr.mxu0 0.0
        %3245 = vmatpush1.xpose.msra.mxu0 0.0
        %3246 = vmatprep.subr.mxu0 0.0
        %3247 = vmatpush1.xpose.msra.mxu0 0.0
        %3248 = vmatprep.subr.mxu0 0.0
        %3249 = vmatpush1.xpose.msra.mxu0 0.0
        %3250 = vmatprep.subr.mxu0 0.0
        %3251 = vmatpush1.xpose.msra.mxu0 0.0
        %3252 = vmatprep.subr.mxu0 0.0
        %3253 = vmatpush1.xpose.msra.mxu0 0.0
        %3254 = vmatprep.subr.mxu0 0.0
        %3255 = vmatpush1.xpose.msra.mxu0 0.0
        %3256 = vmatprep.subr.mxu0 0.0
        %3257 = vmatpush1.xpose.msra.mxu0 0.0
        %3258 = vmatprep.subr.mxu0 0.0
        %3259 = vmatpush1.xpose.msra.mxu0 0.0
        %3260 = vmatprep.subr.mxu0 0.0
        %3261 = vmatpush1.xpose.msra.mxu0 0.0
        %3262 = vmatprep.subr.mxu0 0.0
        %3263 = vmatpush1.xpose.msra.mxu0 0.0
        %3264 = vmatprep.subr.mxu0 0.0
        %3265 = vmatpush1.xpose.msra.mxu0 0.0
        %3266 = vmatprep.subr.mxu0 0.0
        %3267 = vmatpush1.xpose.msra.mxu0 0.0
        %3268 = vmatprep.subr.mxu0 0.0
        %3269 = vmatpush1.xpose.msra.mxu0 0.0
        %3270 = vmatprep.subr.mxu0 0.0
        %3271 = vmatpush1.xpose.msra.mxu0 %v3238
        %3272 = vmatprep.subr.mxu0 0.0
        %3273 = vmatpush2.xpose.msra.mxu0 0.0
        %3274 = vmatprep.subr.mxu0 0.0
        %3275 = vmatpush2.xpose.msra.mxu0 0.0
        %3276 = vmatprep.subr.mxu0 0.0
        %3277 = vmatpush2.xpose.msra.mxu0 0.0
        %3278 = vmatprep.subr.mxu0 0.0
        %3279 = vmatpush2.xpose.msra.mxu0 0.0
        %3280 = vmatprep.subr.mxu0 0.0
        %3281 = vmatpush2.xpose.msra.mxu0 0.0
        %3282 = vmatprep.subr.mxu0 0.0
        %3283 = vmatpush2.xpose.msra.mxu0 0.0
        %3284 = vmatprep.subr.mxu0 0.0
        %3285 = vmatpush2.xpose.msra.mxu0 0.0
        %3286 = vmatprep.subr.mxu0 0.0
        %3287 = vmatpush2.xpose.msra.mxu0 0.0
        %3288 = vmatprep.subr.mxu0 0.0
        %3289 = vmatpush2.xpose.msra.mxu0 0.0
        %3290 = vmatprep.subr.mxu0 0.0
        %3291 = vmatpush2.xpose.msra.mxu0 0.0
        %3292 = vmatprep.subr.mxu0 0.0
        %3293 = vmatpush2.xpose.msra.mxu0 0.0
        %3294 = vmatprep.subr.mxu0 0.0
        %3295 = vmatpush2.xpose.msra.mxu0 0.0
        %3296 = vmatprep.subr.mxu0 0.0
        %3297 = vmatpush2.xpose.msra.mxu0 0.0
        %3298 = vmatprep.subr.mxu0 0.0
        %3299 = vmatpush2.xpose.msra.mxu0 0.0
        %3300 = vmatprep.subr.mxu0 0.0
        %3301 = vmatpush2.xpose.msra.mxu0 0.0
        %3302 = vmatprep.subr.mxu0 0.0
        %3303 = vmatpush2.xpose.msra.mxu0 0.0
        %3304 = vmatprep.mubr.f32.mxu0 0.0
        %3305 = vmatmul.mubr.f32.gmra.mxu0 %v3236
        %v3306 = vpop.f32.mrf.mxu0
        %v3307 = vadd.f32 0.0, %v3306
        %v3308 = vpop.f32.mrf.mxu0
        %3309 = vdwg.mxu0
        %v3310 = vsel %vm1150, %v2776, 0
        %v3312 = vsel %vm1150, %v2791, 0
        %3314 = vmatprep.subr.mxu0 0.0
        %3315 = vmatpush1.xpose.msra.mxu0 0.0
        %3316 = vmatprep.subr.mxu0 0.0
        %3317 = vmatpush1.xpose.msra.mxu0 0.0
        %3318 = vmatprep.subr.mxu0 0.0
        %3319 = vmatpush1.xpose.msra.mxu0 0.0
        %3320 = vmatprep.subr.mxu0 0.0
        %3321 = vmatpush1.xpose.msra.mxu0 0.0
        %3322 = vmatprep.subr.mxu0 0.0
        %3323 = vmatpush1.xpose.msra.mxu0 0.0
        %3324 = vmatprep.subr.mxu0 0.0
        %3325 = vmatpush1.xpose.msra.mxu0 0.0
        %3326 = vmatprep.subr.mxu0 0.0
        %3327 = vmatpush1.xpose.msra.mxu0 0.0
        %3328 = vmatprep.subr.mxu0 0.0
        %3329 = vmatpush1.xpose.msra.mxu0 0.0
        %3330 = vmatprep.subr.mxu0 0.0
        %3331 = vmatpush1.xpose.msra.mxu0 0.0
        %3332 = vmatprep.subr.mxu0 0.0
        %3333 = vmatpush1.xpose.msra.mxu0 0.0
        %3334 = vmatprep.subr.mxu0 0.0
        %3335 = vmatpush1.xpose.msra.mxu0 0.0
        %3336 = vmatprep.subr.mxu0 0.0
        %3337 = vmatpush1.xpose.msra.mxu0 0.0
        %3338 = vmatprep.subr.mxu0 0.0
        %3339 = vmatpush1.xpose.msra.mxu0 0.0
        %3340 = vmatprep.subr.mxu0 0.0
        %3341 = vmatpush1.xpose.msra.mxu0 0.0
        %3342 = vmatprep.subr.mxu0 0.0
        %3343 = vmatpush1.xpose.msra.mxu0 0.0
        %3344 = vmatprep.subr.mxu0 0.0
        %3345 = vmatpush1.xpose.msra.mxu0 %v3312
        %3346 = vmatprep.subr.mxu0 0.0
        %3347 = vmatpush2.xpose.msra.mxu0 0.0
        %3348 = vmatprep.subr.mxu0 0.0
        %3349 = vmatpush2.xpose.msra.mxu0 0.0
        %3350 = vmatprep.subr.mxu0 0.0
        %3351 = vmatpush2.xpose.msra.mxu0 0.0
        %3352 = vmatprep.subr.mxu0 0.0
        %3353 = vmatpush2.xpose.msra.mxu0 0.0
        %3354 = vmatprep.subr.mxu0 0.0
        %3355 = vmatpush2.xpose.msra.mxu0 0.0
        %3356 = vmatprep.subr.mxu0 0.0
        %3357 = vmatpush2.xpose.msra.mxu0 0.0
        %3358 = vmatprep.subr.mxu0 0.0
        %3359 = vmatpush2.xpose.msra.mxu0 0.0
        %3360 = vmatprep.subr.mxu0 0.0
        %3361 = vmatpush2.xpose.msra.mxu0 0.0
        %3362 = vmatprep.subr.mxu0 0.0
        %3363 = vmatpush2.xpose.msra.mxu0 0.0
        %3364 = vmatprep.subr.mxu0 0.0
        %3365 = vmatpush2.xpose.msra.mxu0 0.0
        %3366 = vmatprep.subr.mxu0 0.0
        %3367 = vmatpush2.xpose.msra.mxu0 0.0
        %3368 = vmatprep.subr.mxu0 0.0
        %3369 = vmatpush2.xpose.msra.mxu0 0.0
        %3370 = vmatprep.subr.mxu0 0.0
        %3371 = vmatpush2.xpose.msra.mxu0 0.0
        %3372 = vmatprep.subr.mxu0 0.0
        %3373 = vmatpush2.xpose.msra.mxu0 0.0
        %3374 = vmatprep.subr.mxu0 0.0
        %3375 = vmatpush2.xpose.msra.mxu0 0.0
        %3376 = vmatprep.subr.mxu0 0.0
        %3377 = vmatpush2.xpose.msra.mxu0 0.0
        %3378 = vmatprep.mubr.f32.mxu0 0.0
        %3379 = vmatmul.mubr.f32.gmra.mxu0 %v3310
        %v3380 = vpop.f32.mrf.mxu0
        %v3381 = vadd.f32 0.0, %v3380
        %v3382 = vpop.f32.mrf.mxu0
        %3383 = vdwg.mxu0
        %v3385 = vlaneseq
        %v3386 = vshrl.u32 %v3385, 7
        %v3387 = vsub.s32 0, %v3386
        %v3388 = vrot.slane %v949, %v3387
        %v3390 = vadd.f32 %v2863, %v3388
        %v3391 = vadd.f32 %v2937, %v3388
        %v3392 = vadd.f32 %v3011, %v3388
        %v3393 = vadd.f32 %v3085, %v3388
        %v3394 = vadd.f32 %v3159, %v3388
        %v3395 = vadd.f32 %v3233, %v3388
        %v3396 = vadd.f32 %v3307, %v3388
        %v3397 = vadd.f32 %v3381, %v3388
        %v3398 = vsel %vm1150, %v3390, -inf
        %3399 = vmax.xlane.f32.xlu0 %v3398
        %v3400 = vpop.xlane.xlu0 %3399
        %v3401 = vsel %vm1150, %v3391, -inf
        %3402 = vmax.xlane.f32.xlu0 %v3401
        %v3403 = vpop.xlane.xlu0 %3402
        %v3404 = vsel %vm1150, %v3392, -inf
        %3405 = vmax.xlane.f32.xlu0 %v3404
        %v3406 = vpop.xlane.xlu0 %3405
        %v3407 = vsel %vm1150, %v3393, -inf
        %3408 = vmax.xlane.f32.xlu0 %v3407
        %v3409 = vpop.xlane.xlu0 %3408
        %v3410 = vsel %vm1150, %v3394, -inf
        %3411 = vmax.xlane.f32.xlu0 %v3410
        %v3412 = vpop.xlane.xlu0 %3411
        %v3413 = vsel %vm1150, %v3395, -inf
        %3414 = vmax.xlane.f32.xlu0 %v3413
        %v3415 = vpop.xlane.xlu0 %3414
        %v3416 = vsel %vm1150, %v3396, -inf
        %3417 = vmax.xlane.f32.xlu0 %v3416
        %v3418 = vpop.xlane.xlu0 %3417
        %v3419 = vsel %vm1150, %v3397, -inf
        %3420 = vmax.xlane.f32.xlu0 %v3419
        %v3421 = vpop.xlane.xlu0 %3420
        %v3422 = vsub.f32 %v3390, %v3400
        %v3423 = vsub.f32 %v3391, %v3403
        %v3424 = vsub.f32 %v3392, %v3406
        %v3425 = vsub.f32 %v3393, %v3409
        %v3426 = vsub.f32 %v3394, %v3412
        %v3427 = vsub.f32 %v3395, %v3415
        %v3428 = vsub.f32 %v3396, %v3418
        %v3429 = vsub.f32 %v3397, %v3421
        %v3430 = vmul.f32 %v3422, 1.442695
        %v3431 = vpow.pop %v3430
        %v3432 = vmul.f32 %v3423, 1.442695
        %v3433 = vpow.pop %v3432
        %v3434 = vmul.f32 %v3424, 1.442695
        %v3435 = vpow.pop %v3434
        %v3436 = vmul.f32 %v3425, 1.442695
        %v3437 = vpow.pop %v3436
        %v3438 = vmul.f32 %v3426, 1.442695
        %v3439 = vpow.pop %v3438
        %v3440 = vmul.f32 %v3427, 1.442695
        %v3441 = vpow.pop %v3440
        %v3442 = vmul.f32 %v3428, 1.442695
        %v3443 = vpow.pop %v3442
        %v3444 = vmul.f32 %v3429, 1.442695
        %v3445 = vpow.pop %v3444
        %v3446 = vsel %vm1150, %v3431, 0.0
        %3447 = vadd.xlane.f32.xlu0 %v3446
        %v3448 = vpop.xlane.xlu0 %3447
        %v3449 = vsel %vm1150, %v3433, 0.0
        %3450 = vadd.xlane.f32.xlu0 %v3449
        %v3451 = vpop.xlane.xlu0 %3450
        %v3452 = vsel %vm1150, %v3435, 0.0
        %3453 = vadd.xlane.f32.xlu0 %v3452
        %v3454 = vpop.xlane.xlu0 %3453
        %v3455 = vsel %vm1150, %v3437, 0.0
        %3456 = vadd.xlane.f32.xlu0 %v3455
        %v3457 = vpop.xlane.xlu0 %3456
        %v3458 = vsel %vm1150, %v3439, 0.0
        %3459 = vadd.xlane.f32.xlu0 %v3458
        %v3460 = vpop.xlane.xlu0 %3459
        %v3461 = vsel %vm1150, %v3441, 0.0
        %3462 = vadd.xlane.f32.xlu0 %v3461
        %v3463 = vpop.xlane.xlu0 %3462
        %v3464 = vsel %vm1150, %v3443, 0.0
        %3465 = vadd.xlane.f32.xlu0 %v3464
        %v3466 = vpop.xlane.xlu0 %3465
        %v3467 = vsel %vm1150, %v3445, 0.0
        %3468 = vadd.xlane.f32.xlu0 %v3467
        %v3469 = vpop.xlane.xlu0 %3468
        %v3470 = vrcp.pop %v3448
        %v3471 = vrcp.pop %v3451
        %v3472 = vrcp.pop %v3454
        %v3473 = vrcp.pop %v3457
        %v3474 = vrcp.pop %v3460
        %v3475 = vrcp.pop %v3463
        %v3476 = vrcp.pop %v3466
        %v3477 = vrcp.pop %v3469
        %v3478 = vmul.f32 %v3431, %v3470
        %v3479 = vmul.f32 %v3433, %v3471
        %v3480 = vmul.f32 %v3435, %v3472
        %v3481 = vmul.f32 %v3437, %v3473
        %v3482 = vmul.f32 %v3439, %v3474
        %v3483 = vmul.f32 %v3441, %v3475
        %v3484 = vmul.f32 %v3443, %v3476
        %v3485 = vmul.f32 %v3445, %v3477
        %3486 = vrot.lane.b32.xlu0 %v2746, 64
        %v3487 = vpop.permute.xlu0 %3486
        %v3490 = vsel %vm1150, %v3478, 0
        %3492 = vmatprep.subr.mxu0 0.0
        %3493 = vmatpush1.msra.mxu0 0.0
        %3494 = vmatprep.subr.mxu0 0.0
        %3495 = vmatpush1.msra.mxu0 0.0
        %3496 = vmatprep.subr.mxu0 0.0
        %3497 = vmatpush1.msra.mxu0 0.0
        %3498 = vmatprep.subr.mxu0 0.0
        %3499 = vmatpush1.msra.mxu0 0.0
        %3500 = vmatprep.subr.mxu0 0.0
        %3501 = vmatpush1.msra.mxu0 0.0
        %3502 = vmatprep.subr.mxu0 0.0
        %3503 = vmatpush1.msra.mxu0 0.0
        %3504 = vmatprep.subr.mxu0 0.0
        %3505 = vmatpush1.msra.mxu0 0.0
        %3506 = vmatprep.subr.mxu0 0.0
        %3507 = vmatpush1.msra.mxu0 0.0
        %3508 = vmatprep.subr.mxu0 0.0
        %3509 = vmatpush1.msra.mxu0 0.0
        %3510 = vmatprep.subr.mxu0 0.0
        %3511 = vmatpush1.msra.mxu0 0.0
        %3512 = vmatprep.subr.mxu0 0.0
        %3513 = vmatpush1.msra.mxu0 0.0
        %3514 = vmatprep.subr.mxu0 0.0
        %3515 = vmatpush1.msra.mxu0 0.0
        %3516 = vmatprep.subr.mxu0 0.0
        %3517 = vmatpush1.msra.mxu0 0.0
        %3518 = vmatprep.subr.mxu0 0.0
        %3519 = vmatpush1.msra.mxu0 0.0
        %3520 = vmatprep.subr.mxu0 0.0
        %3521 = vmatpush1.msra.mxu0 0.0
        %3522 = vmatprep.subr.mxu0 0.0
        %3523 = vmatpush1.msra.mxu0 %v3487
        %3524 = vmatprep.subr.mxu0 0.0
        %3525 = vmatpush2.msra.mxu0 0.0
        %3526 = vmatprep.subr.mxu0 0.0
        %3527 = vmatpush2.msra.mxu0 0.0
        %3528 = vmatprep.subr.mxu0 0.0
        %3529 = vmatpush2.msra.mxu0 0.0
        %3530 = vmatprep.subr.mxu0 0.0
        %3531 = vmatpush2.msra.mxu0 0.0
        %3532 = vmatprep.subr.mxu0 0.0
        %3533 = vmatpush2.msra.mxu0 0.0
        %3534 = vmatprep.subr.mxu0 0.0
        %3535 = vmatpush2.msra.mxu0 0.0
        %3536 = vmatprep.subr.mxu0 0.0
        %3537 = vmatpush2.msra.mxu0 0.0
        %3538 = vmatprep.subr.mxu0 0.0
        %3539 = vmatpush2.msra.mxu0 0.0
        %3540 = vmatprep.subr.mxu0 0.0
        %3541 = vmatpush2.msra.mxu0 0.0
        %3542 = vmatprep.subr.mxu0 0.0
        %3543 = vmatpush2.msra.mxu0 0.0
        %3544 = vmatprep.subr.mxu0 0.0
        %3545 = vmatpush2.msra.mxu0 0.0
        %3546 = vmatprep.subr.mxu0 0.0
        %3547 = vmatpush2.msra.mxu0 0.0
        %3548 = vmatprep.subr.mxu0 0.0
        %3549 = vmatpush2.msra.mxu0 0.0
        %3550 = vmatprep.subr.mxu0 0.0
        %3551 = vmatpush2.msra.mxu0 0.0
        %3552 = vmatprep.subr.mxu0 0.0
        %3553 = vmatpush2.msra.mxu0 0.0
        %3554 = vmatprep.subr.mxu0 0.0
        %3555 = vmatpush2.msra.mxu0 0.0
        %3556 = vmatprep.mubr.f32.mxu0 0.0
        %3557 = vmatmul.mubr.f32.gmra.mxu0 %v3490
        %v3558 = vpop.f32.mrf.mxu0
        %v3559 = vadd.f32 0.0, %v3558
        %v3560 = vpop.f32.mrf.mxu0
        %3561 = vdwg.mxu0
        %3562 = vrot.lane.b32.xlu0 %v2779, 64
        %v3563 = vpop.permute.xlu0 %3562
        %v3566 = vsel %vm1150, %v3479, 0
        %3568 = vmatprep.subr.mxu0 0.0
        %3569 = vmatpush1.msra.mxu0 0.0
        %3570 = vmatprep.subr.mxu0 0.0
        %3571 = vmatpush1.msra.mxu0 0.0
        %3572 = vmatprep.subr.mxu0 0.0
        %3573 = vmatpush1.msra.mxu0 0.0
        %3574 = vmatprep.subr.mxu0 0.0
        %3575 = vmatpush1.msra.mxu0 0.0
        %3576 = vmatprep.subr.mxu0 0.0
        %3577 = vmatpush1.msra.mxu0 0.0
        %3578 = vmatprep.subr.mxu0 0.0
        %3579 = vmatpush1.msra.mxu0 0.0
        %3580 = vmatprep.subr.mxu0 0.0
        %3581 = vmatpush1.msra.mxu0 0.0
        %3582 = vmatprep.subr.mxu0 0.0
        %3583 = vmatpush1.msra.mxu0 0.0
        %3584 = vmatprep.subr.mxu0 0.0
        %3585 = vmatpush1.msra.mxu0 0.0
        %3586 = vmatprep.subr.mxu0 0.0
        %3587 = vmatpush1.msra.mxu0 0.0
        %3588 = vmatprep.subr.mxu0 0.0
        %3589 = vmatpush1.msra.mxu0 0.0
        %3590 = vmatprep.subr.mxu0 0.0
        %3591 = vmatpush1.msra.mxu0 0.0
        %3592 = vmatprep.subr.mxu0 0.0
        %3593 = vmatpush1.msra.mxu0 0.0
        %3594 = vmatprep.subr.mxu0 0.0
        %3595 = vmatpush1.msra.mxu0 0.0
        %3596 = vmatprep.subr.mxu0 0.0
        %3597 = vmatpush1.msra.mxu0 0.0
        %3598 = vmatprep.subr.mxu0 0.0
        %3599 = vmatpush1.msra.mxu0 %v3563
        %3600 = vmatprep.subr.mxu0 0.0
        %3601 = vmatpush2.msra.mxu0 0.0
        %3602 = vmatprep.subr.mxu0 0.0
        %3603 = vmatpush2.msra.mxu0 0.0
        %3604 = vmatprep.subr.mxu0 0.0
        %3605 = vmatpush2.msra.mxu0 0.0
        %3606 = vmatprep.subr.mxu0 0.0
        %3607 = vmatpush2.msra.mxu0 0.0
        %3608 = vmatprep.subr.mxu0 0.0
        %3609 = vmatpush2.msra.mxu0 0.0
        %3610 = vmatprep.subr.mxu0 0.0
        %3611 = vmatpush2.msra.mxu0 0.0
        %3612 = vmatprep.subr.mxu0 0.0
        %3613 = vmatpush2.msra.mxu0 0.0
        %3614 = vmatprep.subr.mxu0 0.0
        %3615 = vmatpush2.msra.mxu0 0.0
        %3616 = vmatprep.subr.mxu0 0.0
        %3617 = vmatpush2.msra.mxu0 0.0
        %3618 = vmatprep.subr.mxu0 0.0
        %3619 = vmatpush2.msra.mxu0 0.0
        %3620 = vmatprep.subr.mxu0 0.0
        %3621 = vmatpush2.msra.mxu0 0.0
        %3622 = vmatprep.subr.mxu0 0.0
        %3623 = vmatpush2.msra.mxu0 0.0
        %3624 = vmatprep.subr.mxu0 0.0
        %3625 = vmatpush2.msra.mxu0 0.0
        %3626 = vmatprep.subr.mxu0 0.0
        %3627 = vmatpush2.msra.mxu0 0.0
        %3628 = vmatprep.subr.mxu0 0.0
        %3629 = vmatpush2.msra.mxu0 0.0
        %3630 = vmatprep.subr.mxu0 0.0
        %3631 = vmatpush2.msra.mxu0 0.0
        %3632 = vmatprep.mubr.f32.mxu0 0.0
        %3633 = vmatmul.mubr.f32.gmra.mxu0 %v3566
        %v3634 = vpop.f32.mrf.mxu0
        %v3635 = vadd.f32 0.0, %v3634
        %v3636 = vpop.f32.mrf.mxu0
        %3637 = vdwg.mxu0
        %3638 = vrot.lane.b32.xlu0 %v2781, 64
        %v3639 = vpop.permute.xlu0 %3638
        %v3642 = vsel %vm1150, %v3480, 0
        %3644 = vmatprep.subr.mxu0 0.0
        %3645 = vmatpush1.msra.mxu0 0.0
        %3646 = vmatprep.subr.mxu0 0.0
        %3647 = vmatpush1.msra.mxu0 0.0
        %3648 = vmatprep.subr.mxu0 0.0
        %3649 = vmatpush1.msra.mxu0 0.0
        %3650 = vmatprep.subr.mxu0 0.0
        %3651 = vmatpush1.msra.mxu0 0.0
        %3652 = vmatprep.subr.mxu0 0.0
        %3653 = vmatpush1.msra.mxu0 0.0
        %3654 = vmatprep.subr.mxu0 0.0
        %3655 = vmatpush1.msra.mxu0 0.0
        %3656 = vmatprep.subr.mxu0 0.0
        %3657 = vmatpush1.msra.mxu0 0.0
        %3658 = vmatprep.subr.mxu0 0.0
        %3659 = vmatpush1.msra.mxu0 0.0
        %3660 = vmatprep.subr.mxu0 0.0
        %3661 = vmatpush1.msra.mxu0 0.0
        %3662 = vmatprep.subr.mxu0 0.0
        %3663 = vmatpush1.msra.mxu0 0.0
        %3664 = vmatprep.subr.mxu0 0.0
        %3665 = vmatpush1.msra.mxu0 0.0
        %3666 = vmatprep.subr.mxu0 0.0
        %3667 = vmatpush1.msra.mxu0 0.0
        %3668 = vmatprep.subr.mxu0 0.0
        %3669 = vmatpush1.msra.mxu0 0.0
        %3670 = vmatprep.subr.mxu0 0.0
        %3671 = vmatpush1.msra.mxu0 0.0
        %3672 = vmatprep.subr.mxu0 0.0
        %3673 = vmatpush1.msra.mxu0 0.0
        %3674 = vmatprep.subr.mxu0 0.0
        %3675 = vmatpush1.msra.mxu0 %v3639
        %3676 = vmatprep.subr.mxu0 0.0
        %3677 = vmatpush2.msra.mxu0 0.0
        %3678 = vmatprep.subr.mxu0 0.0
        %3679 = vmatpush2.msra.mxu0 0.0
        %3680 = vmatprep.subr.mxu0 0.0
        %3681 = vmatpush2.msra.mxu0 0.0
        %3682 = vmatprep.subr.mxu0 0.0
        %3683 = vmatpush2.msra.mxu0 0.0
        %3684 = vmatprep.subr.mxu0 0.0
        %3685 = vmatpush2.msra.mxu0 0.0
        %3686 = vmatprep.subr.mxu0 0.0
        %3687 = vmatpush2.msra.mxu0 0.0
        %3688 = vmatprep.subr.mxu0 0.0
        %3689 = vmatpush2.msra.mxu0 0.0
        %3690 = vmatprep.subr.mxu0 0.0
        %3691 = vmatpush2.msra.mxu0 0.0
        %3692 = vmatprep.subr.mxu0 0.0
        %3693 = vmatpush2.msra.mxu0 0.0
        %3694 = vmatprep.subr.mxu0 0.0
        %3695 = vmatpush2.msra.mxu0 0.0
        %3696 = vmatprep.subr.mxu0 0.0
        %3697 = vmatpush2.msra.mxu0 0.0
        %3698 = vmatprep.subr.mxu0 0.0
        %3699 = vmatpush2.msra.mxu0 0.0
        %3700 = vmatprep.subr.mxu0 0.0
        %3701 = vmatpush2.msra.mxu0 0.0
        %3702 = vmatprep.subr.mxu0 0.0
        %3703 = vmatpush2.msra.mxu0 0.0
        %3704 = vmatprep.subr.mxu0 0.0
        %3705 = vmatpush2.msra.mxu0 0.0
        %3706 = vmatprep.subr.mxu0 0.0
        %3707 = vmatpush2.msra.mxu0 0.0
        %3708 = vmatprep.mubr.f32.mxu0 0.0
        %3709 = vmatmul.mubr.f32.gmra.mxu0 %v3642
        %v3710 = vpop.f32.mrf.mxu0
        %v3711 = vadd.f32 0.0, %v3710
        %v3712 = vpop.f32.mrf.mxu0
        %3713 = vdwg.mxu0
        %3714 = vrot.lane.b32.xlu0 %v2783, 64
        %v3715 = vpop.permute.xlu0 %3714
        %v3718 = vsel %vm1150, %v3481, 0
        %3720 = vmatprep.subr.mxu0 0.0
        %3721 = vmatpush1.msra.mxu0 0.0
        %3722 = vmatprep.subr.mxu0 0.0
        %3723 = vmatpush1.msra.mxu0 0.0
        %3724 = vmatprep.subr.mxu0 0.0
        %3725 = vmatpush1.msra.mxu0 0.0
        %3726 = vmatprep.subr.mxu0 0.0
        %3727 = vmatpush1.msra.mxu0 0.0
        %3728 = vmatprep.subr.mxu0 0.0
        %3729 = vmatpush1.msra.mxu0 0.0
        %3730 = vmatprep.subr.mxu0 0.0
        %3731 = vmatpush1.msra.mxu0 0.0
        %3732 = vmatprep.subr.mxu0 0.0
        %3733 = vmatpush1.msra.mxu0 0.0
        %3734 = vmatprep.subr.mxu0 0.0
        %3735 = vmatpush1.msra.mxu0 0.0
        %3736 = vmatprep.subr.mxu0 0.0
        %3737 = vmatpush1.msra.mxu0 0.0
        %3738 = vmatprep.subr.mxu0 0.0
        %3739 = vmatpush1.msra.mxu0 0.0
        %3740 = vmatprep.subr.mxu0 0.0
        %3741 = vmatpush1.msra.mxu0 0.0
        %3742 = vmatprep.subr.mxu0 0.0
        %3743 = vmatpush1.msra.mxu0 0.0
        %3744 = vmatprep.subr.mxu0 0.0
        %3745 = vmatpush1.msra.mxu0 0.0
        %3746 = vmatprep.subr.mxu0 0.0
        %3747 = vmatpush1.msra.mxu0 0.0
        %3748 = vmatprep.subr.mxu0 0.0
        %3749 = vmatpush1.msra.mxu0 0.0
        %3750 = vmatprep.subr.mxu0 0.0
        %3751 = vmatpush1.msra.mxu0 %v3715
        %3752 = vmatprep.subr.mxu0 0.0
        %3753 = vmatpush2.msra.mxu0 0.0
        %3754 = vmatprep.subr.mxu0 0.0
        %3755 = vmatpush2.msra.mxu0 0.0
        %3756 = vmatprep.subr.mxu0 0.0
        %3757 = vmatpush2.msra.mxu0 0.0
        %3758 = vmatprep.subr.mxu0 0.0
        %3759 = vmatpush2.msra.mxu0 0.0
        %3760 = vmatprep.subr.mxu0 0.0
        %3761 = vmatpush2.msra.mxu0 0.0
        %3762 = vmatprep.subr.mxu0 0.0
        %3763 = vmatpush2.msra.mxu0 0.0
        %3764 = vmatprep.subr.mxu0 0.0
        %3765 = vmatpush2.msra.mxu0 0.0
        %3766 = vmatprep.subr.mxu0 0.0
        %3767 = vmatpush2.msra.mxu0 0.0
        %3768 = vmatprep.subr.mxu0 0.0
        %3769 = vmatpush2.msra.mxu0 0.0
        %3770 = vmatprep.subr.mxu0 0.0
        %3771 = vmatpush2.msra.mxu0 0.0
        %3772 = vmatprep.subr.mxu0 0.0
        %3773 = vmatpush2.msra.mxu0 0.0
        %3774 = vmatprep.subr.mxu0 0.0
        %3775 = vmatpush2.msra.mxu0 0.0
        %3776 = vmatprep.subr.mxu0 0.0
        %3777 = vmatpush2.msra.mxu0 0.0
        %3778 = vmatprep.subr.mxu0 0.0
        %3779 = vmatpush2.msra.mxu0 0.0
        %3780 = vmatprep.subr.mxu0 0.0
        %3781 = vmatpush2.msra.mxu0 0.0
        %3782 = vmatprep.subr.mxu0 0.0
        %3783 = vmatpush2.msra.mxu0 0.0
        %3784 = vmatprep.mubr.f32.mxu0 0.0
        %3785 = vmatmul.mubr.f32.gmra.mxu0 %v3718
        %v3786 = vpop.f32.mrf.mxu0
        %v3787 = vadd.f32 0.0, %v3786
        %v3788 = vpop.f32.mrf.mxu0
        %3789 = vdwg.mxu0
        %3790 = vrot.lane.b32.xlu0 %v2785, 64
        %v3791 = vpop.permute.xlu0 %3790
        %v3794 = vsel %vm1150, %v3482, 0
        %3796 = vmatprep.subr.mxu0 0.0
        %3797 = vmatpush1.msra.mxu0 0.0
        %3798 = vmatprep.subr.mxu0 0.0
        %3799 = vmatpush1.msra.mxu0 0.0
        %3800 = vmatprep.subr.mxu0 0.0
        %3801 = vmatpush1.msra.mxu0 0.0
        %3802 = vmatprep.subr.mxu0 0.0
        %3803 = vmatpush1.msra.mxu0 0.0
        %3804 = vmatprep.subr.mxu0 0.0
        %3805 = vmatpush1.msra.mxu0 0.0
        %3806 = vmatprep.subr.mxu0 0.0
        %3807 = vmatpush1.msra.mxu0 0.0
        %3808 = vmatprep.subr.mxu0 0.0
        %3809 = vmatpush1.msra.mxu0 0.0
        %3810 = vmatprep.subr.mxu0 0.0
        %3811 = vmatpush1.msra.mxu0 0.0
        %3812 = vmatprep.subr.mxu0 0.0
        %3813 = vmatpush1.msra.mxu0 0.0
        %3814 = vmatprep.subr.mxu0 0.0
        %3815 = vmatpush1.msra.mxu0 0.0
        %3816 = vmatprep.subr.mxu0 0.0
        %3817 = vmatpush1.msra.mxu0 0.0
        %3818 = vmatprep.subr.mxu0 0.0
        %3819 = vmatpush1.msra.mxu0 0.0
        %3820 = vmatprep.subr.mxu0 0.0
        %3821 = vmatpush1.msra.mxu0 0.0
        %3822 = vmatprep.subr.mxu0 0.0
        %3823 = vmatpush1.msra.mxu0 0.0
        %3824 = vmatprep.subr.mxu0 0.0
        %3825 = vmatpush1.msra.mxu0 0.0
        %3826 = vmatprep.subr.mxu0 0.0
        %3827 = vmatpush1.msra.mxu0 %v3791
        %3828 = vmatprep.subr.mxu0 0.0
        %3829 = vmatpush2.msra.mxu0 0.0
        %3830 = vmatprep.subr.mxu0 0.0
        %3831 = vmatpush2.msra.mxu0 0.0
        %3832 = vmatprep.subr.mxu0 0.0
        %3833 = vmatpush2.msra.mxu0 0.0
        %3834 = vmatprep.subr.mxu0 0.0
        %3835 = vmatpush2.msra.mxu0 0.0
        %3836 = vmatprep.subr.mxu0 0.0
        %3837 = vmatpush2.msra.mxu0 0.0
        %3838 = vmatprep.subr.mxu0 0.0
        %3839 = vmatpush2.msra.mxu0 0.0
        %3840 = vmatprep.subr.mxu0 0.0
        %3841 = vmatpush2.msra.mxu0 0.0
        %3842 = vmatprep.subr.mxu0 0.0
        %3843 = vmatpush2.msra.mxu0 0.0
        %3844 = vmatprep.subr.mxu0 0.0
        %3845 = vmatpush2.msra.mxu0 0.0
        %3846 = vmatprep.subr.mxu0 0.0
        %3847 = vmatpush2.msra.mxu0 0.0
        %3848 = vmatprep.subr.mxu0 0.0
        %3849 = vmatpush2.msra.mxu0 0.0
        %3850 = vmatprep.subr.mxu0 0.0
        %3851 = vmatpush2.msra.mxu0 0.0
        %3852 = vmatprep.subr.mxu0 0.0
        %3853 = vmatpush2.msra.mxu0 0.0
        %3854 = vmatprep.subr.mxu0 0.0
        %3855 = vmatpush2.msra.mxu0 0.0
        %3856 = vmatprep.subr.mxu0 0.0
        %3857 = vmatpush2.msra.mxu0 0.0
        %3858 = vmatprep.subr.mxu0 0.0
        %3859 = vmatpush2.msra.mxu0 0.0
        %3860 = vmatprep.mubr.f32.mxu0 0.0
        %3861 = vmatmul.mubr.f32.gmra.mxu0 %v3794
        %v3862 = vpop.f32.mrf.mxu0
        %v3863 = vadd.f32 0.0, %v3862
        %v3864 = vpop.f32.mrf.mxu0
        %3865 = vdwg.mxu0
        %3866 = vrot.lane.b32.xlu0 %v2787, 64
        %v3867 = vpop.permute.xlu0 %3866
        %v3870 = vsel %vm1150, %v3483, 0
        %3872 = vmatprep.subr.mxu0 0.0
        %3873 = vmatpush1.msra.mxu0 0.0
        %3874 = vmatprep.subr.mxu0 0.0
        %3875 = vmatpush1.msra.mxu0 0.0
        %3876 = vmatprep.subr.mxu0 0.0
        %3877 = vmatpush1.msra.mxu0 0.0
        %3878 = vmatprep.subr.mxu0 0.0
        %3879 = vmatpush1.msra.mxu0 0.0
        %3880 = vmatprep.subr.mxu0 0.0
        %3881 = vmatpush1.msra.mxu0 0.0
        %3882 = vmatprep.subr.mxu0 0.0
        %3883 = vmatpush1.msra.mxu0 0.0
        %3884 = vmatprep.subr.mxu0 0.0
        %3885 = vmatpush1.msra.mxu0 0.0
        %3886 = vmatprep.subr.mxu0 0.0
        %3887 = vmatpush1.msra.mxu0 0.0
        %3888 = vmatprep.subr.mxu0 0.0
        %3889 = vmatpush1.msra.mxu0 0.0
        %3890 = vmatprep.subr.mxu0 0.0
        %3891 = vmatpush1.msra.mxu0 0.0
        %3892 = vmatprep.subr.mxu0 0.0
        %3893 = vmatpush1.msra.mxu0 0.0
        %3894 = vmatprep.subr.mxu0 0.0
        %3895 = vmatpush1.msra.mxu0 0.0
        %3896 = vmatprep.subr.mxu0 0.0
        %3897 = vmatpush1.msra.mxu0 0.0
        %3898 = vmatprep.subr.mxu0 0.0
        %3899 = vmatpush1.msra.mxu0 0.0
        %3900 = vmatprep.subr.mxu0 0.0
        %3901 = vmatpush1.msra.mxu0 0.0
        %3902 = vmatprep.subr.mxu0 0.0
        %3903 = vmatpush1.msra.mxu0 %v3867
        %3904 = vmatprep.subr.mxu0 0.0
        %3905 = vmatpush2.msra.mxu0 0.0
        %3906 = vmatprep.subr.mxu0 0.0
        %3907 = vmatpush2.msra.mxu0 0.0
        %3908 = vmatprep.subr.mxu0 0.0
        %3909 = vmatpush2.msra.mxu0 0.0
        %3910 = vmatprep.subr.mxu0 0.0
        %3911 = vmatpush2.msra.mxu0 0.0
        %3912 = vmatprep.subr.mxu0 0.0
        %3913 = vmatpush2.msra.mxu0 0.0
        %3914 = vmatprep.subr.mxu0 0.0
        %3915 = vmatpush2.msra.mxu0 0.0
        %3916 = vmatprep.subr.mxu0 0.0
        %3917 = vmatpush2.msra.mxu0 0.0
        %3918 = vmatprep.subr.mxu0 0.0
        %3919 = vmatpush2.msra.mxu0 0.0
        %3920 = vmatprep.subr.mxu0 0.0
        %3921 = vmatpush2.msra.mxu0 0.0
        %3922 = vmatprep.subr.mxu0 0.0
        %3923 = vmatpush2.msra.mxu0 0.0
        %3924 = vmatprep.subr.mxu0 0.0
        %3925 = vmatpush2.msra.mxu0 0.0
        %3926 = vmatprep.subr.mxu0 0.0
        %3927 = vmatpush2.msra.mxu0 0.0
        %3928 = vmatprep.subr.mxu0 0.0
        %3929 = vmatpush2.msra.mxu0 0.0
        %3930 = vmatprep.subr.mxu0 0.0
        %3931 = vmatpush2.msra.mxu0 0.0
        %3932 = vmatprep.subr.mxu0 0.0
        %3933 = vmatpush2.msra.mxu0 0.0
        %3934 = vmatprep.subr.mxu0 0.0
        %3935 = vmatpush2.msra.mxu0 0.0
        %3936 = vmatprep.mubr.f32.mxu0 0.0
        %3937 = vmatmul.mubr.f32.gmra.mxu0 %v3870
        %v3938 = vpop.f32.mrf.mxu0
        %v3939 = vadd.f32 0.0, %v3938
        %v3940 = vpop.f32.mrf.mxu0
        %3941 = vdwg.mxu0
        %3942 = vrot.lane.b32.xlu0 %v2789, 64
        %v3943 = vpop.permute.xlu0 %3942
        %v3946 = vsel %vm1150, %v3484, 0
        %3948 = vmatprep.subr.mxu0 0.0
        %3949 = vmatpush1.msra.mxu0 0.0
        %3950 = vmatprep.subr.mxu0 0.0
        %3951 = vmatpush1.msra.mxu0 0.0
        %3952 = vmatprep.subr.mxu0 0.0
        %3953 = vmatpush1.msra.mxu0 0.0
        %3954 = vmatprep.subr.mxu0 0.0
        %3955 = vmatpush1.msra.mxu0 0.0
        %3956 = vmatprep.subr.mxu0 0.0
        %3957 = vmatpush1.msra.mxu0 0.0
        %3958 = vmatprep.subr.mxu0 0.0
        %3959 = vmatpush1.msra.mxu0 0.0
        %3960 = vmatprep.subr.mxu0 0.0
        %3961 = vmatpush1.msra.mxu0 0.0
        %3962 = vmatprep.subr.mxu0 0.0
        %3963 = vmatpush1.msra.mxu0 0.0
        %3964 = vmatprep.subr.mxu0 0.0
        %3965 = vmatpush1.msra.mxu0 0.0
        %3966 = vmatprep.subr.mxu0 0.0
        %3967 = vmatpush1.msra.mxu0 0.0
        %3968 = vmatprep.subr.mxu0 0.0
        %3969 = vmatpush1.msra.mxu0 0.0
        %3970 = vmatprep.subr.mxu0 0.0
        %3971 = vmatpush1.msra.mxu0 0.0
        %3972 = vmatprep.subr.mxu0 0.0
        %3973 = vmatpush1.msra.mxu0 0.0
        %3974 = vmatprep.subr.mxu0 0.0
        %3975 = vmatpush1.msra.mxu0 0.0
        %3976 = vmatprep.subr.mxu0 0.0
        %3977 = vmatpush1.msra.mxu0 0.0
        %3978 = vmatprep.subr.mxu0 0.0
        %3979 = vmatpush1.msra.mxu0 %v3943
        %3980 = vmatprep.subr.mxu0 0.0
        %3981 = vmatpush2.msra.mxu0 0.0
        %3982 = vmatprep.subr.mxu0 0.0
        %3983 = vmatpush2.msra.mxu0 0.0
        %3984 = vmatprep.subr.mxu0 0.0
        %3985 = vmatpush2.msra.mxu0 0.0
        %3986 = vmatprep.subr.mxu0 0.0
        %3987 = vmatpush2.msra.mxu0 0.0
        %3988 = vmatprep.subr.mxu0 0.0
        %3989 = vmatpush2.msra.mxu0 0.0
        %3990 = vmatprep.subr.mxu0 0.0
        %3991 = vmatpush2.msra.mxu0 0.0
        %3992 = vmatprep.subr.mxu0 0.0
        %3993 = vmatpush2.msra.mxu0 0.0
        %3994 = vmatprep.subr.mxu0 0.0
        %3995 = vmatpush2.msra.mxu0 0.0
        %3996 = vmatprep.subr.mxu0 0.0
        %3997 = vmatpush2.msra.mxu0 0.0
        %3998 = vmatprep.subr.mxu0 0.0
        %3999 = vmatpush2.msra.mxu0 0.0
        %4000 = vmatprep.subr.mxu0 0.0
        %4001 = vmatpush2.msra.mxu0 0.0
        %4002 = vmatprep.subr.mxu0 0.0
        %4003 = vmatpush2.msra.mxu0 0.0
        %4004 = vmatprep.subr.mxu0 0.0
        %4005 = vmatpush2.msra.mxu0 0.0
        %4006 = vmatprep.subr.mxu0 0.0
        %4007 = vmatpush2.msra.mxu0 0.0
        %4008 = vmatprep.subr.mxu0 0.0
        %4009 = vmatpush2.msra.mxu0 0.0
        %4010 = vmatprep.subr.mxu0 0.0
        %4011 = vmatpush2.msra.mxu0 0.0
        %4012 = vmatprep.mubr.f32.mxu0 0.0
        %4013 = vmatmul.mubr.f32.gmra.mxu0 %v3946
        %v4014 = vpop.f32.mrf.mxu0
        %v4015 = vadd.f32 0.0, %v4014
        %v4016 = vpop.f32.mrf.mxu0
        %4017 = vdwg.mxu0
        %4018 = vrot.lane.b32.xlu0 %v2791, 64
        %v4019 = vpop.permute.xlu0 %4018
        %v4022 = vsel %vm1150, %v3485, 0
        %4024 = vmatprep.subr.mxu0 0.0
        %4025 = vmatpush1.msra.mxu0 0.0
        %4026 = vmatprep.subr.mxu0 0.0
        %4027 = vmatpush1.msra.mxu0 0.0
        %4028 = vmatprep.subr.mxu0 0.0
        %4029 = vmatpush1.msra.mxu0 0.0
        %4030 = vmatprep.subr.mxu0 0.0
        %4031 = vmatpush1.msra.mxu0 0.0
        %4032 = vmatprep.subr.mxu0 0.0
        %4033 = vmatpush1.msra.mxu0 0.0
        %4034 = vmatprep.subr.mxu0 0.0
        %4035 = vmatpush1.msra.mxu0 0.0
        %4036 = vmatprep.subr.mxu0 0.0
        %4037 = vmatpush1.msra.mxu0 0.0
        %4038 = vmatprep.subr.mxu0 0.0
        %4039 = vmatpush1.msra.mxu0 0.0
        %4040 = vmatprep.subr.mxu0 0.0
        %4041 = vmatpush1.msra.mxu0 0.0
        %4042 = vmatprep.subr.mxu0 0.0
        %4043 = vmatpush1.msra.mxu0 0.0
        %4044 = vmatprep.subr.mxu0 0.0
        %4045 = vmatpush1.msra.mxu0 0.0
        %4046 = vmatprep.subr.mxu0 0.0
        %4047 = vmatpush1.msra.mxu0 0.0
        %4048 = vmatprep.subr.mxu0 0.0
        %4049 = vmatpush1.msra.mxu0 0.0
        %4050 = vmatprep.subr.mxu0 0.0
        %4051 = vmatpush1.msra.mxu0 0.0
        %4052 = vmatprep.subr.mxu0 0.0
        %4053 = vmatpush1.msra.mxu0 0.0
        %4054 = vmatprep.subr.mxu0 0.0
        %4055 = vmatpush1.msra.mxu0 %v4019
        %4056 = vmatprep.subr.mxu0 0.0
        %4057 = vmatpush2.msra.mxu0 0.0
        %4058 = vmatprep.subr.mxu0 0.0
        %4059 = vmatpush2.msra.mxu0 0.0
        %4060 = vmatprep.subr.mxu0 0.0
        %4061 = vmatpush2.msra.mxu0 0.0
        %4062 = vmatprep.subr.mxu0 0.0
        %4063 = vmatpush2.msra.mxu0 0.0
        %4064 = vmatprep.subr.mxu0 0.0
        %4065 = vmatpush2.msra.mxu0 0.0
        %4066 = vmatprep.subr.mxu0 0.0
        %4067 = vmatpush2.msra.mxu0 0.0
        %4068 = vmatprep.subr.mxu0 0.0
        %4069 = vmatpush2.msra.mxu0 0.0
        %4070 = vmatprep.subr.mxu0 0.0
        %4071 = vmatpush2.msra.mxu0 0.0
        %4072 = vmatprep.subr.mxu0 0.0
        %4073 = vmatpush2.msra.mxu0 0.0
        %4074 = vmatprep.subr.mxu0 0.0
        %4075 = vmatpush2.msra.mxu0 0.0
        %4076 = vmatprep.subr.mxu0 0.0
        %4077 = vmatpush2.msra.mxu0 0.0
        %4078 = vmatprep.subr.mxu0 0.0
        %4079 = vmatpush2.msra.mxu0 0.0
        %4080 = vmatprep.subr.mxu0 0.0
        %4081 = vmatpush2.msra.mxu0 0.0
        %4082 = vmatprep.subr.mxu0 0.0
        %4083 = vmatpush2.msra.mxu0 0.0
        %4084 = vmatprep.subr.mxu0 0.0
        %4085 = vmatpush2.msra.mxu0 0.0
        %4086 = vmatprep.subr.mxu0 0.0
        %4087 = vmatpush2.msra.mxu0 0.0
        %4088 = vmatprep.mubr.f32.mxu0 0.0
        %4089 = vmatmul.mubr.f32.gmra.mxu0 %v4022
        %v4090 = vpop.f32.mrf.mxu0
        %v4091 = vadd.f32 0.0, %v4090
        %v4092 = vpop.f32.mrf.mxu0
        %4093 = vdwg.mxu0
        %4095 = vrot.lane.b32.xlu0 %v3635, 8
        %v4096 = vpop.permute.xlu0 %4095
        %4099 = vrot.lane.b32.xlu0 %v3711, 16
        %v4100 = vpop.permute.xlu0 %4099
        %4103 = vrot.lane.b32.xlu0 %v3787, 24
        %v4104 = vpop.permute.xlu0 %4103
        %4107 = vrot.lane.b32.xlu0 %v3863, 32
        %v4108 = vpop.permute.xlu0 %4107
        %4111 = vrot.lane.b32.xlu0 %v3939, 40
        %v4112 = vpop.permute.xlu0 %4111
        %4115 = vrot.lane.b32.xlu0 %v4015, 48
        %v4116 = vpop.permute.xlu0 %4115
        %4119 = vrot.lane.b32.xlu0 %v4091, 56
        %v4120 = vpop.permute.xlu0 %4119
        %v4122 = vsel %vm1150, %v3559, %v4096
        %v4123 = vsel %vm2466, %v4122, %v4100
        %v4124 = vsel %vm2468, %v4123, %v4104
        %v4125 = vsel %vm2470, %v4124, %v4108
        %v4126 = vsel %vm2472, %v4125, %v4112
        %v4127 = vsel %vm2474, %v4126, %v4116
        %v4128 = vsel %vm2476, %v4127, %v4120
        %v4129 = vpack.c.bf16 %v4128, %v4128
        %v4131 = vlaneseq
        %v4132 = vshrl.u32 %v4131, 7
        %v4133 = vsub.s32 0, %v4132
        %v4134 = vrot.slane %v2761, %v4133
        %v4144 = vunpack.c.l.b16 %v2752
        %v4145 = vunpack.c.l.b16 %v2753
        %v4146 = vunpack.c.l.b16 %v2754
        %v4147 = vunpack.c.l.b16 %v2755
        %v4148 = vunpack.c.l.b16 %v2756
        %v4149 = vunpack.c.l.b16 %v2757
        %v4150 = vunpack.c.l.b16 %v2758
        %v4151 = vunpack.c.l.b16 %v2759
        %v4152 = vpack.c.b16 %v4145, %v4144
        %v4153 = vpack.c.b16 %v4147, %v4146
        %v4154 = vpack.c.b16 %v4149, %v4148
        %v4155 = vpack.c.b16 %v4151, %v4150
        %v4161 = vsel %vm952, %v4129, 0
        %4163 = vmatprep.subr.bf16.mxu0 0
        %4164 = vmatpush1.bf16.msra.mxu0 0
        %4165 = vmatprep.subr.bf16.mxu0 0
        %4166 = vmatpush1.bf16.msra.mxu0 0
        %4167 = vmatprep.subr.bf16.mxu0 0
        %4168 = vmatpush1.bf16.msra.mxu0 0
        %4169 = vmatprep.subr.bf16.mxu0 0
        %4170 = vmatpush1.bf16.msra.mxu0 0
        %4171 = vmatprep.subr.bf16.mxu0 0
        %4172 = vmatpush1.bf16.msra.mxu0 %v4155
        %4173 = vmatprep.subr.bf16.mxu0 0
        %4174 = vmatpush1.bf16.msra.mxu0 %v4154
        %4175 = vmatprep.subr.bf16.mxu0 0
        %4176 = vmatpush1.bf16.msra.mxu0 %v4153
        %4177 = vmatprep.subr.bf16.mxu0 0
        %4178 = vmatpush1.bf16.msra.mxu0 %v4152
        %4179 = vmatprep.subr.bf16.mxu0 0
        %4180 = vmatpush2.bf16.msra.mxu0 0
        %4181 = vmatprep.subr.bf16.mxu0 0
        %4182 = vmatpush2.bf16.msra.mxu0 0
        %4183 = vmatprep.subr.bf16.mxu0 0
        %4184 = vmatpush2.bf16.msra.mxu0 0
        %4185 = vmatprep.subr.bf16.mxu0 0
        %4186 = vmatpush2.bf16.msra.mxu0 0
        %4187 = vmatprep.subr.bf16.mxu0 0
        %4188 = vmatpush2.bf16.msra.mxu0 0
        %4189 = vmatprep.subr.bf16.mxu0 0
        %4190 = vmatpush2.bf16.msra.mxu0 0
        %4191 = vmatprep.subr.bf16.mxu0 0
        %4192 = vmatpush2.bf16.msra.mxu0 0
        %4193 = vmatprep.subr.bf16.mxu0 0
        %4194 = vmatpush2.bf16.msra.mxu0 0
        %4195 = vmatprep.mubr.bf16.mxu0 0
        %4196 = vmatmul.mubr.bf16.gmra.mxu0 %v4161
        %v4197 = vpop.f32.mrf.mxu0
        %v4198 = vadd.f32 %v4134, %v4197
        %v4199 = vpop.f32.mrf.mxu0
        %v4200 = vpop.f32.mrf.mxu0
        %v4201 = vpop.f32.mrf.mxu0
        %4202 = vdwg.mxu0
        %v4203 = vadd.f32 %v4198, %v2552
        %s4204 = scalar_lea.vmem %s5, 2
        %v4205 = vld [vmem:[%s4204] sm:$0x1]
        %s4206 = scalar_lea.vmem %s6, 2
        %v4207 = vld [vmem:[%s4206] sm:$0x1]
        %v4208 = vsel %vm952, %v4203, 0.0
        %4209 = vadd.xlane.f32.xlu0 %v4208
        %v4210 = vpop.xlane.xlu0 %4209
        %v4211 = vmul.f32 %v4210, %v956
        %v4212 = vsub.f32 %v4203, %v4211
        %v4213 = vmul.f32 %v4212, %v4212
        %v4214 = vsel %vm952, %v4213, 0.0
        %4215 = vadd.xlane.f32.xlu0 %v4214
        %v4216 = vpop.xlane.xlu0 %4215
        %v4217 = vmul.f32 %v4216, %v956
        %v4218 = vadd.f32 %v4217, 1e-06
        %v4219 = vrsqrt.pop %v4218
        %v4220 = vmul.f32 %v4212, %v4219
        %v4222 = vlaneseq
        %v4223 = vshrl.u32 %v4222, 7
        %v4224 = vsub.s32 0, %v4223
        %v4225 = vrot.slane %v4205, %v4224
        %v4227 = vmul.f32 %v4220, %v4225
        %v4229 = vlaneseq
        %v4230 = vshrl.u32 %v4229, 7
        %v4231 = vsub.s32 0, %v4230
        %v4232 = vrot.slane %v4207, %v4231
        %v4234 = vadd.f32 %v4227, %v4232
        %v4235 = vpack.c.bf16 %v4234, %v4234
        %v4236 = vld [vmem:[#allocation16] sm:$0xf]
        %v4237 = vld [vmem:[#allocation16 + $0x4] sm:$0xf]
        %v4238 = vld [vmem:[#allocation16 + $0x8] sm:$0xf]
        %v4239 = vld [vmem:[#allocation16 + $0xc] sm:$0xf]
        %v4240 = vld [vmem:[#allocation16 + $0x10] sm:$0xf]
        %v4241 = vld [vmem:[#allocation16 + $0x14] sm:$0xf]
        %v4242 = vld [vmem:[#allocation16 + $0x18] sm:$0xf]
        %v4243 = vld [vmem:[#allocation16 + $0x1c] sm:$0xf]
        %v4244 = vld [vmem:[#allocation17] sm:$0x1]
        %v4246 = vlaneseq
        %v4247 = vshrl.u32 %v4246, 7
        %v4248 = vsub.s32 0, %v4247
        %v4249 = vrot.slane %v4244, %v4248
        %v4259 = vunpack.c.l.b16 %v4236
        %v4260 = vunpack.c.l.b16 %v4237
        %v4261 = vunpack.c.l.b16 %v4238
        %v4262 = vunpack.c.l.b16 %v4239
        %v4263 = vunpack.c.l.b16 %v4240
        %v4264 = vunpack.c.l.b16 %v4241
        %v4265 = vunpack.c.l.b16 %v4242
        %v4266 = vunpack.c.l.b16 %v4243
        %v4267 = vpack.c.b16 %v4260, %v4259
        %v4268 = vpack.c.b16 %v4262, %v4261
        %v4269 = vpack.c.b16 %v4264, %v4263
        %v4270 = vpack.c.b16 %v4266, %v4265
        %v4276 = vsel %vm952, %v4235, 0
        %4278 = vmatprep.subr.bf16.mxu0 0
        %4279 = vmatpush1.bf16.msra.mxu0 0
        %4280 = vmatprep.subr.bf16.mxu0 0
        %4281 = vmatpush1.bf16.msra.mxu0 0
        %4282 = vmatprep.subr.bf16.mxu0 0
        %4283 = vmatpush1.bf16.msra.mxu0 0
        %4284 = vmatprep.subr.bf16.mxu0 0
        %4285 = vmatpush1.bf16.msra.mxu0 0
        %4286 = vmatprep.subr.bf16.mxu0 0
        %4287 = vmatpush1.bf16.msra.mxu0 %v4270
        %4288 = vmatprep.subr.bf16.mxu0 0
        %4289 = vmatpush1.bf16.msra.mxu0 %v4269
        %4290 = vmatprep.subr.bf16.mxu0 0
        %4291 = vmatpush1.bf16.msra.mxu0 %v4268
        %4292 = vmatprep.subr.bf16.mxu0 0
        %4293 = vmatpush1.bf16.msra.mxu0 %v4267
        %4294 = vmatprep.subr.bf16.mxu0 0
        %4295 = vmatpush2.bf16.msra.mxu0 0
        %4296 = vmatprep.subr.bf16.mxu0 0
        %4297 = vmatpush2.bf16.msra.mxu0 0
        %4298 = vmatprep.subr.bf16.mxu0 0
        %4299 = vmatpush2.bf16.msra.mxu0 0
        %4300 = vmatprep.subr.bf16.mxu0 0
        %4301 = vmatpush2.bf16.msra.mxu0 0
        %4302 = vmatprep.subr.bf16.mxu0 0
        %4303 = vmatpush2.bf16.msra.mxu0 0
        %4304 = vmatprep.subr.bf16.mxu0 0
        %4305 = vmatpush2.bf16.msra.mxu0 0
        %4306 = vmatprep.subr.bf16.mxu0 0
        %4307 = vmatpush2.bf16.msra.mxu0 0
        %4308 = vmatprep.subr.bf16.mxu0 0
        %4309 = vmatpush2.bf16.msra.mxu0 0
        %4310 = vmatprep.mubr.bf16.mxu0 0
        %4311 = vmatmul.mubr.bf16.gmra.mxu0 %v4276
        %v4312 = vpop.f32.mrf.mxu0
        %v4313 = vadd.f32 %v4249, %v4312
        %v4314 = vpop.f32.mrf.mxu0
        %v4315 = vpop.f32.mrf.mxu0
        %v4316 = vpop.f32.mrf.mxu0
        %4317 = vdwg.mxu0
        %v4318 = vmax.f32 %v4313, 0.0
        %v4319 = vpack.c.bf16 %v4318, %v4318
        %v4320 = vld [vmem:[#allocation19] sm:$0xf]
        %v4321 = vld [vmem:[#allocation19 + $0x4] sm:$0xf]
        %v4322 = vld [vmem:[#allocation19 + $0x8] sm:$0xf]
        %v4323 = vld [vmem:[#allocation19 + $0xc] sm:$0xf]
        %v4324 = vld [vmem:[#allocation19 + $0x10] sm:$0xf]
        %v4325 = vld [vmem:[#allocation19 + $0x14] sm:$0xf]
        %v4326 = vld [vmem:[#allocation19 + $0x18] sm:$0xf]
        %v4327 = vld [vmem:[#allocation19 + $0x1c] sm:$0xf]
        %v4328 = vld [vmem:[#allocation19 + $0x20] sm:$0xf]
        %v4329 = vld [vmem:[#allocation19 + $0x24] sm:$0xf]
        %v4330 = vld [vmem:[#allocation19 + $0x28] sm:$0xf]
        %v4331 = vld [vmem:[#allocation19 + $0x2c] sm:$0xf]
        %v4332 = vld [vmem:[#allocation19 + $0x30] sm:$0xf]
        %v4333 = vld [vmem:[#allocation19 + $0x34] sm:$0xf]
        %v4334 = vld [vmem:[#allocation19 + $0x38] sm:$0xf]
        %v4335 = vld [vmem:[#allocation19 + $0x3c] sm:$0xf]
        %v4336 = vld [vmem:[%s18] sm:$0x1]
        %v4338 = vlaneseq
        %v4339 = vshrl.u32 %v4338, 7
        %v4340 = vsub.s32 0, %v4339
        %v4341 = vrot.slane %v4336, %v4340
        %v4359 = vunpack.c.l.b16 %v4320
        %v4360 = vunpack.c.l.b16 %v4321
        %v4361 = vunpack.c.l.b16 %v4322
        %v4362 = vunpack.c.l.b16 %v4323
        %v4363 = vunpack.c.l.b16 %v4324
        %v4364 = vunpack.c.l.b16 %v4325
        %v4365 = vunpack.c.l.b16 %v4326
        %v4366 = vunpack.c.l.b16 %v4327
        %v4367 = vunpack.c.l.b16 %v4328
        %v4368 = vunpack.c.l.b16 %v4329
        %v4369 = vunpack.c.l.b16 %v4330
        %v4370 = vunpack.c.l.b16 %v4331
        %v4371 = vunpack.c.l.b16 %v4332
        %v4372 = vunpack.c.l.b16 %v4333
        %v4373 = vunpack.c.l.b16 %v4334
        %v4374 = vunpack.c.l.b16 %v4335
        %v4375 = vpack.c.b16 %v4360, %v4359
        %v4376 = vpack.c.b16 %v4362, %v4361
        %v4377 = vpack.c.b16 %v4364, %v4363
        %v4378 = vpack.c.b16 %v4366, %v4365
        %v4379 = vpack.c.b16 %v4368, %v4367
        %v4380 = vpack.c.b16 %v4370, %v4369
        %v4381 = vpack.c.b16 %v4372, %v4371
        %v4382 = vpack.c.b16 %v4374, %v4373
        %4391 = vmatprep.subr.bf16.mxu0 0
        %4392 = vmatpush1.bf16.msra.mxu0 %v4382
        %4393 = vmatprep.subr.bf16.mxu0 0
        %4394 = vmatpush1.bf16.msra.mxu0 %v4381
        %4395 = vmatprep.subr.bf16.mxu0 0
        %4396 = vmatpush1.bf16.msra.mxu0 %v4380
        %4397 = vmatprep.subr.bf16.mxu0 0
        %4398 = vmatpush1.bf16.msra.mxu0 %v4379
        %4399 = vmatprep.subr.bf16.mxu0 0
        %4400 = vmatpush1.bf16.msra.mxu0 %v4378
        %4401 = vmatprep.subr.bf16.mxu0 0
        %4402 = vmatpush1.bf16.msra.mxu0 %v4377
        %4403 = vmatprep.subr.bf16.mxu0 0
        %4404 = vmatpush1.bf16.msra.mxu0 %v4376
        %4405 = vmatprep.subr.bf16.mxu0 0
        %4406 = vmatpush1.bf16.msra.mxu0 %v4375
        %4407 = vmatprep.subr.bf16.mxu0 0
        %4408 = vmatpush2.bf16.msra.mxu0 0
        %4409 = vmatprep.subr.bf16.mxu0 0
        %4410 = vmatpush2.bf16.msra.mxu0 0
        %4411 = vmatprep.subr.bf16.mxu0 0
        %4412 = vmatpush2.bf16.msra.mxu0 0
        %4413 = vmatprep.subr.bf16.mxu0 0
        %4414 = vmatpush2.bf16.msra.mxu0 0
        %4415 = vmatprep.subr.bf16.mxu0 0
        %4416 = vmatpush2.bf16.msra.mxu0 0
        %4417 = vmatprep.subr.bf16.mxu0 0
        %4418 = vmatpush2.bf16.msra.mxu0 0
        %4419 = vmatprep.subr.bf16.mxu0 0
        %4420 = vmatpush2.bf16.msra.mxu0 0
        %4421 = vmatprep.subr.bf16.mxu0 0
        %4422 = vmatpush2.bf16.msra.mxu0 0
        %4423 = vmatprep.mubr.bf16.mxu0 0
        %4424 = vmatmul.mubr.bf16.gmra.mxu0 %v4319
        %v4425 = vpop.f32.mrf.mxu0
        %v4426 = vadd.f32 %v4341, %v4425
        %v4427 = vpop.f32.mrf.mxu0
        %v4428 = vpop.f32.mrf.mxu0
        %v4429 = vpop.f32.mrf.mxu0
        %4430 = vdwg.mxu0
        %v4431 = vadd.f32 %v4426, %v4203
        %s4432 = scalar_lea.vmem %s5, 3
        %v4433 = vld [vmem:[%s4432] sm:$0x1]
        %s4434 = scalar_lea.vmem %s6, 3
        %v4435 = vld [vmem:[%s4434] sm:$0x1]
        %v4436 = vsel %vm952, %v4431, 0.0
        %4437 = vadd.xlane.f32.xlu0 %v4436
        %v4438 = vpop.xlane.xlu0 %4437
        %v4439 = vmul.f32 %v4438, %v956
        %v4440 = vsub.f32 %v4431, %v4439
        %v4441 = vmul.f32 %v4440, %v4440
        %v4442 = vsel %vm952, %v4441, 0.0
        %4443 = vadd.xlane.f32.xlu0 %v4442
        %v4444 = vpop.xlane.xlu0 %4443
        %v4445 = vmul.f32 %v4444, %v956
        %v4446 = vadd.f32 %v4445, 1e-06
        %v4447 = vrsqrt.pop %v4446
        %v4448 = vmul.f32 %v4440, %v4447
        %v4450 = vlaneseq
        %v4451 = vshrl.u32 %v4450, 7
        %v4452 = vsub.s32 0, %v4451
        %v4453 = vrot.slane %v4433, %v4452
        %v4455 = vmul.f32 %v4448, %v4453
        %v4457 = vlaneseq
        %v4458 = vshrl.u32 %v4457, 7
        %v4459 = vsub.s32 0, %v4458
        %v4460 = vrot.slane %v4435, %v4459
        %v4462 = vadd.f32 %v4455, %v4460
        %v4463 = vpack.c.bf16 %v4462, %v4462
        %s4464 = scalar_lea.vmem [#allocation5], 64
        %v4465 = vld [vmem:[%s4464] sm:$0xff]
        %v4466 = vld [vmem:[%s4464 + $0x8] sm:$0xff]
        %v4467 = vld [vmem:[%s4464 + $0x10] sm:$0xff]
        %v4468 = vld [vmem:[%s4464 + $0x18] sm:$0xff]
        %v4469 = vld [vmem:[%s4464 + $0x20] sm:$0xff]
        %v4470 = vld [vmem:[%s4464 + $0x28] sm:$0xff]
        %v4471 = vld [vmem:[%s4464 + $0x30] sm:$0xff]
        %v4472 = vld [vmem:[%s4464 + $0x38] sm:$0xff]
        %s4473 = scalar_lea.vmem [#allocation7], 2
        %v4474 = vld [vmem:[%s4473] sm:$0x3]
        %v4476 = vlaneseq
        %v4477 = vshrl.u32 %v4476, 7
        %v4478 = vsub.s32 0, %v4477
        %v4479 = vrot.slane %v4474, %v4478
        %v4480 = vlaneseq
        %v4481 = vshrl.u32 %v4480, 7
        %v4482 = vsub.s32 1, %v4481
        %v4483 = vrot.slane %v4474, %v4482
        %v4494 = vunpack.c.l.b16 %v4465
        %v4495 = vunpack.c.h.b16 %v4465
        %v4496 = vunpack.c.l.b16 %v4466
        %v4497 = vunpack.c.h.b16 %v4466
        %v4498 = vunpack.c.l.b16 %v4467
        %v4499 = vunpack.c.h.b16 %v4467
        %v4500 = vunpack.c.l.b16 %v4468
        %v4501 = vunpack.c.h.b16 %v4468
        %v4502 = vunpack.c.l.b16 %v4469
        %v4503 = vunpack.c.h.b16 %v4469
        %v4504 = vunpack.c.l.b16 %v4470
        %v4505 = vunpack.c.h.b16 %v4470
        %v4506 = vunpack.c.l.b16 %v4471
        %v4507 = vunpack.c.h.b16 %v4471
        %v4508 = vunpack.c.l.b16 %v4472
        %v4509 = vunpack.c.h.b16 %v4472
        %v4510 = vpack.c.b16 %v4496, %v4494
        %v4511 = vpack.c.b16 %v4497, %v4495
        %v4512 = vpack.c.b16 %v4500, %v4498
        %v4513 = vpack.c.b16 %v4501, %v4499
        %v4514 = vpack.c.b16 %v4504, %v4502
        %v4515 = vpack.c.b16 %v4505, %v4503
        %v4516 = vpack.c.b16 %v4508, %v4506
        %v4517 = vpack.c.b16 %v4509, %v4507
        %v4527 = vsel %vm952, %v4463, 0
        %4529 = vmatprep.subr.bf16.mxu0 0
        %4530 = vmatpush1.bf16.msra.mxu0 0
        %4531 = vmatprep.subr.bf16.mxu0 0
        %4532 = vmatpush1.bf16.msra.mxu0 0
        %4533 = vmatprep.subr.bf16.mxu0 0
        %4534 = vmatpush1.bf16.msra.mxu0 0
        %4535 = vmatprep.subr.bf16.mxu0 0
        %4536 = vmatpush1.bf16.msra.mxu0 0
        %4537 = vmatprep.subr.bf16.mxu0 %v4517
        %4538 = vmatpush1.bf16.msra.mxu0 %v4516
        %4539 = vmatprep.subr.bf16.mxu0 %v4515
        %4540 = vmatpush1.bf16.msra.mxu0 %v4514
        %4541 = vmatprep.subr.bf16.mxu0 %v4513
        %4542 = vmatpush1.bf16.msra.mxu0 %v4512
        %4543 = vmatprep.subr.bf16.mxu0 %v4511
        %4544 = vmatpush1.bf16.msra.mxu0 %v4510
        %4545 = vmatprep.subr.bf16.mxu0 0
        %4546 = vmatpush2.bf16.msra.mxu0 0
        %4547 = vmatprep.subr.bf16.mxu0 0
        %4548 = vmatpush2.bf16.msra.mxu0 0
        %4549 = vmatprep.subr.bf16.mxu0 0
        %4550 = vmatpush2.bf16.msra.mxu0 0
        %4551 = vmatprep.subr.bf16.mxu0 0
        %4552 = vmatpush2.bf16.msra.mxu0 0
        %4553 = vmatprep.subr.bf16.mxu0 0
        %4554 = vmatpush2.bf16.msra.mxu0 0
        %4555 = vmatprep.subr.bf16.mxu0 0
        %4556 = vmatpush2.bf16.msra.mxu0 0
        %4557 = vmatprep.subr.bf16.mxu0 0
        %4558 = vmatpush2.bf16.msra.mxu0 0
        %4559 = vmatprep.subr.bf16.mxu0 0
        %4560 = vmatpush2.bf16.msra.mxu0 0
        %4561 = vmatprep.mubr.bf16.mxu0 0
        %4562 = vmatmul.mubr.bf16.gmra.mxu0 %v4527
        %v4563 = vpop.f32.mrf.mxu0
        %v4564 = vadd.f32 %v4479, %v4563
        %v4565 = vpop.f32.mrf.mxu0
        %v4566 = vadd.f32 %v4483, %v4565
        %v4567 = vpop.f32.mrf.mxu0
        %v4568 = vpop.f32.mrf.mxu0
        %4569 = vdwg.mxu0
        %v4570 = vmul.f32 %v4564, 0.35355338
        %s4571 = scalar_lea.vmem [#allocation14], 64
        %v4572 = vld [vmem:[%s4571] sm:$0xf]
        %v4573 = vld [vmem:[%s4571 + $0x4] sm:$0xf]
        %v4574 = vld [vmem:[%s4571 + $0x8] sm:$0xf]
        %v4575 = vld [vmem:[%s4571 + $0xc] sm:$0xf]
        %v4576 = vld [vmem:[%s4571 + $0x10] sm:$0xf]
        %v4577 = vld [vmem:[%s4571 + $0x14] sm:$0xf]
        %v4578 = vld [vmem:[%s4571 + $0x18] sm:$0xf]
        %v4579 = vld [vmem:[%s4571 + $0x1c] sm:$0xf]
        %s4580 = scalar_lea.vmem %s14, 2
        %v4581 = vld [vmem:[%s4580] sm:$0x1]
        %4583 = vrot.lane.b32.xlu0 %v4570, 120
        %v4584 = vpop.permute.xlu0 %4583
        %4585 = vrot.lane.b32.xlu0 %v4570, 112
        %v4586 = vpop.permute.xlu0 %4585
        %4587 = vrot.lane.b32.xlu0 %v4570, 104
        %v4588 = vpop.permute.xlu0 %4587
        %4589 = vrot.lane.b32.xlu0 %v4570, 96
        %v4590 = vpop.permute.xlu0 %4589
        %4591 = vrot.lane.b32.xlu0 %v4570, 88
        %v4592 = vpop.permute.xlu0 %4591
        %4593 = vrot.lane.b32.xlu0 %v4570, 80
        %v4594 = vpop.permute.xlu0 %4593
        %4595 = vrot.lane.b32.xlu0 %v4570, 72
        %v4596 = vpop.permute.xlu0 %4595
        %4598 = vrot.lane.b32.xlu0 %v4564, 120
        %v4599 = vpop.permute.xlu0 %4598
        %4600 = vrot.lane.b32.xlu0 %v4564, 112
        %v4601 = vpop.permute.xlu0 %4600
        %4602 = vrot.lane.b32.xlu0 %v4564, 104
        %v4603 = vpop.permute.xlu0 %4602
        %4604 = vrot.lane.b32.xlu0 %v4564, 96
        %v4605 = vpop.permute.xlu0 %4604
        %4606 = vrot.lane.b32.xlu0 %v4564, 88
        %v4607 = vpop.permute.xlu0 %4606
        %4608 = vrot.lane.b32.xlu0 %v4564, 80
        %v4609 = vpop.permute.xlu0 %4608
        %4610 = vrot.lane.b32.xlu0 %v4564, 72
        %v4611 = vpop.permute.xlu0 %4610
        %4613 = vrot.lane.b32.xlu0 %v4566, 120
        %v4614 = vpop.permute.xlu0 %4613
        %4616 = vrot.lane.b32.xlu0 %v4566, 112
        %v4617 = vpop.permute.xlu0 %4616
        %4619 = vrot.lane.b32.xlu0 %v4566, 104
        %v4620 = vpop.permute.xlu0 %4619
        %4622 = vrot.lane.b32.xlu0 %v4566, 96
        %v4623 = vpop.permute.xlu0 %4622
        %4625 = vrot.lane.b32.xlu0 %v4566, 88
        %v4626 = vpop.permute.xlu0 %4625
        %4628 = vrot.lane.b32.xlu0 %v4566, 80
        %v4629 = vpop.permute.xlu0 %4628
        %4631 = vrot.lane.b32.xlu0 %v4566, 72
        %v4632 = vpop.permute.xlu0 %4631
        %4634 = vrot.lane.b32.xlu0 %v4564, 64
        %v4635 = vpop.permute.xlu0 %4634
        %v4636 = vsel %vm1150, %v4570, 0
        %v4638 = vsel %vm1150, %v4635, 0
        %4640 = vmatprep.subr.mxu0 0.0
        %4641 = vmatpush1.xpose.msra.mxu0 0.0
        %4642 = vmatprep.subr.mxu0 0.0
        %4643 = vmatpush1.xpose.msra.mxu0 0.0
        %4644 = vmatprep.subr.mxu0 0.0
        %4645 = vmatpush1.xpose.msra.mxu0 0.0
        %4646 = vmatprep.subr.mxu0 0.0
        %4647 = vmatpush1.xpose.msra.mxu0 0.0
        %4648 = vmatprep.subr.mxu0 0.0
        %4649 = vmatpush1.xpose.msra.mxu0 0.0
        %4650 = vmatprep.subr.mxu0 0.0
        %4651 = vmatpush1.xpose.msra.mxu0 0.0
        %4652 = vmatprep.subr.mxu0 0.0
        %4653 = vmatpush1.xpose.msra.mxu0 0.0
        %4654 = vmatprep.subr.mxu0 0.0
        %4655 = vmatpush1.xpose.msra.mxu0 0.0
        %4656 = vmatprep.subr.mxu0 0.0
        %4657 = vmatpush1.xpose.msra.mxu0 0.0
        %4658 = vmatprep.subr.mxu0 0.0
        %4659 = vmatpush1.xpose.msra.mxu0 0.0
        %4660 = vmatprep.subr.mxu0 0.0
        %4661 = vmatpush1.xpose.msra.mxu0 0.0
        %4662 = vmatprep.subr.mxu0 0.0
        %4663 = vmatpush1.xpose.msra.mxu0 0.0
        %4664 = vmatprep.subr.mxu0 0.0
        %4665 = vmatpush1.xpose.msra.mxu0 0.0
        %4666 = vmatprep.subr.mxu0 0.0
        %4667 = vmatpush1.xpose.msra.mxu0 0.0
        %4668 = vmatprep.subr.mxu0 0.0
        %4669 = vmatpush1.xpose.msra.mxu0 0.0
        %4670 = vmatprep.subr.mxu0 0.0
        %4671 = vmatpush1.xpose.msra.mxu0 %v4638
        %4672 = vmatprep.subr.mxu0 0.0
        %4673 = vmatpush2.xpose.msra.mxu0 0.0
        %4674 = vmatprep.subr.mxu0 0.0
        %4675 = vmatpush2.xpose.msra.mxu0 0.0
        %4676 = vmatprep.subr.mxu0 0.0
        %4677 = vmatpush2.xpose.msra.mxu0 0.0
        %4678 = vmatprep.subr.mxu0 0.0
        %4679 = vmatpush2.xpose.msra.mxu0 0.0
        %4680 = vmatprep.subr.mxu0 0.0
        %4681 = vmatpush2.xpose.msra.mxu0 0.0
        %4682 = vmatprep.subr.mxu0 0.0
        %4683 = vmatpush2.xpose.msra.mxu0 0.0
        %4684 = vmatprep.subr.mxu0 0.0
        %4685 = vmatpush2.xpose.msra.mxu0 0.0
        %4686 = vmatprep.subr.mxu0 0.0
        %4687 = vmatpush2.xpose.msra.mxu0 0.0
        %4688 = vmatprep.subr.mxu0 0.0
        %4689 = vmatpush2.xpose.msra.mxu0 0.0
        %4690 = vmatprep.subr.mxu0 0.0
        %4691 = vmatpush2.xpose.msra.mxu0 0.0
        %4692 = vmatprep.subr.mxu0 0.0
        %4693 = vmatpush2.xpose.msra.mxu0 0.0
        %4694 = vmatprep.subr.mxu0 0.0
        %4695 = vmatpush2.xpose.msra.mxu0 0.0
        %4696 = vmatprep.subr.mxu0 0.0
        %4697 = vmatpush2.xpose.msra.mxu0 0.0
        %4698 = vmatprep.subr.mxu0 0.0
        %4699 = vmatpush2.xpose.msra.mxu0 0.0
        %4700 = vmatprep.subr.mxu0 0.0
        %4701 = vmatpush2.xpose.msra.mxu0 0.0
        %4702 = vmatprep.subr.mxu0 0.0
        %4703 = vmatpush2.xpose.msra.mxu0 0.0
        %4704 = vmatprep.mubr.f32.mxu0 0.0
        %4705 = vmatmul.mubr.f32.gmra.mxu0 %v4636
        %v4706 = vpop.f32.mrf.mxu0
        %v4707 = vadd.f32 0.0, %v4706
        %v4708 = vpop.f32.mrf.mxu0
        %4709 = vdwg.mxu0
        %4710 = vrot.lane.b32.xlu0 %v4599, 64
        %v4711 = vpop.permute.xlu0 %4710
        %v4712 = vsel %vm1150, %v4584, 0
        %v4714 = vsel %vm1150, %v4711, 0
        %4716 = vmatprep.subr.mxu0 0.0
        %4717 = vmatpush1.xpose.msra.mxu0 0.0
        %4718 = vmatprep.subr.mxu0 0.0
        %4719 = vmatpush1.xpose.msra.mxu0 0.0
        %4720 = vmatprep.subr.mxu0 0.0
        %4721 = vmatpush1.xpose.msra.mxu0 0.0
        %4722 = vmatprep.subr.mxu0 0.0
        %4723 = vmatpush1.xpose.msra.mxu0 0.0
        %4724 = vmatprep.subr.mxu0 0.0
        %4725 = vmatpush1.xpose.msra.mxu0 0.0
        %4726 = vmatprep.subr.mxu0 0.0
        %4727 = vmatpush1.xpose.msra.mxu0 0.0
        %4728 = vmatprep.subr.mxu0 0.0
        %4729 = vmatpush1.xpose.msra.mxu0 0.0
        %4730 = vmatprep.subr.mxu0 0.0
        %4731 = vmatpush1.xpose.msra.mxu0 0.0
        %4732 = vmatprep.subr.mxu0 0.0
        %4733 = vmatpush1.xpose.msra.mxu0 0.0
        %4734 = vmatprep.subr.mxu0 0.0
        %4735 = vmatpush1.xpose.msra.mxu0 0.0
        %4736 = vmatprep.subr.mxu0 0.0
        %4737 = vmatpush1.xpose.msra.mxu0 0.0
        %4738 = vmatprep.subr.mxu0 0.0
        %4739 = vmatpush1.xpose.msra.mxu0 0.0
        %4740 = vmatprep.subr.mxu0 0.0
        %4741 = vmatpush1.xpose.msra.mxu0 0.0
        %4742 = vmatprep.subr.mxu0 0.0
        %4743 = vmatpush1.xpose.msra.mxu0 0.0
        %4744 = vmatprep.subr.mxu0 0.0
        %4745 = vmatpush1.xpose.msra.mxu0 0.0
        %4746 = vmatprep.subr.mxu0 0.0
        %4747 = vmatpush1.xpose.msra.mxu0 %v4714
        %4748 = vmatprep.subr.mxu0 0.0
        %4749 = vmatpush2.xpose.msra.mxu0 0.0
        %4750 = vmatprep.subr.mxu0 0.0
        %4751 = vmatpush2.xpose.msra.mxu0 0.0
        %4752 = vmatprep.subr.mxu0 0.0
        %4753 = vmatpush2.xpose.msra.mxu0 0.0
        %4754 = vmatprep.subr.mxu0 0.0
        %4755 = vmatpush2.xpose.msra.mxu0 0.0
        %4756 = vmatprep.subr.mxu0 0.0
        %4757 = vmatpush2.xpose.msra.mxu0 0.0
        %4758 = vmatprep.subr.mxu0 0.0
        %4759 = vmatpush2.xpose.msra.mxu0 0.0
        %4760 = vmatprep.subr.mxu0 0.0
        %4761 = vmatpush2.xpose.msra.mxu0 0.0
        %4762 = vmatprep.subr.mxu0 0.0
        %4763 = vmatpush2.xpose.msra.mxu0 0.0
        %4764 = vmatprep.subr.mxu0 0.0
        %4765 = vmatpush2.xpose.msra.mxu0 0.0
        %4766 = vmatprep.subr.mxu0 0.0
        %4767 = vmatpush2.xpose.msra.mxu0 0.0
        %4768 = vmatprep.subr.mxu0 0.0
        %4769 = vmatpush2.xpose.msra.mxu0 0.0
        %4770 = vmatprep.subr.mxu0 0.0
        %4771 = vmatpush2.xpose.msra.mxu0 0.0
        %4772 = vmatprep.subr.mxu0 0.0
        %4773 = vmatpush2.xpose.msra.mxu0 0.0
        %4774 = vmatprep.subr.mxu0 0.0
        %4775 = vmatpush2.xpose.msra.mxu0 0.0
        %4776 = vmatprep.subr.mxu0 0.0
        %4777 = vmatpush2.xpose.msra.mxu0 0.0
        %4778 = vmatprep.subr.mxu0 0.0
        %4779 = vmatpush2.xpose.msra.mxu0 0.0
        %4780 = vmatprep.mubr.f32.mxu0 0.0
        %4781 = vmatmul.mubr.f32.gmra.mxu0 %v4712
        %v4782 = vpop.f32.mrf.mxu0
        %v4783 = vadd.f32 0.0, %v4782
        %v4784 = vpop.f32.mrf.mxu0
        %4785 = vdwg.mxu0
        %4786 = vrot.lane.b32.xlu0 %v4601, 64
        %v4787 = vpop.permute.xlu0 %4786
        %v4788 = vsel %vm1150, %v4586, 0
        %v4790 = vsel %vm1150, %v4787, 0
        %4792 = vmatprep.subr.mxu0 0.0
        %4793 = vmatpush1.xpose.msra.mxu0 0.0
        %4794 = vmatprep.subr.mxu0 0.0
        %4795 = vmatpush1.xpose.msra.mxu0 0.0
        %4796 = vmatprep.subr.mxu0 0.0
        %4797 = vmatpush1.xpose.msra.mxu0 0.0
        %4798 = vmatprep.subr.mxu0 0.0
        %4799 = vmatpush1.xpose.msra.mxu0 0.0
        %4800 = vmatprep.subr.mxu0 0.0
        %4801 = vmatpush1.xpose.msra.mxu0 0.0
        %4802 = vmatprep.subr.mxu0 0.0
        %4803 = vmatpush1.xpose.msra.mxu0 0.0
        %4804 = vmatprep.subr.mxu0 0.0
        %4805 = vmatpush1.xpose.msra.mxu0 0.0
        %4806 = vmatprep.subr.mxu0 0.0
        %4807 = vmatpush1.xpose.msra.mxu0 0.0
        %4808 = vmatprep.subr.mxu0 0.0
        %4809 = vmatpush1.xpose.msra.mxu0 0.0
        %4810 = vmatprep.subr.mxu0 0.0
        %4811 = vmatpush1.xpose.msra.mxu0 0.0
        %4812 = vmatprep.subr.mxu0 0.0
        %4813 = vmatpush1.xpose.msra.mxu0 0.0
        %4814 = vmatprep.subr.mxu0 0.0
        %4815 = vmatpush1.xpose.msra.mxu0 0.0
        %4816 = vmatprep.subr.mxu0 0.0
        %4817 = vmatpush1.xpose.msra.mxu0 0.0
        %4818 = vmatprep.subr.mxu0 0.0
        %4819 = vmatpush1.xpose.msra.mxu0 0.0
        %4820 = vmatprep.subr.mxu0 0.0
        %4821 = vmatpush1.xpose.msra.mxu0 0.0
        %4822 = vmatprep.subr.mxu0 0.0
        %4823 = vmatpush1.xpose.msra.mxu0 %v4790
        %4824 = vmatprep.subr.mxu0 0.0
        %4825 = vmatpush2.xpose.msra.mxu0 0.0
        %4826 = vmatprep.subr.mxu0 0.0
        %4827 = vmatpush2.xpose.msra.mxu0 0.0
        %4828 = vmatprep.subr.mxu0 0.0
        %4829 = vmatpush2.xpose.msra.mxu0 0.0
        %4830 = vmatprep.subr.mxu0 0.0
        %4831 = vmatpush2.xpose.msra.mxu0 0.0
        %4832 = vmatprep.subr.mxu0 0.0
        %4833 = vmatpush2.xpose.msra.mxu0 0.0
        %4834 = vmatprep.subr.mxu0 0.0
        %4835 = vmatpush2.xpose.msra.mxu0 0.0
        %4836 = vmatprep.subr.mxu0 0.0
        %4837 = vmatpush2.xpose.msra.mxu0 0.0
        %4838 = vmatprep.subr.mxu0 0.0
        %4839 = vmatpush2.xpose.msra.mxu0 0.0
        %4840 = vmatprep.subr.mxu0 0.0
        %4841 = vmatpush2.xpose.msra.mxu0 0.0
        %4842 = vmatprep.subr.mxu0 0.0
        %4843 = vmatpush2.xpose.msra.mxu0 0.0
        %4844 = vmatprep.subr.mxu0 0.0
        %4845 = vmatpush2.xpose.msra.mxu0 0.0
        %4846 = vmatprep.subr.mxu0 0.0
        %4847 = vmatpush2.xpose.msra.mxu0 0.0
        %4848 = vmatprep.subr.mxu0 0.0
        %4849 = vmatpush2.xpose.msra.mxu0 0.0
        %4850 = vmatprep.subr.mxu0 0.0
        %4851 = vmatpush2.xpose.msra.mxu0 0.0
        %4852 = vmatprep.subr.mxu0 0.0
        %4853 = vmatpush2.xpose.msra.mxu0 0.0
        %4854 = vmatprep.subr.mxu0 0.0
        %4855 = vmatpush2.xpose.msra.mxu0 0.0
        %4856 = vmatprep.mubr.f32.mxu0 0.0
        %4857 = vmatmul.mubr.f32.gmra.mxu0 %v4788
        %v4858 = vpop.f32.mrf.mxu0
        %v4859 = vadd.f32 0.0, %v4858
        %v4860 = vpop.f32.mrf.mxu0
        %4861 = vdwg.mxu0
        %4862 = vrot.lane.b32.xlu0 %v4603, 64
        %v4863 = vpop.permute.xlu0 %4862
        %v4864 = vsel %vm1150, %v4588, 0
        %v4866 = vsel %vm1150, %v4863, 0
        %4868 = vmatprep.subr.mxu0 0.0
        %4869 = vmatpush1.xpose.msra.mxu0 0.0
        %4870 = vmatprep.subr.mxu0 0.0
        %4871 = vmatpush1.xpose.msra.mxu0 0.0
        %4872 = vmatprep.subr.mxu0 0.0
        %4873 = vmatpush1.xpose.msra.mxu0 0.0
        %4874 = vmatprep.subr.mxu0 0.0
        %4875 = vmatpush1.xpose.msra.mxu0 0.0
        %4876 = vmatprep.subr.mxu0 0.0
        %4877 = vmatpush1.xpose.msra.mxu0 0.0
        %4878 = vmatprep.subr.mxu0 0.0
        %4879 = vmatpush1.xpose.msra.mxu0 0.0
        %4880 = vmatprep.subr.mxu0 0.0
        %4881 = vmatpush1.xpose.msra.mxu0 0.0
        %4882 = vmatprep.subr.mxu0 0.0
        %4883 = vmatpush1.xpose.msra.mxu0 0.0
        %4884 = vmatprep.subr.mxu0 0.0
        %4885 = vmatpush1.xpose.msra.mxu0 0.0
        %4886 = vmatprep.subr.mxu0 0.0
        %4887 = vmatpush1.xpose.msra.mxu0 0.0
        %4888 = vmatprep.subr.mxu0 0.0
        %4889 = vmatpush1.xpose.msra.mxu0 0.0
        %4890 = vmatprep.subr.mxu0 0.0
        %4891 = vmatpush1.xpose.msra.mxu0 0.0
        %4892 = vmatprep.subr.mxu0 0.0
        %4893 = vmatpush1.xpose.msra.mxu0 0.0
        %4894 = vmatprep.subr.mxu0 0.0
        %4895 = vmatpush1.xpose.msra.mxu0 0.0
        %4896 = vmatprep.subr.mxu0 0.0
        %4897 = vmatpush1.xpose.msra.mxu0 0.0
        %4898 = vmatprep.subr.mxu0 0.0
        %4899 = vmatpush1.xpose.msra.mxu0 %v4866
        %4900 = vmatprep.subr.mxu0 0.0
        %4901 = vmatpush2.xpose.msra.mxu0 0.0
        %4902 = vmatprep.subr.mxu0 0.0
        %4903 = vmatpush2.xpose.msra.mxu0 0.0
        %4904 = vmatprep.subr.mxu0 0.0
        %4905 = vmatpush2.xpose.msra.mxu0 0.0
        %4906 = vmatprep.subr.mxu0 0.0
        %4907 = vmatpush2.xpose.msra.mxu0 0.0
        %4908 = vmatprep.subr.mxu0 0.0
        %4909 = vmatpush2.xpose.msra.mxu0 0.0
        %4910 = vmatprep.subr.mxu0 0.0
        %4911 = vmatpush2.xpose.msra.mxu0 0.0
        %4912 = vmatprep.subr.mxu0 0.0
        %4913 = vmatpush2.xpose.msra.mxu0 0.0
        %4914 = vmatprep.subr.mxu0 0.0
        %4915 = vmatpush2.xpose.msra.mxu0 0.0
        %4916 = vmatprep.subr.mxu0 0.0
        %4917 = vmatpush2.xpose.msra.mxu0 0.0
        %4918 = vmatprep.subr.mxu0 0.0
        %4919 = vmatpush2.xpose.msra.mxu0 0.0
        %4920 = vmatprep.subr.mxu0 0.0
        %4921 = vmatpush2.xpose.msra.mxu0 0.0
        %4922 = vmatprep.subr.mxu0 0.0
        %4923 = vmatpush2.xpose.msra.mxu0 0.0
        %4924 = vmatprep.subr.mxu0 0.0
        %4925 = vmatpush2.xpose.msra.mxu0 0.0
        %4926 = vmatprep.subr.mxu0 0.0
        %4927 = vmatpush2.xpose.msra.mxu0 0.0
        %4928 = vmatprep.subr.mxu0 0.0
        %4929 = vmatpush2.xpose.msra.mxu0 0.0
        %4930 = vmatprep.subr.mxu0 0.0
        %4931 = vmatpush2.xpose.msra.mxu0 0.0
        %4932 = vmatprep.mubr.f32.mxu0 0.0
        %4933 = vmatmul.mubr.f32.gmra.mxu0 %v4864
        %v4934 = vpop.f32.mrf.mxu0
        %v4935 = vadd.f32 0.0, %v4934
        %v4936 = vpop.f32.mrf.mxu0
        %4937 = vdwg.mxu0
        %4938 = vrot.lane.b32.xlu0 %v4605, 64
        %v4939 = vpop.permute.xlu0 %4938
        %v4940 = vsel %vm1150, %v4590, 0
        %v4942 = vsel %vm1150, %v4939, 0
        %4944 = vmatprep.subr.mxu0 0.0
        %4945 = vmatpush1.xpose.msra.mxu0 0.0
        %4946 = vmatprep.subr.mxu0 0.0
        %4947 = vmatpush1.xpose.msra.mxu0 0.0
        %4948 = vmatprep.subr.mxu0 0.0
        %4949 = vmatpush1.xpose.msra.mxu0 0.0
        %4950 = vmatprep.subr.mxu0 0.0
        %4951 = vmatpush1.xpose.msra.mxu0 0.0
        %4952 = vmatprep.subr.mxu0 0.0
        %4953 = vmatpush1.xpose.msra.mxu0 0.0
        %4954 = vmatprep.subr.mxu0 0.0
        %4955 = vmatpush1.xpose.msra.mxu0 0.0
        %4956 = vmatprep.subr.mxu0 0.0
        %4957 = vmatpush1.xpose.msra.mxu0 0.0
        %4958 = vmatprep.subr.mxu0 0.0
        %4959 = vmatpush1.xpose.msra.mxu0 0.0
        %4960 = vmatprep.subr.mxu0 0.0
        %4961 = vmatpush1.xpose.msra.mxu0 0.0
        %4962 = vmatprep.subr.mxu0 0.0
        %4963 = vmatpush1.xpose.msra.mxu0 0.0
        %4964 = vmatprep.subr.mxu0 0.0
        %4965 = vmatpush1.xpose.msra.mxu0 0.0
        %4966 = vmatprep.subr.mxu0 0.0
        %4967 = vmatpush1.xpose.msra.mxu0 0.0
        %4968 = vmatprep.subr.mxu0 0.0
        %4969 = vmatpush1.xpose.msra.mxu0 0.0
        %4970 = vmatprep.subr.mxu0 0.0
        %4971 = vmatpush1.xpose.msra.mxu0 0.0
        %4972 = vmatprep.subr.mxu0 0.0
        %4973 = vmatpush1.xpose.msra.mxu0 0.0
        %4974 = vmatprep.subr.mxu0 0.0
        %4975 = vmatpush1.xpose.msra.mxu0 %v4942
        %4976 = vmatprep.subr.mxu0 0.0
        %4977 = vmatpush2.xpose.msra.mxu0 0.0
        %4978 = vmatprep.subr.mxu0 0.0
        %4979 = vmatpush2.xpose.msra.mxu0 0.0
        %4980 = vmatprep.subr.mxu0 0.0
        %4981 = vmatpush2.xpose.msra.mxu0 0.0
        %4982 = vmatprep.subr.mxu0 0.0
        %4983 = vmatpush2.xpose.msra.mxu0 0.0
        %4984 = vmatprep.subr.mxu0 0.0
        %4985 = vmatpush2.xpose.msra.mxu0 0.0
        %4986 = vmatprep.subr.mxu0 0.0
        %4987 = vmatpush2.xpose.msra.mxu0 0.0
        %4988 = vmatprep.subr.mxu0 0.0
        %4989 = vmatpush2.xpose.msra.mxu0 0.0
        %4990 = vmatprep.subr.mxu0 0.0
        %4991 = vmatpush2.xpose.msra.mxu0 0.0
        %4992 = vmatprep.subr.mxu0 0.0
        %4993 = vmatpush2.xpose.msra.mxu0 0.0
        %4994 = vmatprep.subr.mxu0 0.0
        %4995 = vmatpush2.xpose.msra.mxu0 0.0
        %4996 = vmatprep.subr.mxu0 0.0
        %4997 = vmatpush2.xpose.msra.mxu0 0.0
        %4998 = vmatprep.subr.mxu0 0.0
        %4999 = vmatpush2.xpose.msra.mxu0 0.0
        %5000 = vmatprep.subr.mxu0 0.0
        %5001 = vmatpush2.xpose.msra.mxu0 0.0
        %5002 = vmatprep.subr.mxu0 0.0
        %5003 = vmatpush2.xpose.msra.mxu0 0.0
        %5004 = vmatprep.subr.mxu0 0.0
        %5005 = vmatpush2.xpose.msra.mxu0 0.0
        %5006 = vmatprep.subr.mxu0 0.0
        %5007 = vmatpush2.xpose.msra.mxu0 0.0
        %5008 = vmatprep.mubr.f32.mxu0 0.0
        %5009 = vmatmul.mubr.f32.gmra.mxu0 %v4940
        %v5010 = vpop.f32.mrf.mxu0
        %v5011 = vadd.f32 0.0, %v5010
        %v5012 = vpop.f32.mrf.mxu0
        %5013 = vdwg.mxu0
        %5014 = vrot.lane.b32.xlu0 %v4607, 64
        %v5015 = vpop.permute.xlu0 %5014
        %v5016 = vsel %vm1150, %v4592, 0
        %v5018 = vsel %vm1150, %v5015, 0
        %5020 = vmatprep.subr.mxu0 0.0
        %5021 = vmatpush1.xpose.msra.mxu0 0.0
        %5022 = vmatprep.subr.mxu0 0.0
        %5023 = vmatpush1.xpose.msra.mxu0 0.0
        %5024 = vmatprep.subr.mxu0 0.0
        %5025 = vmatpush1.xpose.msra.mxu0 0.0
        %5026 = vmatprep.subr.mxu0 0.0
        %5027 = vmatpush1.xpose.msra.mxu0 0.0
        %5028 = vmatprep.subr.mxu0 0.0
        %5029 = vmatpush1.xpose.msra.mxu0 0.0
        %5030 = vmatprep.subr.mxu0 0.0
        %5031 = vmatpush1.xpose.msra.mxu0 0.0
        %5032 = vmatprep.subr.mxu0 0.0
        %5033 = vmatpush1.xpose.msra.mxu0 0.0
        %5034 = vmatprep.subr.mxu0 0.0
        %5035 = vmatpush1.xpose.msra.mxu0 0.0
        %5036 = vmatprep.subr.mxu0 0.0
        %5037 = vmatpush1.xpose.msra.mxu0 0.0
        %5038 = vmatprep.subr.mxu0 0.0
        %5039 = vmatpush1.xpose.msra.mxu0 0.0
        %5040 = vmatprep.subr.mxu0 0.0
        %5041 = vmatpush1.xpose.msra.mxu0 0.0
        %5042 = vmatprep.subr.mxu0 0.0
        %5043 = vmatpush1.xpose.msra.mxu0 0.0
        %5044 = vmatprep.subr.mxu0 0.0
        %5045 = vmatpush1.xpose.msra.mxu0 0.0
        %5046 = vmatprep.subr.mxu0 0.0
        %5047 = vmatpush1.xpose.msra.mxu0 0.0
        %5048 = vmatprep.subr.mxu0 0.0
        %5049 = vmatpush1.xpose.msra.mxu0 0.0
        %5050 = vmatprep.subr.mxu0 0.0
        %5051 = vmatpush1.xpose.msra.mxu0 %v5018
        %5052 = vmatprep.subr.mxu0 0.0
        %5053 = vmatpush2.xpose.msra.mxu0 0.0
        %5054 = vmatprep.subr.mxu0 0.0
        %5055 = vmatpush2.xpose.msra.mxu0 0.0
        %5056 = vmatprep.subr.mxu0 0.0
        %5057 = vmatpush2.xpose.msra.mxu0 0.0
        %5058 = vmatprep.subr.mxu0 0.0
        %5059 = vmatpush2.xpose.msra.mxu0 0.0
        %5060 = vmatprep.subr.mxu0 0.0
        %5061 = vmatpush2.xpose.msra.mxu0 0.0
        %5062 = vmatprep.subr.mxu0 0.0
        %5063 = vmatpush2.xpose.msra.mxu0 0.0
        %5064 = vmatprep.subr.mxu0 0.0
        %5065 = vmatpush2.xpose.msra.mxu0 0.0
        %5066 = vmatprep.subr.mxu0 0.0
        %5067 = vmatpush2.xpose.msra.mxu0 0.0
        %5068 = vmatprep.subr.mxu0 0.0
        %5069 = vmatpush2.xpose.msra.mxu0 0.0
        %5070 = vmatprep.subr.mxu0 0.0
        %5071 = vmatpush2.xpose.msra.mxu0 0.0
        %5072 = vmatprep.subr.mxu0 0.0
        %5073 = vmatpush2.xpose.msra.mxu0 0.0
        %5074 = vmatprep.subr.mxu0 0.0
        %5075 = vmatpush2.xpose.msra.mxu0 0.0
        %5076 = vmatprep.subr.mxu0 0.0
        %5077 = vmatpush2.xpose.msra.mxu0 0.0
        %5078 = vmatprep.subr.mxu0 0.0
        %5079 = vmatpush2.xpose.msra.mxu0 0.0
        %5080 = vmatprep.subr.mxu0 0.0
        %5081 = vmatpush2.xpose.msra.mxu0 0.0
        %5082 = vmatprep.subr.mxu0 0.0
        %5083 = vmatpush2.xpose.msra.mxu0 0.0
        %5084 = vmatprep.mubr.f32.mxu0 0.0
        %5085 = vmatmul.mubr.f32.gmra.mxu0 %v5016
        %v5086 = vpop.f32.mrf.mxu0
        %v5087 = vadd.f32 0.0, %v5086
        %v5088 = vpop.f32.mrf.mxu0
        %5089 = vdwg.mxu0
        %5090 = vrot.lane.b32.xlu0 %v4609, 64
        %v5091 = vpop.permute.xlu0 %5090
        %v5092 = vsel %vm1150, %v4594, 0
        %v5094 = vsel %vm1150, %v5091, 0
        %5096 = vmatprep.subr.mxu0 0.0
        %5097 = vmatpush1.xpose.msra.mxu0 0.0
        %5098 = vmatprep.subr.mxu0 0.0
        %5099 = vmatpush1.xpose.msra.mxu0 0.0
        %5100 = vmatprep.subr.mxu0 0.0
        %5101 = vmatpush1.xpose.msra.mxu0 0.0
        %5102 = vmatprep.subr.mxu0 0.0
        %5103 = vmatpush1.xpose.msra.mxu0 0.0
        %5104 = vmatprep.subr.mxu0 0.0
        %5105 = vmatpush1.xpose.msra.mxu0 0.0
        %5106 = vmatprep.subr.mxu0 0.0
        %5107 = vmatpush1.xpose.msra.mxu0 0.0
        %5108 = vmatprep.subr.mxu0 0.0
        %5109 = vmatpush1.xpose.msra.mxu0 0.0
        %5110 = vmatprep.subr.mxu0 0.0
        %5111 = vmatpush1.xpose.msra.mxu0 0.0
        %5112 = vmatprep.subr.mxu0 0.0
        %5113 = vmatpush1.xpose.msra.mxu0 0.0
        %5114 = vmatprep.subr.mxu0 0.0
        %5115 = vmatpush1.xpose.msra.mxu0 0.0
        %5116 = vmatprep.subr.mxu0 0.0
        %5117 = vmatpush1.xpose.msra.mxu0 0.0
        %5118 = vmatprep.subr.mxu0 0.0
        %5119 = vmatpush1.xpose.msra.mxu0 0.0
        %5120 = vmatprep.subr.mxu0 0.0
        %5121 = vmatpush1.xpose.msra.mxu0 0.0
        %5122 = vmatprep.subr.mxu0 0.0
        %5123 = vmatpush1.xpose.msra.mxu0 0.0
        %5124 = vmatprep.subr.mxu0 0.0
        %5125 = vmatpush1.xpose.msra.mxu0 0.0
        %5126 = vmatprep.subr.mxu0 0.0
        %5127 = vmatpush1.xpose.msra.mxu0 %v5094
        %5128 = vmatprep.subr.mxu0 0.0
        %5129 = vmatpush2.xpose.msra.mxu0 0.0
        %5130 = vmatprep.subr.mxu0 0.0
        %5131 = vmatpush2.xpose.msra.mxu0 0.0
        %5132 = vmatprep.subr.mxu0 0.0
        %5133 = vmatpush2.xpose.msra.mxu0 0.0
        %5134 = vmatprep.subr.mxu0 0.0
        %5135 = vmatpush2.xpose.msra.mxu0 0.0
        %5136 = vmatprep.subr.mxu0 0.0
        %5137 = vmatpush2.xpose.msra.mxu0 0.0
        %5138 = vmatprep.subr.mxu0 0.0
        %5139 = vmatpush2.xpose.msra.mxu0 0.0
        %5140 = vmatprep.subr.mxu0 0.0
        %5141 = vmatpush2.xpose.msra.mxu0 0.0
        %5142 = vmatprep.subr.mxu0 0.0
        %5143 = vmatpush2.xpose.msra.mxu0 0.0
        %5144 = vmatprep.subr.mxu0 0.0
        %5145 = vmatpush2.xpose.msra.mxu0 0.0
        %5146 = vmatprep.subr.mxu0 0.0
        %5147 = vmatpush2.xpose.msra.mxu0 0.0
        %5148 = vmatprep.subr.mxu0 0.0
        %5149 = vmatpush2.xpose.msra.mxu0 0.0
        %5150 = vmatprep.subr.mxu0 0.0
        %5151 = vmatpush2.xpose.msra.mxu0 0.0
        %5152 = vmatprep.subr.mxu0 0.0
        %5153 = vmatpush2.xpose.msra.mxu0 0.0
        %5154 = vmatprep.subr.mxu0 0.0
        %5155 = vmatpush2.xpose.msra.mxu0 0.0
        %5156 = vmatprep.subr.mxu0 0.0
        %5157 = vmatpush2.xpose.msra.mxu0 0.0
        %5158 = vmatprep.subr.mxu0 0.0
        %5159 = vmatpush2.xpose.msra.mxu0 0.0
        %5160 = vmatprep.mubr.f32.mxu0 0.0
        %5161 = vmatmul.mubr.f32.gmra.mxu0 %v5092
        %v5162 = vpop.f32.mrf.mxu0
        %v5163 = vadd.f32 0.0, %v5162
        %v5164 = vpop.f32.mrf.mxu0
        %5165 = vdwg.mxu0
        %5166 = vrot.lane.b32.xlu0 %v4611, 64
        %v5167 = vpop.permute.xlu0 %5166
        %v5168 = vsel %vm1150, %v4596, 0
        %v5170 = vsel %vm1150, %v5167, 0
        %5172 = vmatprep.subr.mxu0 0.0
        %5173 = vmatpush1.xpose.msra.mxu0 0.0
        %5174 = vmatprep.subr.mxu0 0.0
        %5175 = vmatpush1.xpose.msra.mxu0 0.0
        %5176 = vmatprep.subr.mxu0 0.0
        %5177 = vmatpush1.xpose.msra.mxu0 0.0
        %5178 = vmatprep.subr.mxu0 0.0
        %5179 = vmatpush1.xpose.msra.mxu0 0.0
        %5180 = vmatprep.subr.mxu0 0.0
        %5181 = vmatpush1.xpose.msra.mxu0 0.0
        %5182 = vmatprep.subr.mxu0 0.0
        %5183 = vmatpush1.xpose.msra.mxu0 0.0
        %5184 = vmatprep.subr.mxu0 0.0
        %5185 = vmatpush1.xpose.msra.mxu0 0.0
        %5186 = vmatprep.subr.mxu0 0.0
        %5187 = vmatpush1.xpose.msra.mxu0 0.0
        %5188 = vmatprep.subr.mxu0 0.0
        %5189 = vmatpush1.xpose.msra.mxu0 0.0
        %5190 = vmatprep.subr.mxu0 0.0
        %5191 = vmatpush1.xpose.msra.mxu0 0.0
        %5192 = vmatprep.subr.mxu0 0.0
        %5193 = vmatpush1.xpose.msra.mxu0 0.0
        %5194 = vmatprep.subr.mxu0 0.0
        %5195 = vmatpush1.xpose.msra.mxu0 0.0
        %5196 = vmatprep.subr.mxu0 0.0
        %5197 = vmatpush1.xpose.msra.mxu0 0.0
        %5198 = vmatprep.subr.mxu0 0.0
        %5199 = vmatpush1.xpose.msra.mxu0 0.0
        %5200 = vmatprep.subr.mxu0 0.0
        %5201 = vmatpush1.xpose.msra.mxu0 0.0
        %5202 = vmatprep.subr.mxu0 0.0
        %5203 = vmatpush1.xpose.msra.mxu0 %v5170
        %5204 = vmatprep.subr.mxu0 0.0
        %5205 = vmatpush2.xpose.msra.mxu0 0.0
        %5206 = vmatprep.subr.mxu0 0.0
        %5207 = vmatpush2.xpose.msra.mxu0 0.0
        %5208 = vmatprep.subr.mxu0 0.0
        %5209 = vmatpush2.xpose.msra.mxu0 0.0
        %5210 = vmatprep.subr.mxu0 0.0
        %5211 = vmatpush2.xpose.msra.mxu0 0.0
        %5212 = vmatprep.subr.mxu0 0.0
        %5213 = vmatpush2.xpose.msra.mxu0 0.0
        %5214 = vmatprep.subr.mxu0 0.0
        %5215 = vmatpush2.xpose.msra.mxu0 0.0
        %5216 = vmatprep.subr.mxu0 0.0
        %5217 = vmatpush2.xpose.msra.mxu0 0.0
        %5218 = vmatprep.subr.mxu0 0.0
        %5219 = vmatpush2.xpose.msra.mxu0 0.0
        %5220 = vmatprep.subr.mxu0 0.0
        %5221 = vmatpush2.xpose.msra.mxu0 0.0
        %5222 = vmatprep.subr.mxu0 0.0
        %5223 = vmatpush2.xpose.msra.mxu0 0.0
        %5224 = vmatprep.subr.mxu0 0.0
        %5225 = vmatpush2.xpose.msra.mxu0 0.0
        %5226 = vmatprep.subr.mxu0 0.0
        %5227 = vmatpush2.xpose.msra.mxu0 0.0
        %5228 = vmatprep.subr.mxu0 0.0
        %5229 = vmatpush2.xpose.msra.mxu0 0.0
        %5230 = vmatprep.subr.mxu0 0.0
        %5231 = vmatpush2.xpose.msra.mxu0 0.0
        %5232 = vmatprep.subr.mxu0 0.0
        %5233 = vmatpush2.xpose.msra.mxu0 0.0
        %5234 = vmatprep.subr.mxu0 0.0
        %5235 = vmatpush2.xpose.msra.mxu0 0.0
        %5236 = vmatprep.mubr.f32.mxu0 0.0
        %5237 = vmatmul.mubr.f32.gmra.mxu0 %v5168
        %v5238 = vpop.f32.mrf.mxu0
        %v5239 = vadd.f32 0.0, %v5238
        %v5240 = vpop.f32.mrf.mxu0
        %5241 = vdwg.mxu0
        %v5242 = vadd.f32 %v4707, %v946
        %v5243 = vadd.f32 %v4783, %v946
        %v5244 = vadd.f32 %v4859, %v946
        %v5245 = vadd.f32 %v4935, %v946
        %v5246 = vadd.f32 %v5011, %v946
        %v5247 = vadd.f32 %v5087, %v946
        %v5248 = vadd.f32 %v5163, %v946
        %v5249 = vadd.f32 %v5239, %v946
        %v5250 = vsel %vm1150, %v5242, -inf
        %5251 = vmax.xlane.f32.xlu0 %v5250
        %v5252 = vpop.xlane.xlu0 %5251
        %v5253 = vsel %vm1150, %v5243, -inf
        %5254 = vmax.xlane.f32.xlu0 %v5253
        %v5255 = vpop.xlane.xlu0 %5254
        %v5256 = vsel %vm1150, %v5244, -inf
        %5257 = vmax.xlane.f32.xlu0 %v5256
        %v5258 = vpop.xlane.xlu0 %5257
        %v5259 = vsel %vm1150, %v5245, -inf
        %5260 = vmax.xlane.f32.xlu0 %v5259
        %v5261 = vpop.xlane.xlu0 %5260
        %v5262 = vsel %vm1150, %v5246, -inf
        %5263 = vmax.xlane.f32.xlu0 %v5262
        %v5264 = vpop.xlane.xlu0 %5263
        %v5265 = vsel %vm1150, %v5247, -inf
        %5266 = vmax.xlane.f32.xlu0 %v5265
        %v5267 = vpop.xlane.xlu0 %5266
        %v5268 = vsel %vm1150, %v5248, -inf
        %5269 = vmax.xlane.f32.xlu0 %v5268
        %v5270 = vpop.xlane.xlu0 %5269
        %v5271 = vsel %vm1150, %v5249, -inf
        %5272 = vmax.xlane.f32.xlu0 %v5271
        %v5273 = vpop.xlane.xlu0 %5272
        %v5274 = vsub.f32 %v5242, %v5252
        %v5275 = vsub.f32 %v5243, %v5255
        %v5276 = vsub.f32 %v5244, %v5258
        %v5277 = vsub.f32 %v5245, %v5261
        %v5278 = vsub.f32 %v5246, %v5264
        %v5279 = vsub.f32 %v5247, %v5267
        %v5280 = vsub.f32 %v5248, %v5270
        %v5281 = vsub.f32 %v5249, %v5273
        %v5282 = vmul.f32 %v5274, 1.442695
        %v5283 = vpow.pop %v5282
        %v5284 = vmul.f32 %v5275, 1.442695
        %v5285 = vpow.pop %v5284
        %v5286 = vmul.f32 %v5276, 1.442695
        %v5287 = vpow.pop %v5286
        %v5288 = vmul.f32 %v5277, 1.442695
        %v5289 = vpow.pop %v5288
        %v5290 = vmul.f32 %v5278, 1.442695
        %v5291 = vpow.pop %v5290
        %v5292 = vmul.f32 %v5279, 1.442695
        %v5293 = vpow.pop %v5292
        %v5294 = vmul.f32 %v5280, 1.442695
        %v5295 = vpow.pop %v5294
        %v5296 = vmul.f32 %v5281, 1.442695
        %v5297 = vpow.pop %v5296
        %v5298 = vsel %vm1150, %v5283, 0.0
        %5299 = vadd.xlane.f32.xlu0 %v5298
        %v5300 = vpop.xlane.xlu0 %5299
        %v5301 = vsel %vm1150, %v5285, 0.0
        %5302 = vadd.xlane.f32.xlu0 %v5301
        %v5303 = vpop.xlane.xlu0 %5302
        %v5304 = vsel %vm1150, %v5287, 0.0
        %5305 = vadd.xlane.f32.xlu0 %v5304
        %v5306 = vpop.xlane.xlu0 %5305
        %v5307 = vsel %vm1150, %v5289, 0.0
        %5308 = vadd.xlane.f32.xlu0 %v5307
        %v5309 = vpop.xlane.xlu0 %5308
        %v5310 = vsel %vm1150, %v5291, 0.0
        %5311 = vadd.xlane.f32.xlu0 %v5310
        %v5312 = vpop.xlane.xlu0 %5311
        %v5313 = vsel %vm1150, %v5293, 0.0
        %5314 = vadd.xlane.f32.xlu0 %v5313
        %v5315 = vpop.xlane.xlu0 %5314
        %v5316 = vsel %vm1150, %v5295, 0.0
        %5317 = vadd.xlane.f32.xlu0 %v5316
        %v5318 = vpop.xlane.xlu0 %5317
        %v5319 = vsel %vm1150, %v5297, 0.0
        %5320 = vadd.xlane.f32.xlu0 %v5319
        %v5321 = vpop.xlane.xlu0 %5320
        %v5322 = vrcp.pop %v5300
        %v5323 = vrcp.pop %v5303
        %v5324 = vrcp.pop %v5306
        %v5325 = vrcp.pop %v5309
        %v5326 = vrcp.pop %v5312
        %v5327 = vrcp.pop %v5315
        %v5328 = vrcp.pop %v5318
        %v5329 = vrcp.pop %v5321
        %v5330 = vmul.f32 %v5283, %v5322
        %v5331 = vmul.f32 %v5285, %v5323
        %v5332 = vmul.f32 %v5287, %v5324
        %v5333 = vmul.f32 %v5289, %v5325
        %v5334 = vmul.f32 %v5291, %v5326
        %v5335 = vmul.f32 %v5293, %v5327
        %v5336 = vmul.f32 %v5295, %v5328
        %v5337 = vmul.f32 %v5297, %v5329
        %v5339 = vsel %vm1150, %v5330, 0
        %5341 = vmatprep.subr.mxu0 0.0
        %5342 = vmatpush1.msra.mxu0 0.0
        %5343 = vmatprep.subr.mxu0 0.0
        %5344 = vmatpush1.msra.mxu0 0.0
        %5345 = vmatprep.subr.mxu0 0.0
        %5346 = vmatpush1.msra.mxu0 0.0
        %5347 = vmatprep.subr.mxu0 0.0
        %5348 = vmatpush1.msra.mxu0 0.0
        %5349 = vmatprep.subr.mxu0 0.0
        %5350 = vmatpush1.msra.mxu0 0.0
        %5351 = vmatprep.subr.mxu0 0.0
        %5352 = vmatpush1.msra.mxu0 0.0
        %5353 = vmatprep.subr.mxu0 0.0
        %5354 = vmatpush1.msra.mxu0 0.0
        %5355 = vmatprep.subr.mxu0 0.0
        %5356 = vmatpush1.msra.mxu0 0.0
        %5357 = vmatprep.subr.mxu0 0.0
        %5358 = vmatpush1.msra.mxu0 0.0
        %5359 = vmatprep.subr.mxu0 0.0
        %5360 = vmatpush1.msra.mxu0 0.0
        %5361 = vmatprep.subr.mxu0 0.0
        %5362 = vmatpush1.msra.mxu0 0.0
        %5363 = vmatprep.subr.mxu0 0.0
        %5364 = vmatpush1.msra.mxu0 0.0
        %5365 = vmatprep.subr.mxu0 0.0
        %5366 = vmatpush1.msra.mxu0 0.0
        %5367 = vmatprep.subr.mxu0 0.0
        %5368 = vmatpush1.msra.mxu0 0.0
        %5369 = vmatprep.subr.mxu0 0.0
        %5370 = vmatpush1.msra.mxu0 0.0
        %5371 = vmatprep.subr.mxu0 0.0
        %5372 = vmatpush1.msra.mxu0 %v4566
        %5373 = vmatprep.subr.mxu0 0.0
        %5374 = vmatpush2.msra.mxu0 0.0
        %5375 = vmatprep.subr.mxu0 0.0
        %5376 = vmatpush2.msra.mxu0 0.0
        %5377 = vmatprep.subr.mxu0 0.0
        %5378 = vmatpush2.msra.mxu0 0.0
        %5379 = vmatprep.subr.mxu0 0.0
        %5380 = vmatpush2.msra.mxu0 0.0
        %5381 = vmatprep.subr.mxu0 0.0
        %5382 = vmatpush2.msra.mxu0 0.0
        %5383 = vmatprep.subr.mxu0 0.0
        %5384 = vmatpush2.msra.mxu0 0.0
        %5385 = vmatprep.subr.mxu0 0.0
        %5386 = vmatpush2.msra.mxu0 0.0
        %5387 = vmatprep.subr.mxu0 0.0
        %5388 = vmatpush2.msra.mxu0 0.0
        %5389 = vmatprep.subr.mxu0 0.0
        %5390 = vmatpush2.msra.mxu0 0.0
        %5391 = vmatprep.subr.mxu0 0.0
        %5392 = vmatpush2.msra.mxu0 0.0
        %5393 = vmatprep.subr.mxu0 0.0
        %5394 = vmatpush2.msra.mxu0 0.0
        %5395 = vmatprep.subr.mxu0 0.0
        %5396 = vmatpush2.msra.mxu0 0.0
        %5397 = vmatprep.subr.mxu0 0.0
        %5398 = vmatpush2.msra.mxu0 0.0
        %5399 = vmatprep.subr.mxu0 0.0
        %5400 = vmatpush2.msra.mxu0 0.0
        %5401 = vmatprep.subr.mxu0 0.0
        %5402 = vmatpush2.msra.mxu0 0.0
        %5403 = vmatprep.subr.mxu0 0.0
        %5404 = vmatpush2.msra.mxu0 0.0
        %5405 = vmatprep.mubr.f32.mxu0 0.0
        %5406 = vmatmul.mubr.f32.gmra.mxu0 %v5339
        %v5407 = vpop.f32.mrf.mxu0
        %v5408 = vadd.f32 0.0, %v5407
        %v5409 = vpop.f32.mrf.mxu0
        %5410 = vdwg.mxu0
        %v5412 = vsel %vm1150, %v5331, 0
        %5414 = vmatprep.subr.mxu0 0.0
        %5415 = vmatpush1.msra.mxu0 0.0
        %5416 = vmatprep.subr.mxu0 0.0
        %5417 = vmatpush1.msra.mxu0 0.0
        %5418 = vmatprep.subr.mxu0 0.0
        %5419 = vmatpush1.msra.mxu0 0.0
        %5420 = vmatprep.subr.mxu0 0.0
        %5421 = vmatpush1.msra.mxu0 0.0
        %5422 = vmatprep.subr.mxu0 0.0
        %5423 = vmatpush1.msra.mxu0 0.0
        %5424 = vmatprep.subr.mxu0 0.0
        %5425 = vmatpush1.msra.mxu0 0.0
        %5426 = vmatprep.subr.mxu0 0.0
        %5427 = vmatpush1.msra.mxu0 0.0
        %5428 = vmatprep.subr.mxu0 0.0
        %5429 = vmatpush1.msra.mxu0 0.0
        %5430 = vmatprep.subr.mxu0 0.0
        %5431 = vmatpush1.msra.mxu0 0.0
        %5432 = vmatprep.subr.mxu0 0.0
        %5433 = vmatpush1.msra.mxu0 0.0
        %5434 = vmatprep.subr.mxu0 0.0
        %5435 = vmatpush1.msra.mxu0 0.0
        %5436 = vmatprep.subr.mxu0 0.0
        %5437 = vmatpush1.msra.mxu0 0.0
        %5438 = vmatprep.subr.mxu0 0.0
        %5439 = vmatpush1.msra.mxu0 0.0
        %5440 = vmatprep.subr.mxu0 0.0
        %5441 = vmatpush1.msra.mxu0 0.0
        %5442 = vmatprep.subr.mxu0 0.0
        %5443 = vmatpush1.msra.mxu0 0.0
        %5444 = vmatprep.subr.mxu0 0.0
        %5445 = vmatpush1.msra.mxu0 %v4614
        %5446 = vmatprep.subr.mxu0 0.0
        %5447 = vmatpush2.msra.mxu0 0.0
        %5448 = vmatprep.subr.mxu0 0.0
        %5449 = vmatpush2.msra.mxu0 0.0
        %5450 = vmatprep.subr.mxu0 0.0
        %5451 = vmatpush2.msra.mxu0 0.0
        %5452 = vmatprep.subr.mxu0 0.0
        %5453 = vmatpush2.msra.mxu0 0.0
        %5454 = vmatprep.subr.mxu0 0.0
        %5455 = vmatpush2.msra.mxu0 0.0
        %5456 = vmatprep.subr.mxu0 0.0
        %5457 = vmatpush2.msra.mxu0 0.0
        %5458 = vmatprep.subr.mxu0 0.0
        %5459 = vmatpush2.msra.mxu0 0.0
        %5460 = vmatprep.subr.mxu0 0.0
        %5461 = vmatpush2.msra.mxu0 0.0
        %5462 = vmatprep.subr.mxu0 0.0
        %5463 = vmatpush2.msra.mxu0 0.0
        %5464 = vmatprep.subr.mxu0 0.0
        %5465 = vmatpush2.msra.mxu0 0.0
        %5466 = vmatprep.subr.mxu0 0.0
        %5467 = vmatpush2.msra.mxu0 0.0
        %5468 = vmatprep.subr.mxu0 0.0
        %5469 = vmatpush2.msra.mxu0 0.0
        %5470 = vmatprep.subr.mxu0 0.0
        %5471 = vmatpush2.msra.mxu0 0.0
        %5472 = vmatprep.subr.mxu0 0.0
        %5473 = vmatpush2.msra.mxu0 0.0
        %5474 = vmatprep.subr.mxu0 0.0
        %5475 = vmatpush2.msra.mxu0 0.0
        %5476 = vmatprep.subr.mxu0 0.0
        %5477 = vmatpush2.msra.mxu0 0.0
        %5478 = vmatprep.mubr.f32.mxu0 0.0
        %5479 = vmatmul.mubr.f32.gmra.mxu0 %v5412
        %v5480 = vpop.f32.mrf.mxu0
        %v5481 = vadd.f32 0.0, %v5480
        %v5482 = vpop.f32.mrf.mxu0
        %5483 = vdwg.mxu0
        %v5485 = vsel %vm1150, %v5332, 0
        %5487 = vmatprep.subr.mxu0 0.0
        %5488 = vmatpush1.msra.mxu0 0.0
        %5489 = vmatprep.subr.mxu0 0.0
        %5490 = vmatpush1.msra.mxu0 0.0
        %5491 = vmatprep.subr.mxu0 0.0
        %5492 = vmatpush1.msra.mxu0 0.0
        %5493 = vmatprep.subr.mxu0 0.0
        %5494 = vmatpush1.msra.mxu0 0.0
        %5495 = vmatprep.subr.mxu0 0.0
        %5496 = vmatpush1.msra.mxu0 0.0
        %5497 = vmatprep.subr.mxu0 0.0
        %5498 = vmatpush1.msra.mxu0 0.0
        %5499 = vmatprep.subr.mxu0 0.0
        %5500 = vmatpush1.msra.mxu0 0.0
        %5501 = vmatprep.subr.mxu0 0.0
        %5502 = vmatpush1.msra.mxu0 0.0
        %5503 = vmatprep.subr.mxu0 0.0
        %5504 = vmatpush1.msra.mxu0 0.0
        %5505 = vmatprep.subr.mxu0 0.0
        %5506 = vmatpush1.msra.mxu0 0.0
        %5507 = vmatprep.subr.mxu0 0.0
        %5508 = vmatpush1.msra.mxu0 0.0
        %5509 = vmatprep.subr.mxu0 0.0
        %5510 = vmatpush1.msra.mxu0 0.0
        %5511 = vmatprep.subr.mxu0 0.0
        %5512 = vmatpush1.msra.mxu0 0.0
        %5513 = vmatprep.subr.mxu0 0.0
        %5514 = vmatpush1.msra.mxu0 0.0
        %5515 = vmatprep.subr.mxu0 0.0
        %5516 = vmatpush1.msra.mxu0 0.0
        %5517 = vmatprep.subr.mxu0 0.0
        %5518 = vmatpush1.msra.mxu0 %v4617
        %5519 = vmatprep.subr.mxu0 0.0
        %5520 = vmatpush2.msra.mxu0 0.0
        %5521 = vmatprep.subr.mxu0 0.0
        %5522 = vmatpush2.msra.mxu0 0.0
        %5523 = vmatprep.subr.mxu0 0.0
        %5524 = vmatpush2.msra.mxu0 0.0
        %5525 = vmatprep.subr.mxu0 0.0
        %5526 = vmatpush2.msra.mxu0 0.0
        %5527 = vmatprep.subr.mxu0 0.0
        %5528 = vmatpush2.msra.mxu0 0.0
        %5529 = vmatprep.subr.mxu0 0.0
        %5530 = vmatpush2.msra.mxu0 0.0
        %5531 = vmatprep.subr.mxu0 0.0
        %5532 = vmatpush2.msra.mxu0 0.0
        %5533 = vmatprep.subr.mxu0 0.0
        %5534 = vmatpush2.msra.mxu0 0.0
        %5535 = vmatprep.subr.mxu0 0.0
        %5536 = vmatpush2.msra.mxu0 0.0
        %5537 = vmatprep.subr.mxu0 0.0
        %5538 = vmatpush2.msra.mxu0 0.0
        %5539 = vmatprep.subr.mxu0 0.0
        %5540 = vmatpush2.msra.mxu0 0.0
        %5541 = vmatprep.subr.mxu0 0.0
        %5542 = vmatpush2.msra.mxu0 0.0
        %5543 = vmatprep.subr.mxu0 0.0
        %5544 = vmatpush2.msra.mxu0 0.0
        %5545 = vmatprep.subr.mxu0 0.0
        %5546 = vmatpush2.msra.mxu0 0.0
        %5547 = vmatprep.subr.mxu0 0.0
        %5548 = vmatpush2.msra.mxu0 0.0
        %5549 = vmatprep.subr.mxu0 0.0
        %5550 = vmatpush2.msra.mxu0 0.0
        %5551 = vmatprep.mubr.f32.mxu0 0.0
        %5552 = vmatmul.mubr.f32.gmra.mxu0 %v5485
        %v5553 = vpop.f32.mrf.mxu0
        %v5554 = vadd.f32 0.0, %v5553
        %v5555 = vpop.f32.mrf.mxu0
        %5556 = vdwg.mxu0
        %v5558 = vsel %vm1150, %v5333, 0
        %5560 = vmatprep.subr.mxu0 0.0
        %5561 = vmatpush1.msra.mxu0 0.0
        %5562 = vmatprep.subr.mxu0 0.0
        %5563 = vmatpush1.msra.mxu0 0.0
        %5564 = vmatprep.subr.mxu0 0.0
        %5565 = vmatpush1.msra.mxu0 0.0
        %5566 = vmatprep.subr.mxu0 0.0
        %5567 = vmatpush1.msra.mxu0 0.0
        %5568 = vmatprep.subr.mxu0 0.0
        %5569 = vmatpush1.msra.mxu0 0.0
        %5570 = vmatprep.subr.mxu0 0.0
        %5571 = vmatpush1.msra.mxu0 0.0
        %5572 = vmatprep.subr.mxu0 0.0
        %5573 = vmatpush1.msra.mxu0 0.0
        %5574 = vmatprep.subr.mxu0 0.0
        %5575 = vmatpush1.msra.mxu0 0.0
        %5576 = vmatprep.subr.mxu0 0.0
        %5577 = vmatpush1.msra.mxu0 0.0
        %5578 = vmatprep.subr.mxu0 0.0
        %5579 = vmatpush1.msra.mxu0 0.0
        %5580 = vmatprep.subr.mxu0 0.0
        %5581 = vmatpush1.msra.mxu0 0.0
        %5582 = vmatprep.subr.mxu0 0.0
        %5583 = vmatpush1.msra.mxu0 0.0
        %5584 = vmatprep.subr.mxu0 0.0
        %5585 = vmatpush1.msra.mxu0 0.0
        %5586 = vmatprep.subr.mxu0 0.0
        %5587 = vmatpush1.msra.mxu0 0.0
        %5588 = vmatprep.subr.mxu0 0.0
        %5589 = vmatpush1.msra.mxu0 0.0
        %5590 = vmatprep.subr.mxu0 0.0
        %5591 = vmatpush1.msra.mxu0 %v4620
        %5592 = vmatprep.subr.mxu0 0.0
        %5593 = vmatpush2.msra.mxu0 0.0
        %5594 = vmatprep.subr.mxu0 0.0
        %5595 = vmatpush2.msra.mxu0 0.0
        %5596 = vmatprep.subr.mxu0 0.0
        %5597 = vmatpush2.msra.mxu0 0.0
        %5598 = vmatprep.subr.mxu0 0.0
        %5599 = vmatpush2.msra.mxu0 0.0
        %5600 = vmatprep.subr.mxu0 0.0
        %5601 = vmatpush2.msra.mxu0 0.0
        %5602 = vmatprep.subr.mxu0 0.0
        %5603 = vmatpush2.msra.mxu0 0.0
        %5604 = vmatprep.subr.mxu0 0.0
        %5605 = vmatpush2.msra.mxu0 0.0
        %5606 = vmatprep.subr.mxu0 0.0
        %5607 = vmatpush2.msra.mxu0 0.0
        %5608 = vmatprep.subr.mxu0 0.0
        %5609 = vmatpush2.msra.mxu0 0.0
        %5610 = vmatprep.subr.mxu0 0.0
        %5611 = vmatpush2.msra.mxu0 0.0
        %5612 = vmatprep.subr.mxu0 0.0
        %5613 = vmatpush2.msra.mxu0 0.0
        %5614 = vmatprep.subr.mxu0 0.0
        %5615 = vmatpush2.msra.mxu0 0.0
        %5616 = vmatprep.subr.mxu0 0.0
        %5617 = vmatpush2.msra.mxu0 0.0
        %5618 = vmatprep.subr.mxu0 0.0
        %5619 = vmatpush2.msra.mxu0 0.0
        %5620 = vmatprep.subr.mxu0 0.0
        %5621 = vmatpush2.msra.mxu0 0.0
        %5622 = vmatprep.subr.mxu0 0.0
        %5623 = vmatpush2.msra.mxu0 0.0
        %5624 = vmatprep.mubr.f32.mxu0 0.0
        %5625 = vmatmul.mubr.f32.gmra.mxu0 %v5558
        %v5626 = vpop.f32.mrf.mxu0
        %v5627 = vadd.f32 0.0, %v5626
        %v5628 = vpop.f32.mrf.mxu0
        %5629 = vdwg.mxu0
        %v5631 = vsel %vm1150, %v5334, 0
        %5633 = vmatprep.subr.mxu0 0.0
        %5634 = vmatpush1.msra.mxu0 0.0
        %5635 = vmatprep.subr.mxu0 0.0
        %5636 = vmatpush1.msra.mxu0 0.0
        %5637 = vmatprep.subr.mxu0 0.0
        %5638 = vmatpush1.msra.mxu0 0.0
        %5639 = vmatprep.subr.mxu0 0.0
        %5640 = vmatpush1.msra.mxu0 0.0
        %5641 = vmatprep.subr.mxu0 0.0
        %5642 = vmatpush1.msra.mxu0 0.0
        %5643 = vmatprep.subr.mxu0 0.0
        %5644 = vmatpush1.msra.mxu0 0.0
        %5645 = vmatprep.subr.mxu0 0.0
        %5646 = vmatpush1.msra.mxu0 0.0
        %5647 = vmatprep.subr.mxu0 0.0
        %5648 = vmatpush1.msra.mxu0 0.0
        %5649 = vmatprep.subr.mxu0 0.0
        %5650 = vmatpush1.msra.mxu0 0.0
        %5651 = vmatprep.subr.mxu0 0.0
        %5652 = vmatpush1.msra.mxu0 0.0
        %5653 = vmatprep.subr.mxu0 0.0
        %5654 = vmatpush1.msra.mxu0 0.0
        %5655 = vmatprep.subr.mxu0 0.0
        %5656 = vmatpush1.msra.mxu0 0.0
        %5657 = vmatprep.subr.mxu0 0.0
        %5658 = vmatpush1.msra.mxu0 0.0
        %5659 = vmatprep.subr.mxu0 0.0
        %5660 = vmatpush1.msra.mxu0 0.0
        %5661 = vmatprep.subr.mxu0 0.0
        %5662 = vmatpush1.msra.mxu0 0.0
        %5663 = vmatprep.subr.mxu0 0.0
        %5664 = vmatpush1.msra.mxu0 %v4623
        %5665 = vmatprep.subr.mxu0 0.0
        %5666 = vmatpush2.msra.mxu0 0.0
        %5667 = vmatprep.subr.mxu0 0.0
        %5668 = vmatpush2.msra.mxu0 0.0
        %5669 = vmatprep.subr.mxu0 0.0
        %5670 = vmatpush2.msra.mxu0 0.0
        %5671 = vmatprep.subr.mxu0 0.0
        %5672 = vmatpush2.msra.mxu0 0.0
        %5673 = vmatprep.subr.mxu0 0.0
        %5674 = vmatpush2.msra.mxu0 0.0
        %5675 = vmatprep.subr.mxu0 0.0
        %5676 = vmatpush2.msra.mxu0 0.0
        %5677 = vmatprep.subr.mxu0 0.0
        %5678 = vmatpush2.msra.mxu0 0.0
        %5679 = vmatprep.subr.mxu0 0.0
        %5680 = vmatpush2.msra.mxu0 0.0
        %5681 = vmatprep.subr.mxu0 0.0
        %5682 = vmatpush2.msra.mxu0 0.0
        %5683 = vmatprep.subr.mxu0 0.0
        %5684 = vmatpush2.msra.mxu0 0.0
        %5685 = vmatprep.subr.mxu0 0.0
        %5686 = vmatpush2.msra.mxu0 0.0
        %5687 = vmatprep.subr.mxu0 0.0
        %5688 = vmatpush2.msra.mxu0 0.0
        %5689 = vmatprep.subr.mxu0 0.0
        %5690 = vmatpush2.msra.mxu0 0.0
        %5691 = vmatprep.subr.mxu0 0.0
        %5692 = vmatpush2.msra.mxu0 0.0
        %5693 = vmatprep.subr.mxu0 0.0
        %5694 = vmatpush2.msra.mxu0 0.0
        %5695 = vmatprep.subr.mxu0 0.0
        %5696 = vmatpush2.msra.mxu0 0.0
        %5697 = vmatprep.mubr.f32.mxu0 0.0
        %5698 = vmatmul.mubr.f32.gmra.mxu0 %v5631
        %v5699 = vpop.f32.mrf.mxu0
        %v5700 = vadd.f32 0.0, %v5699
        %v5701 = vpop.f32.mrf.mxu0
        %5702 = vdwg.mxu0
        %v5704 = vsel %vm1150, %v5335, 0
        %5706 = vmatprep.subr.mxu0 0.0
        %5707 = vmatpush1.msra.mxu0 0.0
        %5708 = vmatprep.subr.mxu0 0.0
        %5709 = vmatpush1.msra.mxu0 0.0
        %5710 = vmatprep.subr.mxu0 0.0
        %5711 = vmatpush1.msra.mxu0 0.0
        %5712 = vmatprep.subr.mxu0 0.0
        %5713 = vmatpush1.msra.mxu0 0.0
        %5714 = vmatprep.subr.mxu0 0.0
        %5715 = vmatpush1.msra.mxu0 0.0
        %5716 = vmatprep.subr.mxu0 0.0
        %5717 = vmatpush1.msra.mxu0 0.0
        %5718 = vmatprep.subr.mxu0 0.0
        %5719 = vmatpush1.msra.mxu0 0.0
        %5720 = vmatprep.subr.mxu0 0.0
        %5721 = vmatpush1.msra.mxu0 0.0
        %5722 = vmatprep.subr.mxu0 0.0
        %5723 = vmatpush1.msra.mxu0 0.0
        %5724 = vmatprep.subr.mxu0 0.0
        %5725 = vmatpush1.msra.mxu0 0.0
        %5726 = vmatprep.subr.mxu0 0.0
        %5727 = vmatpush1.msra.mxu0 0.0
        %5728 = vmatprep.subr.mxu0 0.0
        %5729 = vmatpush1.msra.mxu0 0.0
        %5730 = vmatprep.subr.mxu0 0.0
        %5731 = vmatpush1.msra.mxu0 0.0
        %5732 = vmatprep.subr.mxu0 0.0
        %5733 = vmatpush1.msra.mxu0 0.0
        %5734 = vmatprep.subr.mxu0 0.0
        %5735 = vmatpush1.msra.mxu0 0.0
        %5736 = vmatprep.subr.mxu0 0.0
        %5737 = vmatpush1.msra.mxu0 %v4626
        %5738 = vmatprep.subr.mxu0 0.0
        %5739 = vmatpush2.msra.mxu0 0.0
        %5740 = vmatprep.subr.mxu0 0.0
        %5741 = vmatpush2.msra.mxu0 0.0
        %5742 = vmatprep.subr.mxu0 0.0
        %5743 = vmatpush2.msra.mxu0 0.0
        %5744 = vmatprep.subr.mxu0 0.0
        %5745 = vmatpush2.msra.mxu0 0.0
        %5746 = vmatprep.subr.mxu0 0.0
        %5747 = vmatpush2.msra.mxu0 0.0
        %5748 = vmatprep.subr.mxu0 0.0
        %5749 = vmatpush2.msra.mxu0 0.0
        %5750 = vmatprep.subr.mxu0 0.0
        %5751 = vmatpush2.msra.mxu0 0.0
        %5752 = vmatprep.subr.mxu0 0.0
        %5753 = vmatpush2.msra.mxu0 0.0
        %5754 = vmatprep.subr.mxu0 0.0
        %5755 = vmatpush2.msra.mxu0 0.0
        %5756 = vmatprep.subr.mxu0 0.0
        %5757 = vmatpush2.msra.mxu0 0.0
        %5758 = vmatprep.subr.mxu0 0.0
        %5759 = vmatpush2.msra.mxu0 0.0
        %5760 = vmatprep.subr.mxu0 0.0
        %5761 = vmatpush2.msra.mxu0 0.0
        %5762 = vmatprep.subr.mxu0 0.0
        %5763 = vmatpush2.msra.mxu0 0.0
        %5764 = vmatprep.subr.mxu0 0.0
        %5765 = vmatpush2.msra.mxu0 0.0
        %5766 = vmatprep.subr.mxu0 0.0
        %5767 = vmatpush2.msra.mxu0 0.0
        %5768 = vmatprep.subr.mxu0 0.0
        %5769 = vmatpush2.msra.mxu0 0.0
        %5770 = vmatprep.mubr.f32.mxu0 0.0
        %5771 = vmatmul.mubr.f32.gmra.mxu0 %v5704
        %v5772 = vpop.f32.mrf.mxu0
        %v5773 = vadd.f32 0.0, %v5772
        %v5774 = vpop.f32.mrf.mxu0
        %5775 = vdwg.mxu0
        %v5777 = vsel %vm1150, %v5336, 0
        %5779 = vmatprep.subr.mxu0 0.0
        %5780 = vmatpush1.msra.mxu0 0.0
        %5781 = vmatprep.subr.mxu0 0.0
        %5782 = vmatpush1.msra.mxu0 0.0
        %5783 = vmatprep.subr.mxu0 0.0
        %5784 = vmatpush1.msra.mxu0 0.0
        %5785 = vmatprep.subr.mxu0 0.0
        %5786 = vmatpush1.msra.mxu0 0.0
        %5787 = vmatprep.subr.mxu0 0.0
        %5788 = vmatpush1.msra.mxu0 0.0
        %5789 = vmatprep.subr.mxu0 0.0
        %5790 = vmatpush1.msra.mxu0 0.0
        %5791 = vmatprep.subr.mxu0 0.0
        %5792 = vmatpush1.msra.mxu0 0.0
        %5793 = vmatprep.subr.mxu0 0.0
        %5794 = vmatpush1.msra.mxu0 0.0
        %5795 = vmatprep.subr.mxu0 0.0
        %5796 = vmatpush1.msra.mxu0 0.0
        %5797 = vmatprep.subr.mxu0 0.0
        %5798 = vmatpush1.msra.mxu0 0.0
        %5799 = vmatprep.subr.mxu0 0.0
        %5800 = vmatpush1.msra.mxu0 0.0
        %5801 = vmatprep.subr.mxu0 0.0
        %5802 = vmatpush1.msra.mxu0 0.0
        %5803 = vmatprep.subr.mxu0 0.0
        %5804 = vmatpush1.msra.mxu0 0.0
        %5805 = vmatprep.subr.mxu0 0.0
        %5806 = vmatpush1.msra.mxu0 0.0
        %5807 = vmatprep.subr.mxu0 0.0
        %5808 = vmatpush1.msra.mxu0 0.0
        %5809 = vmatprep.subr.mxu0 0.0
        %5810 = vmatpush1.msra.mxu0 %v4629
        %5811 = vmatprep.subr.mxu0 0.0
        %5812 = vmatpush2.msra.mxu0 0.0
        %5813 = vmatprep.subr.mxu0 0.0
        %5814 = vmatpush2.msra.mxu0 0.0
        %5815 = vmatprep.subr.mxu0 0.0
        %5816 = vmatpush2.msra.mxu0 0.0
        %5817 = vmatprep.subr.mxu0 0.0
        %5818 = vmatpush2.msra.mxu0 0.0
        %5819 = vmatprep.subr.mxu0 0.0
        %5820 = vmatpush2.msra.mxu0 0.0
        %5821 = vmatprep.subr.mxu0 0.0
        %5822 = vmatpush2.msra.mxu0 0.0
        %5823 = vmatprep.subr.mxu0 0.0
        %5824 = vmatpush2.msra.mxu0 0.0
        %5825 = vmatprep.subr.mxu0 0.0
        %5826 = vmatpush2.msra.mxu0 0.0
        %5827 = vmatprep.subr.mxu0 0.0
        %5828 = vmatpush2.msra.mxu0 0.0
        %5829 = vmatprep.subr.mxu0 0.0
        %5830 = vmatpush2.msra.mxu0 0.0
        %5831 = vmatprep.subr.mxu0 0.0
        %5832 = vmatpush2.msra.mxu0 0.0
        %5833 = vmatprep.subr.mxu0 0.0
        %5834 = vmatpush2.msra.mxu0 0.0
        %5835 = vmatprep.subr.mxu0 0.0
        %5836 = vmatpush2.msra.mxu0 0.0
        %5837 = vmatprep.subr.mxu0 0.0
        %5838 = vmatpush2.msra.mxu0 0.0
        %5839 = vmatprep.subr.mxu0 0.0
        %5840 = vmatpush2.msra.mxu0 0.0
        %5841 = vmatprep.subr.mxu0 0.0
        %5842 = vmatpush2.msra.mxu0 0.0
        %5843 = vmatprep.mubr.f32.mxu0 0.0
        %5844 = vmatmul.mubr.f32.gmra.mxu0 %v5777
        %v5845 = vpop.f32.mrf.mxu0
        %v5846 = vadd.f32 0.0, %v5845
        %v5847 = vpop.f32.mrf.mxu0
        %5848 = vdwg.mxu0
        %v5850 = vsel %vm1150, %v5337, 0
        %5852 = vmatprep.subr.mxu0 0.0
        %5853 = vmatpush1.msra.mxu0 0.0
        %5854 = vmatprep.subr.mxu0 0.0
        %5855 = vmatpush1.msra.mxu0 0.0
        %5856 = vmatprep.subr.mxu0 0.0
        %5857 = vmatpush1.msra.mxu0 0.0
        %5858 = vmatprep.subr.mxu0 0.0
        %5859 = vmatpush1.msra.mxu0 0.0
        %5860 = vmatprep.subr.mxu0 0.0
        %5861 = vmatpush1.msra.mxu0 0.0
        %5862 = vmatprep.subr.mxu0 0.0
        %5863 = vmatpush1.msra.mxu0 0.0
        %5864 = vmatprep.subr.mxu0 0.0
        %5865 = vmatpush1.msra.mxu0 0.0
        %5866 = vmatprep.subr.mxu0 0.0
        %5867 = vmatpush1.msra.mxu0 0.0
        %5868 = vmatprep.subr.mxu0 0.0
        %5869 = vmatpush1.msra.mxu0 0.0
        %5870 = vmatprep.subr.mxu0 0.0
        %5871 = vmatpush1.msra.mxu0 0.0
        %5872 = vmatprep.subr.mxu0 0.0
        %5873 = vmatpush1.msra.mxu0 0.0
        %5874 = vmatprep.subr.mxu0 0.0
        %5875 = vmatpush1.msra.mxu0 0.0
        %5876 = vmatprep.subr.mxu0 0.0
        %5877 = vmatpush1.msra.mxu0 0.0
        %5878 = vmatprep.subr.mxu0 0.0
        %5879 = vmatpush1.msra.mxu0 0.0
        %5880 = vmatprep.subr.mxu0 0.0
        %5881 = vmatpush1.msra.mxu0 0.0
        %5882 = vmatprep.subr.mxu0 0.0
        %5883 = vmatpush1.msra.mxu0 %v4632
        %5884 = vmatprep.subr.mxu0 0.0
        %5885 = vmatpush2.msra.mxu0 0.0
        %5886 = vmatprep.subr.mxu0 0.0
        %5887 = vmatpush2.msra.mxu0 0.0
        %5888 = vmatprep.subr.mxu0 0.0
        %5889 = vmatpush2.msra.mxu0 0.0
        %5890 = vmatprep.subr.mxu0 0.0
        %5891 = vmatpush2.msra.mxu0 0.0
        %5892 = vmatprep.subr.mxu0 0.0
        %5893 = vmatpush2.msra.mxu0 0.0
        %5894 = vmatprep.subr.mxu0 0.0
        %5895 = vmatpush2.msra.mxu0 0.0
        %5896 = vmatprep.subr.mxu0 0.0
        %5897 = vmatpush2.msra.mxu0 0.0
        %5898 = vmatprep.subr.mxu0 0.0
        %5899 = vmatpush2.msra.mxu0 0.0
        %5900 = vmatprep.subr.mxu0 0.0
        %5901 = vmatpush2.msra.mxu0 0.0
        %5902 = vmatprep.subr.mxu0 0.0
        %5903 = vmatpush2.msra.mxu0 0.0
        %5904 = vmatprep.subr.mxu0 0.0
        %5905 = vmatpush2.msra.mxu0 0.0
        %5906 = vmatprep.subr.mxu0 0.0
        %5907 = vmatpush2.msra.mxu0 0.0
        %5908 = vmatprep.subr.mxu0 0.0
        %5909 = vmatpush2.msra.mxu0 0.0
        %5910 = vmatprep.subr.mxu0 0.0
        %5911 = vmatpush2.msra.mxu0 0.0
        %5912 = vmatprep.subr.mxu0 0.0
        %5913 = vmatpush2.msra.mxu0 0.0
        %5914 = vmatprep.subr.mxu0 0.0
        %5915 = vmatpush2.msra.mxu0 0.0
        %5916 = vmatprep.mubr.f32.mxu0 0.0
        %5917 = vmatmul.mubr.f32.gmra.mxu0 %v5850
        %v5918 = vpop.f32.mrf.mxu0
        %v5919 = vadd.f32 0.0, %v5918
        %v5920 = vpop.f32.mrf.mxu0
        %5921 = vdwg.mxu0
        %5923 = vrot.lane.b32.xlu0 %v5481, 8
        %v5924 = vpop.permute.xlu0 %5923
        %5927 = vrot.lane.b32.xlu0 %v5554, 16
        %v5928 = vpop.permute.xlu0 %5927
        %5931 = vrot.lane.b32.xlu0 %v5627, 24
        %v5932 = vpop.permute.xlu0 %5931
        %5935 = vrot.lane.b32.xlu0 %v5700, 32
        %v5936 = vpop.permute.xlu0 %5935
        %5939 = vrot.lane.b32.xlu0 %v5773, 40
        %v5940 = vpop.permute.xlu0 %5939
        %5943 = vrot.lane.b32.xlu0 %v5846, 48
        %v5944 = vpop.permute.xlu0 %5943
        %5947 = vrot.lane.b32.xlu0 %v5919, 56
        %v5948 = vpop.permute.xlu0 %5947
        %v5950 = vsel %vm1150, %v5408, %v5924
        %v5951 = vsel %vm2466, %v5950, %v5928
        %v5952 = vsel %vm2468, %v5951, %v5932
        %v5953 = vsel %vm2470, %v5952, %v5936
        %v5954 = vsel %vm2472, %v5953, %v5940
        %v5955 = vsel %vm2474, %v5954, %v5944
        %v5956 = vsel %vm2476, %v5955, %v5948
        %v5957 = vpack.c.bf16 %v5956, %v5956
        %v5959 = vlaneseq
        %v5960 = vshrl.u32 %v5959, 7
        %v5961 = vsub.s32 0, %v5960
        %v5962 = vrot.slane %v4581, %v5961
        %v5972 = vunpack.c.l.b16 %v4572
        %v5973 = vunpack.c.l.b16 %v4573
        %v5974 = vunpack.c.l.b16 %v4574
        %v5975 = vunpack.c.l.b16 %v4575
        %v5976 = vunpack.c.l.b16 %v4576
        %v5977 = vunpack.c.l.b16 %v4577
        %v5978 = vunpack.c.l.b16 %v4578
        %v5979 = vunpack.c.l.b16 %v4579
        %v5980 = vpack.c.b16 %v5973, %v5972
        %v5981 = vpack.c.b16 %v5975, %v5974
        %v5982 = vpack.c.b16 %v5977, %v5976
        %v5983 = vpack.c.b16 %v5979, %v5978
        %v5989 = vsel %vm952, %v5957, 0
        %5991 = vmatprep.subr.bf16.mxu0 0
        %5992 = vmatpush1.bf16.msra.mxu0 0
        %5993 = vmatprep.subr.bf16.mxu0 0
        %5994 = vmatpush1.bf16.msra.mxu0 0
        %5995 = vmatprep.subr.bf16.mxu0 0
        %5996 = vmatpush1.bf16.msra.mxu0 0
        %5997 = vmatprep.subr.bf16.mxu0 0
        %5998 = vmatpush1.bf16.msra.mxu0 0
        %5999 = vmatprep.subr.bf16.mxu0 0
        %6000 = vmatpush1.bf16.msra.mxu0 %v5983
        %6001 = vmatprep.subr.bf16.mxu0 0
        %6002 = vmatpush1.bf16.msra.mxu0 %v5982
        %6003 = vmatprep.subr.bf16.mxu0 0
        %6004 = vmatpush1.bf16.msra.mxu0 %v5981
        %6005 = vmatprep.subr.bf16.mxu0 0
        %6006 = vmatpush1.bf16.msra.mxu0 %v5980
        %6007 = vmatprep.subr.bf16.mxu0 0
        %6008 = vmatpush2.bf16.msra.mxu0 0
        %6009 = vmatprep.subr.bf16.mxu0 0
        %6010 = vmatpush2.bf16.msra.mxu0 0
        %6011 = vmatprep.subr.bf16.mxu0 0
        %6012 = vmatpush2.bf16.msra.mxu0 0
        %6013 = vmatprep.subr.bf16.mxu0 0
        %6014 = vmatpush2.bf16.msra.mxu0 0
        %6015 = vmatprep.subr.bf16.mxu0 0
        %6016 = vmatpush2.bf16.msra.mxu0 0
        %6017 = vmatprep.subr.bf16.mxu0 0
        %6018 = vmatpush2.bf16.msra.mxu0 0
        %6019 = vmatprep.subr.bf16.mxu0 0
        %6020 = vmatpush2.bf16.msra.mxu0 0
        %6021 = vmatprep.subr.bf16.mxu0 0
        %6022 = vmatpush2.bf16.msra.mxu0 0
        %6023 = vmatprep.mubr.bf16.mxu0 0
        %6024 = vmatmul.mubr.bf16.gmra.mxu0 %v5989
        %v6025 = vpop.f32.mrf.mxu0
        %v6026 = vadd.f32 %v5962, %v6025
        %v6027 = vpop.f32.mrf.mxu0
        %v6028 = vpop.f32.mrf.mxu0
        %v6029 = vpop.f32.mrf.mxu0
        %6030 = vdwg.mxu0
        %v6031 = vadd.f32 %v6026, %v4431
        %s6032 = scalar_lea.vmem %s5, 4
        %v6033 = vld [vmem:[%s6032] sm:$0x1]
        %s6034 = scalar_lea.vmem %s6, 4
        %v6035 = vld [vmem:[%s6034] sm:$0x1]
        %v6036 = vsel %vm952, %v6031, 0.0
        %6037 = vadd.xlane.f32.xlu0 %v6036
        %v6038 = vpop.xlane.xlu0 %6037
        %v6039 = vmul.f32 %v6038, %v956
        %v6040 = vsub.f32 %v6031, %v6039
        %v6041 = vmul.f32 %v6040, %v6040
        %v6042 = vsel %vm952, %v6041, 0.0
        %6043 = vadd.xlane.f32.xlu0 %v6042
        %v6044 = vpop.xlane.xlu0 %6043
        %v6045 = vmul.f32 %v6044, %v956
        %v6046 = vadd.f32 %v6045, 1e-06
        %v6047 = vrsqrt.pop %v6046
        %v6048 = vmul.f32 %v6040, %v6047
        %v6050 = vlaneseq
        %v6051 = vshrl.u32 %v6050, 7
        %v6052 = vsub.s32 0, %v6051
        %v6053 = vrot.slane %v6033, %v6052
        %v6055 = vmul.f32 %v6048, %v6053
        %v6057 = vlaneseq
        %v6058 = vshrl.u32 %v6057, 7
        %v6059 = vsub.s32 0, %v6058
        %v6060 = vrot.slane %v6035, %v6059
        %v6062 = vadd.f32 %v6055, %v6060
        %v6063 = vpack.c.bf16 %v6062, %v6062
        %s6064 = scalar_lea.vmem [#allocation8], 32
        %v6065 = vld [vmem:[%s6064] sm:$0xf]
        %v6066 = vld [vmem:[%s6064 + $0x4] sm:$0xf]
        %v6067 = vld [vmem:[%s6064 + $0x8] sm:$0xf]
        %v6068 = vld [vmem:[%s6064 + $0xc] sm:$0xf]
        %v6069 = vld [vmem:[%s6064 + $0x10] sm:$0xf]
        %v6070 = vld [vmem:[%s6064 + $0x14] sm:$0xf]
        %v6071 = vld [vmem:[%s6064 + $0x18] sm:$0xf]
        %v6072 = vld [vmem:[%s6064 + $0x1c] sm:$0xf]
        %s6073 = scalar_lea.vmem [#allocation10], 1
        %v6074 = vld [vmem:[%s6073] sm:$0x1]
        %v6076 = vlaneseq
        %v6077 = vshrl.u32 %v6076, 7
        %v6078 = vsub.s32 0, %v6077
        %v6079 = vrot.slane %v6074, %v6078
        %v6089 = vunpack.c.l.b16 %v6065
        %v6090 = vunpack.c.l.b16 %v6066
        %v6091 = vunpack.c.l.b16 %v6067
        %v6092 = vunpack.c.l.b16 %v6068
        %v6093 = vunpack.c.l.b16 %v6069
        %v6094 = vunpack.c.l.b16 %v6070
        %v6095 = vunpack.c.l.b16 %v6071
        %v6096 = vunpack.c.l.b16 %v6072
        %v6097 = vpack.c.b16 %v6090, %v6089
        %v6098 = vpack.c.b16 %v6092, %v6091
        %v6099 = vpack.c.b16 %v6094, %v6093
        %v6100 = vpack.c.b16 %v6096, %v6095
        %v6106 = vsel %vm952, %v6063, 0
        %6108 = vmatprep.subr.bf16.mxu0 0
        %6109 = vmatpush1.bf16.msra.mxu0 0
        %6110 = vmatprep.subr.bf16.mxu0 0
        %6111 = vmatpush1.bf16.msra.mxu0 0
        %6112 = vmatprep.subr.bf16.mxu0 0
        %6113 = vmatpush1.bf16.msra.mxu0 0
        %6114 = vmatprep.subr.bf16.mxu0 0
        %6115 = vmatpush1.bf16.msra.mxu0 0
        %6116 = vmatprep.subr.bf16.mxu0 0
        %6117 = vmatpush1.bf16.msra.mxu0 %v6100
        %6118 = vmatprep.subr.bf16.mxu0 0
        %6119 = vmatpush1.bf16.msra.mxu0 %v6099
        %6120 = vmatprep.subr.bf16.mxu0 0
        %6121 = vmatpush1.bf16.msra.mxu0 %v6098
        %6122 = vmatprep.subr.bf16.mxu0 0
        %6123 = vmatpush1.bf16.msra.mxu0 %v6097
        %6124 = vmatprep.subr.bf16.mxu0 0
        %6125 = vmatpush2.bf16.msra.mxu0 0
        %6126 = vmatprep.subr.bf16.mxu0 0
        %6127 = vmatpush2.bf16.msra.mxu0 0
        %6128 = vmatprep.subr.bf16.mxu0 0
        %6129 = vmatpush2.bf16.msra.mxu0 0
        %6130 = vmatprep.subr.bf16.mxu0 0
        %6131 = vmatpush2.bf16.msra.mxu0 0
        %6132 = vmatprep.subr.bf16.mxu0 0
        %6133 = vmatpush2.bf16.msra.mxu0 0
        %6134 = vmatprep.subr.bf16.mxu0 0
        %6135 = vmatpush2.bf16.msra.mxu0 0
        %6136 = vmatprep.subr.bf16.mxu0 0
        %6137 = vmatpush2.bf16.msra.mxu0 0
        %6138 = vmatprep.subr.bf16.mxu0 0
        %6139 = vmatpush2.bf16.msra.mxu0 0
        %6140 = vmatprep.mubr.bf16.mxu0 0
        %6141 = vmatmul.mubr.bf16.gmra.mxu0 %v6106
        %v6142 = vpop.f32.mrf.mxu0
        %v6143 = vadd.f32 %v6079, %v6142
        %v6144 = vpop.f32.mrf.mxu0
        %v6145 = vpop.f32.mrf.mxu0
        %v6146 = vpop.f32.mrf.mxu0
        %6147 = vdwg.mxu0
        %v6148 = vmul.f32 %v6143, 0.35355338
        %s6149 = scalar_lea.vmem [#allocation11], 32
        %v6150 = vld [vmem:[%s6149] sm:$0xf]
        %v6151 = vld [vmem:[%s6149 + $0x4] sm:$0xf]
        %v6152 = vld [vmem:[%s6149 + $0x8] sm:$0xf]
        %v6153 = vld [vmem:[%s6149 + $0xc] sm:$0xf]
        %v6154 = vld [vmem:[%s6149 + $0x10] sm:$0xf]
        %v6155 = vld [vmem:[%s6149 + $0x14] sm:$0xf]
        %v6156 = vld [vmem:[%s6149 + $0x18] sm:$0xf]
        %v6157 = vld [vmem:[%s6149 + $0x1c] sm:$0xf]
        %s6158 = scalar_lea.vmem [#allocation13], 1
        %v6159 = vld [vmem:[%s6158] sm:$0x1]
        %v6161 = vlaneseq
        %v6162 = vshrl.u32 %v6161, 7
        %v6163 = vsub.s32 0, %v6162
        %v6164 = vrot.slane %v6159, %v6163
        %v6174 = vunpack.c.l.b16 %v6150
        %v6175 = vunpack.c.l.b16 %v6151
        %v6176 = vunpack.c.l.b16 %v6152
        %v6177 = vunpack.c.l.b16 %v6153
        %v6178 = vunpack.c.l.b16 %v6154
        %v6179 = vunpack.c.l.b16 %v6155
        %v6180 = vunpack.c.l.b16 %v6156
        %v6181 = vunpack.c.l.b16 %v6157
        %v6182 = vpack.c.b16 %v6175, %v6174
        %v6183 = vpack.c.b16 %v6177, %v6176
        %v6184 = vpack.c.b16 %v6179, %v6178
        %v6185 = vpack.c.b16 %v6181, %v6180
        %6190 = vmatprep.subr.bf16.mxu0 0
        %6191 = vmatpush1.bf16.msra.mxu0 0
        %6192 = vmatprep.subr.bf16.mxu0 0
        %6193 = vmatpush1.bf16.msra.mxu0 0
        %6194 = vmatprep.subr.bf16.mxu0 0
        %6195 = vmatpush1.bf16.msra.mxu0 0
        %6196 = vmatprep.subr.bf16.mxu0 0
        %6197 = vmatpush1.bf16.msra.mxu0 0
        %6198 = vmatprep.subr.bf16.mxu0 0
        %6199 = vmatpush1.bf16.msra.mxu0 %v6185
        %6200 = vmatprep.subr.bf16.mxu0 0
        %6201 = vmatpush1.bf16.msra.mxu0 %v6184
        %6202 = vmatprep.subr.bf16.mxu0 0
        %6203 = vmatpush1.bf16.msra.mxu0 %v6183
        %6204 = vmatprep.subr.bf16.mxu0 0
        %6205 = vmatpush1.bf16.msra.mxu0 %v6182
        %6206 = vmatprep.subr.bf16.mxu0 0
        %6207 = vmatpush2.bf16.msra.mxu0 0
        %6208 = vmatprep.subr.bf16.mxu0 0
        %6209 = vmatpush2.bf16.msra.mxu0 0
        %6210 = vmatprep.subr.bf16.mxu0 0
        %6211 = vmatpush2.bf16.msra.mxu0 0
        %6212 = vmatprep.subr.bf16.mxu0 0
        %6213 = vmatpush2.bf16.msra.mxu0 0
        %6214 = vmatprep.subr.bf16.mxu0 0
        %6215 = vmatpush2.bf16.msra.mxu0 0
        %6216 = vmatprep.subr.bf16.mxu0 0
        %6217 = vmatpush2.bf16.msra.mxu0 0
        %6218 = vmatprep.subr.bf16.mxu0 0
        %6219 = vmatpush2.bf16.msra.mxu0 0
        %6220 = vmatprep.subr.bf16.mxu0 0
        %6221 = vmatpush2.bf16.msra.mxu0 0
        %6222 = vmatprep.mubr.bf16.mxu0 0
        %6223 = vmatmul.mubr.bf16.gmra.mxu0 %v2709
        %v6224 = vpop.f32.mrf.mxu0
        %v6225 = vadd.f32 %v6164, %v6224
        %v6226 = vpop.f32.mrf.mxu0
        %v6227 = vpop.f32.mrf.mxu0
        %v6228 = vpop.f32.mrf.mxu0
        %6229 = vdwg.mxu0
        %s6230 = scalar_lea.vmem [#allocation14], 96
        %v6231 = vld [vmem:[%s6230] sm:$0xf]
        %v6232 = vld [vmem:[%s6230 + $0x4] sm:$0xf]
        %v6233 = vld [vmem:[%s6230 + $0x8] sm:$0xf]
        %v6234 = vld [vmem:[%s6230 + $0xc] sm:$0xf]
        %v6235 = vld [vmem:[%s6230 + $0x10] sm:$0xf]
        %v6236 = vld [vmem:[%s6230 + $0x14] sm:$0xf]
        %v6237 = vld [vmem:[%s6230 + $0x18] sm:$0xf]
        %v6238 = vld [vmem:[%s6230 + $0x1c] sm:$0xf]
        %s6239 = scalar_lea.vmem %s14, 3
        %v6240 = vld [vmem:[%s6239] sm:$0x1]
        %6242 = vrot.lane.b32.xlu0 %v6148, 120
        %v6243 = vpop.permute.xlu0 %6242
        %6244 = vrot.lane.b32.xlu0 %v6148, 112
        %v6245 = vpop.permute.xlu0 %6244
        %6246 = vrot.lane.b32.xlu0 %v6148, 104
        %v6247 = vpop.permute.xlu0 %6246
        %6248 = vrot.lane.b32.xlu0 %v6148, 96
        %v6249 = vpop.permute.xlu0 %6248
        %6250 = vrot.lane.b32.xlu0 %v6148, 88
        %v6251 = vpop.permute.xlu0 %6250
        %6252 = vrot.lane.b32.xlu0 %v6148, 80
        %v6253 = vpop.permute.xlu0 %6252
        %6254 = vrot.lane.b32.xlu0 %v6148, 72
        %v6255 = vpop.permute.xlu0 %6254
        %6257 = vrot.lane.b32.xlu0 %v6225, 120
        %v6258 = vpop.permute.xlu0 %6257
        %6259 = vrot.lane.b32.xlu0 %v6225, 112
        %v6260 = vpop.permute.xlu0 %6259
        %6261 = vrot.lane.b32.xlu0 %v6225, 104
        %v6262 = vpop.permute.xlu0 %6261
        %6263 = vrot.lane.b32.xlu0 %v6225, 96
        %v6264 = vpop.permute.xlu0 %6263
        %6265 = vrot.lane.b32.xlu0 %v6225, 88
        %v6266 = vpop.permute.xlu0 %6265
        %6267 = vrot.lane.b32.xlu0 %v6225, 80
        %v6268 = vpop.permute.xlu0 %6267
        %6269 = vrot.lane.b32.xlu0 %v6225, 72
        %v6270 = vpop.permute.xlu0 %6269
        %v6271 = vsel %vm1150, %v6148, 0
        %v6273 = vsel %vm1150, %v6225, 0
        %6275 = vmatprep.subr.mxu0 0.0
        %6276 = vmatpush1.xpose.msra.mxu0 0.0
        %6277 = vmatprep.subr.mxu0 0.0
        %6278 = vmatpush1.xpose.msra.mxu0 0.0
        %6279 = vmatprep.subr.mxu0 0.0
        %6280 = vmatpush1.xpose.msra.mxu0 0.0
        %6281 = vmatprep.subr.mxu0 0.0
        %6282 = vmatpush1.xpose.msra.mxu0 0.0
        %6283 = vmatprep.subr.mxu0 0.0
        %6284 = vmatpush1.xpose.msra.mxu0 0.0
        %6285 = vmatprep.subr.mxu0 0.0
        %6286 = vmatpush1.xpose.msra.mxu0 0.0
        %6287 = vmatprep.subr.mxu0 0.0
        %6288 = vmatpush1.xpose.msra.mxu0 0.0
        %6289 = vmatprep.subr.mxu0 0.0
        %6290 = vmatpush1.xpose.msra.mxu0 0.0
        %6291 = vmatprep.subr.mxu0 0.0
        %6292 = vmatpush1.xpose.msra.mxu0 0.0
        %6293 = vmatprep.subr.mxu0 0.0
        %6294 = vmatpush1.xpose.msra.mxu0 0.0
        %6295 = vmatprep.subr.mxu0 0.0
        %6296 = vmatpush1.xpose.msra.mxu0 0.0
        %6297 = vmatprep.subr.mxu0 0.0
        %6298 = vmatpush1.xpose.msra.mxu0 0.0
        %6299 = vmatprep.subr.mxu0 0.0
        %6300 = vmatpush1.xpose.msra.mxu0 0.0
        %6301 = vmatprep.subr.mxu0 0.0
        %6302 = vmatpush1.xpose.msra.mxu0 0.0
        %6303 = vmatprep.subr.mxu0 0.0
        %6304 = vmatpush1.xpose.msra.mxu0 0.0
        %6305 = vmatprep.subr.mxu0 0.0
        %6306 = vmatpush1.xpose.msra.mxu0 %v6273
        %6307 = vmatprep.subr.mxu0 0.0
        %6308 = vmatpush2.xpose.msra.mxu0 0.0
        %6309 = vmatprep.subr.mxu0 0.0
        %6310 = vmatpush2.xpose.msra.mxu0 0.0
        %6311 = vmatprep.subr.mxu0 0.0
        %6312 = vmatpush2.xpose.msra.mxu0 0.0
        %6313 = vmatprep.subr.mxu0 0.0
        %6314 = vmatpush2.xpose.msra.mxu0 0.0
        %6315 = vmatprep.subr.mxu0 0.0
        %6316 = vmatpush2.xpose.msra.mxu0 0.0
        %6317 = vmatprep.subr.mxu0 0.0
        %6318 = vmatpush2.xpose.msra.mxu0 0.0
        %6319 = vmatprep.subr.mxu0 0.0
        %6320 = vmatpush2.xpose.msra.mxu0 0.0
        %6321 = vmatprep.subr.mxu0 0.0
        %6322 = vmatpush2.xpose.msra.mxu0 0.0
        %6323 = vmatprep.subr.mxu0 0.0
        %6324 = vmatpush2.xpose.msra.mxu0 0.0
        %6325 = vmatprep.subr.mxu0 0.0
        %6326 = vmatpush2.xpose.msra.mxu0 0.0
        %6327 = vmatprep.subr.mxu0 0.0
        %6328 = vmatpush2.xpose.msra.mxu0 0.0
        %6329 = vmatprep.subr.mxu0 0.0
        %6330 = vmatpush2.xpose.msra.mxu0 0.0
        %6331 = vmatprep.subr.mxu0 0.0
        %6332 = vmatpush2.xpose.msra.mxu0 0.0
        %6333 = vmatprep.subr.mxu0 0.0
        %6334 = vmatpush2.xpose.msra.mxu0 0.0
        %6335 = vmatprep.subr.mxu0 0.0
        %6336 = vmatpush2.xpose.msra.mxu0 0.0
        %6337 = vmatprep.subr.mxu0 0.0
        %6338 = vmatpush2.xpose.msra.mxu0 0.0
        %6339 = vmatprep.mubr.f32.mxu0 0.0
        %6340 = vmatmul.mubr.f32.gmra.mxu0 %v6271
        %v6341 = vpop.f32.mrf.mxu0
        %v6342 = vadd.f32 0.0, %v6341
        %v6343 = vpop.f32.mrf.mxu0
        %6344 = vdwg.mxu0
        %v6345 = vsel %vm1150, %v6243, 0
        %v6347 = vsel %vm1150, %v6258, 0
        %6349 = vmatprep.subr.mxu0 0.0
        %6350 = vmatpush1.xpose.msra.mxu0 0.0
        %6351 = vmatprep.subr.mxu0 0.0
        %6352 = vmatpush1.xpose.msra.mxu0 0.0
        %6353 = vmatprep.subr.mxu0 0.0
        %6354 = vmatpush1.xpose.msra.mxu0 0.0
        %6355 = vmatprep.subr.mxu0 0.0
        %6356 = vmatpush1.xpose.msra.mxu0 0.0
        %6357 = vmatprep.subr.mxu0 0.0
        %6358 = vmatpush1.xpose.msra.mxu0 0.0
        %6359 = vmatprep.subr.mxu0 0.0
        %6360 = vmatpush1.xpose.msra.mxu0 0.0
        %6361 = vmatprep.subr.mxu0 0.0
        %6362 = vmatpush1.xpose.msra.mxu0 0.0
        %6363 = vmatprep.subr.mxu0 0.0
        %6364 = vmatpush1.xpose.msra.mxu0 0.0
        %6365 = vmatprep.subr.mxu0 0.0
        %6366 = vmatpush1.xpose.msra.mxu0 0.0
        %6367 = vmatprep.subr.mxu0 0.0
        %6368 = vmatpush1.xpose.msra.mxu0 0.0
        %6369 = vmatprep.subr.mxu0 0.0
        %6370 = vmatpush1.xpose.msra.mxu0 0.0
        %6371 = vmatprep.subr.mxu0 0.0
        %6372 = vmatpush1.xpose.msra.mxu0 0.0
        %6373 = vmatprep.subr.mxu0 0.0
        %6374 = vmatpush1.xpose.msra.mxu0 0.0
        %6375 = vmatprep.subr.mxu0 0.0
        %6376 = vmatpush1.xpose.msra.mxu0 0.0
        %6377 = vmatprep.subr.mxu0 0.0
        %6378 = vmatpush1.xpose.msra.mxu0 0.0
        %6379 = vmatprep.subr.mxu0 0.0
        %6380 = vmatpush1.xpose.msra.mxu0 %v6347
        %6381 = vmatprep.subr.mxu0 0.0
        %6382 = vmatpush2.xpose.msra.mxu0 0.0
        %6383 = vmatprep.subr.mxu0 0.0
        %6384 = vmatpush2.xpose.msra.mxu0 0.0
        %6385 = vmatprep.subr.mxu0 0.0
        %6386 = vmatpush2.xpose.msra.mxu0 0.0
        %6387 = vmatprep.subr.mxu0 0.0
        %6388 = vmatpush2.xpose.msra.mxu0 0.0
        %6389 = vmatprep.subr.mxu0 0.0
        %6390 = vmatpush2.xpose.msra.mxu0 0.0
        %6391 = vmatprep.subr.mxu0 0.0
        %6392 = vmatpush2.xpose.msra.mxu0 0.0
        %6393 = vmatprep.subr.mxu0 0.0
        %6394 = vmatpush2.xpose.msra.mxu0 0.0
        %6395 = vmatprep.subr.mxu0 0.0
        %6396 = vmatpush2.xpose.msra.mxu0 0.0
        %6397 = vmatprep.subr.mxu0 0.0
        %6398 = vmatpush2.xpose.msra.mxu0 0.0
        %6399 = vmatprep.subr.mxu0 0.0
        %6400 = vmatpush2.xpose.msra.mxu0 0.0
        %6401 = vmatprep.subr.mxu0 0.0
        %6402 = vmatpush2.xpose.msra.mxu0 0.0
        %6403 = vmatprep.subr.mxu0 0.0
        %6404 = vmatpush2.xpose.msra.mxu0 0.0
        %6405 = vmatprep.subr.mxu0 0.0
        %6406 = vmatpush2.xpose.msra.mxu0 0.0
        %6407 = vmatprep.subr.mxu0 0.0
        %6408 = vmatpush2.xpose.msra.mxu0 0.0
        %6409 = vmatprep.subr.mxu0 0.0
        %6410 = vmatpush2.xpose.msra.mxu0 0.0
        %6411 = vmatprep.subr.mxu0 0.0
        %6412 = vmatpush2.xpose.msra.mxu0 0.0
        %6413 = vmatprep.mubr.f32.mxu0 0.0
        %6414 = vmatmul.mubr.f32.gmra.mxu0 %v6345
        %v6415 = vpop.f32.mrf.mxu0
        %v6416 = vadd.f32 0.0, %v6415
        %v6417 = vpop.f32.mrf.mxu0
        %6418 = vdwg.mxu0
        %v6419 = vsel %vm1150, %v6245, 0
        %v6421 = vsel %vm1150, %v6260, 0
        %6423 = vmatprep.subr.mxu0 0.0
        %6424 = vmatpush1.xpose.msra.mxu0 0.0
        %6425 = vmatprep.subr.mxu0 0.0
        %6426 = vmatpush1.xpose.msra.mxu0 0.0
        %6427 = vmatprep.subr.mxu0 0.0
        %6428 = vmatpush1.xpose.msra.mxu0 0.0
        %6429 = vmatprep.subr.mxu0 0.0
        %6430 = vmatpush1.xpose.msra.mxu0 0.0
        %6431 = vmatprep.subr.mxu0 0.0
        %6432 = vmatpush1.xpose.msra.mxu0 0.0
        %6433 = vmatprep.subr.mxu0 0.0
        %6434 = vmatpush1.xpose.msra.mxu0 0.0
        %6435 = vmatprep.subr.mxu0 0.0
        %6436 = vmatpush1.xpose.msra.mxu0 0.0
        %6437 = vmatprep.subr.mxu0 0.0
        %6438 = vmatpush1.xpose.msra.mxu0 0.0
        %6439 = vmatprep.subr.mxu0 0.0
        %6440 = vmatpush1.xpose.msra.mxu0 0.0
        %6441 = vmatprep.subr.mxu0 0.0
        %6442 = vmatpush1.xpose.msra.mxu0 0.0
        %6443 = vmatprep.subr.mxu0 0.0
        %6444 = vmatpush1.xpose.msra.mxu0 0.0
        %6445 = vmatprep.subr.mxu0 0.0
        %6446 = vmatpush1.xpose.msra.mxu0 0.0
        %6447 = vmatprep.subr.mxu0 0.0
        %6448 = vmatpush1.xpose.msra.mxu0 0.0
        %6449 = vmatprep.subr.mxu0 0.0
        %6450 = vmatpush1.xpose.msra.mxu0 0.0
        %6451 = vmatprep.subr.mxu0 0.0
        %6452 = vmatpush1.xpose.msra.mxu0 0.0
        %6453 = vmatprep.subr.mxu0 0.0
        %6454 = vmatpush1.xpose.msra.mxu0 %v6421
        %6455 = vmatprep.subr.mxu0 0.0
        %6456 = vmatpush2.xpose.msra.mxu0 0.0
        %6457 = vmatprep.subr.mxu0 0.0
        %6458 = vmatpush2.xpose.msra.mxu0 0.0
        %6459 = vmatprep.subr.mxu0 0.0
        %6460 = vmatpush2.xpose.msra.mxu0 0.0
        %6461 = vmatprep.subr.mxu0 0.0
        %6462 = vmatpush2.xpose.msra.mxu0 0.0
        %6463 = vmatprep.subr.mxu0 0.0
        %6464 = vmatpush2.xpose.msra.mxu0 0.0
        %6465 = vmatprep.subr.mxu0 0.0
        %6466 = vmatpush2.xpose.msra.mxu0 0.0
        %6467 = vmatprep.subr.mxu0 0.0
        %6468 = vmatpush2.xpose.msra.mxu0 0.0
        %6469 = vmatprep.subr.mxu0 0.0
        %6470 = vmatpush2.xpose.msra.mxu0 0.0
        %6471 = vmatprep.subr.mxu0 0.0
        %6472 = vmatpush2.xpose.msra.mxu0 0.0
        %6473 = vmatprep.subr.mxu0 0.0
        %6474 = vmatpush2.xpose.msra.mxu0 0.0
        %6475 = vmatprep.subr.mxu0 0.0
        %6476 = vmatpush2.xpose.msra.mxu0 0.0
        %6477 = vmatprep.subr.mxu0 0.0
        %6478 = vmatpush2.xpose.msra.mxu0 0.0
        %6479 = vmatprep.subr.mxu0 0.0
        %6480 = vmatpush2.xpose.msra.mxu0 0.0
        %6481 = vmatprep.subr.mxu0 0.0
        %6482 = vmatpush2.xpose.msra.mxu0 0.0
        %6483 = vmatprep.subr.mxu0 0.0
        %6484 = vmatpush2.xpose.msra.mxu0 0.0
        %6485 = vmatprep.subr.mxu0 0.0
        %6486 = vmatpush2.xpose.msra.mxu0 0.0
        %6487 = vmatprep.mubr.f32.mxu0 0.0
        %6488 = vmatmul.mubr.f32.gmra.mxu0 %v6419
        %v6489 = vpop.f32.mrf.mxu0
        %v6490 = vadd.f32 0.0, %v6489
        %v6491 = vpop.f32.mrf.mxu0
        %6492 = vdwg.mxu0
        %v6493 = vsel %vm1150, %v6247, 0
        %v6495 = vsel %vm1150, %v6262, 0
        %6497 = vmatprep.subr.mxu0 0.0
        %6498 = vmatpush1.xpose.msra.mxu0 0.0
        %6499 = vmatprep.subr.mxu0 0.0
        %6500 = vmatpush1.xpose.msra.mxu0 0.0
        %6501 = vmatprep.subr.mxu0 0.0
        %6502 = vmatpush1.xpose.msra.mxu0 0.0
        %6503 = vmatprep.subr.mxu0 0.0
        %6504 = vmatpush1.xpose.msra.mxu0 0.0
        %6505 = vmatprep.subr.mxu0 0.0
        %6506 = vmatpush1.xpose.msra.mxu0 0.0
        %6507 = vmatprep.subr.mxu0 0.0
        %6508 = vmatpush1.xpose.msra.mxu0 0.0
        %6509 = vmatprep.subr.mxu0 0.0
        %6510 = vmatpush1.xpose.msra.mxu0 0.0
        %6511 = vmatprep.subr.mxu0 0.0
        %6512 = vmatpush1.xpose.msra.mxu0 0.0
        %6513 = vmatprep.subr.mxu0 0.0
        %6514 = vmatpush1.xpose.msra.mxu0 0.0
        %6515 = vmatprep.subr.mxu0 0.0
        %6516 = vmatpush1.xpose.msra.mxu0 0.0
        %6517 = vmatprep.subr.mxu0 0.0
        %6518 = vmatpush1.xpose.msra.mxu0 0.0
        %6519 = vmatprep.subr.mxu0 0.0
        %6520 = vmatpush1.xpose.msra.mxu0 0.0
        %6521 = vmatprep.subr.mxu0 0.0
        %6522 = vmatpush1.xpose.msra.mxu0 0.0
        %6523 = vmatprep.subr.mxu0 0.0
        %6524 = vmatpush1.xpose.msra.mxu0 0.0
        %6525 = vmatprep.subr.mxu0 0.0
        %6526 = vmatpush1.xpose.msra.mxu0 0.0
        %6527 = vmatprep.subr.mxu0 0.0
        %6528 = vmatpush1.xpose.msra.mxu0 %v6495
        %6529 = vmatprep.subr.mxu0 0.0
        %6530 = vmatpush2.xpose.msra.mxu0 0.0
        %6531 = vmatprep.subr.mxu0 0.0
        %6532 = vmatpush2.xpose.msra.mxu0 0.0
        %6533 = vmatprep.subr.mxu0 0.0
        %6534 = vmatpush2.xpose.msra.mxu0 0.0
        %6535 = vmatprep.subr.mxu0 0.0
        %6536 = vmatpush2.xpose.msra.mxu0 0.0
        %6537 = vmatprep.subr.mxu0 0.0
        %6538 = vmatpush2.xpose.msra.mxu0 0.0
        %6539 = vmatprep.subr.mxu0 0.0
        %6540 = vmatpush2.xpose.msra.mxu0 0.0
        %6541 = vmatprep.subr.mxu0 0.0
        %6542 = vmatpush2.xpose.msra.mxu0 0.0
        %6543 = vmatprep.subr.mxu0 0.0
        %6544 = vmatpush2.xpose.msra.mxu0 0.0
        %6545 = vmatprep.subr.mxu0 0.0
        %6546 = vmatpush2.xpose.msra.mxu0 0.0
        %6547 = vmatprep.subr.mxu0 0.0
        %6548 = vmatpush2.xpose.msra.mxu0 0.0
        %6549 = vmatprep.subr.mxu0 0.0
        %6550 = vmatpush2.xpose.msra.mxu0 0.0
        %6551 = vmatprep.subr.mxu0 0.0
        %6552 = vmatpush2.xpose.msra.mxu0 0.0
        %6553 = vmatprep.subr.mxu0 0.0
        %6554 = vmatpush2.xpose.msra.mxu0 0.0
        %6555 = vmatprep.subr.mxu0 0.0
        %6556 = vmatpush2.xpose.msra.mxu0 0.0
        %6557 = vmatprep.subr.mxu0 0.0
        %6558 = vmatpush2.xpose.msra.mxu0 0.0
        %6559 = vmatprep.subr.mxu0 0.0
        %6560 = vmatpush2.xpose.msra.mxu0 0.0
        %6561 = vmatprep.mubr.f32.mxu0 0.0
        %6562 = vmatmul.mubr.f32.gmra.mxu0 %v6493
        %v6563 = vpop.f32.mrf.mxu0
        %v6564 = vadd.f32 0.0, %v6563
        %v6565 = vpop.f32.mrf.mxu0
        %6566 = vdwg.mxu0
        %v6567 = vsel %vm1150, %v6249, 0
        %v6569 = vsel %vm1150, %v6264, 0
        %6571 = vmatprep.subr.mxu0 0.0
        %6572 = vmatpush1.xpose.msra.mxu0 0.0
        %6573 = vmatprep.subr.mxu0 0.0
        %6574 = vmatpush1.xpose.msra.mxu0 0.0
        %6575 = vmatprep.subr.mxu0 0.0
        %6576 = vmatpush1.xpose.msra.mxu0 0.0
        %6577 = vmatprep.subr.mxu0 0.0
        %6578 = vmatpush1.xpose.msra.mxu0 0.0
        %6579 = vmatprep.subr.mxu0 0.0
        %6580 = vmatpush1.xpose.msra.mxu0 0.0
        %6581 = vmatprep.subr.mxu0 0.0
        %6582 = vmatpush1.xpose.msra.mxu0 0.0
        %6583 = vmatprep.subr.mxu0 0.0
        %6584 = vmatpush1.xpose.msra.mxu0 0.0
        %6585 = vmatprep.subr.mxu0 0.0
        %6586 = vmatpush1.xpose.msra.mxu0 0.0
        %6587 = vmatprep.subr.mxu0 0.0
        %6588 = vmatpush1.xpose.msra.mxu0 0.0
        %6589 = vmatprep.subr.mxu0 0.0
        %6590 = vmatpush1.xpose.msra.mxu0 0.0
        %6591 = vmatprep.subr.mxu0 0.0
        %6592 = vmatpush1.xpose.msra.mxu0 0.0
        %6593 = vmatprep.subr.mxu0 0.0
        %6594 = vmatpush1.xpose.msra.mxu0 0.0
        %6595 = vmatprep.subr.mxu0 0.0
        %6596 = vmatpush1.xpose.msra.mxu0 0.0
        %6597 = vmatprep.subr.mxu0 0.0
        %6598 = vmatpush1.xpose.msra.mxu0 0.0
        %6599 = vmatprep.subr.mxu0 0.0
        %6600 = vmatpush1.xpose.msra.mxu0 0.0
        %6601 = vmatprep.subr.mxu0 0.0
        %6602 = vmatpush1.xpose.msra.mxu0 %v6569
        %6603 = vmatprep.subr.mxu0 0.0
        %6604 = vmatpush2.xpose.msra.mxu0 0.0
        %6605 = vmatprep.subr.mxu0 0.0
        %6606 = vmatpush2.xpose.msra.mxu0 0.0
        %6607 = vmatprep.subr.mxu0 0.0
        %6608 = vmatpush2.xpose.msra.mxu0 0.0
        %6609 = vmatprep.subr.mxu0 0.0
        %6610 = vmatpush2.xpose.msra.mxu0 0.0
        %6611 = vmatprep.subr.mxu0 0.0
        %6612 = vmatpush2.xpose.msra.mxu0 0.0
        %6613 = vmatprep.subr.mxu0 0.0
        %6614 = vmatpush2.xpose.msra.mxu0 0.0
        %6615 = vmatprep.subr.mxu0 0.0
        %6616 = vmatpush2.xpose.msra.mxu0 0.0
        %6617 = vmatprep.subr.mxu0 0.0
        %6618 = vmatpush2.xpose.msra.mxu0 0.0
        %6619 = vmatprep.subr.mxu0 0.0
        %6620 = vmatpush2.xpose.msra.mxu0 0.0
        %6621 = vmatprep.subr.mxu0 0.0
        %6622 = vmatpush2.xpose.msra.mxu0 0.0
        %6623 = vmatprep.subr.mxu0 0.0
        %6624 = vmatpush2.xpose.msra.mxu0 0.0
        %6625 = vmatprep.subr.mxu0 0.0
        %6626 = vmatpush2.xpose.msra.mxu0 0.0
        %6627 = vmatprep.subr.mxu0 0.0
        %6628 = vmatpush2.xpose.msra.mxu0 0.0
        %6629 = vmatprep.subr.mxu0 0.0
        %6630 = vmatpush2.xpose.msra.mxu0 0.0
        %6631 = vmatprep.subr.mxu0 0.0
        %6632 = vmatpush2.xpose.msra.mxu0 0.0
        %6633 = vmatprep.subr.mxu0 0.0
        %6634 = vmatpush2.xpose.msra.mxu0 0.0
        %6635 = vmatprep.mubr.f32.mxu0 0.0
        %6636 = vmatmul.mubr.f32.gmra.mxu0 %v6567
        %v6637 = vpop.f32.mrf.mxu0
        %v6638 = vadd.f32 0.0, %v6637
        %v6639 = vpop.f32.mrf.mxu0
        %6640 = vdwg.mxu0
        %v6641 = vsel %vm1150, %v6251, 0
        %v6643 = vsel %vm1150, %v6266, 0
        %6645 = vmatprep.subr.mxu0 0.0
        %6646 = vmatpush1.xpose.msra.mxu0 0.0
        %6647 = vmatprep.subr.mxu0 0.0
        %6648 = vmatpush1.xpose.msra.mxu0 0.0
        %6649 = vmatprep.subr.mxu0 0.0
        %6650 = vmatpush1.xpose.msra.mxu0 0.0
        %6651 = vmatprep.subr.mxu0 0.0
        %6652 = vmatpush1.xpose.msra.mxu0 0.0
        %6653 = vmatprep.subr.mxu0 0.0
        %6654 = vmatpush1.xpose.msra.mxu0 0.0
        %6655 = vmatprep.subr.mxu0 0.0
        %6656 = vmatpush1.xpose.msra.mxu0 0.0
        %6657 = vmatprep.subr.mxu0 0.0
        %6658 = vmatpush1.xpose.msra.mxu0 0.0
        %6659 = vmatprep.subr.mxu0 0.0
        %6660 = vmatpush1.xpose.msra.mxu0 0.0
        %6661 = vmatprep.subr.mxu0 0.0
        %6662 = vmatpush1.xpose.msra.mxu0 0.0
        %6663 = vmatprep.subr.mxu0 0.0
        %6664 = vmatpush1.xpose.msra.mxu0 0.0
        %6665 = vmatprep.subr.mxu0 0.0
        %6666 = vmatpush1.xpose.msra.mxu0 0.0
        %6667 = vmatprep.subr.mxu0 0.0
        %6668 = vmatpush1.xpose.msra.mxu0 0.0
        %6669 = vmatprep.subr.mxu0 0.0
        %6670 = vmatpush1.xpose.msra.mxu0 0.0
        %6671 = vmatprep.subr.mxu0 0.0
        %6672 = vmatpush1.xpose.msra.mxu0 0.0
        %6673 = vmatprep.subr.mxu0 0.0
        %6674 = vmatpush1.xpose.msra.mxu0 0.0
        %6675 = vmatprep.subr.mxu0 0.0
        %6676 = vmatpush1.xpose.msra.mxu0 %v6643
        %6677 = vmatprep.subr.mxu0 0.0
        %6678 = vmatpush2.xpose.msra.mxu0 0.0
        %6679 = vmatprep.subr.mxu0 0.0
        %6680 = vmatpush2.xpose.msra.mxu0 0.0
        %6681 = vmatprep.subr.mxu0 0.0
        %6682 = vmatpush2.xpose.msra.mxu0 0.0
        %6683 = vmatprep.subr.mxu0 0.0
        %6684 = vmatpush2.xpose.msra.mxu0 0.0
        %6685 = vmatprep.subr.mxu0 0.0
        %6686 = vmatpush2.xpose.msra.mxu0 0.0
        %6687 = vmatprep.subr.mxu0 0.0
        %6688 = vmatpush2.xpose.msra.mxu0 0.0
        %6689 = vmatprep.subr.mxu0 0.0
        %6690 = vmatpush2.xpose.msra.mxu0 0.0
        %6691 = vmatprep.subr.mxu0 0.0
        %6692 = vmatpush2.xpose.msra.mxu0 0.0
        %6693 = vmatprep.subr.mxu0 0.0
        %6694 = vmatpush2.xpose.msra.mxu0 0.0
        %6695 = vmatprep.subr.mxu0 0.0
        %6696 = vmatpush2.xpose.msra.mxu0 0.0
        %6697 = vmatprep.subr.mxu0 0.0
        %6698 = vmatpush2.xpose.msra.mxu0 0.0
        %6699 = vmatprep.subr.mxu0 0.0
        %6700 = vmatpush2.xpose.msra.mxu0 0.0
        %6701 = vmatprep.subr.mxu0 0.0
        %6702 = vmatpush2.xpose.msra.mxu0 0.0
        %6703 = vmatprep.subr.mxu0 0.0
        %6704 = vmatpush2.xpose.msra.mxu0 0.0
        %6705 = vmatprep.subr.mxu0 0.0
        %6706 = vmatpush2.xpose.msra.mxu0 0.0
        %6707 = vmatprep.subr.mxu0 0.0
        %6708 = vmatpush2.xpose.msra.mxu0 0.0
        %6709 = vmatprep.mubr.f32.mxu0 0.0
        %6710 = vmatmul.mubr.f32.gmra.mxu0 %v6641
        %v6711 = vpop.f32.mrf.mxu0
        %v6712 = vadd.f32 0.0, %v6711
        %v6713 = vpop.f32.mrf.mxu0
        %6714 = vdwg.mxu0
        %v6715 = vsel %vm1150, %v6253, 0
        %v6717 = vsel %vm1150, %v6268, 0
        %6719 = vmatprep.subr.mxu0 0.0
        %6720 = vmatpush1.xpose.msra.mxu0 0.0
        %6721 = vmatprep.subr.mxu0 0.0
        %6722 = vmatpush1.xpose.msra.mxu0 0.0
        %6723 = vmatprep.subr.mxu0 0.0
        %6724 = vmatpush1.xpose.msra.mxu0 0.0
        %6725 = vmatprep.subr.mxu0 0.0
        %6726 = vmatpush1.xpose.msra.mxu0 0.0
        %6727 = vmatprep.subr.mxu0 0.0
        %6728 = vmatpush1.xpose.msra.mxu0 0.0
        %6729 = vmatprep.subr.mxu0 0.0
        %6730 = vmatpush1.xpose.msra.mxu0 0.0
        %6731 = vmatprep.subr.mxu0 0.0
        %6732 = vmatpush1.xpose.msra.mxu0 0.0
        %6733 = vmatprep.subr.mxu0 0.0
        %6734 = vmatpush1.xpose.msra.mxu0 0.0
        %6735 = vmatprep.subr.mxu0 0.0
        %6736 = vmatpush1.xpose.msra.mxu0 0.0
        %6737 = vmatprep.subr.mxu0 0.0
        %6738 = vmatpush1.xpose.msra.mxu0 0.0
        %6739 = vmatprep.subr.mxu0 0.0
        %6740 = vmatpush1.xpose.msra.mxu0 0.0
        %6741 = vmatprep.subr.mxu0 0.0
        %6742 = vmatpush1.xpose.msra.mxu0 0.0
        %6743 = vmatprep.subr.mxu0 0.0
        %6744 = vmatpush1.xpose.msra.mxu0 0.0
        %6745 = vmatprep.subr.mxu0 0.0
        %6746 = vmatpush1.xpose.msra.mxu0 0.0
        %6747 = vmatprep.subr.mxu0 0.0
        %6748 = vmatpush1.xpose.msra.mxu0 0.0
        %6749 = vmatprep.subr.mxu0 0.0
        %6750 = vmatpush1.xpose.msra.mxu0 %v6717
        %6751 = vmatprep.subr.mxu0 0.0
        %6752 = vmatpush2.xpose.msra.mxu0 0.0
        %6753 = vmatprep.subr.mxu0 0.0
        %6754 = vmatpush2.xpose.msra.mxu0 0.0
        %6755 = vmatprep.subr.mxu0 0.0
        %6756 = vmatpush2.xpose.msra.mxu0 0.0
        %6757 = vmatprep.subr.mxu0 0.0
        %6758 = vmatpush2.xpose.msra.mxu0 0.0
        %6759 = vmatprep.subr.mxu0 0.0
        %6760 = vmatpush2.xpose.msra.mxu0 0.0
        %6761 = vmatprep.subr.mxu0 0.0
        %6762 = vmatpush2.xpose.msra.mxu0 0.0
        %6763 = vmatprep.subr.mxu0 0.0
        %6764 = vmatpush2.xpose.msra.mxu0 0.0
        %6765 = vmatprep.subr.mxu0 0.0
        %6766 = vmatpush2.xpose.msra.mxu0 0.0
        %6767 = vmatprep.subr.mxu0 0.0
        %6768 = vmatpush2.xpose.msra.mxu0 0.0
        %6769 = vmatprep.subr.mxu0 0.0
        %6770 = vmatpush2.xpose.msra.mxu0 0.0
        %6771 = vmatprep.subr.mxu0 0.0
        %6772 = vmatpush2.xpose.msra.mxu0 0.0
        %6773 = vmatprep.subr.mxu0 0.0
        %6774 = vmatpush2.xpose.msra.mxu0 0.0
        %6775 = vmatprep.subr.mxu0 0.0
        %6776 = vmatpush2.xpose.msra.mxu0 0.0
        %6777 = vmatprep.subr.mxu0 0.0
        %6778 = vmatpush2.xpose.msra.mxu0 0.0
        %6779 = vmatprep.subr.mxu0 0.0
        %6780 = vmatpush2.xpose.msra.mxu0 0.0
        %6781 = vmatprep.subr.mxu0 0.0
        %6782 = vmatpush2.xpose.msra.mxu0 0.0
        %6783 = vmatprep.mubr.f32.mxu0 0.0
        %6784 = vmatmul.mubr.f32.gmra.mxu0 %v6715
        %v6785 = vpop.f32.mrf.mxu0
        %v6786 = vadd.f32 0.0, %v6785
        %v6787 = vpop.f32.mrf.mxu0
        %6788 = vdwg.mxu0
        %v6789 = vsel %vm1150, %v6255, 0
        %v6791 = vsel %vm1150, %v6270, 0
        %6793 = vmatprep.subr.mxu0 0.0
        %6794 = vmatpush1.xpose.msra.mxu0 0.0
        %6795 = vmatprep.subr.mxu0 0.0
        %6796 = vmatpush1.xpose.msra.mxu0 0.0
        %6797 = vmatprep.subr.mxu0 0.0
        %6798 = vmatpush1.xpose.msra.mxu0 0.0
        %6799 = vmatprep.subr.mxu0 0.0
        %6800 = vmatpush1.xpose.msra.mxu0 0.0
        %6801 = vmatprep.subr.mxu0 0.0
        %6802 = vmatpush1.xpose.msra.mxu0 0.0
        %6803 = vmatprep.subr.mxu0 0.0
        %6804 = vmatpush1.xpose.msra.mxu0 0.0
        %6805 = vmatprep.subr.mxu0 0.0
        %6806 = vmatpush1.xpose.msra.mxu0 0.0
        %6807 = vmatprep.subr.mxu0 0.0
        %6808 = vmatpush1.xpose.msra.mxu0 0.0
        %6809 = vmatprep.subr.mxu0 0.0
        %6810 = vmatpush1.xpose.msra.mxu0 0.0
        %6811 = vmatprep.subr.mxu0 0.0
        %6812 = vmatpush1.xpose.msra.mxu0 0.0
        %6813 = vmatprep.subr.mxu0 0.0
        %6814 = vmatpush1.xpose.msra.mxu0 0.0
        %6815 = vmatprep.subr.mxu0 0.0
        %6816 = vmatpush1.xpose.msra.mxu0 0.0
        %6817 = vmatprep.subr.mxu0 0.0
        %6818 = vmatpush1.xpose.msra.mxu0 0.0
        %6819 = vmatprep.subr.mxu0 0.0
        %6820 = vmatpush1.xpose.msra.mxu0 0.0
        %6821 = vmatprep.subr.mxu0 0.0
        %6822 = vmatpush1.xpose.msra.mxu0 0.0
        %6823 = vmatprep.subr.mxu0 0.0
        %6824 = vmatpush1.xpose.msra.mxu0 %v6791
        %6825 = vmatprep.subr.mxu0 0.0
        %6826 = vmatpush2.xpose.msra.mxu0 0.0
        %6827 = vmatprep.subr.mxu0 0.0
        %6828 = vmatpush2.xpose.msra.mxu0 0.0
        %6829 = vmatprep.subr.mxu0 0.0
        %6830 = vmatpush2.xpose.msra.mxu0 0.0
        %6831 = vmatprep.subr.mxu0 0.0
        %6832 = vmatpush2.xpose.msra.mxu0 0.0
        %6833 = vmatprep.subr.mxu0 0.0
        %6834 = vmatpush2.xpose.msra.mxu0 0.0
        %6835 = vmatprep.subr.mxu0 0.0
        %6836 = vmatpush2.xpose.msra.mxu0 0.0
        %6837 = vmatprep.subr.mxu0 0.0
        %6838 = vmatpush2.xpose.msra.mxu0 0.0
        %6839 = vmatprep.subr.mxu0 0.0
        %6840 = vmatpush2.xpose.msra.mxu0 0.0
        %6841 = vmatprep.subr.mxu0 0.0
        %6842 = vmatpush2.xpose.msra.mxu0 0.0
        %6843 = vmatprep.subr.mxu0 0.0
        %6844 = vmatpush2.xpose.msra.mxu0 0.0
        %6845 = vmatprep.subr.mxu0 0.0
        %6846 = vmatpush2.xpose.msra.mxu0 0.0
        %6847 = vmatprep.subr.mxu0 0.0
        %6848 = vmatpush2.xpose.msra.mxu0 0.0
        %6849 = vmatprep.subr.mxu0 0.0
        %6850 = vmatpush2.xpose.msra.mxu0 0.0
        %6851 = vmatprep.subr.mxu0 0.0
        %6852 = vmatpush2.xpose.msra.mxu0 0.0
        %6853 = vmatprep.subr.mxu0 0.0
        %6854 = vmatpush2.xpose.msra.mxu0 0.0
        %6855 = vmatprep.subr.mxu0 0.0
        %6856 = vmatpush2.xpose.msra.mxu0 0.0
        %6857 = vmatprep.mubr.f32.mxu0 0.0
        %6858 = vmatmul.mubr.f32.gmra.mxu0 %v6789
        %v6859 = vpop.f32.mrf.mxu0
        %v6860 = vadd.f32 0.0, %v6859
        %v6861 = vpop.f32.mrf.mxu0
        %6862 = vdwg.mxu0
        %v6863 = vadd.f32 %v6342, %v3388
        %v6864 = vadd.f32 %v6416, %v3388
        %v6865 = vadd.f32 %v6490, %v3388
        %v6866 = vadd.f32 %v6564, %v3388
        %v6867 = vadd.f32 %v6638, %v3388
        %v6868 = vadd.f32 %v6712, %v3388
        %v6869 = vadd.f32 %v6786, %v3388
        %v6870 = vadd.f32 %v6860, %v3388
        %v6871 = vsel %vm1150, %v6863, -inf
        %6872 = vmax.xlane.f32.xlu0 %v6871
        %v6873 = vpop.xlane.xlu0 %6872
        %v6874 = vsel %vm1150, %v6864, -inf
        %6875 = vmax.xlane.f32.xlu0 %v6874
        %v6876 = vpop.xlane.xlu0 %6875
        %v6877 = vsel %vm1150, %v6865, -inf
        %6878 = vmax.xlane.f32.xlu0 %v6877
        %v6879 = vpop.xlane.xlu0 %6878
        %v6880 = vsel %vm1150, %v6866, -inf
        %6881 = vmax.xlane.f32.xlu0 %v6880
        %v6882 = vpop.xlane.xlu0 %6881
        %v6883 = vsel %vm1150, %v6867, -inf
        %6884 = vmax.xlane.f32.xlu0 %v6883
        %v6885 = vpop.xlane.xlu0 %6884
        %v6886 = vsel %vm1150, %v6868, -inf
        %6887 = vmax.xlane.f32.xlu0 %v6886
        %v6888 = vpop.xlane.xlu0 %6887
        %v6889 = vsel %vm1150, %v6869, -inf
        %6890 = vmax.xlane.f32.xlu0 %v6889
        %v6891 = vpop.xlane.xlu0 %6890
        %v6892 = vsel %vm1150, %v6870, -inf
        %6893 = vmax.xlane.f32.xlu0 %v6892
        %v6894 = vpop.xlane.xlu0 %6893
        %v6895 = vsub.f32 %v6863, %v6873
        %v6896 = vsub.f32 %v6864, %v6876
        %v6897 = vsub.f32 %v6865, %v6879
        %v6898 = vsub.f32 %v6866, %v6882
        %v6899 = vsub.f32 %v6867, %v6885
        %v6900 = vsub.f32 %v6868, %v6888
        %v6901 = vsub.f32 %v6869, %v6891
        %v6902 = vsub.f32 %v6870, %v6894
        %v6903 = vmul.f32 %v6895, 1.442695
        %v6904 = vpow.pop %v6903
        %v6905 = vmul.f32 %v6896, 1.442695
        %v6906 = vpow.pop %v6905
        %v6907 = vmul.f32 %v6897, 1.442695
        %v6908 = vpow.pop %v6907
        %v6909 = vmul.f32 %v6898, 1.442695
        %v6910 = vpow.pop %v6909
        %v6911 = vmul.f32 %v6899, 1.442695
        %v6912 = vpow.pop %v6911
        %v6913 = vmul.f32 %v6900, 1.442695
        %v6914 = vpow.pop %v6913
        %v6915 = vmul.f32 %v6901, 1.442695
        %v6916 = vpow.pop %v6915
        %v6917 = vmul.f32 %v6902, 1.442695
        %v6918 = vpow.pop %v6917
        %v6919 = vsel %vm1150, %v6904, 0.0
        %6920 = vadd.xlane.f32.xlu0 %v6919
        %v6921 = vpop.xlane.xlu0 %6920
        %v6922 = vsel %vm1150, %v6906, 0.0
        %6923 = vadd.xlane.f32.xlu0 %v6922
        %v6924 = vpop.xlane.xlu0 %6923
        %v6925 = vsel %vm1150, %v6908, 0.0
        %6926 = vadd.xlane.f32.xlu0 %v6925
        %v6927 = vpop.xlane.xlu0 %6926
        %v6928 = vsel %vm1150, %v6910, 0.0
        %6929 = vadd.xlane.f32.xlu0 %v6928
        %v6930 = vpop.xlane.xlu0 %6929
        %v6931 = vsel %vm1150, %v6912, 0.0
        %6932 = vadd.xlane.f32.xlu0 %v6931
        %v6933 = vpop.xlane.xlu0 %6932
        %v6934 = vsel %vm1150, %v6914, 0.0
        %6935 = vadd.xlane.f32.xlu0 %v6934
        %v6936 = vpop.xlane.xlu0 %6935
        %v6937 = vsel %vm1150, %v6916, 0.0
        %6938 = vadd.xlane.f32.xlu0 %v6937
        %v6939 = vpop.xlane.xlu0 %6938
        %v6940 = vsel %vm1150, %v6918, 0.0
        %6941 = vadd.xlane.f32.xlu0 %v6940
        %v6942 = vpop.xlane.xlu0 %6941
        %v6943 = vrcp.pop %v6921
        %v6944 = vrcp.pop %v6924
        %v6945 = vrcp.pop %v6927
        %v6946 = vrcp.pop %v6930
        %v6947 = vrcp.pop %v6933
        %v6948 = vrcp.pop %v6936
        %v6949 = vrcp.pop %v6939
        %v6950 = vrcp.pop %v6942
        %v6951 = vmul.f32 %v6904, %v6943
        %v6952 = vmul.f32 %v6906, %v6944
        %v6953 = vmul.f32 %v6908, %v6945
        %v6954 = vmul.f32 %v6910, %v6946
        %v6955 = vmul.f32 %v6912, %v6947
        %v6956 = vmul.f32 %v6914, %v6948
        %v6957 = vmul.f32 %v6916, %v6949
        %v6958 = vmul.f32 %v6918, %v6950
        %6959 = vrot.lane.b32.xlu0 %v6225, 64
        %v6960 = vpop.permute.xlu0 %6959
        %v6963 = vsel %vm1150, %v6951, 0
        %6965 = vmatprep.subr.mxu0 0.0
        %6966 = vmatpush1.msra.mxu0 0.0
        %6967 = vmatprep.subr.mxu0 0.0
        %6968 = vmatpush1.msra.mxu0 0.0
        %6969 = vmatprep.subr.mxu0 0.0
        %6970 = vmatpush1.msra.mxu0 0.0
        %6971 = vmatprep.subr.mxu0 0.0
        %6972 = vmatpush1.msra.mxu0 0.0
        %6973 = vmatprep.subr.mxu0 0.0
        %6974 = vmatpush1.msra.mxu0 0.0
        %6975 = vmatprep.subr.mxu0 0.0
        %6976 = vmatpush1.msra.mxu0 0.0
        %6977 = vmatprep.subr.mxu0 0.0
        %6978 = vmatpush1.msra.mxu0 0.0
        %6979 = vmatprep.subr.mxu0 0.0
        %6980 = vmatpush1.msra.mxu0 0.0
        %6981 = vmatprep.subr.mxu0 0.0
        %6982 = vmatpush1.msra.mxu0 0.0
        %6983 = vmatprep.subr.mxu0 0.0
        %6984 = vmatpush1.msra.mxu0 0.0
        %6985 = vmatprep.subr.mxu0 0.0
        %6986 = vmatpush1.msra.mxu0 0.0
        %6987 = vmatprep.subr.mxu0 0.0
        %6988 = vmatpush1.msra.mxu0 0.0
        %6989 = vmatprep.subr.mxu0 0.0
        %6990 = vmatpush1.msra.mxu0 0.0
        %6991 = vmatprep.subr.mxu0 0.0
        %6992 = vmatpush1.msra.mxu0 0.0
        %6993 = vmatprep.subr.mxu0 0.0
        %6994 = vmatpush1.msra.mxu0 0.0
        %6995 = vmatprep.subr.mxu0 0.0
        %6996 = vmatpush1.msra.mxu0 %v6960
        %6997 = vmatprep.subr.mxu0 0.0
        %6998 = vmatpush2.msra.mxu0 0.0
        %6999 = vmatprep.subr.mxu0 0.0
        %7000 = vmatpush2.msra.mxu0 0.0
        %7001 = vmatprep.subr.mxu0 0.0
        %7002 = vmatpush2.msra.mxu0 0.0
        %7003 = vmatprep.subr.mxu0 0.0
        %7004 = vmatpush2.msra.mxu0 0.0
        %7005 = vmatprep.subr.mxu0 0.0
        %7006 = vmatpush2.msra.mxu0 0.0
        %7007 = vmatprep.subr.mxu0 0.0
        %7008 = vmatpush2.msra.mxu0 0.0
        %7009 = vmatprep.subr.mxu0 0.0
        %7010 = vmatpush2.msra.mxu0 0.0
        %7011 = vmatprep.subr.mxu0 0.0
        %7012 = vmatpush2.msra.mxu0 0.0
        %7013 = vmatprep.subr.mxu0 0.0
        %7014 = vmatpush2.msra.mxu0 0.0
        %7015 = vmatprep.subr.mxu0 0.0
        %7016 = vmatpush2.msra.mxu0 0.0
        %7017 = vmatprep.subr.mxu0 0.0
        %7018 = vmatpush2.msra.mxu0 0.0
        %7019 = vmatprep.subr.mxu0 0.0
        %7020 = vmatpush2.msra.mxu0 0.0
        %7021 = vmatprep.subr.mxu0 0.0
        %7022 = vmatpush2.msra.mxu0 0.0
        %7023 = vmatprep.subr.mxu0 0.0
        %7024 = vmatpush2.msra.mxu0 0.0
        %7025 = vmatprep.subr.mxu0 0.0
        %7026 = vmatpush2.msra.mxu0 0.0
        %7027 = vmatprep.subr.mxu0 0.0
        %7028 = vmatpush2.msra.mxu0 0.0
        %7029 = vmatprep.mubr.f32.mxu0 0.0
        %7030 = vmatmul.mubr.f32.gmra.mxu0 %v6963
        %v7031 = vpop.f32.mrf.mxu0
        %v7032 = vadd.f32 0.0, %v7031
        %v7033 = vpop.f32.mrf.mxu0
        %7034 = vdwg.mxu0
        %7035 = vrot.lane.b32.xlu0 %v6258, 64
        %v7036 = vpop.permute.xlu0 %7035
        %v7039 = vsel %vm1150, %v6952, 0
        %7041 = vmatprep.subr.mxu0 0.0
        %7042 = vmatpush1.msra.mxu0 0.0
        %7043 = vmatprep.subr.mxu0 0.0
        %7044 = vmatpush1.msra.mxu0 0.0
        %7045 = vmatprep.subr.mxu0 0.0
        %7046 = vmatpush1.msra.mxu0 0.0
        %7047 = vmatprep.subr.mxu0 0.0
        %7048 = vmatpush1.msra.mxu0 0.0
        %7049 = vmatprep.subr.mxu0 0.0
        %7050 = vmatpush1.msra.mxu0 0.0
        %7051 = vmatprep.subr.mxu0 0.0
        %7052 = vmatpush1.msra.mxu0 0.0
        %7053 = vmatprep.subr.mxu0 0.0
        %7054 = vmatpush1.msra.mxu0 0.0
        %7055 = vmatprep.subr.mxu0 0.0
        %7056 = vmatpush1.msra.mxu0 0.0
        %7057 = vmatprep.subr.mxu0 0.0
        %7058 = vmatpush1.msra.mxu0 0.0
        %7059 = vmatprep.subr.mxu0 0.0
        %7060 = vmatpush1.msra.mxu0 0.0
        %7061 = vmatprep.subr.mxu0 0.0
        %7062 = vmatpush1.msra.mxu0 0.0
        %7063 = vmatprep.subr.mxu0 0.0
        %7064 = vmatpush1.msra.mxu0 0.0
        %7065 = vmatprep.subr.mxu0 0.0
        %7066 = vmatpush1.msra.mxu0 0.0
        %7067 = vmatprep.subr.mxu0 0.0
        %7068 = vmatpush1.msra.mxu0 0.0
        %7069 = vmatprep.subr.mxu0 0.0
        %7070 = vmatpush1.msra.mxu0 0.0
        %7071 = vmatprep.subr.mxu0 0.0
        %7072 = vmatpush1.msra.mxu0 %v7036
        %7073 = vmatprep.subr.mxu0 0.0
        %7074 = vmatpush2.msra.mxu0 0.0
        %7075 = vmatprep.subr.mxu0 0.0
        %7076 = vmatpush2.msra.mxu0 0.0
        %7077 = vmatprep.subr.mxu0 0.0
        %7078 = vmatpush2.msra.mxu0 0.0
        %7079 = vmatprep.subr.mxu0 0.0
        %7080 = vmatpush2.msra.mxu0 0.0
        %7081 = vmatprep.subr.mxu0 0.0
        %7082 = vmatpush2.msra.mxu0 0.0
        %7083 = vmatprep.subr.mxu0 0.0
        %7084 = vmatpush2.msra.mxu0 0.0
        %7085 = vmatprep.subr.mxu0 0.0
        %7086 = vmatpush2.msra.mxu0 0.0
        %7087 = vmatprep.subr.mxu0 0.0
        %7088 = vmatpush2.msra.mxu0 0.0
        %7089 = vmatprep.subr.mxu0 0.0
        %7090 = vmatpush2.msra.mxu0 0.0
        %7091 = vmatprep.subr.mxu0 0.0
        %7092 = vmatpush2.msra.mxu0 0.0
        %7093 = vmatprep.subr.mxu0 0.0
        %7094 = vmatpush2.msra.mxu0 0.0
        %7095 = vmatprep.subr.mxu0 0.0
        %7096 = vmatpush2.msra.mxu0 0.0
        %7097 = vmatprep.subr.mxu0 0.0
        %7098 = vmatpush2.msra.mxu0 0.0
        %7099 = vmatprep.subr.mxu0 0.0
        %7100 = vmatpush2.msra.mxu0 0.0
        %7101 = vmatprep.subr.mxu0 0.0
        %7102 = vmatpush2.msra.mxu0 0.0
        %7103 = vmatprep.subr.mxu0 0.0
        %7104 = vmatpush2.msra.mxu0 0.0
        %7105 = vmatprep.mubr.f32.mxu0 0.0
        %7106 = vmatmul.mubr.f32.gmra.mxu0 %v7039
        %v7107 = vpop.f32.mrf.mxu0
        %v7108 = vadd.f32 0.0, %v7107
        %v7109 = vpop.f32.mrf.mxu0
        %7110 = vdwg.mxu0
        %7111 = vrot.lane.b32.xlu0 %v6260, 64
        %v7112 = vpop.permute.xlu0 %7111
        %v7115 = vsel %vm1150, %v6953, 0
        %7117 = vmatprep.subr.mxu0 0.0
        %7118 = vmatpush1.msra.mxu0 0.0
        %7119 = vmatprep.subr.mxu0 0.0
        %7120 = vmatpush1.msra.mxu0 0.0
        %7121 = vmatprep.subr.mxu0 0.0
        %7122 = vmatpush1.msra.mxu0 0.0
        %7123 = vmatprep.subr.mxu0 0.0
        %7124 = vmatpush1.msra.mxu0 0.0
        %7125 = vmatprep.subr.mxu0 0.0
        %7126 = vmatpush1.msra.mxu0 0.0
        %7127 = vmatprep.subr.mxu0 0.0
        %7128 = vmatpush1.msra.mxu0 0.0
        %7129 = vmatprep.subr.mxu0 0.0
        %7130 = vmatpush1.msra.mxu0 0.0
        %7131 = vmatprep.subr.mxu0 0.0
        %7132 = vmatpush1.msra.mxu0 0.0
        %7133 = vmatprep.subr.mxu0 0.0
        %7134 = vmatpush1.msra.mxu0 0.0
        %7135 = vmatprep.subr.mxu0 0.0
        %7136 = vmatpush1.msra.mxu0 0.0
        %7137 = vmatprep.subr.mxu0 0.0
        %7138 = vmatpush1.msra.mxu0 0.0
        %7139 = vmatprep.subr.mxu0 0.0
        %7140 = vmatpush1.msra.mxu0 0.0
        %7141 = vmatprep.subr.mxu0 0.0
        %7142 = vmatpush1.msra.mxu0 0.0
        %7143 = vmatprep.subr.mxu0 0.0
        %7144 = vmatpush1.msra.mxu0 0.0
        %7145 = vmatprep.subr.mxu0 0.0
        %7146 = vmatpush1.msra.mxu0 0.0
        %7147 = vmatprep.subr.mxu0 0.0
        %7148 = vmatpush1.msra.mxu0 %v7112
        %7149 = vmatprep.subr.mxu0 0.0
        %7150 = vmatpush2.msra.mxu0 0.0
        %7151 = vmatprep.subr.mxu0 0.0
        %7152 = vmatpush2.msra.mxu0 0.0
        %7153 = vmatprep.subr.mxu0 0.0
        %7154 = vmatpush2.msra.mxu0 0.0
        %7155 = vmatprep.subr.mxu0 0.0
        %7156 = vmatpush2.msra.mxu0 0.0
        %7157 = vmatprep.subr.mxu0 0.0
        %7158 = vmatpush2.msra.mxu0 0.0
        %7159 = vmatprep.subr.mxu0 0.0
        %7160 = vmatpush2.msra.mxu0 0.0
        %7161 = vmatprep.subr.mxu0 0.0
        %7162 = vmatpush2.msra.mxu0 0.0
        %7163 = vmatprep.subr.mxu0 0.0
        %7164 = vmatpush2.msra.mxu0 0.0
        %7165 = vmatprep.subr.mxu0 0.0
        %7166 = vmatpush2.msra.mxu0 0.0
        %7167 = vmatprep.subr.mxu0 0.0
        %7168 = vmatpush2.msra.mxu0 0.0
        %7169 = vmatprep.subr.mxu0 0.0
        %7170 = vmatpush2.msra.mxu0 0.0
        %7171 = vmatprep.subr.mxu0 0.0
        %7172 = vmatpush2.msra.mxu0 0.0
        %7173 = vmatprep.subr.mxu0 0.0
        %7174 = vmatpush2.msra.mxu0 0.0
        %7175 = vmatprep.subr.mxu0 0.0
        %7176 = vmatpush2.msra.mxu0 0.0
        %7177 = vmatprep.subr.mxu0 0.0
        %7178 = vmatpush2.msra.mxu0 0.0
        %7179 = vmatprep.subr.mxu0 0.0
        %7180 = vmatpush2.msra.mxu0 0.0
        %7181 = vmatprep.mubr.f32.mxu0 0.0
        %7182 = vmatmul.mubr.f32.gmra.mxu0 %v7115
        %v7183 = vpop.f32.mrf.mxu0
        %v7184 = vadd.f32 0.0, %v7183
        %v7185 = vpop.f32.mrf.mxu0
        %7186 = vdwg.mxu0
        %7187 = vrot.lane.b32.xlu0 %v6262, 64
        %v7188 = vpop.permute.xlu0 %7187
        %v7191 = vsel %vm1150, %v6954, 0
        %7193 = vmatprep.subr.mxu0 0.0
        %7194 = vmatpush1.msra.mxu0 0.0
        %7195 = vmatprep.subr.mxu0 0.0
        %7196 = vmatpush1.msra.mxu0 0.0
        %7197 = vmatprep.subr.mxu0 0.0
        %7198 = vmatpush1.msra.mxu0 0.0
        %7199 = vmatprep.subr.mxu0 0.0
        %7200 = vmatpush1.msra.mxu0 0.0
        %7201 = vmatprep.subr.mxu0 0.0
        %7202 = vmatpush1.msra.mxu0 0.0
        %7203 = vmatprep.subr.mxu0 0.0
        %7204 = vmatpush1.msra.mxu0 0.0
        %7205 = vmatprep.subr.mxu0 0.0
        %7206 = vmatpush1.msra.mxu0 0.0
        %7207 = vmatprep.subr.mxu0 0.0
        %7208 = vmatpush1.msra.mxu0 0.0
        %7209 = vmatprep.subr.mxu0 0.0
        %7210 = vmatpush1.msra.mxu0 0.0
        %7211 = vmatprep.subr.mxu0 0.0
        %7212 = vmatpush1.msra.mxu0 0.0
        %7213 = vmatprep.subr.mxu0 0.0
        %7214 = vmatpush1.msra.mxu0 0.0
        %7215 = vmatprep.subr.mxu0 0.0
        %7216 = vmatpush1.msra.mxu0 0.0
        %7217 = vmatprep.subr.mxu0 0.0
        %7218 = vmatpush1.msra.mxu0 0.0
        %7219 = vmatprep.subr.mxu0 0.0
        %7220 = vmatpush1.msra.mxu0 0.0
        %7221 = vmatprep.subr.mxu0 0.0
        %7222 = vmatpush1.msra.mxu0 0.0
        %7223 = vmatprep.subr.mxu0 0.0
        %7224 = vmatpush1.msra.mxu0 %v7188
        %7225 = vmatprep.subr.mxu0 0.0
        %7226 = vmatpush2.msra.mxu0 0.0
        %7227 = vmatprep.subr.mxu0 0.0
        %7228 = vmatpush2.msra.mxu0 0.0
        %7229 = vmatprep.subr.mxu0 0.0
        %7230 = vmatpush2.msra.mxu0 0.0
        %7231 = vmatprep.subr.mxu0 0.0
        %7232 = vmatpush2.msra.mxu0 0.0
        %7233 = vmatprep.subr.mxu0 0.0
        %7234 = vmatpush2.msra.mxu0 0.0
        %7235 = vmatprep.subr.mxu0 0.0
        %7236 = vmatpush2.msra.mxu0 0.0
        %7237 = vmatprep.subr.mxu0 0.0
        %7238 = vmatpush2.msra.mxu0 0.0
        %7239 = vmatprep.subr.mxu0 0.0
        %7240 = vmatpush2.msra.mxu0 0.0
        %7241 = vmatprep.subr.mxu0 0.0
        %7242 = vmatpush2.msra.mxu0 0.0
        %7243 = vmatprep.subr.mxu0 0.0
        %7244 = vmatpush2.msra.mxu0 0.0
        %7245 = vmatprep.subr.mxu0 0.0
        %7246 = vmatpush2.msra.mxu0 0.0
        %7247 = vmatprep.subr.mxu0 0.0
        %7248 = vmatpush2.msra.mxu0 0.0
        %7249 = vmatprep.subr.mxu0 0.0
        %7250 = vmatpush2.msra.mxu0 0.0
        %7251 = vmatprep.subr.mxu0 0.0
        %7252 = vmatpush2.msra.mxu0 0.0
        %7253 = vmatprep.subr.mxu0 0.0
        %7254 = vmatpush2.msra.mxu0 0.0
        %7255 = vmatprep.subr.mxu0 0.0
        %7256 = vmatpush2.msra.mxu0 0.0
        %7257 = vmatprep.mubr.f32.mxu0 0.0
        %7258 = vmatmul.mubr.f32.gmra.mxu0 %v7191
        %v7259 = vpop.f32.mrf.mxu0
        %v7260 = vadd.f32 0.0, %v7259
        %v7261 = vpop.f32.mrf.mxu0
        %7262 = vdwg.mxu0
        %7263 = vrot.lane.b32.xlu0 %v6264, 64
        %v7264 = vpop.permute.xlu0 %7263
        %v7267 = vsel %vm1150, %v6955, 0
        %7269 = vmatprep.subr.mxu0 0.0
        %7270 = vmatpush1.msra.mxu0 0.0
        %7271 = vmatprep.subr.mxu0 0.0
        %7272 = vmatpush1.msra.mxu0 0.0
        %7273 = vmatprep.subr.mxu0 0.0
        %7274 = vmatpush1.msra.mxu0 0.0
        %7275 = vmatprep.subr.mxu0 0.0
        %7276 = vmatpush1.msra.mxu0 0.0
        %7277 = vmatprep.subr.mxu0 0.0
        %7278 = vmatpush1.msra.mxu0 0.0
        %7279 = vmatprep.subr.mxu0 0.0
        %7280 = vmatpush1.msra.mxu0 0.0
        %7281 = vmatprep.subr.mxu0 0.0
        %7282 = vmatpush1.msra.mxu0 0.0
        %7283 = vmatprep.subr.mxu0 0.0
        %7284 = vmatpush1.msra.mxu0 0.0
        %7285 = vmatprep.subr.mxu0 0.0
        %7286 = vmatpush1.msra.mxu0 0.0
        %7287 = vmatprep.subr.mxu0 0.0
        %7288 = vmatpush1.msra.mxu0 0.0
        %7289 = vmatprep.subr.mxu0 0.0
        %7290 = vmatpush1.msra.mxu0 0.0
        %7291 = vmatprep.subr.mxu0 0.0
        %7292 = vmatpush1.msra.mxu0 0.0
        %7293 = vmatprep.subr.mxu0 0.0
        %7294 = vmatpush1.msra.mxu0 0.0
        %7295 = vmatprep.subr.mxu0 0.0
        %7296 = vmatpush1.msra.mxu0 0.0
        %7297 = vmatprep.subr.mxu0 0.0
        %7298 = vmatpush1.msra.mxu0 0.0
        %7299 = vmatprep.subr.mxu0 0.0
        %7300 = vmatpush1.msra.mxu0 %v7264
        %7301 = vmatprep.subr.mxu0 0.0
        %7302 = vmatpush2.msra.mxu0 0.0
        %7303 = vmatprep.subr.mxu0 0.0
        %7304 = vmatpush2.msra.mxu0 0.0
        %7305 = vmatprep.subr.mxu0 0.0
        %7306 = vmatpush2.msra.mxu0 0.0
        %7307 = vmatprep.subr.mxu0 0.0
        %7308 = vmatpush2.msra.mxu0 0.0
        %7309 = vmatprep.subr.mxu0 0.0
        %7310 = vmatpush2.msra.mxu0 0.0
        %7311 = vmatprep.subr.mxu0 0.0
        %7312 = vmatpush2.msra.mxu0 0.0
        %7313 = vmatprep.subr.mxu0 0.0
        %7314 = vmatpush2.msra.mxu0 0.0
        %7315 = vmatprep.subr.mxu0 0.0
        %7316 = vmatpush2.msra.mxu0 0.0
        %7317 = vmatprep.subr.mxu0 0.0
        %7318 = vmatpush2.msra.mxu0 0.0
        %7319 = vmatprep.subr.mxu0 0.0
        %7320 = vmatpush2.msra.mxu0 0.0
        %7321 = vmatprep.subr.mxu0 0.0
        %7322 = vmatpush2.msra.mxu0 0.0
        %7323 = vmatprep.subr.mxu0 0.0
        %7324 = vmatpush2.msra.mxu0 0.0
        %7325 = vmatprep.subr.mxu0 0.0
        %7326 = vmatpush2.msra.mxu0 0.0
        %7327 = vmatprep.subr.mxu0 0.0
        %7328 = vmatpush2.msra.mxu0 0.0
        %7329 = vmatprep.subr.mxu0 0.0
        %7330 = vmatpush2.msra.mxu0 0.0
        %7331 = vmatprep.subr.mxu0 0.0
        %7332 = vmatpush2.msra.mxu0 0.0
        %7333 = vmatprep.mubr.f32.mxu0 0.0
        %7334 = vmatmul.mubr.f32.gmra.mxu0 %v7267
        %v7335 = vpop.f32.mrf.mxu0
        %v7336 = vadd.f32 0.0, %v7335
        %v7337 = vpop.f32.mrf.mxu0
        %7338 = vdwg.mxu0
        %7339 = vrot.lane.b32.xlu0 %v6266, 64
        %v7340 = vpop.permute.xlu0 %7339
        %v7343 = vsel %vm1150, %v6956, 0
        %7345 = vmatprep.subr.mxu0 0.0
        %7346 = vmatpush1.msra.mxu0 0.0
        %7347 = vmatprep.subr.mxu0 0.0
        %7348 = vmatpush1.msra.mxu0 0.0
        %7349 = vmatprep.subr.mxu0 0.0
        %7350 = vmatpush1.msra.mxu0 0.0
        %7351 = vmatprep.subr.mxu0 0.0
        %7352 = vmatpush1.msra.mxu0 0.0
        %7353 = vmatprep.subr.mxu0 0.0
        %7354 = vmatpush1.msra.mxu0 0.0
        %7355 = vmatprep.subr.mxu0 0.0
        %7356 = vmatpush1.msra.mxu0 0.0
        %7357 = vmatprep.subr.mxu0 0.0
        %7358 = vmatpush1.msra.mxu0 0.0
        %7359 = vmatprep.subr.mxu0 0.0
        %7360 = vmatpush1.msra.mxu0 0.0
        %7361 = vmatprep.subr.mxu0 0.0
        %7362 = vmatpush1.msra.mxu0 0.0
        %7363 = vmatprep.subr.mxu0 0.0
        %7364 = vmatpush1.msra.mxu0 0.0
        %7365 = vmatprep.subr.mxu0 0.0
        %7366 = vmatpush1.msra.mxu0 0.0
        %7367 = vmatprep.subr.mxu0 0.0
        %7368 = vmatpush1.msra.mxu0 0.0
        %7369 = vmatprep.subr.mxu0 0.0
        %7370 = vmatpush1.msra.mxu0 0.0
        %7371 = vmatprep.subr.mxu0 0.0
        %7372 = vmatpush1.msra.mxu0 0.0
        %7373 = vmatprep.subr.mxu0 0.0
        %7374 = vmatpush1.msra.mxu0 0.0
        %7375 = vmatprep.subr.mxu0 0.0
        %7376 = vmatpush1.msra.mxu0 %v7340
        %7377 = vmatprep.subr.mxu0 0.0
        %7378 = vmatpush2.msra.mxu0 0.0
        %7379 = vmatprep.subr.mxu0 0.0
        %7380 = vmatpush2.msra.mxu0 0.0
        %7381 = vmatprep.subr.mxu0 0.0
        %7382 = vmatpush2.msra.mxu0 0.0
        %7383 = vmatprep.subr.mxu0 0.0
        %7384 = vmatpush2.msra.mxu0 0.0
        %7385 = vmatprep.subr.mxu0 0.0
        %7386 = vmatpush2.msra.mxu0 0.0
        %7387 = vmatprep.subr.mxu0 0.0
        %7388 = vmatpush2.msra.mxu0 0.0
        %7389 = vmatprep.subr.mxu0 0.0
        %7390 = vmatpush2.msra.mxu0 0.0
        %7391 = vmatprep.subr.mxu0 0.0
        %7392 = vmatpush2.msra.mxu0 0.0
        %7393 = vmatprep.subr.mxu0 0.0
        %7394 = vmatpush2.msra.mxu0 0.0
        %7395 = vmatprep.subr.mxu0 0.0
        %7396 = vmatpush2.msra.mxu0 0.0
        %7397 = vmatprep.subr.mxu0 0.0
        %7398 = vmatpush2.msra.mxu0 0.0
        %7399 = vmatprep.subr.mxu0 0.0
        %7400 = vmatpush2.msra.mxu0 0.0
        %7401 = vmatprep.subr.mxu0 0.0
        %7402 = vmatpush2.msra.mxu0 0.0
        %7403 = vmatprep.subr.mxu0 0.0
        %7404 = vmatpush2.msra.mxu0 0.0
        %7405 = vmatprep.subr.mxu0 0.0
        %7406 = vmatpush2.msra.mxu0 0.0
        %7407 = vmatprep.subr.mxu0 0.0
        %7408 = vmatpush2.msra.mxu0 0.0
        %7409 = vmatprep.mubr.f32.mxu0 0.0
        %7410 = vmatmul.mubr.f32.gmra.mxu0 %v7343
        %v7411 = vpop.f32.mrf.mxu0
        %v7412 = vadd.f32 0.0, %v7411
        %v7413 = vpop.f32.mrf.mxu0
        %7414 = vdwg.mxu0
        %7415 = vrot.lane.b32.xlu0 %v6268, 64
        %v7416 = vpop.permute.xlu0 %7415
        %v7419 = vsel %vm1150, %v6957, 0
        %7421 = vmatprep.subr.mxu0 0.0
        %7422 = vmatpush1.msra.mxu0 0.0
        %7423 = vmatprep.subr.mxu0 0.0
        %7424 = vmatpush1.msra.mxu0 0.0
        %7425 = vmatprep.subr.mxu0 0.0
        %7426 = vmatpush1.msra.mxu0 0.0
        %7427 = vmatprep.subr.mxu0 0.0
        %7428 = vmatpush1.msra.mxu0 0.0
        %7429 = vmatprep.subr.mxu0 0.0
        %7430 = vmatpush1.msra.mxu0 0.0
        %7431 = vmatprep.subr.mxu0 0.0
        %7432 = vmatpush1.msra.mxu0 0.0
        %7433 = vmatprep.subr.mxu0 0.0
        %7434 = vmatpush1.msra.mxu0 0.0
        %7435 = vmatprep.subr.mxu0 0.0
        %7436 = vmatpush1.msra.mxu0 0.0
        %7437 = vmatprep.subr.mxu0 0.0
        %7438 = vmatpush1.msra.mxu0 0.0
        %7439 = vmatprep.subr.mxu0 0.0
        %7440 = vmatpush1.msra.mxu0 0.0
        %7441 = vmatprep.subr.mxu0 0.0
        %7442 = vmatpush1.msra.mxu0 0.0
        %7443 = vmatprep.subr.mxu0 0.0
        %7444 = vmatpush1.msra.mxu0 0.0
        %7445 = vmatprep.subr.mxu0 0.0
        %7446 = vmatpush1.msra.mxu0 0.0
        %7447 = vmatprep.subr.mxu0 0.0
        %7448 = vmatpush1.msra.mxu0 0.0
        %7449 = vmatprep.subr.mxu0 0.0
        %7450 = vmatpush1.msra.mxu0 0.0
        %7451 = vmatprep.subr.mxu0 0.0
        %7452 = vmatpush1.msra.mxu0 %v7416
        %7453 = vmatprep.subr.mxu0 0.0
        %7454 = vmatpush2.msra.mxu0 0.0
        %7455 = vmatprep.subr.mxu0 0.0
        %7456 = vmatpush2.msra.mxu0 0.0
        %7457 = vmatprep.subr.mxu0 0.0
        %7458 = vmatpush2.msra.mxu0 0.0
        %7459 = vmatprep.subr.mxu0 0.0
        %7460 = vmatpush2.msra.mxu0 0.0
        %7461 = vmatprep.subr.mxu0 0.0
        %7462 = vmatpush2.msra.mxu0 0.0
        %7463 = vmatprep.subr.mxu0 0.0
        %7464 = vmatpush2.msra.mxu0 0.0
        %7465 = vmatprep.subr.mxu0 0.0
        %7466 = vmatpush2.msra.mxu0 0.0
        %7467 = vmatprep.subr.mxu0 0.0
        %7468 = vmatpush2.msra.mxu0 0.0
        %7469 = vmatprep.subr.mxu0 0.0
        %7470 = vmatpush2.msra.mxu0 0.0
        %7471 = vmatprep.subr.mxu0 0.0
        %7472 = vmatpush2.msra.mxu0 0.0
        %7473 = vmatprep.subr.mxu0 0.0
        %7474 = vmatpush2.msra.mxu0 0.0
        %7475 = vmatprep.subr.mxu0 0.0
        %7476 = vmatpush2.msra.mxu0 0.0
        %7477 = vmatprep.subr.mxu0 0.0
        %7478 = vmatpush2.msra.mxu0 0.0
        %7479 = vmatprep.subr.mxu0 0.0
        %7480 = vmatpush2.msra.mxu0 0.0
        %7481 = vmatprep.subr.mxu0 0.0
        %7482 = vmatpush2.msra.mxu0 0.0
        %7483 = vmatprep.subr.mxu0 0.0
        %7484 = vmatpush2.msra.mxu0 0.0
        %7485 = vmatprep.mubr.f32.mxu0 0.0
        %7486 = vmatmul.mubr.f32.gmra.mxu0 %v7419
        %v7487 = vpop.f32.mrf.mxu0
        %v7488 = vadd.f32 0.0, %v7487
        %v7489 = vpop.f32.mrf.mxu0
        %7490 = vdwg.mxu0
        %7491 = vrot.lane.b32.xlu0 %v6270, 64
        %v7492 = vpop.permute.xlu0 %7491
        %v7495 = vsel %vm1150, %v6958, 0
        %7497 = vmatprep.subr.mxu0 0.0
        %7498 = vmatpush1.msra.mxu0 0.0
        %7499 = vmatprep.subr.mxu0 0.0
        %7500 = vmatpush1.msra.mxu0 0.0
        %7501 = vmatprep.subr.mxu0 0.0
        %7502 = vmatpush1.msra.mxu0 0.0
        %7503 = vmatprep.subr.mxu0 0.0
        %7504 = vmatpush1.msra.mxu0 0.0
        %7505 = vmatprep.subr.mxu0 0.0
        %7506 = vmatpush1.msra.mxu0 0.0
        %7507 = vmatprep.subr.mxu0 0.0
        %7508 = vmatpush1.msra.mxu0 0.0
        %7509 = vmatprep.subr.mxu0 0.0
        %7510 = vmatpush1.msra.mxu0 0.0
        %7511 = vmatprep.subr.mxu0 0.0
        %7512 = vmatpush1.msra.mxu0 0.0
        %7513 = vmatprep.subr.mxu0 0.0
        %7514 = vmatpush1.msra.mxu0 0.0
        %7515 = vmatprep.subr.mxu0 0.0
        %7516 = vmatpush1.msra.mxu0 0.0
        %7517 = vmatprep.subr.mxu0 0.0
        %7518 = vmatpush1.msra.mxu0 0.0
        %7519 = vmatprep.subr.mxu0 0.0
        %7520 = vmatpush1.msra.mxu0 0.0
        %7521 = vmatprep.subr.mxu0 0.0
        %7522 = vmatpush1.msra.mxu0 0.0
        %7523 = vmatprep.subr.mxu0 0.0
        %7524 = vmatpush1.msra.mxu0 0.0
        %7525 = vmatprep.subr.mxu0 0.0
        %7526 = vmatpush1.msra.mxu0 0.0
        %7527 = vmatprep.subr.mxu0 0.0
        %7528 = vmatpush1.msra.mxu0 %v7492
        %7529 = vmatprep.subr.mxu0 0.0
        %7530 = vmatpush2.msra.mxu0 0.0
        %7531 = vmatprep.subr.mxu0 0.0
        %7532 = vmatpush2.msra.mxu0 0.0
        %7533 = vmatprep.subr.mxu0 0.0
        %7534 = vmatpush2.msra.mxu0 0.0
        %7535 = vmatprep.subr.mxu0 0.0
        %7536 = vmatpush2.msra.mxu0 0.0
        %7537 = vmatprep.subr.mxu0 0.0
        %7538 = vmatpush2.msra.mxu0 0.0
        %7539 = vmatprep.subr.mxu0 0.0
        %7540 = vmatpush2.msra.mxu0 0.0
        %7541 = vmatprep.subr.mxu0 0.0
        %7542 = vmatpush2.msra.mxu0 0.0
        %7543 = vmatprep.subr.mxu0 0.0
        %7544 = vmatpush2.msra.mxu0 0.0
        %7545 = vmatprep.subr.mxu0 0.0
        %7546 = vmatpush2.msra.mxu0 0.0
        %7547 = vmatprep.subr.mxu0 0.0
        %7548 = vmatpush2.msra.mxu0 0.0
        %7549 = vmatprep.subr.mxu0 0.0
        %7550 = vmatpush2.msra.mxu0 0.0
        %7551 = vmatprep.subr.mxu0 0.0
        %7552 = vmatpush2.msra.mxu0 0.0
        %7553 = vmatprep.subr.mxu0 0.0
        %7554 = vmatpush2.msra.mxu0 0.0
        %7555 = vmatprep.subr.mxu0 0.0
        %7556 = vmatpush2.msra.mxu0 0.0
        %7557 = vmatprep.subr.mxu0 0.0
        %7558 = vmatpush2.msra.mxu0 0.0
        %7559 = vmatprep.subr.mxu0 0.0
        %7560 = vmatpush2.msra.mxu0 0.0
        %7561 = vmatprep.mubr.f32.mxu0 0.0
        %7562 = vmatmul.mubr.f32.gmra.mxu0 %v7495
        %v7563 = vpop.f32.mrf.mxu0
        %v7564 = vadd.f32 0.0, %v7563
        %v7565 = vpop.f32.mrf.mxu0
        %7566 = vdwg.mxu0
        %7568 = vrot.lane.b32.xlu0 %v7108, 8
        %v7569 = vpop.permute.xlu0 %7568
        %7572 = vrot.lane.b32.xlu0 %v7184, 16
        %v7573 = vpop.permute.xlu0 %7572
        %7576 = vrot.lane.b32.xlu0 %v7260, 24
        %v7577 = vpop.permute.xlu0 %7576
        %7580 = vrot.lane.b32.xlu0 %v7336, 32
        %v7581 = vpop.permute.xlu0 %7580
        %7584 = vrot.lane.b32.xlu0 %v7412, 40
        %v7585 = vpop.permute.xlu0 %7584
        %7588 = vrot.lane.b32.xlu0 %v7488, 48
        %v7589 = vpop.permute.xlu0 %7588
        %7592 = vrot.lane.b32.xlu0 %v7564, 56
        %v7593 = vpop.permute.xlu0 %7592
        %v7595 = vsel %vm1150, %v7032, %v7569
        %v7596 = vsel %vm2466, %v7595, %v7573
        %v7597 = vsel %vm2468, %v7596, %v7577
        %v7598 = vsel %vm2470, %v7597, %v7581
        %v7599 = vsel %vm2472, %v7598, %v7585
        %v7600 = vsel %vm2474, %v7599, %v7589
        %v7601 = vsel %vm2476, %v7600, %v7593
        %v7602 = vpack.c.bf16 %v7601, %v7601
        %v7604 = vlaneseq
        %v7605 = vshrl.u32 %v7604, 7
        %v7606 = vsub.s32 0, %v7605
        %v7607 = vrot.slane %v6240, %v7606
        %v7617 = vunpack.c.l.b16 %v6231
        %v7618 = vunpack.c.l.b16 %v6232
        %v7619 = vunpack.c.l.b16 %v6233
        %v7620 = vunpack.c.l.b16 %v6234
        %v7621 = vunpack.c.l.b16 %v6235
        %v7622 = vunpack.c.l.b16 %v6236
        %v7623 = vunpack.c.l.b16 %v6237
        %v7624 = vunpack.c.l.b16 %v6238
        %v7625 = vpack.c.b16 %v7618, %v7617
        %v7626 = vpack.c.b16 %v7620, %v7619
        %v7627 = vpack.c.b16 %v7622, %v7621
        %v7628 = vpack.c.b16 %v7624, %v7623
        %v7634 = vsel %vm952, %v7602, 0
        %7636 = vmatprep.subr.bf16.mxu0 0
        %7637 = vmatpush1.bf16.msra.mxu0 0
        %7638 = vmatprep.subr.bf16.mxu0 0
        %7639 = vmatpush1.bf16.msra.mxu0 0
        %7640 = vmatprep.subr.bf16.mxu0 0
        %7641 = vmatpush1.bf16.msra.mxu0 0
        %7642 = vmatprep.subr.bf16.mxu0 0
        %7643 = vmatpush1.bf16.msra.mxu0 0
        %7644 = vmatprep.subr.bf16.mxu0 0
        %7645 = vmatpush1.bf16.msra.mxu0 %v7628
        %7646 = vmatprep.subr.bf16.mxu0 0
        %7647 = vmatpush1.bf16.msra.mxu0 %v7627
        %7648 = vmatprep.subr.bf16.mxu0 0
        %7649 = vmatpush1.bf16.msra.mxu0 %v7626
        %7650 = vmatprep.subr.bf16.mxu0 0
        %7651 = vmatpush1.bf16.msra.mxu0 %v7625
        %7652 = vmatprep.subr.bf16.mxu0 0
        %7653 = vmatpush2.bf16.msra.mxu0 0
        %7654 = vmatprep.subr.bf16.mxu0 0
        %7655 = vmatpush2.bf16.msra.mxu0 0
        %7656 = vmatprep.subr.bf16.mxu0 0
        %7657 = vmatpush2.bf16.msra.mxu0 0
        %7658 = vmatprep.subr.bf16.mxu0 0
        %7659 = vmatpush2.bf16.msra.mxu0 0
        %7660 = vmatprep.subr.bf16.mxu0 0
        %7661 = vmatpush2.bf16.msra.mxu0 0
        %7662 = vmatprep.subr.bf16.mxu0 0
        %7663 = vmatpush2.bf16.msra.mxu0 0
        %7664 = vmatprep.subr.bf16.mxu0 0
        %7665 = vmatpush2.bf16.msra.mxu0 0
        %7666 = vmatprep.subr.bf16.mxu0 0
        %7667 = vmatpush2.bf16.msra.mxu0 0
        %7668 = vmatprep.mubr.bf16.mxu0 0
        %7669 = vmatmul.mubr.bf16.gmra.mxu0 %v7634
        %v7670 = vpop.f32.mrf.mxu0
        %v7671 = vadd.f32 %v7607, %v7670
        %v7672 = vpop.f32.mrf.mxu0
        %v7673 = vpop.f32.mrf.mxu0
        %v7674 = vpop.f32.mrf.mxu0
        %7675 = vdwg.mxu0
        %v7676 = vadd.f32 %v7671, %v6031
        %s7677 = scalar_lea.vmem %s5, 5
        %v7678 = vld [vmem:[%s7677] sm:$0x1]
        %s7679 = scalar_lea.vmem %s6, 5
        %v7680 = vld [vmem:[%s7679] sm:$0x1]
        %v7681 = vsel %vm952, %v7676, 0.0
        %7682 = vadd.xlane.f32.xlu0 %v7681
        %v7683 = vpop.xlane.xlu0 %7682
        %v7684 = vmul.f32 %v7683, %v956
        %v7685 = vsub.f32 %v7676, %v7684
        %v7686 = vmul.f32 %v7685, %v7685
        %v7687 = vsel %vm952, %v7686, 0.0
        %7688 = vadd.xlane.f32.xlu0 %v7687
        %v7689 = vpop.xlane.xlu0 %7688
        %v7690 = vmul.f32 %v7689, %v956
        %v7691 = vadd.f32 %v7690, 1e-06
        %v7692 = vrsqrt.pop %v7691
        %v7693 = vmul.f32 %v7685, %v7692
        %v7695 = vlaneseq
        %v7696 = vshrl.u32 %v7695, 7
        %v7697 = vsub.s32 0, %v7696
        %v7698 = vrot.slane %v7678, %v7697
        %v7700 = vmul.f32 %v7693, %v7698
        %v7702 = vlaneseq
        %v7703 = vshrl.u32 %v7702, 7
        %v7704 = vsub.s32 0, %v7703
        %v7705 = vrot.slane %v7680, %v7704
        %v7707 = vadd.f32 %v7700, %v7705
        %v7708 = vpack.c.bf16 %v7707, %v7707
        %s7709 = scalar_lea.vmem [#allocation16], 32
        %v7710 = vld [vmem:[%s7709] sm:$0xf]
        %v7711 = vld [vmem:[%s7709 + $0x4] sm:$0xf]
        %v7712 = vld [vmem:[%s7709 + $0x8] sm:$0xf]
        %v7713 = vld [vmem:[%s7709 + $0xc] sm:$0xf]
        %v7714 = vld [vmem:[%s7709 + $0x10] sm:$0xf]
        %v7715 = vld [vmem:[%s7709 + $0x14] sm:$0xf]
        %v7716 = vld [vmem:[%s7709 + $0x18] sm:$0xf]
        %v7717 = vld [vmem:[%s7709 + $0x1c] sm:$0xf]
        %s7718 = scalar_lea.vmem [#allocation17], 1
        %v7719 = vld [vmem:[%s7718] sm:$0x1]
        %v7721 = vlaneseq
        %v7722 = vshrl.u32 %v7721, 7
        %v7723 = vsub.s32 0, %v7722
        %v7724 = vrot.slane %v7719, %v7723
        %v7734 = vunpack.c.l.b16 %v7710
        %v7735 = vunpack.c.l.b16 %v7711
        %v7736 = vunpack.c.l.b16 %v7712
        %v7737 = vunpack.c.l.b16 %v7713
        %v7738 = vunpack.c.l.b16 %v7714
        %v7739 = vunpack.c.l.b16 %v7715
        %v7740 = vunpack.c.l.b16 %v7716
        %v7741 = vunpack.c.l.b16 %v7717
        %v7742 = vpack.c.b16 %v7735, %v7734
        %v7743 = vpack.c.b16 %v7737, %v7736
        %v7744 = vpack.c.b16 %v7739, %v7738
        %v7745 = vpack.c.b16 %v7741, %v7740
        %v7751 = vsel %vm952, %v7708, 0
        %7753 = vmatprep.subr.bf16.mxu0 0
        %7754 = vmatpush1.bf16.msra.mxu0 0
        %7755 = vmatprep.subr.bf16.mxu0 0
        %7756 = vmatpush1.bf16.msra.mxu0 0
        %7757 = vmatprep.subr.bf16.mxu0 0
        %7758 = vmatpush1.bf16.msra.mxu0 0
        %7759 = vmatprep.subr.bf16.mxu0 0
        %7760 = vmatpush1.bf16.msra.mxu0 0
        %7761 = vmatprep.subr.bf16.mxu0 0
        %7762 = vmatpush1.bf16.msra.mxu0 %v7745
        %7763 = vmatprep.subr.bf16.mxu0 0
        %7764 = vmatpush1.bf16.msra.mxu0 %v7744
        %7765 = vmatprep.subr.bf16.mxu0 0
        %7766 = vmatpush1.bf16.msra.mxu0 %v7743
        %7767 = vmatprep.subr.bf16.mxu0 0
        %7768 = vmatpush1.bf16.msra.mxu0 %v7742
        %7769 = vmatprep.subr.bf16.mxu0 0
        %7770 = vmatpush2.bf16.msra.mxu0 0
        %7771 = vmatprep.subr.bf16.mxu0 0
        %7772 = vmatpush2.bf16.msra.mxu0 0
        %7773 = vmatprep.subr.bf16.mxu0 0
        %7774 = vmatpush2.bf16.msra.mxu0 0
        %7775 = vmatprep.subr.bf16.mxu0 0
        %7776 = vmatpush2.bf16.msra.mxu0 0
        %7777 = vmatprep.subr.bf16.mxu0 0
        %7778 = vmatpush2.bf16.msra.mxu0 0
        %7779 = vmatprep.subr.bf16.mxu0 0
        %7780 = vmatpush2.bf16.msra.mxu0 0
        %7781 = vmatprep.subr.bf16.mxu0 0
        %7782 = vmatpush2.bf16.msra.mxu0 0
        %7783 = vmatprep.subr.bf16.mxu0 0
        %7784 = vmatpush2.bf16.msra.mxu0 0
        %7785 = vmatprep.mubr.bf16.mxu0 0
        %7786 = vmatmul.mubr.bf16.gmra.mxu0 %v7751
        %v7787 = vpop.f32.mrf.mxu0
        %v7788 = vadd.f32 %v7724, %v7787
        %v7789 = vpop.f32.mrf.mxu0
        %v7790 = vpop.f32.mrf.mxu0
        %v7791 = vpop.f32.mrf.mxu0
        %7792 = vdwg.mxu0
        %v7793 = vmax.f32 %v7788, 0.0
        %v7794 = vpack.c.bf16 %v7793, %v7793
        %s7795 = scalar_lea.vmem [#allocation19], 64
        %v7796 = vld [vmem:[%s7795] sm:$0xf]
        %v7797 = vld [vmem:[%s7795 + $0x4] sm:$0xf]
        %v7798 = vld [vmem:[%s7795 + $0x8] sm:$0xf]
        %v7799 = vld [vmem:[%s7795 + $0xc] sm:$0xf]
        %v7800 = vld [vmem:[%s7795 + $0x10] sm:$0xf]
        %v7801 = vld [vmem:[%s7795 + $0x14] sm:$0xf]
        %v7802 = vld [vmem:[%s7795 + $0x18] sm:$0xf]
        %v7803 = vld [vmem:[%s7795 + $0x1c] sm:$0xf]
        %v7804 = vld [vmem:[%s7795 + $0x20] sm:$0xf]
        %v7805 = vld [vmem:[%s7795 + $0x24] sm:$0xf]
        %v7806 = vld [vmem:[%s7795 + $0x28] sm:$0xf]
        %v7807 = vld [vmem:[%s7795 + $0x2c] sm:$0xf]
        %v7808 = vld [vmem:[%s7795 + $0x30] sm:$0xf]
        %v7809 = vld [vmem:[%s7795 + $0x34] sm:$0xf]
        %v7810 = vld [vmem:[%s7795 + $0x38] sm:$0xf]
        %v7811 = vld [vmem:[%s7795 + $0x3c] sm:$0xf]
        %s7812 = scalar_lea.vmem %s18, 1
        %v7813 = vld [vmem:[%s7812] sm:$0x1]
        %v7815 = vlaneseq
        %v7816 = vshrl.u32 %v7815, 7
        %v7817 = vsub.s32 0, %v7816
        %v7818 = vrot.slane %v7813, %v7817
        %v7836 = vunpack.c.l.b16 %v7796
        %v7837 = vunpack.c.l.b16 %v7797
        %v7838 = vunpack.c.l.b16 %v7798
        %v7839 = vunpack.c.l.b16 %v7799
        %v7840 = vunpack.c.l.b16 %v7800
        %v7841 = vunpack.c.l.b16 %v7801
        %v7842 = vunpack.c.l.b16 %v7802
        %v7843 = vunpack.c.l.b16 %v7803
        %v7844 = vunpack.c.l.b16 %v7804
        %v7845 = vunpack.c.l.b16 %v7805
        %v7846 = vunpack.c.l.b16 %v7806
        %v7847 = vunpack.c.l.b16 %v7807
        %v7848 = vunpack.c.l.b16 %v7808
        %v7849 = vunpack.c.l.b16 %v7809
        %v7850 = vunpack.c.l.b16 %v7810
        %v7851 = vunpack.c.l.b16 %v7811
        %v7852 = vpack.c.b16 %v7837, %v7836
        %v7853 = vpack.c.b16 %v7839, %v7838
        %v7854 = vpack.c.b16 %v7841, %v7840
        %v7855 = vpack.c.b16 %v7843, %v7842
        %v7856 = vpack.c.b16 %v7845, %v7844
        %v7857 = vpack.c.b16 %v7847, %v7846
        %v7858 = vpack.c.b16 %v7849, %v7848
        %v7859 = vpack.c.b16 %v7851, %v7850
        %7868 = vmatprep.subr.bf16.mxu0 0
        %7869 = vmatpush1.bf16.msra.mxu0 %v7859
        %7870 = vmatprep.subr.bf16.mxu0 0
        %7871 = vmatpush1.bf16.msra.mxu0 %v7858
        %7872 = vmatprep.subr.bf16.mxu0 0
        %7873 = vmatpush1.bf16.msra.mxu0 %v7857
        %7874 = vmatprep.subr.bf16.mxu0 0
        %7875 = vmatpush1.bf16.msra.mxu0 %v7856
        %7876 = vmatprep.subr.bf16.mxu0 0
        %7877 = vmatpush1.bf16.msra.mxu0 %v7855
        %7878 = vmatprep.subr.bf16.mxu0 0
        %7879 = vmatpush1.bf16.msra.mxu0 %v7854
        %7880 = vmatprep.subr.bf16.mxu0 0
        %7881 = vmatpush1.bf16.msra.mxu0 %v7853
        %7882 = vmatprep.subr.bf16.mxu0 0
        %7883 = vmatpush1.bf16.msra.mxu0 %v7852
        %7884 = vmatprep.subr.bf16.mxu0 0
        %7885 = vmatpush2.bf16.msra.mxu0 0
        %7886 = vmatprep.subr.bf16.mxu0 0
        %7887 = vmatpush2.bf16.msra.mxu0 0
        %7888 = vmatprep.subr.bf16.mxu0 0
        %7889 = vmatpush2.bf16.msra.mxu0 0
        %7890 = vmatprep.subr.bf16.mxu0 0
        %7891 = vmatpush2.bf16.msra.mxu0 0
        %7892 = vmatprep.subr.bf16.mxu0 0
        %7893 = vmatpush2.bf16.msra.mxu0 0
        %7894 = vmatprep.subr.bf16.mxu0 0
        %7895 = vmatpush2.bf16.msra.mxu0 0
        %7896 = vmatprep.subr.bf16.mxu0 0
        %7897 = vmatpush2.bf16.msra.mxu0 0
        %7898 = vmatprep.subr.bf16.mxu0 0
        %7899 = vmatpush2.bf16.msra.mxu0 0
        %7900 = vmatprep.mubr.bf16.mxu0 0
        %7901 = vmatmul.mubr.bf16.gmra.mxu0 %v7794
        %v7902 = vpop.f32.mrf.mxu0
        %v7903 = vadd.f32 %v7818, %v7902
        %v7904 = vpop.f32.mrf.mxu0
        %v7905 = vpop.f32.mrf.mxu0
        %v7906 = vpop.f32.mrf.mxu0
        %7907 = vdwg.mxu0
        %v7908 = vadd.f32 %v7903, %v7676
        %v7909 = vld [vmem:[%s19] sm:$0x1]
        %v7910 = vld [vmem:[%s20] sm:$0x1]
        %v7911 = vsel %vm952, %v7908, 0.0
        %7912 = vadd.xlane.f32.xlu0 %v7911
        %v7913 = vpop.xlane.xlu0 %7912
        %v7914 = vmul.f32 %v7913, %v956
        %v7915 = vsub.f32 %v7908, %v7914
        %v7916 = vmul.f32 %v7915, %v7915
        %v7917 = vsel %vm952, %v7916, 0.0
        %7918 = vadd.xlane.f32.xlu0 %v7917
        %v7919 = vpop.xlane.xlu0 %7918
        %v7920 = vmul.f32 %v7919, %v956
        %v7921 = vadd.f32 %v7920, 1e-06
        %v7922 = vrsqrt.pop %v7921
        %v7923 = vmul.f32 %v7915, %v7922
        %v7925 = vlaneseq
        %v7926 = vshrl.u32 %v7925, 7
        %v7927 = vsub.s32 0, %v7926
        %v7928 = vrot.slane %v7909, %v7927
        %v7930 = vmul.f32 %v7923, %v7928
        %v7932 = vlaneseq
        %v7933 = vshrl.u32 %v7932, 7
        %v7934 = vsub.s32 0, %v7933
        %v7935 = vrot.slane %v7910, %v7934
        %v7937 = vadd.f32 %v7930, %v7935
        %v7938 = vpack.c.bf16 %v7937, %v7937
        %v7939 = vld [vmem:[%s21] sm:$0xf]
        %v7940 = vld [vmem:[%s21 + $0x4] sm:$0xf]
        %v7941 = vld [vmem:[%s21 + $0x8] sm:$0xf]
        %v7942 = vld [vmem:[%s21 + $0xc] sm:$0xf]
        %v7943 = vld [vmem:[%s21 + $0x10] sm:$0xf]
        %v7944 = vld [vmem:[%s21 + $0x14] sm:$0xf]
        %v7945 = vld [vmem:[%s21 + $0x18] sm:$0xf]
        %v7946 = vld [vmem:[%s21 + $0x1c] sm:$0xf]
        %v7955 = vunpack.c.l.b16 %v7939
        %v7956 = vunpack.c.l.b16 %v7940
        %v7957 = vunpack.c.l.b16 %v7941
        %v7958 = vunpack.c.l.b16 %v7942
        %v7959 = vunpack.c.l.b16 %v7943
        %v7960 = vunpack.c.l.b16 %v7944
        %v7961 = vunpack.c.l.b16 %v7945
        %v7962 = vunpack.c.l.b16 %v7946
        %v7963 = vpack.c.b16 %v7956, %v7955
        %v7964 = vpack.c.b16 %v7958, %v7957
        %v7965 = vpack.c.b16 %v7960, %v7959
        %v7966 = vpack.c.b16 %v7962, %v7961
        %v7972 = vsel %vm952, %v7938, 0
        %7974 = vmatprep.subr.bf16.mxu0 0
        %7975 = vmatpush1.bf16.msra.mxu0 0
        %7976 = vmatprep.subr.bf16.mxu0 0
        %7977 = vmatpush1.bf16.msra.mxu0 0
        %7978 = vmatprep.subr.bf16.mxu0 0
        %7979 = vmatpush1.bf16.msra.mxu0 0
        %7980 = vmatprep.subr.bf16.mxu0 0
        %7981 = vmatpush1.bf16.msra.mxu0 0
        %7982 = vmatprep.subr.bf16.mxu0 0
        %7983 = vmatpush1.bf16.msra.mxu0 %v7966
        %7984 = vmatprep.subr.bf16.mxu0 0
        %7985 = vmatpush1.bf16.msra.mxu0 %v7965
        %7986 = vmatprep.subr.bf16.mxu0 0
        %7987 = vmatpush1.bf16.msra.mxu0 %v7964
        %7988 = vmatprep.subr.bf16.mxu0 0
        %7989 = vmatpush1.bf16.msra.mxu0 %v7963
        %7990 = vmatprep.subr.bf16.mxu0 0
        %7991 = vmatpush2.bf16.msra.mxu0 0
        %7992 = vmatprep.subr.bf16.mxu0 0
        %7993 = vmatpush2.bf16.msra.mxu0 0
        %7994 = vmatprep.subr.bf16.mxu0 0
        %7995 = vmatpush2.bf16.msra.mxu0 0
        %7996 = vmatprep.subr.bf16.mxu0 0
        %7997 = vmatpush2.bf16.msra.mxu0 0
        %7998 = vmatprep.subr.bf16.mxu0 0
        %7999 = vmatpush2.bf16.msra.mxu0 0
        %8000 = vmatprep.subr.bf16.mxu0 0
        %8001 = vmatpush2.bf16.msra.mxu0 0
        %8002 = vmatprep.subr.bf16.mxu0 0
        %8003 = vmatpush2.bf16.msra.mxu0 0
        %8004 = vmatprep.subr.bf16.mxu0 0
        %8005 = vmatpush2.bf16.msra.mxu0 0
        %8006 = vmatprep.mubr.bf16.mxu0 0
        %8007 = vmatmul.mubr.bf16.gmra.mxu0 %v7972
        %v8008 = vpop.f32.mrf.mxu0
        %v8009 = vadd.f32 0.0, %v8008
        %v8010 = vpop.f32.mrf.mxu0
        %v8011 = vpop.f32.mrf.mxu0
        %v8012 = vpop.f32.mrf.mxu0
        %8013 = vdwg.mxu0
        %8014 = vst [vmem:[%s909] sm:$0xff] %v8009
        %v8015 = vsel %vm952, %v7937, 0.0
        %8016 = vst [vmem:[%s916] sm:$0xff] %v8015
        %s8017 = sand.u32 %s539, 1
        %s8018 = scalar_lea.sflag [#allocation4], %s8017
        %s8019 = sand.u32 %s539, 1
        %s8020 = smul.addr %s8019, 8
        %s8021 = scalar_lea.vmem [#allocation20], %s8020
        %s8022 = sand.u32 %s565, 1
        %s8023 = scalar_lea.sflag [#allocation22], %s8022
        %s8024 = sand.u32 %s565, 1
        %s8025 = smul.addr %s8024, 8
        %s8026 = scalar_lea.vmem [#allocation21], %s8025
        // Predicated region
        $region153: #{transformer_decoder_forward.1} parent=107 // pred_check
          %p8027 = pneg %p549
        $region154: #{transformer_decoder_forward.1} parent=107 // pred_check_branch
          %8029 = sbr.rel (%p8027) target = $region156
        $region155: #{transformer_decoder_forward.1} parent=107 // pred_region
          %s8031 = ssub.s32 128, 128
          %8032 = vsyncadd %s8018, %s8031
          %s8033 = smul.addr %s49, 128
          %s8034 = scalar_lea.hbm %s22, %s8033
          %s8036 = sshll.u32 %s8021, 4
          %s8037 = int_to_ptr.vmem [resolvable:$true] %s8036
          %8039 = dma.vmem_to_hbm [thread:$0]  %s8037, 128, %s8034, %s8018
        $region156: #{transformer_decoder_forward.1} parent=107 // pred_fallthru
          _
        // Predicated region
        $region157: #{transformer_decoder_forward.1} parent=107 // pred_check
          %p8040 = pneg %p575
        $region158: #{transformer_decoder_forward.1} parent=107 // pred_check_branch
          %8042 = sbr.rel (%p8040) target = $region160
        $region159: #{transformer_decoder_forward.1} parent=107 // pred_region
          %s8044 = ssub.s32 128, 128
          %8045 = vsyncadd %s8023, %s8044
          %s8046 = smul.addr %s49, 128
          %s8047 = scalar_lea.hbm %s23, %s8046
          %s8049 = sshll.u32 %s8026, 4
          %s8050 = int_to_ptr.vmem [resolvable:$true] %s8049
          %8052 = dma.vmem_to_hbm [thread:$0]  %s8050, 128, %s8047, %s8023
        $region160: #{transformer_decoder_forward.1} parent=107 // pred_fallthru
          _
      $region108: #{transformer_decoder_forward.1} parent=5 // pred_fallthru
        _
      %p8053 = scmp.le.s32.totalorder 2, %s44
      // Predicated region
      $region161: #{transformer_decoder_forward.1} parent=5 // pred_check
        %p8054 = pneg %p8053
      $region162: #{transformer_decoder_forward.1} parent=5 // pred_check_branch
        %8056 = sbr.rel (%p8054) target = $region164
      $region163: #{transformer_decoder_forward.1} parent=5 // pred_region
        %s8057 = ssub.s32 %s44, 2
        // Predicated region
        $region165: #{transformer_decoder_forward.1} parent=163 // pred_check
          %p8058 = pneg %p555
        $region166: #{transformer_decoder_forward.1} parent=163 // pred_check_branch
          %8060 = sbr.rel (%p8058) target = $region168
        $region167: #{transformer_decoder_forward.1} parent=163 // pred_region
          %s8061 = sand.u32 %s540, 1
          %s8062 = scalar_lea.sflag [#allocation4], %s8061
          %s8063 = sand.u32 %s540, 1
          %s8064 = smul.addr %s8063, 8
          %s8065 = scalar_lea.vmem [#allocation20], %s8064
          %8066 = dma.done %s8062, 128
        $region168: #{transformer_decoder_forward.1} parent=163 // pred_fallthru
          _
        // Predicated region
        $region169: #{transformer_decoder_forward.1} parent=163 // pred_check
          %p8067 = pneg %p581
        $region170: #{transformer_decoder_forward.1} parent=163 // pred_check_branch
          %8069 = sbr.rel (%p8067) target = $region172
        $region171: #{transformer_decoder_forward.1} parent=163 // pred_region
          %s8070 = sand.u32 %s566, 1
          %s8071 = scalar_lea.sflag [#allocation22], %s8070
          %s8072 = sand.u32 %s566, 1
          %s8073 = smul.addr %s8072, 8
          %s8074 = scalar_lea.vmem [#allocation21], %s8073
          %8075 = dma.done %s8071, 128
        $region172: #{transformer_decoder_forward.1} parent=163 // pred_fallthru
          _
      $region164: #{transformer_decoder_forward.1} parent=5 // pred_fallthru
        _
    $region6: #{transformer_decoder_forward.1} parent=1 // loop_footer
      %s48 = sadd.s32 1, %s44
    $region7: #{transformer_decoder_forward.1} parent=1 // loop_footer_branch
      %43 = sbr.rel target = $region3
    $region8: #{transformer_decoder_forward.1} parent=1 // loop_exit
      _
    %8076 = vsyncpa [#allocation3], 1
    %s8077 = scalar_lea.sflag [#allocation3], 1
    %8078 = vsyncpa %s8077, 1
    %8079 = vsyncpa [#allocation6], 1
    %8080 = vsyncpa [#allocation9], 1
    %8081 = vsyncpa [#allocation12], 1
    %8082 = vsyncpa [#allocation15], 1
    %8083 = vsyncpa [#allocation18], 1
    %8084 = vsyncpa [#allocation4], 1
    %s8085 = scalar_lea.sflag [#allocation4], 1
    %8086 = vsyncpa %s8085, 1
    %8087 = vsyncpa [#allocation22], 1
    %s8088 = scalar_lea.sflag [#allocation22], 1
    %8089 = vsyncpa %s8088, 1

</llo_original>
